<compile_context>
chip_gen: v6e
topology: v6e:2x2x1
jax: 0.10.0
libtpu: 0.0.40
codegen_flags: <defaults>
</compile_context>

<pallas_src>
import functools

import numpy as np
import jax
import jax.numpy as jnp
from jax.experimental import pallas as pl
from jax.experimental.pallas import tpu as pltpu

F32 = jnp.float32
BF16 = jnp.bfloat16
VMEM_SPEC = pl.BlockSpec(memory_space=pltpu.MemorySpace.VMEM)

# Model hyper-parameters fixed by the PyTorch module (feature_dim = 32*4*4 =
# 512 must equal d_model for the residual `gate * grn_out + x`).
IN_CH = 6
HW = 5
TIME = 5
SEQ_PAD = 8                       # per-batch row stride (multiple of 8)
D_MODEL = 512
N_HEADS = 4
HEAD_DIM = D_MODEL // N_HEADS
DIM_FF = 128
LN_EPS = 1e-5

# conv tap offsets on the flat 7x7 padded grid, order matches the weight rows
CONV_OFFS = [(dh - 1) * 7 + (dw - 1) for dh in range(3) for dw in range(3)]


def _layernorm(y, w, b):
    mu = jnp.mean(y, axis=-1, keepdims=True)
    var = jnp.mean(jnp.square(y - mu), axis=-1, keepdims=True)
    return (y - mu) * jax.lax.rsqrt(var + LN_EPS) * w + b


def _mm(x, w_ref, b_ref):
    """x @ W + b with bf16 operands and f32 accumulation."""
    w = w_ref[...]
    return jnp.dot(x.astype(w.dtype), w, preferred_element_type=F32) + b_ref[...]


# -----------------------------------------------------------------------------
# Fused forward kernel (gridless: one launch, everything resident in VMEM)
# -----------------------------------------------------------------------------
def _fused_tft_kernel(B,
                      x1_ref, cmask_ref, pscale_ref, bias_ref, pos_ref,
                      tsel_ref, bsel_ref,
                      w1_ref, b1_ref, w2_ref, b2_ref,
                      wgg_ref, bgg_ref, wg2_ref, bg2_ref, lnw_ref, lnb_ref,
                      wqkv_ref, bqkv_ref, wo_ref, bo_ref, ln1w_ref, ln1b_ref,
                      wf1_ref, bf1_ref, wf2_ref, bf2_ref, ln2w_ref, ln2b_ref,
                      hw1_ref, hb1_ref, hw2_ref, hb2_ref,
                      o_ref):
    Np = B * SEQ_PAD              # padded frame count (row stride, multiple of 8)

    # ---- conv1 (6->16): single im2col MXU matmul over all 49 padded positions
    y1 = jnp.dot(x1_ref[...], w1_ref[...], preferred_element_type=F32) + b1_ref[...]
    # ReLU, then zero the padding ring so it acts as conv2's zero padding.
    y1 = (jnp.maximum(y1, 0.0) * cmask_ref[...]).astype(BF16)     # (49*Np, 16)

    # ---- conv2 (16->32): im2col via 9 sublane-aligned shifted views, 1 matmul
    # conv2 is only needed on the contiguous position range [8, 41) which
    # covers the 5x5 interior; every tap read stays inside [0, 49).
    x2 = jnp.concatenate(
        [y1[(8 + off) * Np:(41 + off) * Np, :] for off in CONV_OFFS], axis=1)
    y2 = jnp.dot(x2, w2_ref[...], preferred_element_type=F32) + b2_ref[...]
    y2 = jnp.maximum(y2, 0.0)                                      # (33*Np, 32)

    # ---- AdaptiveAvgPool2d(5->4) = 2x2/stride-1 means (4 aligned shifted adds)
    R3 = 25 * Np
    ps = (y2[0:R3] + y2[Np:R3 + Np] +
          y2[7 * Np:R3 + 7 * Np] + y2[8 * Np:R3 + 8 * Np])         # (25*Np, 32)

    # lane-dense (B*8, 512) feature slab; pool output (h,w) -> lanes (4h+w)*32..
    # (pscale = 0.25 on valid (b,t) rows, 0 on the padded t>=5 rows).
    x16 = jnp.concatenate(
        [ps[(7 * h + w) * Np:(7 * h + w + 1) * Np, :]
         for h in range(4) for w in range(4)], axis=1) * pscale_ref[...]

    # ---- GRN + sigmoid gate + residual + LayerNorm + positional embedding ----
    gg = _mm(x16, wgg_ref, bgg_ref)                  # fused [grn_w1 | gate_w]
    grn = _mm(jnp.maximum(gg[:, :D_MODEL], 0.0), wg2_ref, bg2_ref)
    gate = 1.0 / (1.0 + jnp.exp(-gg[:, D_MODEL:]))
    y = _layernorm(gate * grn + x16, lnw_ref[...], lnb_ref[...]) + pos_ref[...]

    # ---- transformer encoder layer (post-norm, ReLU FF, eval dropout) --------
    qkv = _mm(y, wqkv_ref, bqkv_ref)                 # fused [q|k|v], q pre-scaled
    bias = bias_ref[...]                             # block-diag batch + key-pad mask
    attn = jnp.zeros((Np, D_MODEL), F32) + bo_ref[...]
    for h in range(N_HEADS):
        c0 = h * HEAD_DIM
        qh = qkv[:, c0:c0 + HEAD_DIM].astype(BF16)
        kh = qkv[:, D_MODEL + c0:D_MODEL + c0 + HEAD_DIM].astype(BF16)
        vh = qkv[:, 2 * D_MODEL + c0:2 * D_MODEL + c0 + HEAD_DIM].astype(BF16)
        s = jax.lax.dot_general(qh, kh, (((1,), (1,)), ((), ())),
                                preferred_element_type=F32) + bias
        e = jnp.exp(s - jnp.max(s, axis=-1, keepdims=True))
        p = (e * pl.reciprocal(jnp.sum(e, axis=-1, keepdims=True),
                               approx=True)).astype(BF16)
        hv = jnp.dot(p, vh, preferred_element_type=F32).astype(BF16)
        # head-concat fused into the output projection (128-aligned K slices)
        attn = attn + jnp.dot(hv, wo_ref[c0:c0 + HEAD_DIM, :],
                              preferred_element_type=F32)
    y = _layernorm(y + attn, ln1w_ref[...], ln1b_ref[...])
    ff = jnp.maximum(_mm(y, wf1_ref, bf1_ref), 0.0)
    y = _layernorm(y + _mm(ff, wf2_ref, bf2_ref), ln2w_ref[...], ln2b_ref[...])

    # ---- head: one stacked matmul (512 -> T*64), t-select masks, batch reduce
    z = jnp.dot(y.astype(BF16), hw1_ref[...], preferred_element_type=F32)  # (Np, T*64)
    sel = jnp.zeros((Np, 64), F32)
    for t in range(TIME):
        sel = sel + z[:, t * 64:(t + 1) * 64] * tsel_ref[:, t:t + 1]
    h1 = jnp.maximum(jnp.dot(bsel_ref[...], sel, preferred_element_type=F32)
                     + hb1_ref[...], 0.0)                                   # (B, 64)
    o_ref[...] = (jnp.sum(h1 * hw2_ref[...], axis=1, keepdims=True)
                  + hb2_ref[...])                                           # (B, 1)


# -----------------------------------------------------------------------------
# Static masks / layout constants (compile-time, depend only on B)
# -----------------------------------------------------------------------------
def _ring_mask(Np):
    p = np.arange(49 * Np) // Np
    i, j = p // 7, p % 7
    m = ((i >= 1) & (i <= 5) & (j >= 1) & (j <= 5)).astype(np.float32)
    return jnp.asarray(m[:, None])                   # (49*Np, 1)


def _pool_scale(B):
    r = np.arange(B * SEQ_PAD)
    m = np.where(r % SEQ_PAD < TIME, 0.25, 0.0).astype(np.float32)
    return jnp.asarray(m[:, None])                   # (Np, 1): 0.25 / 0 (pad rows)


def _attn_bias(B):
    r = np.arange(B * SEQ_PAD)
    same = (r[:, None] // SEQ_PAD) == (r[None, :] // SEQ_PAD)
    valid = (r[None, :] % SEQ_PAD) < TIME
    return jnp.asarray(np.where(same & valid, 0.0, -1e30).astype(np.float32))


def _time_select(B):
    r = np.arange(B * SEQ_PAD)
    m = (r[:, None] % SEQ_PAD == np.arange(TIME)[None, :]).astype(np.float32)
    return jnp.asarray(m)                            # (Np, TIME)


def _batch_select(B):
    r = np.arange(B * SEQ_PAD)
    m = ((r[None, :] // SEQ_PAD == np.arange(B)[:, None]) &
         (r[None, :] % SEQ_PAD < TIME)).astype(np.float32)
    return jnp.asarray(m)                            # (B, Np)


def _im2col_conv1(x):
    """(B,C,5,5,T) -> (49*Np, 54) bf16 im2col, position-major, frame n=b*8+t."""
    B = x.shape[0]
    Np = B * SEQ_PAD
    xs = jnp.transpose(x.astype(F32), (0, 4, 2, 3, 1))            # (B,T,H,W,C)
    xs = jnp.pad(xs, ((0, 0), (0, SEQ_PAD - TIME), (2, 2), (2, 2), (0, 0)))
    xs = xs.reshape(Np, HW + 4, HW + 4, IN_CH)                    # (Np, 9, 9, C)
    taps = [xs[:, dh:dh + 7, dw:dw + 7, :] for dh in range(3) for dw in range(3)]
    col = jnp.concatenate(taps, axis=-1)                          # (Np, 7, 7, 54)
    col = jnp.transpose(col, (1, 2, 0, 3)).reshape(49 * Np, 9 * IN_CH)
    return col.astype(BF16)


# -----------------------------------------------------------------------------
# Forward wrapper: one fused pallas_call (host side is layout plumbing only)
# -----------------------------------------------------------------------------
def simple_tft_forward(params, x):
    B, C, H, W, T = x.shape
    assert (C, H, W, T) == (IN_CH, HW, HW, TIME)
    Np = B * SEQ_PAD

    x1col = _im2col_conv1(x)
    pos_t = jnp.tile(params['pos8'], (B, 1))         # (Np, 512) pre-tiled pos

    out = pl.pallas_call(
        functools.partial(_fused_tft_kernel, B),
        out_shape=jax.ShapeDtypeStruct((B, 1), F32),
        in_specs=[VMEM_SPEC] * 33,
        out_specs=VMEM_SPEC,
    )(x1col, _ring_mask(Np), _pool_scale(B), _attn_bias(B), pos_t,
      _time_select(B), _batch_select(B),
      params['w1'], params['b1'], params['w2'], params['b2'],
      params['w_gg'], params['b_gg'], params['grn_w2'], params['grn_b2'],
      params['ln_w'], params['ln_b'],
      params['wqkv'], params['bqkv'], params['wo'], params['bo'],
      params['ln1_w'], params['ln1_b'],
      params['wf1'], params['bf1'], params['wf2'], params['bf2'],
      params['ln2_w'], params['ln2_b'],
      params['hw1'], params['hb1'], params['hw2'], params['hb2'])
    return out[:, 0]                                  # .squeeze() -> (B,)


# -----------------------------------------------------------------------------
# Parameters: synthetic init in PyTorch layout + conversion to kernel layout
# -----------------------------------------------------------------------------
def init_params(key):
    ks = iter(jax.random.split(key, 40))

    def w(shape, scale=0.05):
        return (scale * jax.random.normal(next(ks), shape)).astype(F32)

    return {
        'conv1_w': w((16, IN_CH, 3, 3)), 'conv1_b': w((16,)),
        'conv2_w': w((32, 16, 3, 3)),    'conv2_b': w((32,)),
        'grn_w1': w((D_MODEL, D_MODEL)), 'grn_b1': w((D_MODEL,)),
        'grn_w2': w((D_MODEL, D_MODEL)), 'grn_b2': w((D_MODEL,)),
        'gate_w': w((D_MODEL, D_MODEL)), 'gate_b': w((D_MODEL,)),
        'ln_w': jnp.ones((D_MODEL,), F32), 'ln_b': jnp.zeros((D_MODEL,), F32),
        'pos': w((TIME, D_MODEL), scale=1.0),
        'in_proj_w': w((3 * D_MODEL, D_MODEL)), 'in_proj_b': w((3 * D_MODEL,)),
        'out_proj_w': w((D_MODEL, D_MODEL)),    'out_proj_b': w((D_MODEL,)),
        'ln1_w': jnp.ones((D_MODEL,), F32), 'ln1_b': jnp.zeros((D_MODEL,), F32),
        'ff1_w': w((DIM_FF, D_MODEL)), 'ff1_b': w((DIM_FF,)),
        'ff2_w': w((D_MODEL, DIM_FF)), 'ff2_b': w((D_MODEL,)),
        'ln2_w': jnp.ones((D_MODEL,), F32), 'ln2_b': jnp.zeros((D_MODEL,), F32),
        'head1_w': w((64, TIME * D_MODEL)), 'head1_b': w((64,)),
        'head2_w': w((1, 64)),              'head2_b': w((1,)),
    }


def prepare_params(p):
    """PyTorch-layout params -> fused / permuted / bf16 kernel-layout params."""
    # Kernel feature order is (pool-pos q, channel c); PyTorch flattens (c, q).
    # Absorb the difference by permuting the d_model basis of every weight that
    # touches the d_model residual stream.
    q = np.arange(16)
    c = np.arange(32)
    perm = (c[None, :] * 16 + q[:, None]).reshape(-1)   # perm[q*32+c] = c*16+q

    def lin(wt):                 # torch (out, in) -> (in, out)
        return jnp.asarray(wt).T

    def row(v):                  # vector -> (1, dim)
        return jnp.asarray(v)[None, :]

    def in_p(wt):                # permute d_model input rows
        return lin(wt)[perm, :]

    def out_p(w):                # permute d_model output columns of (in, out)
        return w[:, perm]

    scale = 1.0 / float(HEAD_DIM) ** 0.5
    wq, wk, wv = (p['in_proj_w'][i * D_MODEL:(i + 1) * D_MODEL] for i in range(3))
    bq, bk, bv = (p['in_proj_b'][i * D_MODEL:(i + 1) * D_MODEL] for i in range(3))

    # head W1 stacked as (512, TIME*64): column block t = weight for time step t
    hw1 = lin(p['head1_w']).reshape(TIME, D_MODEL, 64)[:, perm, :]
    hw1 = jnp.transpose(hw1, (1, 0, 2)).reshape(D_MODEL, TIME * 64)

    return {
        # conv weights flattened for im2col: row = (kh*3+kw)*Cin + cin, bf16
        'w1': jnp.transpose(p['conv1_w'], (2, 3, 1, 0)).reshape(9 * IN_CH, 16).astype(BF16),
        'b1': row(p['conv1_b']),
        'w2': jnp.transpose(p['conv2_w'], (2, 3, 1, 0)).reshape(9 * 16, 32).astype(BF16),
        'b2': row(p['conv2_b']),
        # fused [grn_w1 | gate_w]
        'w_gg': jnp.concatenate([in_p(p['grn_w1']),
                                 out_p(in_p(p['gate_w']))], axis=1).astype(BF16),
        'b_gg': jnp.concatenate([jnp.asarray(p['grn_b1']),
                                 jnp.asarray(p['gate_b'])[perm]])[None, :],
        'grn_w2': out_p(lin(p['grn_w2'])).astype(BF16),
        'grn_b2': row(jnp.asarray(p['grn_b2'])[perm]),
        'ln_w': row(jnp.asarray(p['ln_w'])[perm]),
        'ln_b': row(jnp.asarray(p['ln_b'])[perm]),
        'pos8': jnp.pad(jnp.asarray(p['pos'])[:, perm],
                        ((0, SEQ_PAD - TIME), (0, 0))),
        # fused [wq | wk | wv], attention scale folded into q
        'wqkv': jnp.concatenate([in_p(wq) * scale, in_p(wk), in_p(wv)],
                                axis=1).astype(BF16),
        'bqkv': jnp.concatenate([jnp.asarray(bq) * scale,
                                 jnp.asarray(bk), jnp.asarray(bv)])[None, :],
        'wo': out_p(lin(p['out_proj_w'])).astype(BF16),
        'bo': row(jnp.asarray(p['out_proj_b'])[perm]),
        'ln1_w': row(jnp.asarray(p['ln1_w'])[perm]),
        'ln1_b': row(jnp.asarray(p['ln1_b'])[perm]),
        'wf1': in_p(p['ff1_w']).astype(BF16), 'bf1': row(p['ff1_b']),
        'wf2': out_p(lin(p['ff2_w'])).astype(BF16),
        'bf2': row(jnp.asarray(p['ff2_b'])[perm]),
        'ln2_w': row(jnp.asarray(p['ln2_w'])[perm]),
        'ln2_b': row(jnp.asarray(p['ln2_b'])[perm]),
        'hw1': hw1.astype(BF16), 'hb1': row(p['head1_b']),
        'hw2': row(jnp.asarray(p['head2_w'])[0]),      # (1, 64) f32
        'hb2': row(p['head2_b']),
    }


if __name__ == "__main__":
    key = jax.random.PRNGKey(0)
    pkey, xkey = jax.random.split(key)
    params = prepare_params(init_params(pkey))

    B = 2
    x = jax.random.normal(xkey, (B, IN_CH, HW, HW, TIME), dtype=F32)

    out = jax.block_until_ready(jax.jit(simple_tft_forward)(params, x))
    assert out.shape == (B,), out.shape
    assert bool(jnp.all(jnp.isfinite(out)))
    print("KERNEL_OK")
</pallas_src>

<mosaic_0001>
module attributes {stable_mosaic.version = 11 : i64} {
  func.func @_fused_tft_kernel(%arg0: memref<784x54xbf16, #tpu.memory_space<vmem>>, %arg1: memref<784x1xf32, #tpu.memory_space<vmem>>, %arg2: memref<16x1xf32, #tpu.memory_space<vmem>>, %arg3: memref<16x16xf32, #tpu.memory_space<vmem>>, %arg4: memref<16x512xf32, #tpu.memory_space<vmem>>, %arg5: memref<16x5xf32, #tpu.memory_space<vmem>>, %arg6: memref<2x16xf32, #tpu.memory_space<vmem>>, %arg7: memref<54x16xbf16, #tpu.memory_space<vmem>>, %arg8: memref<1x16xf32, #tpu.memory_space<vmem>>, %arg9: memref<144x32xbf16, #tpu.memory_space<vmem>>, %arg10: memref<1x32xf32, #tpu.memory_space<vmem>>, %arg11: memref<512x1024xbf16, #tpu.memory_space<vmem>>, %arg12: memref<1x1024xf32, #tpu.memory_space<vmem>>, %arg13: memref<512x512xbf16, #tpu.memory_space<vmem>>, %arg14: memref<1x512xf32, #tpu.memory_space<vmem>>, %arg15: memref<1x512xf32, #tpu.memory_space<vmem>>, %arg16: memref<1x512xf32, #tpu.memory_space<vmem>>, %arg17: memref<512x1536xbf16, #tpu.memory_space<vmem>>, %arg18: memref<1x1536xf32, #tpu.memory_space<vmem>>, %arg19: memref<512x512xbf16, #tpu.memory_space<vmem>>, %arg20: memref<1x512xf32, #tpu.memory_space<vmem>>, %arg21: memref<1x512xf32, #tpu.memory_space<vmem>>, %arg22: memref<1x512xf32, #tpu.memory_space<vmem>>, %arg23: memref<512x128xbf16, #tpu.memory_space<vmem>>, %arg24: memref<1x128xf32, #tpu.memory_space<vmem>>, %arg25: memref<128x512xbf16, #tpu.memory_space<vmem>>, %arg26: memref<1x512xf32, #tpu.memory_space<vmem>>, %arg27: memref<1x512xf32, #tpu.memory_space<vmem>>, %arg28: memref<1x512xf32, #tpu.memory_space<vmem>>, %arg29: memref<512x320xbf16, #tpu.memory_space<vmem>>, %arg30: memref<1x64xf32, #tpu.memory_space<vmem>>, %arg31: memref<1x64xf32, #tpu.memory_space<vmem>>, %arg32: memref<1x1xf32, #tpu.memory_space<vmem>>, %arg33: memref<2x1xf32, #tpu.memory_space<vmem>>) attributes {dimension_semantics = [], scalar_prefetch = 0 : i64, scratch_operands = 0 : i64, tpu.core_type = #tpu.core_type<tc>} {
    %c0 = arith.constant 0 : index
    %c0_0 = arith.constant 0 : index
    %0 = vector.load %arg0[%c0, %c0_0] : memref<784x54xbf16, #tpu.memory_space<vmem>>, vector<784x54xbf16>
    %c0_1 = arith.constant 0 : index
    %c0_2 = arith.constant 0 : index
    %1 = vector.load %arg7[%c0_1, %c0_2] : memref<54x16xbf16, #tpu.memory_space<vmem>>, vector<54x16xbf16>
    %cst = arith.constant dense<0.000000e+00> : vector<784x16xf32>
    %2 = tpu.matmul %0, %1, %cst {dimension_numbers = #tpu.dot_dimension_numbers<[1], [0], [0], [1], [0, 0, 1, 1], [], []>} : vector<784x54xbf16>, vector<54x16xbf16>, vector<784x16xf32> -> vector<784x16xf32>
    %c0_3 = arith.constant 0 : index
    %c0_4 = arith.constant 0 : index
    %3 = vector.load %arg8[%c0_3, %c0_4] : memref<1x16xf32, #tpu.memory_space<vmem>>, vector<1x16xf32>
    %4 = vector.broadcast %3 : vector<1x16xf32> to vector<784x16xf32>
    %5 = arith.addf %2, %4 : vector<784x16xf32>
    %cst_5 = arith.constant 0.000000e+00 : f32
    %6 = vector.broadcast %cst_5 : f32 to vector<784x16xf32>
    %7 = arith.maximumf %5, %6 : vector<784x16xf32>
    %c0_6 = arith.constant 0 : index
    %c0_7 = arith.constant 0 : index
    %8 = vector.load %arg1[%c0_6, %c0_7] : memref<784x1xf32, #tpu.memory_space<vmem>>, vector<784x1xf32>
    %9 = vector.broadcast %8 : vector<784x1xf32> to vector<784x16xf32>
    %10 = arith.mulf %7, %9 : vector<784x16xf32>
    %11 = arith.truncf %10 : vector<784x16xf32> to vector<784x16xbf16>
    %12 = vector.extract_strided_slice %11 {offsets = [0, 0], sizes = [528, 16], strides = [1, 1]} : vector<784x16xbf16> to vector<528x16xbf16>
    %13 = vector.extract_strided_slice %11 {offsets = [16, 0], sizes = [528, 16], strides = [1, 1]} : vector<784x16xbf16> to vector<528x16xbf16>
    %14 = vector.extract_strided_slice %11 {offsets = [32, 0], sizes = [528, 16], strides = [1, 1]} : vector<784x16xbf16> to vector<528x16xbf16>
    %15 = vector.extract_strided_slice %11 {offsets = [112, 0], sizes = [528, 16], strides = [1, 1]} : vector<784x16xbf16> to vector<528x16xbf16>
    %16 = vector.extract_strided_slice %11 {offsets = [128, 0], sizes = [528, 16], strides = [1, 1]} : vector<784x16xbf16> to vector<528x16xbf16>
    %17 = vector.extract_strided_slice %11 {offsets = [144, 0], sizes = [528, 16], strides = [1, 1]} : vector<784x16xbf16> to vector<528x16xbf16>
    %18 = vector.extract_strided_slice %11 {offsets = [224, 0], sizes = [528, 16], strides = [1, 1]} : vector<784x16xbf16> to vector<528x16xbf16>
    %19 = vector.extract_strided_slice %11 {offsets = [240, 0], sizes = [528, 16], strides = [1, 1]} : vector<784x16xbf16> to vector<528x16xbf16>
    %20 = vector.extract_strided_slice %11 {offsets = [256, 0], sizes = [528, 16], strides = [1, 1]} : vector<784x16xbf16> to vector<528x16xbf16>
    %21 = tpu.concatenate %12, %13, %14, %15, %16, %17, %18, %19, %20 in 1 : vector<528x16xbf16>, vector<528x16xbf16>, vector<528x16xbf16>, vector<528x16xbf16>, vector<528x16xbf16>, vector<528x16xbf16>, vector<528x16xbf16>, vector<528x16xbf16>, vector<528x16xbf16> -> vector<528x144xbf16>
    %c0_8 = arith.constant 0 : index
    %c0_9 = arith.constant 0 : index
    %22 = vector.load %arg9[%c0_8, %c0_9] : memref<144x32xbf16, #tpu.memory_space<vmem>>, vector<144x32xbf16>
    %cst_10 = arith.constant dense<0.000000e+00> : vector<528x32xf32>
    %23 = tpu.matmul %21, %22, %cst_10 {dimension_numbers = #tpu.dot_dimension_numbers<[1], [0], [0], [1], [0, 0, 1, 1], [], []>} : vector<528x144xbf16>, vector<144x32xbf16>, vector<528x32xf32> -> vector<528x32xf32>
    %c0_11 = arith.constant 0 : index
    %c0_12 = arith.constant 0 : index
    %24 = vector.load %arg10[%c0_11, %c0_12] : memref<1x32xf32, #tpu.memory_space<vmem>>, vector<1x32xf32>
    %25 = vector.broadcast %24 : vector<1x32xf32> to vector<528x32xf32>
    %26 = arith.addf %23, %25 : vector<528x32xf32>
    %cst_13 = arith.constant 0.000000e+00 : f32
    %27 = vector.broadcast %cst_13 : f32 to vector<528x32xf32>
    %28 = arith.maximumf %26, %27 : vector<528x32xf32>
    %29 = vector.extract_strided_slice %28 {offsets = [0, 0], sizes = [400, 32], strides = [1, 1]} : vector<528x32xf32> to vector<400x32xf32>
    %30 = vector.extract_strided_slice %28 {offsets = [16, 0], sizes = [400, 32], strides = [1, 1]} : vector<528x32xf32> to vector<400x32xf32>
    %31 = arith.addf %29, %30 : vector<400x32xf32>
    %32 = vector.extract_strided_slice %28 {offsets = [112, 0], sizes = [400, 32], strides = [1, 1]} : vector<528x32xf32> to vector<400x32xf32>
    %33 = arith.addf %31, %32 : vector<400x32xf32>
    %34 = vector.extract_strided_slice %28 {offsets = [128, 0], sizes = [400, 32], strides = [1, 1]} : vector<528x32xf32> to vector<400x32xf32>
    %35 = arith.addf %33, %34 : vector<400x32xf32>
    %36 = vector.extract_strided_slice %35 {offsets = [0, 0], sizes = [16, 32], strides = [1, 1]} : vector<400x32xf32> to vector<16x32xf32>
    %37 = vector.extract_strided_slice %35 {offsets = [16, 0], sizes = [16, 32], strides = [1, 1]} : vector<400x32xf32> to vector<16x32xf32>
    %38 = vector.extract_strided_slice %35 {offsets = [32, 0], sizes = [16, 32], strides = [1, 1]} : vector<400x32xf32> to vector<16x32xf32>
    %39 = vector.extract_strided_slice %35 {offsets = [48, 0], sizes = [16, 32], strides = [1, 1]} : vector<400x32xf32> to vector<16x32xf32>
    %40 = vector.extract_strided_slice %35 {offsets = [112, 0], sizes = [16, 32], strides = [1, 1]} : vector<400x32xf32> to vector<16x32xf32>
    %41 = vector.extract_strided_slice %35 {offsets = [128, 0], sizes = [16, 32], strides = [1, 1]} : vector<400x32xf32> to vector<16x32xf32>
    %42 = vector.extract_strided_slice %35 {offsets = [144, 0], sizes = [16, 32], strides = [1, 1]} : vector<400x32xf32> to vector<16x32xf32>
    %43 = vector.extract_strided_slice %35 {offsets = [160, 0], sizes = [16, 32], strides = [1, 1]} : vector<400x32xf32> to vector<16x32xf32>
    %44 = vector.extract_strided_slice %35 {offsets = [224, 0], sizes = [16, 32], strides = [1, 1]} : vector<400x32xf32> to vector<16x32xf32>
    %45 = vector.extract_strided_slice %35 {offsets = [240, 0], sizes = [16, 32], strides = [1, 1]} : vector<400x32xf32> to vector<16x32xf32>
    %46 = vector.extract_strided_slice %35 {offsets = [256, 0], sizes = [16, 32], strides = [1, 1]} : vector<400x32xf32> to vector<16x32xf32>
    %47 = vector.extract_strided_slice %35 {offsets = [272, 0], sizes = [16, 32], strides = [1, 1]} : vector<400x32xf32> to vector<16x32xf32>
    %48 = vector.extract_strided_slice %35 {offsets = [336, 0], sizes = [16, 32], strides = [1, 1]} : vector<400x32xf32> to vector<16x32xf32>
    %49 = vector.extract_strided_slice %35 {offsets = [352, 0], sizes = [16, 32], strides = [1, 1]} : vector<400x32xf32> to vector<16x32xf32>
    %50 = vector.extract_strided_slice %35 {offsets = [368, 0], sizes = [16, 32], strides = [1, 1]} : vector<400x32xf32> to vector<16x32xf32>
    %51 = vector.extract_strided_slice %35 {offsets = [384, 0], sizes = [16, 32], strides = [1, 1]} : vector<400x32xf32> to vector<16x32xf32>
    %52 = tpu.concatenate %36, %37, %38, %39, %40, %41, %42, %43, %44, %45, %46, %47, %48, %49, %50, %51 in 1 : vector<16x32xf32>, vector<16x32xf32>, vector<16x32xf32>, vector<16x32xf32>, vector<16x32xf32>, vector<16x32xf32>, vector<16x32xf32>, vector<16x32xf32>, vector<16x32xf32>, vector<16x32xf32>, vector<16x32xf32>, vector<16x32xf32>, vector<16x32xf32>, vector<16x32xf32>, vector<16x32xf32>, vector<16x32xf32> -> vector<16x512xf32>
    %c0_14 = arith.constant 0 : index
    %c0_15 = arith.constant 0 : index
    %53 = vector.load %arg2[%c0_14, %c0_15] : memref<16x1xf32, #tpu.memory_space<vmem>>, vector<16x1xf32>
    %54 = vector.broadcast %53 : vector<16x1xf32> to vector<16x512xf32>
    %55 = arith.mulf %52, %54 : vector<16x512xf32>
    %c0_16 = arith.constant 0 : index
    %c0_17 = arith.constant 0 : index
    %56 = vector.load %arg11[%c0_16, %c0_17] : memref<512x1024xbf16, #tpu.memory_space<vmem>>, vector<512x1024xbf16>
    %57 = arith.truncf %55 : vector<16x512xf32> to vector<16x512xbf16>
    %cst_18 = arith.constant dense<0.000000e+00> : vector<16x1024xf32>
    %58 = tpu.matmul %57, %56, %cst_18 {dimension_numbers = #tpu.dot_dimension_numbers<[1], [0], [0], [1], [0, 0, 1, 1], [], []>} : vector<16x512xbf16>, vector<512x1024xbf16>, vector<16x1024xf32> -> vector<16x1024xf32>
    %c0_19 = arith.constant 0 : index
    %c0_20 = arith.constant 0 : index
    %59 = vector.load %arg12[%c0_19, %c0_20] : memref<1x1024xf32, #tpu.memory_space<vmem>>, vector<1x1024xf32>
    %60 = vector.broadcast %59 : vector<1x1024xf32> to vector<16x1024xf32>
    %61 = arith.addf %58, %60 : vector<16x1024xf32>
    %62 = vector.extract_strided_slice %61 {offsets = [0, 0], sizes = [16, 512], strides = [1, 1]} : vector<16x1024xf32> to vector<16x512xf32>
    %cst_21 = arith.constant 0.000000e+00 : f32
    %63 = vector.broadcast %cst_21 : f32 to vector<16x512xf32>
    %64 = arith.maximumf %62, %63 : vector<16x512xf32>
    %c0_22 = arith.constant 0 : index
    %c0_23 = arith.constant 0 : index
    %65 = vector.load %arg13[%c0_22, %c0_23] : memref<512x512xbf16, #tpu.memory_space<vmem>>, vector<512x512xbf16>
    %66 = arith.truncf %64 : vector<16x512xf32> to vector<16x512xbf16>
    %cst_24 = arith.constant dense<0.000000e+00> : vector<16x512xf32>
    %67 = tpu.matmul %66, %65, %cst_24 {dimension_numbers = #tpu.dot_dimension_numbers<[1], [0], [0], [1], [0, 0, 1, 1], [], []>} : vector<16x512xbf16>, vector<512x512xbf16>, vector<16x512xf32> -> vector<16x512xf32>
    %c0_25 = arith.constant 0 : index
    %c0_26 = arith.constant 0 : index
    %68 = vector.load %arg14[%c0_25, %c0_26] : memref<1x512xf32, #tpu.memory_space<vmem>>, vector<1x512xf32>
    %69 = vector.broadcast %68 : vector<1x512xf32> to vector<16x512xf32>
    %70 = arith.addf %67, %69 : vector<16x512xf32>
    %71 = vector.extract_strided_slice %61 {offsets = [0, 512], sizes = [16, 512], strides = [1, 1]} : vector<16x1024xf32> to vector<16x512xf32>
    %cst_27 = arith.constant 0.000000e+00 : f32
    %72 = vector.broadcast %cst_27 : f32 to vector<16x512xf32>
    %73 = arith.subf %72, %71 : vector<16x512xf32>
    %74 = math.exp %73 : vector<16x512xf32>
    %cst_28 = arith.constant 1.000000e+00 : f32
    %75 = vector.broadcast %cst_28 : f32 to vector<16x512xf32>
    %76 = arith.addf %75, %74 : vector<16x512xf32>
    %cst_29 = arith.constant 1.000000e+00 : f32
    %77 = vector.broadcast %cst_29 : f32 to vector<16x512xf32>
    %78 = arith.divf %77, %76 : vector<16x512xf32>
    %79 = arith.mulf %78, %70 : vector<16x512xf32>
    %80 = arith.addf %79, %55 : vector<16x512xf32>
    %c0_30 = arith.constant 0 : index
    %c0_31 = arith.constant 0 : index
    %81 = vector.load %arg15[%c0_30, %c0_31] : memref<1x512xf32, #tpu.memory_space<vmem>>, vector<1x512xf32>
    %c0_32 = arith.constant 0 : index
    %c0_33 = arith.constant 0 : index
    %82 = vector.load %arg16[%c0_32, %c0_33] : memref<1x512xf32, #tpu.memory_space<vmem>>, vector<1x512xf32>
    %cst_34 = arith.constant dense<0.000000e+00> : vector<16xf32>
    %83 = vector.multi_reduction <add>, %80, %cst_34 [1] : vector<16x512xf32> to vector<16xf32>
    %84 = vector.shape_cast %83 : vector<16xf32> to vector<16x1xf32>
    %cst_35 = arith.constant 5.120000e+02 : f32
    %85 = vector.broadcast %cst_35 : f32 to vector<16x1xf32>
    %86 = arith.divf %84, %85 : vector<16x1xf32>
    %87 = vector.broadcast %86 : vector<16x1xf32> to vector<16x512xf32>
    %88 = arith.subf %80, %87 : vector<16x512xf32>
    %89 = arith.mulf %88, %88 : vector<16x512xf32>
    %cst_36 = arith.constant dense<0.000000e+00> : vector<16xf32>
    %90 = vector.multi_reduction <add>, %89, %cst_36 [1] : vector<16x512xf32> to vector<16xf32>
    %91 = vector.shape_cast %90 : vector<16xf32> to vector<16x1xf32>
    %cst_37 = arith.constant 5.120000e+02 : f32
    %92 = vector.broadcast %cst_37 : f32 to vector<16x1xf32>
    %93 = arith.divf %91, %92 : vector<16x1xf32>
    %94 = vector.broadcast %86 : vector<16x1xf32> to vector<16x512xf32>
    %95 = arith.subf %80, %94 : vector<16x512xf32>
    %cst_38 = arith.constant 9.99999974E-6 : f32
    %96 = vector.broadcast %cst_38 : f32 to vector<16x1xf32>
    %97 = arith.addf %93, %96 : vector<16x1xf32>
    %98 = math.rsqrt %97 : vector<16x1xf32>
    %99 = vector.broadcast %98 : vector<16x1xf32> to vector<16x512xf32>
    %100 = arith.mulf %95, %99 : vector<16x512xf32>
    %101 = vector.broadcast %81 : vector<1x512xf32> to vector<16x512xf32>
    %102 = arith.mulf %100, %101 : vector<16x512xf32>
    %103 = vector.broadcast %82 : vector<1x512xf32> to vector<16x512xf32>
    %104 = arith.addf %102, %103 : vector<16x512xf32>
    %c0_39 = arith.constant 0 : index
    %c0_40 = arith.constant 0 : index
    %105 = vector.load %arg4[%c0_39, %c0_40] : memref<16x512xf32, #tpu.memory_space<vmem>>, vector<16x512xf32>
    %106 = arith.addf %104, %105 : vector<16x512xf32>
    %c0_41 = arith.constant 0 : index
    %c0_42 = arith.constant 0 : index
    %107 = vector.load %arg17[%c0_41, %c0_42] : memref<512x1536xbf16, #tpu.memory_space<vmem>>, vector<512x1536xbf16>
    %108 = arith.truncf %106 : vector<16x512xf32> to vector<16x512xbf16>
    %cst_43 = arith.constant dense<0.000000e+00> : vector<16x1536xf32>
    %109 = tpu.matmul %108, %107, %cst_43 {dimension_numbers = #tpu.dot_dimension_numbers<[1], [0], [0], [1], [0, 0, 1, 1], [], []>} : vector<16x512xbf16>, vector<512x1536xbf16>, vector<16x1536xf32> -> vector<16x1536xf32>
    %c0_44 = arith.constant 0 : index
    %c0_45 = arith.constant 0 : index
    %110 = vector.load %arg18[%c0_44, %c0_45] : memref<1x1536xf32, #tpu.memory_space<vmem>>, vector<1x1536xf32>
    %111 = vector.broadcast %110 : vector<1x1536xf32> to vector<16x1536xf32>
    %112 = arith.addf %109, %111 : vector<16x1536xf32>
    %c0_46 = arith.constant 0 : index
    %c0_47 = arith.constant 0 : index
    %113 = vector.load %arg3[%c0_46, %c0_47] : memref<16x16xf32, #tpu.memory_space<vmem>>, vector<16x16xf32>
    %cst_48 = arith.constant 0.000000e+00 : f32
    %114 = vector.broadcast %cst_48 : f32 to vector<16x512xf32>
    %c0_49 = arith.constant 0 : index
    %c0_50 = arith.constant 0 : index
    %115 = vector.load %arg20[%c0_49, %c0_50] : memref<1x512xf32, #tpu.memory_space<vmem>>, vector<1x512xf32>
    %116 = vector.broadcast %115 : vector<1x512xf32> to vector<16x512xf32>
    %117 = arith.addf %114, %116 : vector<16x512xf32>
    %118 = vector.extract_strided_slice %112 {offsets = [0, 0], sizes = [16, 128], strides = [1, 1]} : vector<16x1536xf32> to vector<16x128xf32>
    %119 = arith.truncf %118 : vector<16x128xf32> to vector<16x128xbf16>
    %120 = vector.extract_strided_slice %112 {offsets = [0, 512], sizes = [16, 128], strides = [1, 1]} : vector<16x1536xf32> to vector<16x128xf32>
    %121 = arith.truncf %120 : vector<16x128xf32> to vector<16x128xbf16>
    %122 = vector.extract_strided_slice %112 {offsets = [0, 1024], sizes = [16, 128], strides = [1, 1]} : vector<16x1536xf32> to vector<16x128xf32>
    %123 = arith.truncf %122 : vector<16x128xf32> to vector<16x128xbf16>
    %cst_51 = arith.constant dense<0.000000e+00> : vector<16x16xf32>
    %124 = tpu.matmul %119, %121, %cst_51 {dimension_numbers = #tpu.dot_dimension_numbers<[1], [1], [0], [0], [0, 0, 1, 0], [], []>} : vector<16x128xbf16>, vector<16x128xbf16>, vector<16x16xf32> -> vector<16x16xf32>
    %125 = arith.addf %124, %113 : vector<16x16xf32>
    %cst_52 = arith.constant dense<0xFF800000> : vector<16xf32>
    %126 = vector.multi_reduction <maximumf>, %125, %cst_52 [1] : vector<16x16xf32> to vector<16xf32>
    %127 = vector.shape_cast %126 : vector<16xf32> to vector<16x1xf32>
    %128 = vector.broadcast %127 : vector<16x1xf32> to vector<16x16xf32>
    %129 = arith.subf %125, %128 : vector<16x16xf32>
    %130 = math.exp %129 : vector<16x16xf32>
    %cst_53 = arith.constant dense<0.000000e+00> : vector<16xf32>
    %131 = vector.multi_reduction <add>, %130, %cst_53 [1] : vector<16x16xf32> to vector<16xf32>
    %132 = vector.shape_cast %131 : vector<16xf32> to vector<16x1xf32>
    %133 = tpu.reciprocal %132 {approx = true} : vector<16x1xf32> -> vector<16x1xf32>
    %134 = vector.broadcast %133 : vector<16x1xf32> to vector<16x16xf32>
    %135 = arith.mulf %130, %134 : vector<16x16xf32>
    %136 = arith.truncf %135 : vector<16x16xf32> to vector<16x16xbf16>
    %cst_54 = arith.constant dense<0.000000e+00> : vector<16x128xf32>
    %137 = tpu.matmul %136, %123, %cst_54 {dimension_numbers = #tpu.dot_dimension_numbers<[1], [0], [0], [1], [0, 0, 1, 1], [], []>} : vector<16x16xbf16>, vector<16x128xbf16>, vector<16x128xf32> -> vector<16x128xf32>
    %138 = arith.truncf %137 : vector<16x128xf32> to vector<16x128xbf16>
    %c0_55 = arith.constant 0 : index
    %c0_56 = arith.constant 0 : index
    %139 = vector.load %arg19[%c0_55, %c0_56] : memref<512x512xbf16, #tpu.memory_space<vmem>>, vector<128x512xbf16>
    %cst_57 = arith.constant dense<0.000000e+00> : vector<16x512xf32>
    %140 = tpu.matmul %138, %139, %cst_57 {dimension_numbers = #tpu.dot_dimension_numbers<[1], [0], [0], [1], [0, 0, 1, 1], [], []>} : vector<16x128xbf16>, vector<128x512xbf16>, vector<16x512xf32> -> vector<16x512xf32>
    %141 = arith.addf %117, %140 : vector<16x512xf32>
    %142 = vector.extract_strided_slice %112 {offsets = [0, 128], sizes = [16, 128], strides = [1, 1]} : vector<16x1536xf32> to vector<16x128xf32>
    %143 = arith.truncf %142 : vector<16x128xf32> to vector<16x128xbf16>
    %144 = vector.extract_strided_slice %112 {offsets = [0, 640], sizes = [16, 128], strides = [1, 1]} : vector<16x1536xf32> to vector<16x128xf32>
    %145 = arith.truncf %144 : vector<16x128xf32> to vector<16x128xbf16>
    %146 = vector.extract_strided_slice %112 {offsets = [0, 1152], sizes = [16, 128], strides = [1, 1]} : vector<16x1536xf32> to vector<16x128xf32>
    %147 = arith.truncf %146 : vector<16x128xf32> to vector<16x128xbf16>
    %cst_58 = arith.constant dense<0.000000e+00> : vector<16x16xf32>
    %148 = tpu.matmul %143, %145, %cst_58 {dimension_numbers = #tpu.dot_dimension_numbers<[1], [1], [0], [0], [0, 0, 1, 0], [], []>} : vector<16x128xbf16>, vector<16x128xbf16>, vector<16x16xf32> -> vector<16x16xf32>
    %149 = arith.addf %148, %113 : vector<16x16xf32>
    %cst_59 = arith.constant dense<0xFF800000> : vector<16xf32>
    %150 = vector.multi_reduction <maximumf>, %149, %cst_59 [1] : vector<16x16xf32> to vector<16xf32>
    %151 = vector.shape_cast %150 : vector<16xf32> to vector<16x1xf32>
    %152 = vector.broadcast %151 : vector<16x1xf32> to vector<16x16xf32>
    %153 = arith.subf %149, %152 : vector<16x16xf32>
    %154 = math.exp %153 : vector<16x16xf32>
    %cst_60 = arith.constant dense<0.000000e+00> : vector<16xf32>
    %155 = vector.multi_reduction <add>, %154, %cst_60 [1] : vector<16x16xf32> to vector<16xf32>
    %156 = vector.shape_cast %155 : vector<16xf32> to vector<16x1xf32>
    %157 = tpu.reciprocal %156 {approx = true} : vector<16x1xf32> -> vector<16x1xf32>
    %158 = vector.broadcast %157 : vector<16x1xf32> to vector<16x16xf32>
    %159 = arith.mulf %154, %158 : vector<16x16xf32>
    %160 = arith.truncf %159 : vector<16x16xf32> to vector<16x16xbf16>
    %cst_61 = arith.constant dense<0.000000e+00> : vector<16x128xf32>
    %161 = tpu.matmul %160, %147, %cst_61 {dimension_numbers = #tpu.dot_dimension_numbers<[1], [0], [0], [1], [0, 0, 1, 1], [], []>} : vector<16x16xbf16>, vector<16x128xbf16>, vector<16x128xf32> -> vector<16x128xf32>
    %162 = arith.truncf %161 : vector<16x128xf32> to vector<16x128xbf16>
    %c128 = arith.constant 128 : index
    %c0_62 = arith.constant 0 : index
    %163 = vector.load %arg19[%c128, %c0_62] : memref<512x512xbf16, #tpu.memory_space<vmem>>, vector<128x512xbf16>
    %cst_63 = arith.constant dense<0.000000e+00> : vector<16x512xf32>
    %164 = tpu.matmul %162, %163, %cst_63 {dimension_numbers = #tpu.dot_dimension_numbers<[1], [0], [0], [1], [0, 0, 1, 1], [], []>} : vector<16x128xbf16>, vector<128x512xbf16>, vector<16x512xf32> -> vector<16x512xf32>
    %165 = arith.addf %141, %164 : vector<16x512xf32>
    %166 = vector.extract_strided_slice %112 {offsets = [0, 256], sizes = [16, 128], strides = [1, 1]} : vector<16x1536xf32> to vector<16x128xf32>
    %167 = arith.truncf %166 : vector<16x128xf32> to vector<16x128xbf16>
    %168 = vector.extract_strided_slice %112 {offsets = [0, 768], sizes = [16, 128], strides = [1, 1]} : vector<16x1536xf32> to vector<16x128xf32>
    %169 = arith.truncf %168 : vector<16x128xf32> to vector<16x128xbf16>
    %170 = vector.extract_strided_slice %112 {offsets = [0, 1280], sizes = [16, 128], strides = [1, 1]} : vector<16x1536xf32> to vector<16x128xf32>
    %171 = arith.truncf %170 : vector<16x128xf32> to vector<16x128xbf16>
    %cst_64 = arith.constant dense<0.000000e+00> : vector<16x16xf32>
    %172 = tpu.matmul %167, %169, %cst_64 {dimension_numbers = #tpu.dot_dimension_numbers<[1], [1], [0], [0], [0, 0, 1, 0], [], []>} : vector<16x128xbf16>, vector<16x128xbf16>, vector<16x16xf32> -> vector<16x16xf32>
    %173 = arith.addf %172, %113 : vector<16x16xf32>
    %cst_65 = arith.constant dense<0xFF800000> : vector<16xf32>
    %174 = vector.multi_reduction <maximumf>, %173, %cst_65 [1] : vector<16x16xf32> to vector<16xf32>
    %175 = vector.shape_cast %174 : vector<16xf32> to vector<16x1xf32>
    %176 = vector.broadcast %175 : vector<16x1xf32> to vector<16x16xf32>
    %177 = arith.subf %173, %176 : vector<16x16xf32>
    %178 = math.exp %177 : vector<16x16xf32>
    %cst_66 = arith.constant dense<0.000000e+00> : vector<16xf32>
    %179 = vector.multi_reduction <add>, %178, %cst_66 [1] : vector<16x16xf32> to vector<16xf32>
    %180 = vector.shape_cast %179 : vector<16xf32> to vector<16x1xf32>
    %181 = tpu.reciprocal %180 {approx = true} : vector<16x1xf32> -> vector<16x1xf32>
    %182 = vector.broadcast %181 : vector<16x1xf32> to vector<16x16xf32>
    %183 = arith.mulf %178, %182 : vector<16x16xf32>
    %184 = arith.truncf %183 : vector<16x16xf32> to vector<16x16xbf16>
    %cst_67 = arith.constant dense<0.000000e+00> : vector<16x128xf32>
    %185 = tpu.matmul %184, %171, %cst_67 {dimension_numbers = #tpu.dot_dimension_numbers<[1], [0], [0], [1], [0, 0, 1, 1], [], []>} : vector<16x16xbf16>, vector<16x128xbf16>, vector<16x128xf32> -> vector<16x128xf32>
    %186 = arith.truncf %185 : vector<16x128xf32> to vector<16x128xbf16>
    %c256 = arith.constant 256 : index
    %c0_68 = arith.constant 0 : index
    %187 = vector.load %arg19[%c256, %c0_68] : memref<512x512xbf16, #tpu.memory_space<vmem>>, vector<128x512xbf16>
    %cst_69 = arith.constant dense<0.000000e+00> : vector<16x512xf32>
    %188 = tpu.matmul %186, %187, %cst_69 {dimension_numbers = #tpu.dot_dimension_numbers<[1], [0], [0], [1], [0, 0, 1, 1], [], []>} : vector<16x128xbf16>, vector<128x512xbf16>, vector<16x512xf32> -> vector<16x512xf32>
    %189 = arith.addf %165, %188 : vector<16x512xf32>
    %190 = vector.extract_strided_slice %112 {offsets = [0, 384], sizes = [16, 128], strides = [1, 1]} : vector<16x1536xf32> to vector<16x128xf32>
    %191 = arith.truncf %190 : vector<16x128xf32> to vector<16x128xbf16>
    %192 = vector.extract_strided_slice %112 {offsets = [0, 896], sizes = [16, 128], strides = [1, 1]} : vector<16x1536xf32> to vector<16x128xf32>
    %193 = arith.truncf %192 : vector<16x128xf32> to vector<16x128xbf16>
    %194 = vector.extract_strided_slice %112 {offsets = [0, 1408], sizes = [16, 128], strides = [1, 1]} : vector<16x1536xf32> to vector<16x128xf32>
    %195 = arith.truncf %194 : vector<16x128xf32> to vector<16x128xbf16>
    %cst_70 = arith.constant dense<0.000000e+00> : vector<16x16xf32>
    %196 = tpu.matmul %191, %193, %cst_70 {dimension_numbers = #tpu.dot_dimension_numbers<[1], [1], [0], [0], [0, 0, 1, 0], [], []>} : vector<16x128xbf16>, vector<16x128xbf16>, vector<16x16xf32> -> vector<16x16xf32>
    %197 = arith.addf %196, %113 : vector<16x16xf32>
    %cst_71 = arith.constant dense<0xFF800000> : vector<16xf32>
    %198 = vector.multi_reduction <maximumf>, %197, %cst_71 [1] : vector<16x16xf32> to vector<16xf32>
    %199 = vector.shape_cast %198 : vector<16xf32> to vector<16x1xf32>
    %200 = vector.broadcast %199 : vector<16x1xf32> to vector<16x16xf32>
    %201 = arith.subf %197, %200 : vector<16x16xf32>
    %202 = math.exp %201 : vector<16x16xf32>
    %cst_72 = arith.constant dense<0.000000e+00> : vector<16xf32>
    %203 = vector.multi_reduction <add>, %202, %cst_72 [1] : vector<16x16xf32> to vector<16xf32>
    %204 = vector.shape_cast %203 : vector<16xf32> to vector<16x1xf32>
    %205 = tpu.reciprocal %204 {approx = true} : vector<16x1xf32> -> vector<16x1xf32>
    %206 = vector.broadcast %205 : vector<16x1xf32> to vector<16x16xf32>
    %207 = arith.mulf %202, %206 : vector<16x16xf32>
    %208 = arith.truncf %207 : vector<16x16xf32> to vector<16x16xbf16>
    %cst_73 = arith.constant dense<0.000000e+00> : vector<16x128xf32>
    %209 = tpu.matmul %208, %195, %cst_73 {dimension_numbers = #tpu.dot_dimension_numbers<[1], [0], [0], [1], [0, 0, 1, 1], [], []>} : vector<16x16xbf16>, vector<16x128xbf16>, vector<16x128xf32> -> vector<16x128xf32>
    %210 = arith.truncf %209 : vector<16x128xf32> to vector<16x128xbf16>
    %c384 = arith.constant 384 : index
    %c0_74 = arith.constant 0 : index
    %211 = vector.load %arg19[%c384, %c0_74] : memref<512x512xbf16, #tpu.memory_space<vmem>>, vector<128x512xbf16>
    %cst_75 = arith.constant dense<0.000000e+00> : vector<16x512xf32>
    %212 = tpu.matmul %210, %211, %cst_75 {dimension_numbers = #tpu.dot_dimension_numbers<[1], [0], [0], [1], [0, 0, 1, 1], [], []>} : vector<16x128xbf16>, vector<128x512xbf16>, vector<16x512xf32> -> vector<16x512xf32>
    %213 = arith.addf %189, %212 : vector<16x512xf32>
    %214 = arith.addf %106, %213 : vector<16x512xf32>
    %c0_76 = arith.constant 0 : index
    %c0_77 = arith.constant 0 : index
    %215 = vector.load %arg21[%c0_76, %c0_77] : memref<1x512xf32, #tpu.memory_space<vmem>>, vector<1x512xf32>
    %c0_78 = arith.constant 0 : index
    %c0_79 = arith.constant 0 : index
    %216 = vector.load %arg22[%c0_78, %c0_79] : memref<1x512xf32, #tpu.memory_space<vmem>>, vector<1x512xf32>
    %cst_80 = arith.constant dense<0.000000e+00> : vector<16xf32>
    %217 = vector.multi_reduction <add>, %214, %cst_80 [1] : vector<16x512xf32> to vector<16xf32>
    %218 = vector.shape_cast %217 : vector<16xf32> to vector<16x1xf32>
    %cst_81 = arith.constant 5.120000e+02 : f32
    %219 = vector.broadcast %cst_81 : f32 to vector<16x1xf32>
    %220 = arith.divf %218, %219 : vector<16x1xf32>
    %221 = vector.broadcast %220 : vector<16x1xf32> to vector<16x512xf32>
    %222 = arith.subf %214, %221 : vector<16x512xf32>
    %223 = arith.mulf %222, %222 : vector<16x512xf32>
    %cst_82 = arith.constant dense<0.000000e+00> : vector<16xf32>
    %224 = vector.multi_reduction <add>, %223, %cst_82 [1] : vector<16x512xf32> to vector<16xf32>
    %225 = vector.shape_cast %224 : vector<16xf32> to vector<16x1xf32>
    %cst_83 = arith.constant 5.120000e+02 : f32
    %226 = vector.broadcast %cst_83 : f32 to vector<16x1xf32>
    %227 = arith.divf %225, %226 : vector<16x1xf32>
    %228 = vector.broadcast %220 : vector<16x1xf32> to vector<16x512xf32>
    %229 = arith.subf %214, %228 : vector<16x512xf32>
    %cst_84 = arith.constant 9.99999974E-6 : f32
    %230 = vector.broadcast %cst_84 : f32 to vector<16x1xf32>
    %231 = arith.addf %227, %230 : vector<16x1xf32>
    %232 = math.rsqrt %231 : vector<16x1xf32>
    %233 = vector.broadcast %232 : vector<16x1xf32> to vector<16x512xf32>
    %234 = arith.mulf %229, %233 : vector<16x512xf32>
    %235 = vector.broadcast %215 : vector<1x512xf32> to vector<16x512xf32>
    %236 = arith.mulf %234, %235 : vector<16x512xf32>
    %237 = vector.broadcast %216 : vector<1x512xf32> to vector<16x512xf32>
    %238 = arith.addf %236, %237 : vector<16x512xf32>
    %c0_85 = arith.constant 0 : index
    %c0_86 = arith.constant 0 : index
    %239 = vector.load %arg23[%c0_85, %c0_86] : memref<512x128xbf16, #tpu.memory_space<vmem>>, vector<512x128xbf16>
    %240 = arith.truncf %238 : vector<16x512xf32> to vector<16x512xbf16>
    %cst_87 = arith.constant dense<0.000000e+00> : vector<16x128xf32>
    %241 = tpu.matmul %240, %239, %cst_87 {dimension_numbers = #tpu.dot_dimension_numbers<[1], [0], [0], [1], [0, 0, 1, 1], [], []>} : vector<16x512xbf16>, vector<512x128xbf16>, vector<16x128xf32> -> vector<16x128xf32>
    %c0_88 = arith.constant 0 : index
    %c0_89 = arith.constant 0 : index
    %242 = vector.load %arg24[%c0_88, %c0_89] : memref<1x128xf32, #tpu.memory_space<vmem>>, vector<1x128xf32>
    %243 = vector.broadcast %242 : vector<1x128xf32> to vector<16x128xf32>
    %244 = arith.addf %241, %243 : vector<16x128xf32>
    %cst_90 = arith.constant 0.000000e+00 : f32
    %245 = vector.broadcast %cst_90 : f32 to vector<16x128xf32>
    %246 = arith.maximumf %244, %245 : vector<16x128xf32>
    %c0_91 = arith.constant 0 : index
    %c0_92 = arith.constant 0 : index
    %247 = vector.load %arg25[%c0_91, %c0_92] : memref<128x512xbf16, #tpu.memory_space<vmem>>, vector<128x512xbf16>
    %248 = arith.truncf %246 : vector<16x128xf32> to vector<16x128xbf16>
    %cst_93 = arith.constant dense<0.000000e+00> : vector<16x512xf32>
    %249 = tpu.matmul %248, %247, %cst_93 {dimension_numbers = #tpu.dot_dimension_numbers<[1], [0], [0], [1], [0, 0, 1, 1], [], []>} : vector<16x128xbf16>, vector<128x512xbf16>, vector<16x512xf32> -> vector<16x512xf32>
    %c0_94 = arith.constant 0 : index
    %c0_95 = arith.constant 0 : index
    %250 = vector.load %arg26[%c0_94, %c0_95] : memref<1x512xf32, #tpu.memory_space<vmem>>, vector<1x512xf32>
    %251 = vector.broadcast %250 : vector<1x512xf32> to vector<16x512xf32>
    %252 = arith.addf %249, %251 : vector<16x512xf32>
    %253 = arith.addf %238, %252 : vector<16x512xf32>
    %c0_96 = arith.constant 0 : index
    %c0_97 = arith.constant 0 : index
    %254 = vector.load %arg27[%c0_96, %c0_97] : memref<1x512xf32, #tpu.memory_space<vmem>>, vector<1x512xf32>
    %c0_98 = arith.constant 0 : index
    %c0_99 = arith.constant 0 : index
    %255 = vector.load %arg28[%c0_98, %c0_99] : memref<1x512xf32, #tpu.memory_space<vmem>>, vector<1x512xf32>
    %cst_100 = arith.constant dense<0.000000e+00> : vector<16xf32>
    %256 = vector.multi_reduction <add>, %253, %cst_100 [1] : vector<16x512xf32> to vector<16xf32>
    %257 = vector.shape_cast %256 : vector<16xf32> to vector<16x1xf32>
    %cst_101 = arith.constant 5.120000e+02 : f32
    %258 = vector.broadcast %cst_101 : f32 to vector<16x1xf32>
    %259 = arith.divf %257, %258 : vector<16x1xf32>
    %260 = vector.broadcast %259 : vector<16x1xf32> to vector<16x512xf32>
    %261 = arith.subf %253, %260 : vector<16x512xf32>
    %262 = arith.mulf %261, %261 : vector<16x512xf32>
    %cst_102 = arith.constant dense<0.000000e+00> : vector<16xf32>
    %263 = vector.multi_reduction <add>, %262, %cst_102 [1] : vector<16x512xf32> to vector<16xf32>
    %264 = vector.shape_cast %263 : vector<16xf32> to vector<16x1xf32>
    %cst_103 = arith.constant 5.120000e+02 : f32
    %265 = vector.broadcast %cst_103 : f32 to vector<16x1xf32>
    %266 = arith.divf %264, %265 : vector<16x1xf32>
    %267 = vector.broadcast %259 : vector<16x1xf32> to vector<16x512xf32>
    %268 = arith.subf %253, %267 : vector<16x512xf32>
    %cst_104 = arith.constant 9.99999974E-6 : f32
    %269 = vector.broadcast %cst_104 : f32 to vector<16x1xf32>
    %270 = arith.addf %266, %269 : vector<16x1xf32>
    %271 = math.rsqrt %270 : vector<16x1xf32>
    %272 = vector.broadcast %271 : vector<16x1xf32> to vector<16x512xf32>
    %273 = arith.mulf %268, %272 : vector<16x512xf32>
    %274 = vector.broadcast %254 : vector<1x512xf32> to vector<16x512xf32>
    %275 = arith.mulf %273, %274 : vector<16x512xf32>
    %276 = vector.broadcast %255 : vector<1x512xf32> to vector<16x512xf32>
    %277 = arith.addf %275, %276 : vector<16x512xf32>
    %278 = arith.truncf %277 : vector<16x512xf32> to vector<16x512xbf16>
    %c0_105 = arith.constant 0 : index
    %c0_106 = arith.constant 0 : index
    %279 = vector.load %arg29[%c0_105, %c0_106] : memref<512x320xbf16, #tpu.memory_space<vmem>>, vector<512x320xbf16>
    %cst_107 = arith.constant dense<0.000000e+00> : vector<16x320xf32>
    %280 = tpu.matmul %278, %279, %cst_107 {dimension_numbers = #tpu.dot_dimension_numbers<[1], [0], [0], [1], [0, 0, 1, 1], [], []>} : vector<16x512xbf16>, vector<512x320xbf16>, vector<16x320xf32> -> vector<16x320xf32>
    %cst_108 = arith.constant 0.000000e+00 : f32
    %281 = vector.broadcast %cst_108 : f32 to vector<16x64xf32>
    %282 = vector.extract_strided_slice %280 {offsets = [0, 0], sizes = [16, 64], strides = [1, 1]} : vector<16x320xf32> to vector<16x64xf32>
    %c0_109 = arith.constant 0 : index
    %c0_110 = arith.constant 0 : index
    %283 = vector.load %arg5[%c0_109, %c0_110] : memref<16x5xf32, #tpu.memory_space<vmem>>, vector<16x1xf32>
    %284 = vector.broadcast %283 : vector<16x1xf32> to vector<16x64xf32>
    %285 = arith.mulf %282, %284 : vector<16x64xf32>
    %286 = arith.addf %281, %285 : vector<16x64xf32>
    %287 = vector.extract_strided_slice %280 {offsets = [0, 64], sizes = [16, 64], strides = [1, 1]} : vector<16x320xf32> to vector<16x64xf32>
    %c0_111 = arith.constant 0 : index
    %c1 = arith.constant 1 : index
    %288 = vector.load %arg5[%c0_111, %c1] : memref<16x5xf32, #tpu.memory_space<vmem>>, vector<16x1xf32>
    %289 = vector.broadcast %288 : vector<16x1xf32> to vector<16x64xf32>
    %290 = arith.mulf %287, %289 : vector<16x64xf32>
    %291 = arith.addf %286, %290 : vector<16x64xf32>
    %292 = vector.extract_strided_slice %280 {offsets = [0, 128], sizes = [16, 64], strides = [1, 1]} : vector<16x320xf32> to vector<16x64xf32>
    %c0_112 = arith.constant 0 : index
    %c2 = arith.constant 2 : index
    %293 = vector.load %arg5[%c0_112, %c2] : memref<16x5xf32, #tpu.memory_space<vmem>>, vector<16x1xf32>
    %294 = vector.broadcast %293 : vector<16x1xf32> to vector<16x64xf32>
    %295 = arith.mulf %292, %294 : vector<16x64xf32>
    %296 = arith.addf %291, %295 : vector<16x64xf32>
    %297 = vector.extract_strided_slice %280 {offsets = [0, 192], sizes = [16, 64], strides = [1, 1]} : vector<16x320xf32> to vector<16x64xf32>
    %c0_113 = arith.constant 0 : index
    %c3 = arith.constant 3 : index
    %298 = vector.load %arg5[%c0_113, %c3] : memref<16x5xf32, #tpu.memory_space<vmem>>, vector<16x1xf32>
    %299 = vector.broadcast %298 : vector<16x1xf32> to vector<16x64xf32>
    %300 = arith.mulf %297, %299 : vector<16x64xf32>
    %301 = arith.addf %296, %300 : vector<16x64xf32>
    %302 = vector.extract_strided_slice %280 {offsets = [0, 256], sizes = [16, 64], strides = [1, 1]} : vector<16x320xf32> to vector<16x64xf32>
    %c0_114 = arith.constant 0 : index
    %c4 = arith.constant 4 : index
    %303 = vector.load %arg5[%c0_114, %c4] : memref<16x5xf32, #tpu.memory_space<vmem>>, vector<16x1xf32>
    %304 = vector.broadcast %303 : vector<16x1xf32> to vector<16x64xf32>
    %305 = arith.mulf %302, %304 : vector<16x64xf32>
    %306 = arith.addf %301, %305 : vector<16x64xf32>
    %c0_115 = arith.constant 0 : index
    %c0_116 = arith.constant 0 : index
    %307 = vector.load %arg6[%c0_115, %c0_116] : memref<2x16xf32, #tpu.memory_space<vmem>>, vector<2x16xf32>
    %cst_117 = arith.constant dense<0.000000e+00> : vector<2x64xf32>
    %308 = tpu.matmul %307, %306, %cst_117 {dimension_numbers = #tpu.dot_dimension_numbers<[1], [0], [0], [1], [0, 0, 1, 1], [], []>} : vector<2x16xf32>, vector<16x64xf32>, vector<2x64xf32> -> vector<2x64xf32>
    %c0_118 = arith.constant 0 : index
    %c0_119 = arith.constant 0 : index
    %309 = vector.load %arg30[%c0_118, %c0_119] : memref<1x64xf32, #tpu.memory_space<vmem>>, vector<1x64xf32>
    %310 = vector.broadcast %309 : vector<1x64xf32> to vector<2x64xf32>
    %311 = arith.addf %308, %310 : vector<2x64xf32>
    %cst_120 = arith.constant 0.000000e+00 : f32
    %312 = vector.broadcast %cst_120 : f32 to vector<2x64xf32>
    %313 = arith.maximumf %311, %312 : vector<2x64xf32>
    %c0_121 = arith.constant 0 : index
    %c0_122 = arith.constant 0 : index
    %314 = vector.load %arg31[%c0_121, %c0_122] : memref<1x64xf32, #tpu.memory_space<vmem>>, vector<1x64xf32>
    %315 = vector.broadcast %314 : vector<1x64xf32> to vector<2x64xf32>
    %316 = arith.mulf %313, %315 : vector<2x64xf32>
    %cst_123 = arith.constant dense<0.000000e+00> : vector<2xf32>
    %317 = vector.multi_reduction <add>, %316, %cst_123 [1] : vector<2x64xf32> to vector<2xf32>
    %318 = vector.shape_cast %317 : vector<2xf32> to vector<2x1xf32>
    %c0_124 = arith.constant 0 : index
    %c0_125 = arith.constant 0 : index
    %319 = vector.load %arg32[%c0_124, %c0_125] : memref<1x1xf32, #tpu.memory_space<vmem>>, vector<1x1xf32>
    %320 = vector.broadcast %319 : vector<1x1xf32> to vector<2x1xf32>
    %321 = arith.addf %318, %320 : vector<2x1xf32>
    %c0_126 = arith.constant 0 : index
    %c0_127 = arith.constant 0 : index
    %322 = vector.load %arg33[%c0_126, %c0_127] : memref<2x1xf32, #tpu.memory_space<vmem>>, vector<2x1xf32>
    tpu.vector_store %arg33[%c0_126, %c0_127], %321 {strides = array<i32>} : memref<2x1xf32, #tpu.memory_space<vmem>>, vector<2x1xf32>,
    return
  }
}

</mosaic_0001>

<llo_original>
// kernel: simple_tft_forward.1
$region0: #{simple_tft_forward.1}
  #allocation0 [shape = 'u32[]', space=smem, size = 0x4, offset = 0x4, fixed_abs, tag = 'smem constant byte address 0x4 - core index']
  #allocation1 [shape = 'u32[144,128]{1,0:T(1,128)}', space=vmem, size = 0x12000, scoped, tag = 'internal scratch']
  #allocation2 [shape = 'f32[1,1]{1,0:T(1,128)S(1)}', space=vmem, size = 0x200, scoped, tag = 'scoped memory for simple_tft_forward.1']
  %s0 = inlined_call_operand.smem [shape: u32[34], index: -1, kind: input, shape index: {}]
  %s1 = sld [smem:[%s0]]
  %s2 = scalar_lea.smem %s0, 1
  %s3 = sld [smem:[%s2]]
  %s4 = scalar_lea.smem %s0, 2
  %s5 = sld [smem:[%s4]]
  %s6 = scalar_lea.smem %s0, 3
  %s7 = sld [smem:[%s6]]
  %s8 = scalar_lea.smem %s0, 4
  %s9 = sld [smem:[%s8]]
  %s10 = scalar_lea.smem %s0, 5
  %s11 = sld [smem:[%s10]]
  %s12 = scalar_lea.smem %s0, 6
  %s13 = sld [smem:[%s12]]
  %s14 = scalar_lea.smem %s0, 7
  %s15 = sld [smem:[%s14]]
  %s16 = scalar_lea.smem %s0, 8
  %s17 = sld [smem:[%s16]]
  %s18 = scalar_lea.smem %s0, 9
  %s19 = sld [smem:[%s18]]
  %s20 = scalar_lea.smem %s0, 10
  %s21 = sld [smem:[%s20]]
  %s22 = scalar_lea.smem %s0, 11
  %s23 = sld [smem:[%s22]]
  %s24 = scalar_lea.smem %s0, 12
  %s25 = sld [smem:[%s24]]
  %s26 = scalar_lea.smem %s0, 13
  %s27 = sld [smem:[%s26]]
  %s28 = scalar_lea.smem %s0, 14
  %s29 = sld [smem:[%s28]]
  %s30 = scalar_lea.smem %s0, 15
  %s31 = sld [smem:[%s30]]
  %s32 = scalar_lea.smem %s0, 16
  %s33 = sld [smem:[%s32]]
  %s34 = scalar_lea.smem %s0, 17
  %s35 = sld [smem:[%s34]]
  %s36 = scalar_lea.smem %s0, 18
  %s37 = sld [smem:[%s36]]
  %s38 = scalar_lea.smem %s0, 19
  %s39 = sld [smem:[%s38]]
  %s40 = scalar_lea.smem %s0, 20
  %s41 = sld [smem:[%s40]]
  %s42 = scalar_lea.smem %s0, 21
  %s43 = sld [smem:[%s42]]
  %s44 = scalar_lea.smem %s0, 22
  %s45 = sld [smem:[%s44]]
  %s46 = scalar_lea.smem %s0, 23
  %s47 = sld [smem:[%s46]]
  %s48 = scalar_lea.smem %s0, 24
  %s49 = sld [smem:[%s48]]
  %s50 = scalar_lea.smem %s0, 25
  %s51 = sld [smem:[%s50]]
  %s52 = scalar_lea.smem %s0, 26
  %s53 = sld [smem:[%s52]]
  %s54 = scalar_lea.smem %s0, 27
  %s55 = sld [smem:[%s54]]
  %s56 = scalar_lea.smem %s0, 28
  %s57 = sld [smem:[%s56]]
  %s58 = scalar_lea.smem %s0, 29
  %s59 = sld [smem:[%s58]]
  %s60 = scalar_lea.smem %s0, 30
  %s61 = sld [smem:[%s60]]
  %s62 = scalar_lea.smem %s0, 31
  %s63 = sld [smem:[%s62]]
  %s64 = scalar_lea.smem %s0, 32
  %s65 = sld [smem:[%s64]]
  %s66 = scalar_lea.smem %s0, 33
  %s67 = sld [smem:[%s66]]
  %s68 = sld [smem:[#allocation0]]
  $region142: #{simple_tft_forward.1} parent=0
    _
  %s70 = ssub.s32 1, %s68
  %s71 = scalar_select 0, %s70, %s68
  %v72 = vstv %s65
  %73 = vst [vmem:[#allocation2] sm:$0x1] %v72
  // Predicated region
  $region2: #{simple_tft_forward.1} parent=0 // pred_check
    _
  $region3: #{simple_tft_forward.1} parent=0 // pred_check_branch
    %75 = sbr.rel (0) target = $region5
  $region4: #{simple_tft_forward.1} parent=0 // pred_region
    _
  $region5: #{simple_tft_forward.1} parent=0 // pred_fallthru
    _
  // Predicated region
  $region6: #{simple_tft_forward.1} parent=0 // pred_check
    _
  $region7: #{simple_tft_forward.1} parent=0 // pred_check_branch
    %77 = sbr.rel (0) target = $region9
  $region8: #{simple_tft_forward.1} parent=0 // pred_region
    _
  $region9: #{simple_tft_forward.1} parent=0 // pred_fallthru
    _
  // Predicated region
  $region10: #{simple_tft_forward.1} parent=0 // pred_check
    _
  $region11: #{simple_tft_forward.1} parent=0 // pred_check_branch
    %79 = sbr.rel (0) target = $region13
  $region12: #{simple_tft_forward.1} parent=0 // pred_region
    _
  $region13: #{simple_tft_forward.1} parent=0 // pred_fallthru
    _
  // Predicated region
  $region14: #{simple_tft_forward.1} parent=0 // pred_check
    _
  $region15: #{simple_tft_forward.1} parent=0 // pred_check_branch
    %81 = sbr.rel (0) target = $region17
  $region16: #{simple_tft_forward.1} parent=0 // pred_region
    _
  $region17: #{simple_tft_forward.1} parent=0 // pred_fallthru
    _
  // Predicated region
  $region18: #{simple_tft_forward.1} parent=0 // pred_check
    _
  $region19: #{simple_tft_forward.1} parent=0 // pred_check_branch
    %83 = sbr.rel (0) target = $region21
  $region20: #{simple_tft_forward.1} parent=0 // pred_region
    _
  $region21: #{simple_tft_forward.1} parent=0 // pred_fallthru
    _
  // Predicated region
  $region22: #{simple_tft_forward.1} parent=0 // pred_check
    _
  $region23: #{simple_tft_forward.1} parent=0 // pred_check_branch
    %85 = sbr.rel (0) target = $region25
  $region24: #{simple_tft_forward.1} parent=0 // pred_region
    _
  $region25: #{simple_tft_forward.1} parent=0 // pred_fallthru
    _
  // Predicated region
  $region26: #{simple_tft_forward.1} parent=0 // pred_check
    _
  $region27: #{simple_tft_forward.1} parent=0 // pred_check_branch
    %87 = sbr.rel (0) target = $region29
  $region28: #{simple_tft_forward.1} parent=0 // pred_region
    _
  $region29: #{simple_tft_forward.1} parent=0 // pred_fallthru
    _
  // Predicated region
  $region30: #{simple_tft_forward.1} parent=0 // pred_check
    _
  $region31: #{simple_tft_forward.1} parent=0 // pred_check_branch
    %89 = sbr.rel (0) target = $region33
  $region32: #{simple_tft_forward.1} parent=0 // pred_region
    _
  $region33: #{simple_tft_forward.1} parent=0 // pred_fallthru
    _
  // Predicated region
  $region34: #{simple_tft_forward.1} parent=0 // pred_check
    _
  $region35: #{simple_tft_forward.1} parent=0 // pred_check_branch
    %91 = sbr.rel (0) target = $region37
  $region36: #{simple_tft_forward.1} parent=0 // pred_region
    _
  $region37: #{simple_tft_forward.1} parent=0 // pred_fallthru
    _
  // Predicated region
  $region38: #{simple_tft_forward.1} parent=0 // pred_check
    _
  $region39: #{simple_tft_forward.1} parent=0 // pred_check_branch
    %93 = sbr.rel (0) target = $region41
  $region40: #{simple_tft_forward.1} parent=0 // pred_region
    _
  $region41: #{simple_tft_forward.1} parent=0 // pred_fallthru
    _
  // Predicated region
  $region42: #{simple_tft_forward.1} parent=0 // pred_check
    _
  $region43: #{simple_tft_forward.1} parent=0 // pred_check_branch
    %95 = sbr.rel (0) target = $region45
  $region44: #{simple_tft_forward.1} parent=0 // pred_region
    _
  $region45: #{simple_tft_forward.1} parent=0 // pred_fallthru
    _
  // Predicated region
  $region46: #{simple_tft_forward.1} parent=0 // pred_check
    _
  $region47: #{simple_tft_forward.1} parent=0 // pred_check_branch
    %97 = sbr.rel (0) target = $region49
  $region48: #{simple_tft_forward.1} parent=0 // pred_region
    _
  $region49: #{simple_tft_forward.1} parent=0 // pred_fallthru
    _
  // Predicated region
  $region50: #{simple_tft_forward.1} parent=0 // pred_check
    _
  $region51: #{simple_tft_forward.1} parent=0 // pred_check_branch
    %99 = sbr.rel (0) target = $region53
  $region52: #{simple_tft_forward.1} parent=0 // pred_region
    _
  $region53: #{simple_tft_forward.1} parent=0 // pred_fallthru
    _
  // Predicated region
  $region54: #{simple_tft_forward.1} parent=0 // pred_check
    _
  $region55: #{simple_tft_forward.1} parent=0 // pred_check_branch
    %101 = sbr.rel (0) target = $region57
  $region56: #{simple_tft_forward.1} parent=0 // pred_region
    _
  $region57: #{simple_tft_forward.1} parent=0 // pred_fallthru
    _
  // Predicated region
  $region58: #{simple_tft_forward.1} parent=0 // pred_check
    _
  $region59: #{simple_tft_forward.1} parent=0 // pred_check_branch
    %103 = sbr.rel (0) target = $region61
  $region60: #{simple_tft_forward.1} parent=0 // pred_region
    _
  $region61: #{simple_tft_forward.1} parent=0 // pred_fallthru
    _
  // Predicated region
  $region62: #{simple_tft_forward.1} parent=0 // pred_check
    _
  $region63: #{simple_tft_forward.1} parent=0 // pred_check_branch
    %105 = sbr.rel (0) target = $region65
  $region64: #{simple_tft_forward.1} parent=0 // pred_region
    _
  $region65: #{simple_tft_forward.1} parent=0 // pred_fallthru
    _
  // Predicated region
  $region66: #{simple_tft_forward.1} parent=0 // pred_check
    _
  $region67: #{simple_tft_forward.1} parent=0 // pred_check_branch
    %107 = sbr.rel (0) target = $region69
  $region68: #{simple_tft_forward.1} parent=0 // pred_region
    _
  $region69: #{simple_tft_forward.1} parent=0 // pred_fallthru
    _
  // Predicated region
  $region70: #{simple_tft_forward.1} parent=0 // pred_check
    _
  $region71: #{simple_tft_forward.1} parent=0 // pred_check_branch
    %109 = sbr.rel (0) target = $region73
  $region72: #{simple_tft_forward.1} parent=0 // pred_region
    _
  $region73: #{simple_tft_forward.1} parent=0 // pred_fallthru
    _
  // Predicated region
  $region74: #{simple_tft_forward.1} parent=0 // pred_check
    _
  $region75: #{simple_tft_forward.1} parent=0 // pred_check_branch
    %111 = sbr.rel (0) target = $region77
  $region76: #{simple_tft_forward.1} parent=0 // pred_region
    _
  $region77: #{simple_tft_forward.1} parent=0 // pred_fallthru
    _
  // Predicated region
  $region78: #{simple_tft_forward.1} parent=0 // pred_check
    _
  $region79: #{simple_tft_forward.1} parent=0 // pred_check_branch
    %113 = sbr.rel (0) target = $region81
  $region80: #{simple_tft_forward.1} parent=0 // pred_region
    _
  $region81: #{simple_tft_forward.1} parent=0 // pred_fallthru
    _
  // Predicated region
  $region82: #{simple_tft_forward.1} parent=0 // pred_check
    _
  $region83: #{simple_tft_forward.1} parent=0 // pred_check_branch
    %115 = sbr.rel (0) target = $region85
  $region84: #{simple_tft_forward.1} parent=0 // pred_region
    _
  $region85: #{simple_tft_forward.1} parent=0 // pred_fallthru
    _
  // Predicated region
  $region86: #{simple_tft_forward.1} parent=0 // pred_check
    _
  $region87: #{simple_tft_forward.1} parent=0 // pred_check_branch
    %117 = sbr.rel (0) target = $region89
  $region88: #{simple_tft_forward.1} parent=0 // pred_region
    _
  $region89: #{simple_tft_forward.1} parent=0 // pred_fallthru
    _
  // Predicated region
  $region90: #{simple_tft_forward.1} parent=0 // pred_check
    _
  $region91: #{simple_tft_forward.1} parent=0 // pred_check_branch
    %119 = sbr.rel (0) target = $region93
  $region92: #{simple_tft_forward.1} parent=0 // pred_region
    _
  $region93: #{simple_tft_forward.1} parent=0 // pred_fallthru
    _
  // Predicated region
  $region94: #{simple_tft_forward.1} parent=0 // pred_check
    _
  $region95: #{simple_tft_forward.1} parent=0 // pred_check_branch
    %121 = sbr.rel (0) target = $region97
  $region96: #{simple_tft_forward.1} parent=0 // pred_region
    _
  $region97: #{simple_tft_forward.1} parent=0 // pred_fallthru
    _
  // Predicated region
  $region98: #{simple_tft_forward.1} parent=0 // pred_check
    _
  $region99: #{simple_tft_forward.1} parent=0 // pred_check_branch
    %123 = sbr.rel (0) target = $region101
  $region100: #{simple_tft_forward.1} parent=0 // pred_region
    _
  $region101: #{simple_tft_forward.1} parent=0 // pred_fallthru
    _
  // Predicated region
  $region102: #{simple_tft_forward.1} parent=0 // pred_check
    _
  $region103: #{simple_tft_forward.1} parent=0 // pred_check_branch
    %125 = sbr.rel (0) target = $region105
  $region104: #{simple_tft_forward.1} parent=0 // pred_region
    _
  $region105: #{simple_tft_forward.1} parent=0 // pred_fallthru
    _
  // Predicated region
  $region106: #{simple_tft_forward.1} parent=0 // pred_check
    _
  $region107: #{simple_tft_forward.1} parent=0 // pred_check_branch
    %127 = sbr.rel (0) target = $region109
  $region108: #{simple_tft_forward.1} parent=0 // pred_region
    _
  $region109: #{simple_tft_forward.1} parent=0 // pred_fallthru
    _
  // Predicated region
  $region110: #{simple_tft_forward.1} parent=0 // pred_check
    _
  $region111: #{simple_tft_forward.1} parent=0 // pred_check_branch
    %129 = sbr.rel (0) target = $region113
  $region112: #{simple_tft_forward.1} parent=0 // pred_region
    _
  $region113: #{simple_tft_forward.1} parent=0 // pred_fallthru
    _
  // Predicated region
  $region114: #{simple_tft_forward.1} parent=0 // pred_check
    _
  $region115: #{simple_tft_forward.1} parent=0 // pred_check_branch
    %131 = sbr.rel (0) target = $region117
  $region116: #{simple_tft_forward.1} parent=0 // pred_region
    _
  $region117: #{simple_tft_forward.1} parent=0 // pred_fallthru
    _
  // Predicated region
  $region118: #{simple_tft_forward.1} parent=0 // pred_check
    _
  $region119: #{simple_tft_forward.1} parent=0 // pred_check_branch
    %133 = sbr.rel (0) target = $region121
  $region120: #{simple_tft_forward.1} parent=0 // pred_region
    _
  $region121: #{simple_tft_forward.1} parent=0 // pred_fallthru
    _
  // Predicated region
  $region122: #{simple_tft_forward.1} parent=0 // pred_check
    _
  $region123: #{simple_tft_forward.1} parent=0 // pred_check_branch
    %135 = sbr.rel (0) target = $region125
  $region124: #{simple_tft_forward.1} parent=0 // pred_region
    _
  $region125: #{simple_tft_forward.1} parent=0 // pred_fallthru
    _
  // Predicated region
  $region126: #{simple_tft_forward.1} parent=0 // pred_check
    _
  $region127: #{simple_tft_forward.1} parent=0 // pred_check_branch
    %137 = sbr.rel (0) target = $region129
  $region128: #{simple_tft_forward.1} parent=0 // pred_region
    _
  $region129: #{simple_tft_forward.1} parent=0 // pred_fallthru
    _
  // Predicated region
  $region130: #{simple_tft_forward.1} parent=0 // pred_check
    _
  $region131: #{simple_tft_forward.1} parent=0 // pred_check_branch
    %139 = sbr.rel (0) target = $region133
  $region132: #{simple_tft_forward.1} parent=0 // pred_region
    _
  $region133: #{simple_tft_forward.1} parent=0 // pred_fallthru
    _
  %v141 = vld [vmem:[%s1] sm:$0xf]
  %v142 = vld [vmem:[%s1 + $0x4] sm:$0xf]
  %v143 = vld [vmem:[%s1 + $0x8] sm:$0xf]
  %v144 = vld [vmem:[%s1 + $0xc] sm:$0xf]
  %v145 = vld [vmem:[%s1 + $0x10] sm:$0xf]
  %v146 = vld [vmem:[%s1 + $0x14] sm:$0xf]
  %v147 = vld [vmem:[%s1 + $0x18] sm:$0xf]
  %v148 = vld [vmem:[%s1 + $0x1c] sm:$0xf]
  %v149 = vld [vmem:[%s1 + $0x20] sm:$0xf]
  %v150 = vld [vmem:[%s1 + $0x24] sm:$0xf]
  %v151 = vld [vmem:[%s1 + $0x28] sm:$0xf]
  %v152 = vld [vmem:[%s1 + $0x2c] sm:$0xf]
  %v153 = vld [vmem:[%s1 + $0x30] sm:$0xf]
  %v154 = vld [vmem:[%s1 + $0x34] sm:$0xf]
  %v155 = vld [vmem:[%s1 + $0x38] sm:$0xf]
  %v156 = vld [vmem:[%s1 + $0x3c] sm:$0xf]
  %v157 = vld [vmem:[%s1 + $0x40] sm:$0xf]
  %v158 = vld [vmem:[%s1 + $0x44] sm:$0xf]
  %v159 = vld [vmem:[%s1 + $0x48] sm:$0xf]
  %v160 = vld [vmem:[%s1 + $0x4c] sm:$0xf]
  %v161 = vld [vmem:[%s1 + $0x50] sm:$0xf]
  %v162 = vld [vmem:[%s1 + $0x54] sm:$0xf]
  %v163 = vld [vmem:[%s1 + $0x58] sm:$0xf]
  %v164 = vld [vmem:[%s1 + $0x5c] sm:$0xf]
  %v165 = vld [vmem:[%s1 + $0x60] sm:$0xf]
  %v166 = vld [vmem:[%s1 + $0x64] sm:$0xf]
  %v167 = vld [vmem:[%s1 + $0x68] sm:$0xf]
  %v168 = vld [vmem:[%s1 + $0x6c] sm:$0xf]
  %v169 = vld [vmem:[%s1 + $0x70] sm:$0xf]
  %v170 = vld [vmem:[%s1 + $0x74] sm:$0xf]
  %v171 = vld [vmem:[%s1 + $0x78] sm:$0xf]
  %v172 = vld [vmem:[%s1 + $0x7c] sm:$0xf]
  %v173 = vld [vmem:[%s1 + $0x80] sm:$0xf]
  %v174 = vld [vmem:[%s1 + $0x84] sm:$0xf]
  %v175 = vld [vmem:[%s1 + $0x88] sm:$0xf]
  %v176 = vld [vmem:[%s1 + $0x8c] sm:$0xf]
  %v177 = vld [vmem:[%s1 + $0x90] sm:$0xf]
  %v178 = vld [vmem:[%s1 + $0x94] sm:$0xf]
  %v179 = vld [vmem:[%s1 + $0x98] sm:$0xf]
  %v180 = vld [vmem:[%s1 + $0x9c] sm:$0xf]
  %v181 = vld [vmem:[%s1 + $0xa0] sm:$0xf]
  %v182 = vld [vmem:[%s1 + $0xa4] sm:$0xf]
  %v183 = vld [vmem:[%s1 + $0xa8] sm:$0xf]
  %v184 = vld [vmem:[%s1 + $0xac] sm:$0xf]
  %v185 = vld [vmem:[%s1 + $0xb0] sm:$0xf]
  %v186 = vld [vmem:[%s1 + $0xb4] sm:$0xf]
  %v187 = vld [vmem:[%s1 + $0xb8] sm:$0xf]
  %v188 = vld [vmem:[%s1 + $0xbc] sm:$0xf]
  %v189 = vld [vmem:[%s1 + $0xc0] sm:$0xf]
  %v190 = vld [vmem:[%s1 + $0xc4] sm:$0xf]
  %v191 = vld [vmem:[%s1 + $0xc8] sm:$0xf]
  %v192 = vld [vmem:[%s1 + $0xcc] sm:$0xf]
  %v193 = vld [vmem:[%s1 + $0xd0] sm:$0xf]
  %v194 = vld [vmem:[%s1 + $0xd4] sm:$0xf]
  %v195 = vld [vmem:[%s1 + $0xd8] sm:$0xf]
  %v196 = vld [vmem:[%s1 + $0xdc] sm:$0xf]
  %v197 = vld [vmem:[%s1 + $0xe0] sm:$0xf]
  %v198 = vld [vmem:[%s1 + $0xe4] sm:$0xf]
  %v199 = vld [vmem:[%s1 + $0xe8] sm:$0xf]
  %v200 = vld [vmem:[%s1 + $0xec] sm:$0xf]
  %v201 = vld [vmem:[%s1 + $0xf0] sm:$0xf]
  %v202 = vld [vmem:[%s1 + $0xf4] sm:$0xf]
  %v203 = vld [vmem:[%s1 + $0xf8] sm:$0xf]
  %v204 = vld [vmem:[%s1 + $0xfc] sm:$0xf]
  %v205 = vld [vmem:[%s1 + $0x100] sm:$0xf]
  %v206 = vld [vmem:[%s1 + $0x104] sm:$0xf]
  %v207 = vld [vmem:[%s1 + $0x108] sm:$0xf]
  %v208 = vld [vmem:[%s1 + $0x10c] sm:$0xf]
  %v209 = vld [vmem:[%s1 + $0x110] sm:$0xf]
  %v210 = vld [vmem:[%s1 + $0x114] sm:$0xf]
  %v211 = vld [vmem:[%s1 + $0x118] sm:$0xf]
  %v212 = vld [vmem:[%s1 + $0x11c] sm:$0xf]
  %v213 = vld [vmem:[%s1 + $0x120] sm:$0xf]
  %v214 = vld [vmem:[%s1 + $0x124] sm:$0xf]
  %v215 = vld [vmem:[%s1 + $0x128] sm:$0xf]
  %v216 = vld [vmem:[%s1 + $0x12c] sm:$0xf]
  %v217 = vld [vmem:[%s1 + $0x130] sm:$0xf]
  %v218 = vld [vmem:[%s1 + $0x134] sm:$0xf]
  %v219 = vld [vmem:[%s1 + $0x138] sm:$0xf]
  %v220 = vld [vmem:[%s1 + $0x13c] sm:$0xf]
  %v221 = vld [vmem:[%s1 + $0x140] sm:$0xf]
  %v222 = vld [vmem:[%s1 + $0x144] sm:$0xf]
  %v223 = vld [vmem:[%s1 + $0x148] sm:$0xf]
  %v224 = vld [vmem:[%s1 + $0x14c] sm:$0xf]
  %v225 = vld [vmem:[%s1 + $0x150] sm:$0xf]
  %v226 = vld [vmem:[%s1 + $0x154] sm:$0xf]
  %v227 = vld [vmem:[%s1 + $0x158] sm:$0xf]
  %v228 = vld [vmem:[%s1 + $0x15c] sm:$0xf]
  %v229 = vld [vmem:[%s1 + $0x160] sm:$0xf]
  %v230 = vld [vmem:[%s1 + $0x164] sm:$0xf]
  %v231 = vld [vmem:[%s1 + $0x168] sm:$0xf]
  %v232 = vld [vmem:[%s1 + $0x16c] sm:$0xf]
  %v233 = vld [vmem:[%s1 + $0x170] sm:$0xf]
  %v234 = vld [vmem:[%s1 + $0x174] sm:$0xf]
  %v235 = vld [vmem:[%s1 + $0x178] sm:$0xf]
  %v236 = vld [vmem:[%s1 + $0x17c] sm:$0xf]
  %v237 = vld [vmem:[%s1 + $0x180] sm:$0xf]
  %v238 = vld [vmem:[%s1 + $0x184] sm:$0xf]
  %v239 = vld [vmem:[%s15] sm:$0xf]
  %v240 = vld [vmem:[%s15 + $0x4] sm:$0xf]
  %v241 = vld [vmem:[%s15 + $0x8] sm:$0xf]
  %v242 = vld [vmem:[%s15 + $0xc] sm:$0xf]
  %v243 = vld [vmem:[%s15 + $0x10] sm:$0xf]
  %v244 = vld [vmem:[%s15 + $0x14] sm:$0xf]
  %v245 = vld [vmem:[%s15 + $0x18] sm:$0x7]
  %v246 = vld [vmem:[%s17] sm:$0x1]
  %v248 = vlaneseq
  %v249 = vshrl.u32 %v248, 7
  %v250 = vsub.s32 0, %v249
  %v251 = vrot.slane %v246, %v250
  %v351 = vunpack.c.l.b16 %v141
  %v352 = vunpack.c.l.b16 %v142
  %v353 = vunpack.c.l.b16 %v143
  %v354 = vunpack.c.l.b16 %v144
  %v355 = vunpack.c.l.b16 %v145
  %v356 = vunpack.c.l.b16 %v146
  %v357 = vunpack.c.l.b16 %v147
  %v358 = vunpack.c.l.b16 %v148
  %v359 = vunpack.c.l.b16 %v149
  %v360 = vunpack.c.l.b16 %v150
  %v361 = vunpack.c.l.b16 %v151
  %v362 = vunpack.c.l.b16 %v152
  %v363 = vunpack.c.l.b16 %v153
  %v364 = vunpack.c.l.b16 %v154
  %v365 = vunpack.c.l.b16 %v155
  %v366 = vunpack.c.l.b16 %v156
  %v367 = vunpack.c.l.b16 %v157
  %v368 = vunpack.c.l.b16 %v158
  %v369 = vunpack.c.l.b16 %v159
  %v370 = vunpack.c.l.b16 %v160
  %v371 = vunpack.c.l.b16 %v161
  %v372 = vunpack.c.l.b16 %v162
  %v373 = vunpack.c.l.b16 %v163
  %v374 = vunpack.c.l.b16 %v164
  %v375 = vunpack.c.l.b16 %v165
  %v376 = vunpack.c.l.b16 %v166
  %v377 = vunpack.c.l.b16 %v167
  %v378 = vunpack.c.l.b16 %v168
  %v379 = vunpack.c.l.b16 %v169
  %v380 = vunpack.c.l.b16 %v170
  %v381 = vunpack.c.l.b16 %v171
  %v382 = vunpack.c.l.b16 %v172
  %v383 = vunpack.c.l.b16 %v173
  %v384 = vunpack.c.l.b16 %v174
  %v385 = vunpack.c.l.b16 %v175
  %v386 = vunpack.c.l.b16 %v176
  %v387 = vunpack.c.l.b16 %v177
  %v388 = vunpack.c.l.b16 %v178
  %v389 = vunpack.c.l.b16 %v179
  %v390 = vunpack.c.l.b16 %v180
  %v391 = vunpack.c.l.b16 %v181
  %v392 = vunpack.c.l.b16 %v182
  %v393 = vunpack.c.l.b16 %v183
  %v394 = vunpack.c.l.b16 %v184
  %v395 = vunpack.c.l.b16 %v185
  %v396 = vunpack.c.l.b16 %v186
  %v397 = vunpack.c.l.b16 %v187
  %v398 = vunpack.c.l.b16 %v188
  %v399 = vunpack.c.l.b16 %v189
  %v400 = vunpack.c.l.b16 %v190
  %v401 = vunpack.c.l.b16 %v191
  %v402 = vunpack.c.l.b16 %v192
  %v403 = vunpack.c.l.b16 %v193
  %v404 = vunpack.c.l.b16 %v194
  %v405 = vunpack.c.l.b16 %v195
  %v406 = vunpack.c.l.b16 %v196
  %v407 = vunpack.c.l.b16 %v197
  %v408 = vunpack.c.l.b16 %v198
  %v409 = vunpack.c.l.b16 %v199
  %v410 = vunpack.c.l.b16 %v200
  %v411 = vunpack.c.l.b16 %v201
  %v412 = vunpack.c.l.b16 %v202
  %v413 = vunpack.c.l.b16 %v203
  %v414 = vunpack.c.l.b16 %v204
  %v415 = vunpack.c.l.b16 %v205
  %v416 = vunpack.c.l.b16 %v206
  %v417 = vunpack.c.l.b16 %v207
  %v418 = vunpack.c.l.b16 %v208
  %v419 = vunpack.c.l.b16 %v209
  %v420 = vunpack.c.l.b16 %v210
  %v421 = vunpack.c.l.b16 %v211
  %v422 = vunpack.c.l.b16 %v212
  %v423 = vunpack.c.l.b16 %v213
  %v424 = vunpack.c.l.b16 %v214
  %v425 = vunpack.c.l.b16 %v215
  %v426 = vunpack.c.l.b16 %v216
  %v427 = vunpack.c.l.b16 %v217
  %v428 = vunpack.c.l.b16 %v218
  %v429 = vunpack.c.l.b16 %v219
  %v430 = vunpack.c.l.b16 %v220
  %v431 = vunpack.c.l.b16 %v221
  %v432 = vunpack.c.l.b16 %v222
  %v433 = vunpack.c.l.b16 %v223
  %v434 = vunpack.c.l.b16 %v224
  %v435 = vunpack.c.l.b16 %v225
  %v436 = vunpack.c.l.b16 %v226
  %v437 = vunpack.c.l.b16 %v227
  %v438 = vunpack.c.l.b16 %v228
  %v439 = vunpack.c.l.b16 %v229
  %v440 = vunpack.c.l.b16 %v230
  %v441 = vunpack.c.l.b16 %v231
  %v442 = vunpack.c.l.b16 %v232
  %v443 = vunpack.c.l.b16 %v233
  %v444 = vunpack.c.l.b16 %v234
  %v445 = vunpack.c.l.b16 %v235
  %v446 = vunpack.c.l.b16 %v236
  %v447 = vunpack.c.l.b16 %v237
  %v448 = vunpack.c.l.b16 %v238
  %v449 = vpack.c.b16 %v352, %v351
  %v450 = vpack.c.b16 %v354, %v353
  %v451 = vpack.c.b16 %v356, %v355
  %v452 = vpack.c.b16 %v358, %v357
  %v453 = vpack.c.b16 %v360, %v359
  %v454 = vpack.c.b16 %v362, %v361
  %v455 = vpack.c.b16 %v364, %v363
  %v456 = vpack.c.b16 %v366, %v365
  %v457 = vpack.c.b16 %v368, %v367
  %v458 = vpack.c.b16 %v370, %v369
  %v459 = vpack.c.b16 %v372, %v371
  %v460 = vpack.c.b16 %v374, %v373
  %v461 = vpack.c.b16 %v376, %v375
  %v462 = vpack.c.b16 %v378, %v377
  %v463 = vpack.c.b16 %v380, %v379
  %v464 = vpack.c.b16 %v382, %v381
  %v465 = vpack.c.b16 %v384, %v383
  %v466 = vpack.c.b16 %v386, %v385
  %v467 = vpack.c.b16 %v388, %v387
  %v468 = vpack.c.b16 %v390, %v389
  %v469 = vpack.c.b16 %v392, %v391
  %v470 = vpack.c.b16 %v394, %v393
  %v471 = vpack.c.b16 %v396, %v395
  %v472 = vpack.c.b16 %v398, %v397
  %v473 = vpack.c.b16 %v400, %v399
  %v474 = vpack.c.b16 %v402, %v401
  %v475 = vpack.c.b16 %v404, %v403
  %v476 = vpack.c.b16 %v406, %v405
  %v477 = vpack.c.b16 %v408, %v407
  %v478 = vpack.c.b16 %v410, %v409
  %v479 = vpack.c.b16 %v412, %v411
  %v480 = vpack.c.b16 %v414, %v413
  %v481 = vpack.c.b16 %v416, %v415
  %v482 = vpack.c.b16 %v418, %v417
  %v483 = vpack.c.b16 %v420, %v419
  %v484 = vpack.c.b16 %v422, %v421
  %v485 = vpack.c.b16 %v424, %v423
  %v486 = vpack.c.b16 %v426, %v425
  %v487 = vpack.c.b16 %v428, %v427
  %v488 = vpack.c.b16 %v430, %v429
  %v489 = vpack.c.b16 %v432, %v431
  %v490 = vpack.c.b16 %v434, %v433
  %v491 = vpack.c.b16 %v436, %v435
  %v492 = vpack.c.b16 %v438, %v437
  %v493 = vpack.c.b16 %v440, %v439
  %v494 = vpack.c.b16 %v442, %v441
  %v495 = vpack.c.b16 %v444, %v443
  %v496 = vpack.c.b16 %v446, %v445
  %v497 = vpack.c.b16 %v448, %v447
  %v505 = vunpack.c.l.b16 %v239
  %v506 = vunpack.c.l.b16 %v240
  %v507 = vunpack.c.l.b16 %v241
  %v508 = vunpack.c.l.b16 %v242
  %v509 = vunpack.c.l.b16 %v243
  %v510 = vunpack.c.l.b16 %v244
  %v511 = vunpack.c.l.b16 %v245
  %v512 = vpack.c.b16 %v506, %v505
  %v513 = vpack.c.b16 %v508, %v507
  %v514 = vpack.c.b16 %v510, %v509
  %v515 = vpack.c.b16 %v511, %v511
  %vm519 = vcmask 441344
  %v521 = vsel %vm519, %v449, 0
  %v524 = vsel %vm519, %v450, 0
  %v527 = vsel %vm519, %v451, 0
  %v530 = vsel %vm519, %v452, 0
  %v533 = vsel %vm519, %v453, 0
  %v536 = vsel %vm519, %v454, 0
  %v539 = vsel %vm519, %v455, 0
  %v542 = vsel %vm519, %v456, 0
  %v545 = vsel %vm519, %v457, 0
  %v548 = vsel %vm519, %v458, 0
  %v551 = vsel %vm519, %v459, 0
  %v554 = vsel %vm519, %v460, 0
  %v557 = vsel %vm519, %v461, 0
  %v560 = vsel %vm519, %v462, 0
  %v563 = vsel %vm519, %v463, 0
  %v566 = vsel %vm519, %v464, 0
  %v569 = vsel %vm519, %v465, 0
  %v572 = vsel %vm519, %v466, 0
  %v575 = vsel %vm519, %v467, 0
  %v578 = vsel %vm519, %v468, 0
  %v581 = vsel %vm519, %v469, 0
  %v584 = vsel %vm519, %v470, 0
  %v587 = vsel %vm519, %v471, 0
  %v590 = vsel %vm519, %v472, 0
  %v593 = vsel %vm519, %v473, 0
  %v596 = vsel %vm519, %v474, 0
  %v599 = vsel %vm519, %v475, 0
  %v602 = vsel %vm519, %v476, 0
  %v605 = vsel %vm519, %v477, 0
  %v608 = vsel %vm519, %v478, 0
  %v611 = vsel %vm519, %v479, 0
  %v614 = vsel %vm519, %v480, 0
  %v617 = vsel %vm519, %v481, 0
  %v620 = vsel %vm519, %v482, 0
  %v623 = vsel %vm519, %v483, 0
  %v626 = vsel %vm519, %v484, 0
  %v629 = vsel %vm519, %v485, 0
  %v632 = vsel %vm519, %v486, 0
  %v635 = vsel %vm519, %v487, 0
  %v638 = vsel %vm519, %v488, 0
  %v641 = vsel %vm519, %v489, 0
  %v644 = vsel %vm519, %v490, 0
  %v647 = vsel %vm519, %v491, 0
  %v650 = vsel %vm519, %v492, 0
  %v653 = vsel %vm519, %v493, 0
  %v656 = vsel %vm519, %v494, 0
  %v659 = vsel %vm519, %v495, 0
  %v662 = vsel %vm519, %v496, 0
  %v665 = vsel %vm519, %v497, 0
  %vm667 = vcmask 1042432
  %v669 = vsel %vm667, %v515, 0
  %671 = vmatprep.subr.bf16.mxu0 0
  %672 = vmatpush1.bf16.msra.mxu0 0
  %673 = vmatprep.subr.bf16.mxu0 0
  %674 = vmatpush1.bf16.msra.mxu0 0
  %675 = vmatprep.subr.bf16.mxu0 0
  %676 = vmatpush1.bf16.msra.mxu0 0
  %677 = vmatprep.subr.bf16.mxu0 0
  %678 = vmatpush1.bf16.msra.mxu0 0
  %679 = vmatprep.subr.bf16.mxu0 0
  %680 = vmatpush1.bf16.msra.mxu0 %v669
  %681 = vmatprep.subr.bf16.mxu0 0
  %682 = vmatpush1.bf16.msra.mxu0 %v514
  %683 = vmatprep.subr.bf16.mxu0 0
  %684 = vmatpush1.bf16.msra.mxu0 %v513
  %685 = vmatprep.subr.bf16.mxu0 0
  %686 = vmatpush1.bf16.msra.mxu0 %v512
  %687 = vmatprep.subr.bf16.mxu0 0
  %688 = vmatpush2.bf16.msra.mxu0 0
  %689 = vmatprep.subr.bf16.mxu0 0
  %690 = vmatpush2.bf16.msra.mxu0 0
  %691 = vmatprep.subr.bf16.mxu0 0
  %692 = vmatpush2.bf16.msra.mxu0 0
  %693 = vmatprep.subr.bf16.mxu0 0
  %694 = vmatpush2.bf16.msra.mxu0 0
  %695 = vmatprep.subr.bf16.mxu0 0
  %696 = vmatpush2.bf16.msra.mxu0 0
  %697 = vmatprep.subr.bf16.mxu0 0
  %698 = vmatpush2.bf16.msra.mxu0 0
  %699 = vmatprep.subr.bf16.mxu0 0
  %700 = vmatpush2.bf16.msra.mxu0 0
  %701 = vmatprep.subr.bf16.mxu0 0
  %702 = vmatpush2.bf16.msra.mxu0 0
  %703 = vmatprep.mubr.bf16.mxu0 0
  %704 = vmatmul.mubr.bf16.gmra.mxu0 %v521
  %v705 = vpop.f32.mrf.mxu0
  %v706 = vadd.f32 %v251, %v705
  %v707 = vpop.f32.mrf.mxu0
  %v708 = vpop.f32.mrf.mxu0
  %v709 = vadd.f32 %v251, %v708
  %v710 = vpop.f32.mrf.mxu0
  %711 = vmatprep.mubr.bf16.mxu0 0
  %712 = vmatmul.mubr.bf16.gmra.mxu0 %v524
  %v713 = vpop.f32.mrf.mxu0
  %v714 = vadd.f32 %v251, %v713
  %v715 = vpop.f32.mrf.mxu0
  %v716 = vpop.f32.mrf.mxu0
  %v717 = vadd.f32 %v251, %v716
  %v718 = vpop.f32.mrf.mxu0
  %719 = vmatprep.mubr.bf16.mxu0 0
  %720 = vmatmul.mubr.bf16.gmra.mxu0 %v527
  %v721 = vpop.f32.mrf.mxu0
  %v722 = vadd.f32 %v251, %v721
  %v723 = vpop.f32.mrf.mxu0
  %v724 = vpop.f32.mrf.mxu0
  %v725 = vadd.f32 %v251, %v724
  %v726 = vpop.f32.mrf.mxu0
  %727 = vmatprep.mubr.bf16.mxu0 0
  %728 = vmatmul.mubr.bf16.gmra.mxu0 %v530
  %v729 = vpop.f32.mrf.mxu0
  %v730 = vadd.f32 %v251, %v729
  %v731 = vpop.f32.mrf.mxu0
  %v732 = vpop.f32.mrf.mxu0
  %v733 = vadd.f32 %v251, %v732
  %v734 = vpop.f32.mrf.mxu0
  %735 = vmatprep.mubr.bf16.mxu0 0
  %736 = vmatmul.mubr.bf16.gmra.mxu0 %v533
  %v737 = vpop.f32.mrf.mxu0
  %v738 = vadd.f32 %v251, %v737
  %v739 = vpop.f32.mrf.mxu0
  %v740 = vpop.f32.mrf.mxu0
  %v741 = vadd.f32 %v251, %v740
  %v742 = vpop.f32.mrf.mxu0
  %743 = vmatprep.mubr.bf16.mxu0 0
  %744 = vmatmul.mubr.bf16.gmra.mxu0 %v536
  %v745 = vpop.f32.mrf.mxu0
  %v746 = vadd.f32 %v251, %v745
  %v747 = vpop.f32.mrf.mxu0
  %v748 = vpop.f32.mrf.mxu0
  %v749 = vadd.f32 %v251, %v748
  %v750 = vpop.f32.mrf.mxu0
  %751 = vmatprep.mubr.bf16.mxu0 0
  %752 = vmatmul.mubr.bf16.gmra.mxu0 %v539
  %v753 = vpop.f32.mrf.mxu0
  %v754 = vadd.f32 %v251, %v753
  %v755 = vpop.f32.mrf.mxu0
  %v756 = vpop.f32.mrf.mxu0
  %v757 = vadd.f32 %v251, %v756
  %v758 = vpop.f32.mrf.mxu0
  %759 = vmatprep.mubr.bf16.mxu0 0
  %760 = vmatmul.mubr.bf16.gmra.mxu0 %v542
  %v761 = vpop.f32.mrf.mxu0
  %v762 = vadd.f32 %v251, %v761
  %v763 = vpop.f32.mrf.mxu0
  %v764 = vpop.f32.mrf.mxu0
  %v765 = vadd.f32 %v251, %v764
  %v766 = vpop.f32.mrf.mxu0
  %767 = vmatprep.mubr.bf16.mxu0 0
  %768 = vmatmul.mubr.bf16.gmra.mxu0 %v545
  %v769 = vpop.f32.mrf.mxu0
  %v770 = vadd.f32 %v251, %v769
  %v771 = vpop.f32.mrf.mxu0
  %v772 = vpop.f32.mrf.mxu0
  %v773 = vadd.f32 %v251, %v772
  %v774 = vpop.f32.mrf.mxu0
  %775 = vmatprep.mubr.bf16.mxu0 0
  %776 = vmatmul.mubr.bf16.gmra.mxu0 %v548
  %v777 = vpop.f32.mrf.mxu0
  %v778 = vadd.f32 %v251, %v777
  %v779 = vpop.f32.mrf.mxu0
  %v780 = vpop.f32.mrf.mxu0
  %v781 = vadd.f32 %v251, %v780
  %v782 = vpop.f32.mrf.mxu0
  %783 = vmatprep.mubr.bf16.mxu0 0
  %784 = vmatmul.mubr.bf16.gmra.mxu0 %v551
  %v785 = vpop.f32.mrf.mxu0
  %v786 = vadd.f32 %v251, %v785
  %v787 = vpop.f32.mrf.mxu0
  %v788 = vpop.f32.mrf.mxu0
  %v789 = vadd.f32 %v251, %v788
  %v790 = vpop.f32.mrf.mxu0
  %791 = vmatprep.mubr.bf16.mxu0 0
  %792 = vmatmul.mubr.bf16.gmra.mxu0 %v554
  %v793 = vpop.f32.mrf.mxu0
  %v794 = vadd.f32 %v251, %v793
  %v795 = vpop.f32.mrf.mxu0
  %v796 = vpop.f32.mrf.mxu0
  %v797 = vadd.f32 %v251, %v796
  %v798 = vpop.f32.mrf.mxu0
  %799 = vmatprep.mubr.bf16.mxu0 0
  %800 = vmatmul.mubr.bf16.gmra.mxu0 %v557
  %v801 = vpop.f32.mrf.mxu0
  %v802 = vadd.f32 %v251, %v801
  %v803 = vpop.f32.mrf.mxu0
  %v804 = vpop.f32.mrf.mxu0
  %v805 = vadd.f32 %v251, %v804
  %v806 = vpop.f32.mrf.mxu0
  %807 = vmatprep.mubr.bf16.mxu0 0
  %808 = vmatmul.mubr.bf16.gmra.mxu0 %v560
  %v809 = vpop.f32.mrf.mxu0
  %v810 = vadd.f32 %v251, %v809
  %v811 = vpop.f32.mrf.mxu0
  %v812 = vpop.f32.mrf.mxu0
  %v813 = vadd.f32 %v251, %v812
  %v814 = vpop.f32.mrf.mxu0
  %815 = vmatprep.mubr.bf16.mxu0 0
  %816 = vmatmul.mubr.bf16.gmra.mxu0 %v563
  %v817 = vpop.f32.mrf.mxu0
  %v818 = vadd.f32 %v251, %v817
  %v819 = vpop.f32.mrf.mxu0
  %v820 = vpop.f32.mrf.mxu0
  %v821 = vadd.f32 %v251, %v820
  %v822 = vpop.f32.mrf.mxu0
  %823 = vmatprep.mubr.bf16.mxu0 0
  %824 = vmatmul.mubr.bf16.gmra.mxu0 %v566
  %v825 = vpop.f32.mrf.mxu0
  %v826 = vadd.f32 %v251, %v825
  %v827 = vpop.f32.mrf.mxu0
  %v828 = vpop.f32.mrf.mxu0
  %v829 = vadd.f32 %v251, %v828
  %v830 = vpop.f32.mrf.mxu0
  %831 = vmatprep.mubr.bf16.mxu0 0
  %832 = vmatmul.mubr.bf16.gmra.mxu0 %v569
  %v833 = vpop.f32.mrf.mxu0
  %v834 = vadd.f32 %v251, %v833
  %v835 = vpop.f32.mrf.mxu0
  %v836 = vpop.f32.mrf.mxu0
  %v837 = vadd.f32 %v251, %v836
  %v838 = vpop.f32.mrf.mxu0
  %839 = vmatprep.mubr.bf16.mxu0 0
  %840 = vmatmul.mubr.bf16.gmra.mxu0 %v572
  %v841 = vpop.f32.mrf.mxu0
  %v842 = vadd.f32 %v251, %v841
  %v843 = vpop.f32.mrf.mxu0
  %v844 = vpop.f32.mrf.mxu0
  %v845 = vadd.f32 %v251, %v844
  %v846 = vpop.f32.mrf.mxu0
  %847 = vmatprep.mubr.bf16.mxu0 0
  %848 = vmatmul.mubr.bf16.gmra.mxu0 %v575
  %v849 = vpop.f32.mrf.mxu0
  %v850 = vadd.f32 %v251, %v849
  %v851 = vpop.f32.mrf.mxu0
  %v852 = vpop.f32.mrf.mxu0
  %v853 = vadd.f32 %v251, %v852
  %v854 = vpop.f32.mrf.mxu0
  %855 = vmatprep.mubr.bf16.mxu0 0
  %856 = vmatmul.mubr.bf16.gmra.mxu0 %v578
  %v857 = vpop.f32.mrf.mxu0
  %v858 = vadd.f32 %v251, %v857
  %v859 = vpop.f32.mrf.mxu0
  %v860 = vpop.f32.mrf.mxu0
  %v861 = vadd.f32 %v251, %v860
  %v862 = vpop.f32.mrf.mxu0
  %863 = vmatprep.mubr.bf16.mxu0 0
  %864 = vmatmul.mubr.bf16.gmra.mxu0 %v581
  %v865 = vpop.f32.mrf.mxu0
  %v866 = vadd.f32 %v251, %v865
  %v867 = vpop.f32.mrf.mxu0
  %v868 = vpop.f32.mrf.mxu0
  %v869 = vadd.f32 %v251, %v868
  %v870 = vpop.f32.mrf.mxu0
  %871 = vmatprep.mubr.bf16.mxu0 0
  %872 = vmatmul.mubr.bf16.gmra.mxu0 %v584
  %v873 = vpop.f32.mrf.mxu0
  %v874 = vadd.f32 %v251, %v873
  %v875 = vpop.f32.mrf.mxu0
  %v876 = vpop.f32.mrf.mxu0
  %v877 = vadd.f32 %v251, %v876
  %v878 = vpop.f32.mrf.mxu0
  %879 = vmatprep.mubr.bf16.mxu0 0
  %880 = vmatmul.mubr.bf16.gmra.mxu0 %v587
  %v881 = vpop.f32.mrf.mxu0
  %v882 = vadd.f32 %v251, %v881
  %v883 = vpop.f32.mrf.mxu0
  %v884 = vpop.f32.mrf.mxu0
  %v885 = vadd.f32 %v251, %v884
  %v886 = vpop.f32.mrf.mxu0
  %887 = vmatprep.mubr.bf16.mxu0 0
  %888 = vmatmul.mubr.bf16.gmra.mxu0 %v590
  %v889 = vpop.f32.mrf.mxu0
  %v890 = vadd.f32 %v251, %v889
  %v891 = vpop.f32.mrf.mxu0
  %v892 = vpop.f32.mrf.mxu0
  %v893 = vadd.f32 %v251, %v892
  %v894 = vpop.f32.mrf.mxu0
  %895 = vmatprep.mubr.bf16.mxu0 0
  %896 = vmatmul.mubr.bf16.gmra.mxu0 %v593
  %v897 = vpop.f32.mrf.mxu0
  %v898 = vadd.f32 %v251, %v897
  %v899 = vpop.f32.mrf.mxu0
  %v900 = vpop.f32.mrf.mxu0
  %v901 = vadd.f32 %v251, %v900
  %v902 = vpop.f32.mrf.mxu0
  %903 = vmatprep.mubr.bf16.mxu0 0
  %904 = vmatmul.mubr.bf16.gmra.mxu0 %v596
  %v905 = vpop.f32.mrf.mxu0
  %v906 = vadd.f32 %v251, %v905
  %v907 = vpop.f32.mrf.mxu0
  %v908 = vpop.f32.mrf.mxu0
  %v909 = vadd.f32 %v251, %v908
  %v910 = vpop.f32.mrf.mxu0
  %911 = vmatprep.mubr.bf16.mxu0 0
  %912 = vmatmul.mubr.bf16.gmra.mxu0 %v599
  %v913 = vpop.f32.mrf.mxu0
  %v914 = vadd.f32 %v251, %v913
  %v915 = vpop.f32.mrf.mxu0
  %v916 = vpop.f32.mrf.mxu0
  %v917 = vadd.f32 %v251, %v916
  %v918 = vpop.f32.mrf.mxu0
  %919 = vmatprep.mubr.bf16.mxu0 0
  %920 = vmatmul.mubr.bf16.gmra.mxu0 %v602
  %v921 = vpop.f32.mrf.mxu0
  %v922 = vadd.f32 %v251, %v921
  %v923 = vpop.f32.mrf.mxu0
  %v924 = vpop.f32.mrf.mxu0
  %v925 = vadd.f32 %v251, %v924
  %v926 = vpop.f32.mrf.mxu0
  %927 = vmatprep.mubr.bf16.mxu0 0
  %928 = vmatmul.mubr.bf16.gmra.mxu0 %v605
  %v929 = vpop.f32.mrf.mxu0
  %v930 = vadd.f32 %v251, %v929
  %v931 = vpop.f32.mrf.mxu0
  %v932 = vpop.f32.mrf.mxu0
  %v933 = vadd.f32 %v251, %v932
  %v934 = vpop.f32.mrf.mxu0
  %935 = vmatprep.mubr.bf16.mxu0 0
  %936 = vmatmul.mubr.bf16.gmra.mxu0 %v608
  %v937 = vpop.f32.mrf.mxu0
  %v938 = vadd.f32 %v251, %v937
  %v939 = vpop.f32.mrf.mxu0
  %v940 = vpop.f32.mrf.mxu0
  %v941 = vadd.f32 %v251, %v940
  %v942 = vpop.f32.mrf.mxu0
  %943 = vmatprep.mubr.bf16.mxu0 0
  %944 = vmatmul.mubr.bf16.gmra.mxu0 %v611
  %v945 = vpop.f32.mrf.mxu0
  %v946 = vadd.f32 %v251, %v945
  %v947 = vpop.f32.mrf.mxu0
  %v948 = vpop.f32.mrf.mxu0
  %v949 = vadd.f32 %v251, %v948
  %v950 = vpop.f32.mrf.mxu0
  %951 = vmatprep.mubr.bf16.mxu0 0
  %952 = vmatmul.mubr.bf16.gmra.mxu0 %v614
  %v953 = vpop.f32.mrf.mxu0
  %v954 = vadd.f32 %v251, %v953
  %v955 = vpop.f32.mrf.mxu0
  %v956 = vpop.f32.mrf.mxu0
  %v957 = vadd.f32 %v251, %v956
  %v958 = vpop.f32.mrf.mxu0
  %959 = vmatprep.mubr.bf16.mxu0 0
  %960 = vmatmul.mubr.bf16.gmra.mxu0 %v617
  %v961 = vpop.f32.mrf.mxu0
  %v962 = vadd.f32 %v251, %v961
  %v963 = vpop.f32.mrf.mxu0
  %v964 = vpop.f32.mrf.mxu0
  %v965 = vadd.f32 %v251, %v964
  %v966 = vpop.f32.mrf.mxu0
  %967 = vmatprep.mubr.bf16.mxu0 0
  %968 = vmatmul.mubr.bf16.gmra.mxu0 %v620
  %v969 = vpop.f32.mrf.mxu0
  %v970 = vadd.f32 %v251, %v969
  %v971 = vpop.f32.mrf.mxu0
  %v972 = vpop.f32.mrf.mxu0
  %v973 = vadd.f32 %v251, %v972
  %v974 = vpop.f32.mrf.mxu0
  %975 = vmatprep.mubr.bf16.mxu0 0
  %976 = vmatmul.mubr.bf16.gmra.mxu0 %v623
  %v977 = vpop.f32.mrf.mxu0
  %v978 = vadd.f32 %v251, %v977
  %v979 = vpop.f32.mrf.mxu0
  %v980 = vpop.f32.mrf.mxu0
  %v981 = vadd.f32 %v251, %v980
  %v982 = vpop.f32.mrf.mxu0
  %983 = vmatprep.mubr.bf16.mxu0 0
  %984 = vmatmul.mubr.bf16.gmra.mxu0 %v626
  %v985 = vpop.f32.mrf.mxu0
  %v986 = vadd.f32 %v251, %v985
  %v987 = vpop.f32.mrf.mxu0
  %v988 = vpop.f32.mrf.mxu0
  %v989 = vadd.f32 %v251, %v988
  %v990 = vpop.f32.mrf.mxu0
  %991 = vmatprep.mubr.bf16.mxu0 0
  %992 = vmatmul.mubr.bf16.gmra.mxu0 %v629
  %v993 = vpop.f32.mrf.mxu0
  %v994 = vadd.f32 %v251, %v993
  %v995 = vpop.f32.mrf.mxu0
  %v996 = vpop.f32.mrf.mxu0
  %v997 = vadd.f32 %v251, %v996
  %v998 = vpop.f32.mrf.mxu0
  %999 = vmatprep.mubr.bf16.mxu0 0
  %1000 = vmatmul.mubr.bf16.gmra.mxu0 %v632
  %v1001 = vpop.f32.mrf.mxu0
  %v1002 = vadd.f32 %v251, %v1001
  %v1003 = vpop.f32.mrf.mxu0
  %v1004 = vpop.f32.mrf.mxu0
  %v1005 = vadd.f32 %v251, %v1004
  %v1006 = vpop.f32.mrf.mxu0
  %1007 = vmatprep.mubr.bf16.mxu0 0
  %1008 = vmatmul.mubr.bf16.gmra.mxu0 %v635
  %v1009 = vpop.f32.mrf.mxu0
  %v1010 = vadd.f32 %v251, %v1009
  %v1011 = vpop.f32.mrf.mxu0
  %v1012 = vpop.f32.mrf.mxu0
  %v1013 = vadd.f32 %v251, %v1012
  %v1014 = vpop.f32.mrf.mxu0
  %1015 = vmatprep.mubr.bf16.mxu0 0
  %1016 = vmatmul.mubr.bf16.gmra.mxu0 %v638
  %v1017 = vpop.f32.mrf.mxu0
  %v1018 = vadd.f32 %v251, %v1017
  %v1019 = vpop.f32.mrf.mxu0
  %v1020 = vpop.f32.mrf.mxu0
  %v1021 = vadd.f32 %v251, %v1020
  %v1022 = vpop.f32.mrf.mxu0
  %1023 = vmatprep.mubr.bf16.mxu0 0
  %1024 = vmatmul.mubr.bf16.gmra.mxu0 %v641
  %v1025 = vpop.f32.mrf.mxu0
  %v1026 = vadd.f32 %v251, %v1025
  %v1027 = vpop.f32.mrf.mxu0
  %v1028 = vpop.f32.mrf.mxu0
  %v1029 = vadd.f32 %v251, %v1028
  %v1030 = vpop.f32.mrf.mxu0
  %1031 = vmatprep.mubr.bf16.mxu0 0
  %1032 = vmatmul.mubr.bf16.gmra.mxu0 %v644
  %v1033 = vpop.f32.mrf.mxu0
  %v1034 = vadd.f32 %v251, %v1033
  %v1035 = vpop.f32.mrf.mxu0
  %v1036 = vpop.f32.mrf.mxu0
  %v1037 = vadd.f32 %v251, %v1036
  %v1038 = vpop.f32.mrf.mxu0
  %1039 = vmatprep.mubr.bf16.mxu0 0
  %1040 = vmatmul.mubr.bf16.gmra.mxu0 %v647
  %v1041 = vpop.f32.mrf.mxu0
  %v1042 = vadd.f32 %v251, %v1041
  %v1043 = vpop.f32.mrf.mxu0
  %v1044 = vpop.f32.mrf.mxu0
  %v1045 = vadd.f32 %v251, %v1044
  %v1046 = vpop.f32.mrf.mxu0
  %1047 = vmatprep.mubr.bf16.mxu0 0
  %1048 = vmatmul.mubr.bf16.gmra.mxu0 %v650
  %v1049 = vpop.f32.mrf.mxu0
  %v1050 = vadd.f32 %v251, %v1049
  %v1051 = vpop.f32.mrf.mxu0
  %v1052 = vpop.f32.mrf.mxu0
  %v1053 = vadd.f32 %v251, %v1052
  %v1054 = vpop.f32.mrf.mxu0
  %1055 = vmatprep.mubr.bf16.mxu0 0
  %1056 = vmatmul.mubr.bf16.gmra.mxu0 %v653
  %v1057 = vpop.f32.mrf.mxu0
  %v1058 = vadd.f32 %v251, %v1057
  %v1059 = vpop.f32.mrf.mxu0
  %v1060 = vpop.f32.mrf.mxu0
  %v1061 = vadd.f32 %v251, %v1060
  %v1062 = vpop.f32.mrf.mxu0
  %1063 = vmatprep.mubr.bf16.mxu0 0
  %1064 = vmatmul.mubr.bf16.gmra.mxu0 %v656
  %v1065 = vpop.f32.mrf.mxu0
  %v1066 = vadd.f32 %v251, %v1065
  %v1067 = vpop.f32.mrf.mxu0
  %v1068 = vpop.f32.mrf.mxu0
  %v1069 = vadd.f32 %v251, %v1068
  %v1070 = vpop.f32.mrf.mxu0
  %1071 = vmatprep.mubr.bf16.mxu0 0
  %1072 = vmatmul.mubr.bf16.gmra.mxu0 %v659
  %v1073 = vpop.f32.mrf.mxu0
  %v1074 = vadd.f32 %v251, %v1073
  %v1075 = vpop.f32.mrf.mxu0
  %v1076 = vpop.f32.mrf.mxu0
  %v1077 = vadd.f32 %v251, %v1076
  %v1078 = vpop.f32.mrf.mxu0
  %1079 = vmatprep.mubr.bf16.mxu0 0
  %1080 = vmatmul.mubr.bf16.gmra.mxu0 %v662
  %v1081 = vpop.f32.mrf.mxu0
  %v1082 = vadd.f32 %v251, %v1081
  %v1083 = vpop.f32.mrf.mxu0
  %v1084 = vpop.f32.mrf.mxu0
  %v1085 = vadd.f32 %v251, %v1084
  %v1086 = vpop.f32.mrf.mxu0
  %1087 = vmatprep.mubr.bf16.mxu0 0
  %1088 = vmatmul.mubr.bf16.gmra.mxu0 %v665
  %v1089 = vpop.f32.mrf.mxu0
  %v1090 = vadd.f32 %v251, %v1089
  %v1091 = vpop.f32.mrf.mxu0
  %v1092 = vpop.f32.mrf.mxu0
  %v1093 = vadd.f32 %v251, %v1092
  %v1094 = vpop.f32.mrf.mxu0
  %1095 = vdwg.mxu0
  %v1096 = vmax.f32 %v706, 0.0
  %v1097 = vmax.f32 %v709, 0.0
  %v1098 = vmax.f32 %v714, 0.0
  %v1099 = vmax.f32 %v717, 0.0
  %v1100 = vmax.f32 %v722, 0.0
  %v1101 = vmax.f32 %v725, 0.0
  %v1102 = vmax.f32 %v730, 0.0
  %v1103 = vmax.f32 %v733, 0.0
  %v1104 = vmax.f32 %v738, 0.0
  %v1105 = vmax.f32 %v741, 0.0
  %v1106 = vmax.f32 %v746, 0.0
  %v1107 = vmax.f32 %v749, 0.0
  %v1108 = vmax.f32 %v754, 0.0
  %v1109 = vmax.f32 %v757, 0.0
  %v1110 = vmax.f32 %v762, 0.0
  %v1111 = vmax.f32 %v765, 0.0
  %v1112 = vmax.f32 %v770, 0.0
  %v1113 = vmax.f32 %v773, 0.0
  %v1114 = vmax.f32 %v778, 0.0
  %v1115 = vmax.f32 %v781, 0.0
  %v1116 = vmax.f32 %v786, 0.0
  %v1117 = vmax.f32 %v789, 0.0
  %v1118 = vmax.f32 %v794, 0.0
  %v1119 = vmax.f32 %v797, 0.0
  %v1120 = vmax.f32 %v802, 0.0
  %v1121 = vmax.f32 %v805, 0.0
  %v1122 = vmax.f32 %v810, 0.0
  %v1123 = vmax.f32 %v813, 0.0
  %v1124 = vmax.f32 %v818, 0.0
  %v1125 = vmax.f32 %v821, 0.0
  %v1126 = vmax.f32 %v826, 0.0
  %v1127 = vmax.f32 %v829, 0.0
  %v1128 = vmax.f32 %v834, 0.0
  %v1129 = vmax.f32 %v837, 0.0
  %v1130 = vmax.f32 %v842, 0.0
  %v1131 = vmax.f32 %v845, 0.0
  %v1132 = vmax.f32 %v850, 0.0
  %v1133 = vmax.f32 %v853, 0.0
  %v1134 = vmax.f32 %v858, 0.0
  %v1135 = vmax.f32 %v861, 0.0
  %v1136 = vmax.f32 %v866, 0.0
  %v1137 = vmax.f32 %v869, 0.0
  %v1138 = vmax.f32 %v874, 0.0
  %v1139 = vmax.f32 %v877, 0.0
  %v1140 = vmax.f32 %v882, 0.0
  %v1141 = vmax.f32 %v885, 0.0
  %v1142 = vmax.f32 %v890, 0.0
  %v1143 = vmax.f32 %v893, 0.0
  %v1144 = vmax.f32 %v898, 0.0
  %v1145 = vmax.f32 %v901, 0.0
  %v1146 = vmax.f32 %v906, 0.0
  %v1147 = vmax.f32 %v909, 0.0
  %v1148 = vmax.f32 %v914, 0.0
  %v1149 = vmax.f32 %v917, 0.0
  %v1150 = vmax.f32 %v922, 0.0
  %v1151 = vmax.f32 %v925, 0.0
  %v1152 = vmax.f32 %v930, 0.0
  %v1153 = vmax.f32 %v933, 0.0
  %v1154 = vmax.f32 %v938, 0.0
  %v1155 = vmax.f32 %v941, 0.0
  %v1156 = vmax.f32 %v946, 0.0
  %v1157 = vmax.f32 %v949, 0.0
  %v1158 = vmax.f32 %v954, 0.0
  %v1159 = vmax.f32 %v957, 0.0
  %v1160 = vmax.f32 %v962, 0.0
  %v1161 = vmax.f32 %v965, 0.0
  %v1162 = vmax.f32 %v970, 0.0
  %v1163 = vmax.f32 %v973, 0.0
  %v1164 = vmax.f32 %v978, 0.0
  %v1165 = vmax.f32 %v981, 0.0
  %v1166 = vmax.f32 %v986, 0.0
  %v1167 = vmax.f32 %v989, 0.0
  %v1168 = vmax.f32 %v994, 0.0
  %v1169 = vmax.f32 %v997, 0.0
  %v1170 = vmax.f32 %v1002, 0.0
  %v1171 = vmax.f32 %v1005, 0.0
  %v1172 = vmax.f32 %v1010, 0.0
  %v1173 = vmax.f32 %v1013, 0.0
  %v1174 = vmax.f32 %v1018, 0.0
  %v1175 = vmax.f32 %v1021, 0.0
  %v1176 = vmax.f32 %v1026, 0.0
  %v1177 = vmax.f32 %v1029, 0.0
  %v1178 = vmax.f32 %v1034, 0.0
  %v1179 = vmax.f32 %v1037, 0.0
  %v1180 = vmax.f32 %v1042, 0.0
  %v1181 = vmax.f32 %v1045, 0.0
  %v1182 = vmax.f32 %v1050, 0.0
  %v1183 = vmax.f32 %v1053, 0.0
  %v1184 = vmax.f32 %v1058, 0.0
  %v1185 = vmax.f32 %v1061, 0.0
  %v1186 = vmax.f32 %v1066, 0.0
  %v1187 = vmax.f32 %v1069, 0.0
  %v1188 = vmax.f32 %v1074, 0.0
  %v1189 = vmax.f32 %v1077, 0.0
  %v1190 = vmax.f32 %v1082, 0.0
  %v1191 = vmax.f32 %v1085, 0.0
  %v1192 = vmax.f32 %v1090, 0.0
  %v1193 = vmax.f32 %v1093, 0.0
  %v1194 = vld [vmem:[%s3] sm:$0xff]
  %v1195 = vld [vmem:[%s3 + $0x8] sm:$0xff]
  %v1196 = vld [vmem:[%s3 + $0x10] sm:$0xff]
  %v1197 = vld [vmem:[%s3 + $0x18] sm:$0xff]
  %v1198 = vld [vmem:[%s3 + $0x20] sm:$0xff]
  %v1199 = vld [vmem:[%s3 + $0x28] sm:$0xff]
  %v1200 = vld [vmem:[%s3 + $0x30] sm:$0xff]
  %v1201 = vld [vmem:[%s3 + $0x38] sm:$0xff]
  %v1202 = vld [vmem:[%s3 + $0x40] sm:$0xff]
  %v1203 = vld [vmem:[%s3 + $0x48] sm:$0xff]
  %v1204 = vld [vmem:[%s3 + $0x50] sm:$0xff]
  %v1205 = vld [vmem:[%s3 + $0x58] sm:$0xff]
  %v1206 = vld [vmem:[%s3 + $0x60] sm:$0xff]
  %v1207 = vld [vmem:[%s3 + $0x68] sm:$0xff]
  %v1208 = vld [vmem:[%s3 + $0x70] sm:$0xff]
  %v1209 = vld [vmem:[%s3 + $0x78] sm:$0xff]
  %v1210 = vld [vmem:[%s3 + $0x80] sm:$0xff]
  %v1211 = vld [vmem:[%s3 + $0x88] sm:$0xff]
  %v1212 = vld [vmem:[%s3 + $0x90] sm:$0xff]
  %v1213 = vld [vmem:[%s3 + $0x98] sm:$0xff]
  %v1214 = vld [vmem:[%s3 + $0xa0] sm:$0xff]
  %v1215 = vld [vmem:[%s3 + $0xa8] sm:$0xff]
  %v1216 = vld [vmem:[%s3 + $0xb0] sm:$0xff]
  %v1217 = vld [vmem:[%s3 + $0xb8] sm:$0xff]
  %v1218 = vld [vmem:[%s3 + $0xc0] sm:$0xff]
  %v1219 = vld [vmem:[%s3 + $0xc8] sm:$0xff]
  %v1220 = vld [vmem:[%s3 + $0xd0] sm:$0xff]
  %v1221 = vld [vmem:[%s3 + $0xd8] sm:$0xff]
  %v1222 = vld [vmem:[%s3 + $0xe0] sm:$0xff]
  %v1223 = vld [vmem:[%s3 + $0xe8] sm:$0xff]
  %v1224 = vld [vmem:[%s3 + $0xf0] sm:$0xff]
  %v1225 = vld [vmem:[%s3 + $0xf8] sm:$0xff]
  %v1226 = vld [vmem:[%s3 + $0x100] sm:$0xff]
  %v1227 = vld [vmem:[%s3 + $0x108] sm:$0xff]
  %v1228 = vld [vmem:[%s3 + $0x110] sm:$0xff]
  %v1229 = vld [vmem:[%s3 + $0x118] sm:$0xff]
  %v1230 = vld [vmem:[%s3 + $0x120] sm:$0xff]
  %v1231 = vld [vmem:[%s3 + $0x128] sm:$0xff]
  %v1232 = vld [vmem:[%s3 + $0x130] sm:$0xff]
  %v1233 = vld [vmem:[%s3 + $0x138] sm:$0xff]
  %v1234 = vld [vmem:[%s3 + $0x140] sm:$0xff]
  %v1235 = vld [vmem:[%s3 + $0x148] sm:$0xff]
  %v1236 = vld [vmem:[%s3 + $0x150] sm:$0xff]
  %v1237 = vld [vmem:[%s3 + $0x158] sm:$0xff]
  %v1238 = vld [vmem:[%s3 + $0x160] sm:$0xff]
  %v1239 = vld [vmem:[%s3 + $0x168] sm:$0xff]
  %v1240 = vld [vmem:[%s3 + $0x170] sm:$0xff]
  %v1241 = vld [vmem:[%s3 + $0x178] sm:$0xff]
  %v1242 = vld [vmem:[%s3 + $0x180] sm:$0xff]
  %v1243 = vld [vmem:[%s3 + $0x188] sm:$0xff]
  %v1244 = vld [vmem:[%s3 + $0x190] sm:$0xff]
  %v1245 = vld [vmem:[%s3 + $0x198] sm:$0xff]
  %v1246 = vld [vmem:[%s3 + $0x1a0] sm:$0xff]
  %v1247 = vld [vmem:[%s3 + $0x1a8] sm:$0xff]
  %v1248 = vld [vmem:[%s3 + $0x1b0] sm:$0xff]
  %v1249 = vld [vmem:[%s3 + $0x1b8] sm:$0xff]
  %v1250 = vld [vmem:[%s3 + $0x1c0] sm:$0xff]
  %v1251 = vld [vmem:[%s3 + $0x1c8] sm:$0xff]
  %v1252 = vld [vmem:[%s3 + $0x1d0] sm:$0xff]
  %v1253 = vld [vmem:[%s3 + $0x1d8] sm:$0xff]
  %v1254 = vld [vmem:[%s3 + $0x1e0] sm:$0xff]
  %v1255 = vld [vmem:[%s3 + $0x1e8] sm:$0xff]
  %v1256 = vld [vmem:[%s3 + $0x1f0] sm:$0xff]
  %v1257 = vld [vmem:[%s3 + $0x1f8] sm:$0xff]
  %v1258 = vld [vmem:[%s3 + $0x200] sm:$0xff]
  %v1259 = vld [vmem:[%s3 + $0x208] sm:$0xff]
  %v1260 = vld [vmem:[%s3 + $0x210] sm:$0xff]
  %v1261 = vld [vmem:[%s3 + $0x218] sm:$0xff]
  %v1262 = vld [vmem:[%s3 + $0x220] sm:$0xff]
  %v1263 = vld [vmem:[%s3 + $0x228] sm:$0xff]
  %v1264 = vld [vmem:[%s3 + $0x230] sm:$0xff]
  %v1265 = vld [vmem:[%s3 + $0x238] sm:$0xff]
  %v1266 = vld [vmem:[%s3 + $0x240] sm:$0xff]
  %v1267 = vld [vmem:[%s3 + $0x248] sm:$0xff]
  %v1268 = vld [vmem:[%s3 + $0x250] sm:$0xff]
  %v1269 = vld [vmem:[%s3 + $0x258] sm:$0xff]
  %v1270 = vld [vmem:[%s3 + $0x260] sm:$0xff]
  %v1271 = vld [vmem:[%s3 + $0x268] sm:$0xff]
  %v1272 = vld [vmem:[%s3 + $0x270] sm:$0xff]
  %v1273 = vld [vmem:[%s3 + $0x278] sm:$0xff]
  %v1274 = vld [vmem:[%s3 + $0x280] sm:$0xff]
  %v1275 = vld [vmem:[%s3 + $0x288] sm:$0xff]
  %v1276 = vld [vmem:[%s3 + $0x290] sm:$0xff]
  %v1277 = vld [vmem:[%s3 + $0x298] sm:$0xff]
  %v1278 = vld [vmem:[%s3 + $0x2a0] sm:$0xff]
  %v1279 = vld [vmem:[%s3 + $0x2a8] sm:$0xff]
  %v1280 = vld [vmem:[%s3 + $0x2b0] sm:$0xff]
  %v1281 = vld [vmem:[%s3 + $0x2b8] sm:$0xff]
  %v1282 = vld [vmem:[%s3 + $0x2c0] sm:$0xff]
  %v1283 = vld [vmem:[%s3 + $0x2c8] sm:$0xff]
  %v1284 = vld [vmem:[%s3 + $0x2d0] sm:$0xff]
  %v1285 = vld [vmem:[%s3 + $0x2d8] sm:$0xff]
  %v1286 = vld [vmem:[%s3 + $0x2e0] sm:$0xff]
  %v1287 = vld [vmem:[%s3 + $0x2e8] sm:$0xff]
  %v1288 = vld [vmem:[%s3 + $0x2f0] sm:$0xff]
  %v1289 = vld [vmem:[%s3 + $0x2f8] sm:$0xff]
  %v1290 = vld [vmem:[%s3 + $0x300] sm:$0xff]
  %v1291 = vld [vmem:[%s3 + $0x308] sm:$0xff]
  %1293 = vset.pattern.permute.xlu0 0
  %1294 = vperm.xlu0 %1293, %v1194
  %v1295 = vpop.permute.xlu0 %1294
  %1298 = vset.pattern.permute.xlu0 0
  %1299 = vperm.xlu0 %1298, %v1195
  %v1300 = vpop.permute.xlu0 %1299
  %1303 = vset.pattern.permute.xlu0 0
  %1304 = vperm.xlu0 %1303, %v1196
  %v1305 = vpop.permute.xlu0 %1304
  %1308 = vset.pattern.permute.xlu0 0
  %1309 = vperm.xlu0 %1308, %v1197
  %v1310 = vpop.permute.xlu0 %1309
  %1313 = vset.pattern.permute.xlu0 0
  %1314 = vperm.xlu0 %1313, %v1198
  %v1315 = vpop.permute.xlu0 %1314
  %1318 = vset.pattern.permute.xlu0 0
  %1319 = vperm.xlu0 %1318, %v1199
  %v1320 = vpop.permute.xlu0 %1319
  %1323 = vset.pattern.permute.xlu0 0
  %1324 = vperm.xlu0 %1323, %v1200
  %v1325 = vpop.permute.xlu0 %1324
  %1328 = vset.pattern.permute.xlu0 0
  %1329 = vperm.xlu0 %1328, %v1201
  %v1330 = vpop.permute.xlu0 %1329
  %1333 = vset.pattern.permute.xlu0 0
  %1334 = vperm.xlu0 %1333, %v1202
  %v1335 = vpop.permute.xlu0 %1334
  %1338 = vset.pattern.permute.xlu0 0
  %1339 = vperm.xlu0 %1338, %v1203
  %v1340 = vpop.permute.xlu0 %1339
  %1343 = vset.pattern.permute.xlu0 0
  %1344 = vperm.xlu0 %1343, %v1204
  %v1345 = vpop.permute.xlu0 %1344
  %1348 = vset.pattern.permute.xlu0 0
  %1349 = vperm.xlu0 %1348, %v1205
  %v1350 = vpop.permute.xlu0 %1349
  %1353 = vset.pattern.permute.xlu0 0
  %1354 = vperm.xlu0 %1353, %v1206
  %v1355 = vpop.permute.xlu0 %1354
  %1358 = vset.pattern.permute.xlu0 0
  %1359 = vperm.xlu0 %1358, %v1207
  %v1360 = vpop.permute.xlu0 %1359
  %1363 = vset.pattern.permute.xlu0 0
  %1364 = vperm.xlu0 %1363, %v1208
  %v1365 = vpop.permute.xlu0 %1364
  %1368 = vset.pattern.permute.xlu0 0
  %1369 = vperm.xlu0 %1368, %v1209
  %v1370 = vpop.permute.xlu0 %1369
  %1373 = vset.pattern.permute.xlu0 0
  %1374 = vperm.xlu0 %1373, %v1210
  %v1375 = vpop.permute.xlu0 %1374
  %1378 = vset.pattern.permute.xlu0 0
  %1379 = vperm.xlu0 %1378, %v1211
  %v1380 = vpop.permute.xlu0 %1379
  %1383 = vset.pattern.permute.xlu0 0
  %1384 = vperm.xlu0 %1383, %v1212
  %v1385 = vpop.permute.xlu0 %1384
  %1388 = vset.pattern.permute.xlu0 0
  %1389 = vperm.xlu0 %1388, %v1213
  %v1390 = vpop.permute.xlu0 %1389
  %1393 = vset.pattern.permute.xlu0 0
  %1394 = vperm.xlu0 %1393, %v1214
  %v1395 = vpop.permute.xlu0 %1394
  %1398 = vset.pattern.permute.xlu0 0
  %1399 = vperm.xlu0 %1398, %v1215
  %v1400 = vpop.permute.xlu0 %1399
  %1403 = vset.pattern.permute.xlu0 0
  %1404 = vperm.xlu0 %1403, %v1216
  %v1405 = vpop.permute.xlu0 %1404
  %1408 = vset.pattern.permute.xlu0 0
  %1409 = vperm.xlu0 %1408, %v1217
  %v1410 = vpop.permute.xlu0 %1409
  %1413 = vset.pattern.permute.xlu0 0
  %1414 = vperm.xlu0 %1413, %v1218
  %v1415 = vpop.permute.xlu0 %1414
  %1418 = vset.pattern.permute.xlu0 0
  %1419 = vperm.xlu0 %1418, %v1219
  %v1420 = vpop.permute.xlu0 %1419
  %1423 = vset.pattern.permute.xlu0 0
  %1424 = vperm.xlu0 %1423, %v1220
  %v1425 = vpop.permute.xlu0 %1424
  %1428 = vset.pattern.permute.xlu0 0
  %1429 = vperm.xlu0 %1428, %v1221
  %v1430 = vpop.permute.xlu0 %1429
  %1433 = vset.pattern.permute.xlu0 0
  %1434 = vperm.xlu0 %1433, %v1222
  %v1435 = vpop.permute.xlu0 %1434
  %1438 = vset.pattern.permute.xlu0 0
  %1439 = vperm.xlu0 %1438, %v1223
  %v1440 = vpop.permute.xlu0 %1439
  %1443 = vset.pattern.permute.xlu0 0
  %1444 = vperm.xlu0 %1443, %v1224
  %v1445 = vpop.permute.xlu0 %1444
  %1448 = vset.pattern.permute.xlu0 0
  %1449 = vperm.xlu0 %1448, %v1225
  %v1450 = vpop.permute.xlu0 %1449
  %1453 = vset.pattern.permute.xlu0 0
  %1454 = vperm.xlu0 %1453, %v1226
  %v1455 = vpop.permute.xlu0 %1454
  %1458 = vset.pattern.permute.xlu0 0
  %1459 = vperm.xlu0 %1458, %v1227
  %v1460 = vpop.permute.xlu0 %1459
  %1463 = vset.pattern.permute.xlu0 0
  %1464 = vperm.xlu0 %1463, %v1228
  %v1465 = vpop.permute.xlu0 %1464
  %1468 = vset.pattern.permute.xlu0 0
  %1469 = vperm.xlu0 %1468, %v1229
  %v1470 = vpop.permute.xlu0 %1469
  %1473 = vset.pattern.permute.xlu0 0
  %1474 = vperm.xlu0 %1473, %v1230
  %v1475 = vpop.permute.xlu0 %1474
  %1478 = vset.pattern.permute.xlu0 0
  %1479 = vperm.xlu0 %1478, %v1231
  %v1480 = vpop.permute.xlu0 %1479
  %1483 = vset.pattern.permute.xlu0 0
  %1484 = vperm.xlu0 %1483, %v1232
  %v1485 = vpop.permute.xlu0 %1484
  %1488 = vset.pattern.permute.xlu0 0
  %1489 = vperm.xlu0 %1488, %v1233
  %v1490 = vpop.permute.xlu0 %1489
  %1493 = vset.pattern.permute.xlu0 0
  %1494 = vperm.xlu0 %1493, %v1234
  %v1495 = vpop.permute.xlu0 %1494
  %1498 = vset.pattern.permute.xlu0 0
  %1499 = vperm.xlu0 %1498, %v1235
  %v1500 = vpop.permute.xlu0 %1499
  %1503 = vset.pattern.permute.xlu0 0
  %1504 = vperm.xlu0 %1503, %v1236
  %v1505 = vpop.permute.xlu0 %1504
  %1508 = vset.pattern.permute.xlu0 0
  %1509 = vperm.xlu0 %1508, %v1237
  %v1510 = vpop.permute.xlu0 %1509
  %1513 = vset.pattern.permute.xlu0 0
  %1514 = vperm.xlu0 %1513, %v1238
  %v1515 = vpop.permute.xlu0 %1514
  %1518 = vset.pattern.permute.xlu0 0
  %1519 = vperm.xlu0 %1518, %v1239
  %v1520 = vpop.permute.xlu0 %1519
  %1523 = vset.pattern.permute.xlu0 0
  %1524 = vperm.xlu0 %1523, %v1240
  %v1525 = vpop.permute.xlu0 %1524
  %1528 = vset.pattern.permute.xlu0 0
  %1529 = vperm.xlu0 %1528, %v1241
  %v1530 = vpop.permute.xlu0 %1529
  %1533 = vset.pattern.permute.xlu0 0
  %1534 = vperm.xlu0 %1533, %v1242
  %v1535 = vpop.permute.xlu0 %1534
  %1538 = vset.pattern.permute.xlu0 0
  %1539 = vperm.xlu0 %1538, %v1243
  %v1540 = vpop.permute.xlu0 %1539
  %1543 = vset.pattern.permute.xlu0 0
  %1544 = vperm.xlu0 %1543, %v1244
  %v1545 = vpop.permute.xlu0 %1544
  %1548 = vset.pattern.permute.xlu0 0
  %1549 = vperm.xlu0 %1548, %v1245
  %v1550 = vpop.permute.xlu0 %1549
  %1553 = vset.pattern.permute.xlu0 0
  %1554 = vperm.xlu0 %1553, %v1246
  %v1555 = vpop.permute.xlu0 %1554
  %1558 = vset.pattern.permute.xlu0 0
  %1559 = vperm.xlu0 %1558, %v1247
  %v1560 = vpop.permute.xlu0 %1559
  %1563 = vset.pattern.permute.xlu0 0
  %1564 = vperm.xlu0 %1563, %v1248
  %v1565 = vpop.permute.xlu0 %1564
  %1568 = vset.pattern.permute.xlu0 0
  %1569 = vperm.xlu0 %1568, %v1249
  %v1570 = vpop.permute.xlu0 %1569
  %1573 = vset.pattern.permute.xlu0 0
  %1574 = vperm.xlu0 %1573, %v1250
  %v1575 = vpop.permute.xlu0 %1574
  %1578 = vset.pattern.permute.xlu0 0
  %1579 = vperm.xlu0 %1578, %v1251
  %v1580 = vpop.permute.xlu0 %1579
  %1583 = vset.pattern.permute.xlu0 0
  %1584 = vperm.xlu0 %1583, %v1252
  %v1585 = vpop.permute.xlu0 %1584
  %1588 = vset.pattern.permute.xlu0 0
  %1589 = vperm.xlu0 %1588, %v1253
  %v1590 = vpop.permute.xlu0 %1589
  %1593 = vset.pattern.permute.xlu0 0
  %1594 = vperm.xlu0 %1593, %v1254
  %v1595 = vpop.permute.xlu0 %1594
  %1598 = vset.pattern.permute.xlu0 0
  %1599 = vperm.xlu0 %1598, %v1255
  %v1600 = vpop.permute.xlu0 %1599
  %1603 = vset.pattern.permute.xlu0 0
  %1604 = vperm.xlu0 %1603, %v1256
  %v1605 = vpop.permute.xlu0 %1604
  %1608 = vset.pattern.permute.xlu0 0
  %1609 = vperm.xlu0 %1608, %v1257
  %v1610 = vpop.permute.xlu0 %1609
  %1613 = vset.pattern.permute.xlu0 0
  %1614 = vperm.xlu0 %1613, %v1258
  %v1615 = vpop.permute.xlu0 %1614
  %1618 = vset.pattern.permute.xlu0 0
  %1619 = vperm.xlu0 %1618, %v1259
  %v1620 = vpop.permute.xlu0 %1619
  %1623 = vset.pattern.permute.xlu0 0
  %1624 = vperm.xlu0 %1623, %v1260
  %v1625 = vpop.permute.xlu0 %1624
  %1628 = vset.pattern.permute.xlu0 0
  %1629 = vperm.xlu0 %1628, %v1261
  %v1630 = vpop.permute.xlu0 %1629
  %1633 = vset.pattern.permute.xlu0 0
  %1634 = vperm.xlu0 %1633, %v1262
  %v1635 = vpop.permute.xlu0 %1634
  %1638 = vset.pattern.permute.xlu0 0
  %1639 = vperm.xlu0 %1638, %v1263
  %v1640 = vpop.permute.xlu0 %1639
  %1643 = vset.pattern.permute.xlu0 0
  %1644 = vperm.xlu0 %1643, %v1264
  %v1645 = vpop.permute.xlu0 %1644
  %1648 = vset.pattern.permute.xlu0 0
  %1649 = vperm.xlu0 %1648, %v1265
  %v1650 = vpop.permute.xlu0 %1649
  %1653 = vset.pattern.permute.xlu0 0
  %1654 = vperm.xlu0 %1653, %v1266
  %v1655 = vpop.permute.xlu0 %1654
  %1658 = vset.pattern.permute.xlu0 0
  %1659 = vperm.xlu0 %1658, %v1267
  %v1660 = vpop.permute.xlu0 %1659
  %1663 = vset.pattern.permute.xlu0 0
  %1664 = vperm.xlu0 %1663, %v1268
  %v1665 = vpop.permute.xlu0 %1664
  %1668 = vset.pattern.permute.xlu0 0
  %1669 = vperm.xlu0 %1668, %v1269
  %v1670 = vpop.permute.xlu0 %1669
  %1673 = vset.pattern.permute.xlu0 0
  %1674 = vperm.xlu0 %1673, %v1270
  %v1675 = vpop.permute.xlu0 %1674
  %1678 = vset.pattern.permute.xlu0 0
  %1679 = vperm.xlu0 %1678, %v1271
  %v1680 = vpop.permute.xlu0 %1679
  %1683 = vset.pattern.permute.xlu0 0
  %1684 = vperm.xlu0 %1683, %v1272
  %v1685 = vpop.permute.xlu0 %1684
  %1688 = vset.pattern.permute.xlu0 0
  %1689 = vperm.xlu0 %1688, %v1273
  %v1690 = vpop.permute.xlu0 %1689
  %1693 = vset.pattern.permute.xlu0 0
  %1694 = vperm.xlu0 %1693, %v1274
  %v1695 = vpop.permute.xlu0 %1694
  %1698 = vset.pattern.permute.xlu0 0
  %1699 = vperm.xlu0 %1698, %v1275
  %v1700 = vpop.permute.xlu0 %1699
  %1703 = vset.pattern.permute.xlu0 0
  %1704 = vperm.xlu0 %1703, %v1276
  %v1705 = vpop.permute.xlu0 %1704
  %1708 = vset.pattern.permute.xlu0 0
  %1709 = vperm.xlu0 %1708, %v1277
  %v1710 = vpop.permute.xlu0 %1709
  %1713 = vset.pattern.permute.xlu0 0
  %1714 = vperm.xlu0 %1713, %v1278
  %v1715 = vpop.permute.xlu0 %1714
  %1718 = vset.pattern.permute.xlu0 0
  %1719 = vperm.xlu0 %1718, %v1279
  %v1720 = vpop.permute.xlu0 %1719
  %1723 = vset.pattern.permute.xlu0 0
  %1724 = vperm.xlu0 %1723, %v1280
  %v1725 = vpop.permute.xlu0 %1724
  %1728 = vset.pattern.permute.xlu0 0
  %1729 = vperm.xlu0 %1728, %v1281
  %v1730 = vpop.permute.xlu0 %1729
  %1733 = vset.pattern.permute.xlu0 0
  %1734 = vperm.xlu0 %1733, %v1282
  %v1735 = vpop.permute.xlu0 %1734
  %1738 = vset.pattern.permute.xlu0 0
  %1739 = vperm.xlu0 %1738, %v1283
  %v1740 = vpop.permute.xlu0 %1739
  %1743 = vset.pattern.permute.xlu0 0
  %1744 = vperm.xlu0 %1743, %v1284
  %v1745 = vpop.permute.xlu0 %1744
  %1748 = vset.pattern.permute.xlu0 0
  %1749 = vperm.xlu0 %1748, %v1285
  %v1750 = vpop.permute.xlu0 %1749
  %1753 = vset.pattern.permute.xlu0 0
  %1754 = vperm.xlu0 %1753, %v1286
  %v1755 = vpop.permute.xlu0 %1754
  %1758 = vset.pattern.permute.xlu0 0
  %1759 = vperm.xlu0 %1758, %v1287
  %v1760 = vpop.permute.xlu0 %1759
  %1763 = vset.pattern.permute.xlu0 0
  %1764 = vperm.xlu0 %1763, %v1288
  %v1765 = vpop.permute.xlu0 %1764
  %1768 = vset.pattern.permute.xlu0 0
  %1769 = vperm.xlu0 %1768, %v1289
  %v1770 = vpop.permute.xlu0 %1769
  %1773 = vset.pattern.permute.xlu0 0
  %1774 = vperm.xlu0 %1773, %v1290
  %v1775 = vpop.permute.xlu0 %1774
  %1778 = vset.pattern.permute.xlu0 0
  %1779 = vperm.xlu0 %1778, %v1291
  %v1780 = vpop.permute.xlu0 %1779
  %v1782 = vmul.f32 %v1096, %v1295
  %v1783 = vmul.f32 %v1097, %v1300
  %v1784 = vmul.f32 %v1098, %v1305
  %v1785 = vmul.f32 %v1099, %v1310
  %v1786 = vmul.f32 %v1100, %v1315
  %v1787 = vmul.f32 %v1101, %v1320
  %v1788 = vmul.f32 %v1102, %v1325
  %v1789 = vmul.f32 %v1103, %v1330
  %v1790 = vmul.f32 %v1104, %v1335
  %v1791 = vmul.f32 %v1105, %v1340
  %v1792 = vmul.f32 %v1106, %v1345
  %v1793 = vmul.f32 %v1107, %v1350
  %v1794 = vmul.f32 %v1108, %v1355
  %v1795 = vmul.f32 %v1109, %v1360
  %v1796 = vmul.f32 %v1110, %v1365
  %v1797 = vmul.f32 %v1111, %v1370
  %v1798 = vmul.f32 %v1112, %v1375
  %v1799 = vmul.f32 %v1113, %v1380
  %v1800 = vmul.f32 %v1114, %v1385
  %v1801 = vmul.f32 %v1115, %v1390
  %v1802 = vmul.f32 %v1116, %v1395
  %v1803 = vmul.f32 %v1117, %v1400
  %v1804 = vmul.f32 %v1118, %v1405
  %v1805 = vmul.f32 %v1119, %v1410
  %v1806 = vmul.f32 %v1120, %v1415
  %v1807 = vmul.f32 %v1121, %v1420
  %v1808 = vmul.f32 %v1122, %v1425
  %v1809 = vmul.f32 %v1123, %v1430
  %v1810 = vmul.f32 %v1124, %v1435
  %v1811 = vmul.f32 %v1125, %v1440
  %v1812 = vmul.f32 %v1126, %v1445
  %v1813 = vmul.f32 %v1127, %v1450
  %v1814 = vmul.f32 %v1128, %v1455
  %v1815 = vmul.f32 %v1129, %v1460
  %v1816 = vmul.f32 %v1130, %v1465
  %v1817 = vmul.f32 %v1131, %v1470
  %v1818 = vmul.f32 %v1132, %v1475
  %v1819 = vmul.f32 %v1133, %v1480
  %v1820 = vmul.f32 %v1134, %v1485
  %v1821 = vmul.f32 %v1135, %v1490
  %v1822 = vmul.f32 %v1136, %v1495
  %v1823 = vmul.f32 %v1137, %v1500
  %v1824 = vmul.f32 %v1138, %v1505
  %v1825 = vmul.f32 %v1139, %v1510
  %v1826 = vmul.f32 %v1140, %v1515
  %v1827 = vmul.f32 %v1141, %v1520
  %v1828 = vmul.f32 %v1142, %v1525
  %v1829 = vmul.f32 %v1143, %v1530
  %v1830 = vmul.f32 %v1144, %v1535
  %v1831 = vmul.f32 %v1145, %v1540
  %v1832 = vmul.f32 %v1146, %v1545
  %v1833 = vmul.f32 %v1147, %v1550
  %v1834 = vmul.f32 %v1148, %v1555
  %v1835 = vmul.f32 %v1149, %v1560
  %v1836 = vmul.f32 %v1150, %v1565
  %v1837 = vmul.f32 %v1151, %v1570
  %v1838 = vmul.f32 %v1152, %v1575
  %v1839 = vmul.f32 %v1153, %v1580
  %v1840 = vmul.f32 %v1154, %v1585
  %v1841 = vmul.f32 %v1155, %v1590
  %v1842 = vmul.f32 %v1156, %v1595
  %v1843 = vmul.f32 %v1157, %v1600
  %v1844 = vmul.f32 %v1158, %v1605
  %v1845 = vmul.f32 %v1159, %v1610
  %v1846 = vmul.f32 %v1160, %v1615
  %v1847 = vmul.f32 %v1161, %v1620
  %v1848 = vmul.f32 %v1162, %v1625
  %v1849 = vmul.f32 %v1163, %v1630
  %v1850 = vmul.f32 %v1164, %v1635
  %v1851 = vmul.f32 %v1165, %v1640
  %v1852 = vmul.f32 %v1166, %v1645
  %v1853 = vmul.f32 %v1167, %v1650
  %v1854 = vmul.f32 %v1168, %v1655
  %v1855 = vmul.f32 %v1169, %v1660
  %v1856 = vmul.f32 %v1170, %v1665
  %v1857 = vmul.f32 %v1171, %v1670
  %v1858 = vmul.f32 %v1172, %v1675
  %v1859 = vmul.f32 %v1173, %v1680
  %v1860 = vmul.f32 %v1174, %v1685
  %v1861 = vmul.f32 %v1175, %v1690
  %v1862 = vmul.f32 %v1176, %v1695
  %v1863 = vmul.f32 %v1177, %v1700
  %v1864 = vmul.f32 %v1178, %v1705
  %v1865 = vmul.f32 %v1179, %v1710
  %v1866 = vmul.f32 %v1180, %v1715
  %v1867 = vmul.f32 %v1181, %v1720
  %v1868 = vmul.f32 %v1182, %v1725
  %v1869 = vmul.f32 %v1183, %v1730
  %v1870 = vmul.f32 %v1184, %v1735
  %v1871 = vmul.f32 %v1185, %v1740
  %v1872 = vmul.f32 %v1186, %v1745
  %v1873 = vmul.f32 %v1187, %v1750
  %v1874 = vmul.f32 %v1188, %v1755
  %v1875 = vmul.f32 %v1189, %v1760
  %v1876 = vmul.f32 %v1190, %v1765
  %v1877 = vmul.f32 %v1191, %v1770
  %v1878 = vmul.f32 %v1192, %v1775
  %v1879 = vmul.f32 %v1193, %v1780
  %v1880 = vpack.c.bf16 %v1783, %v1782
  %v1881 = vpack.c.bf16 %v1785, %v1784
  %v1882 = vpack.c.bf16 %v1787, %v1786
  %v1883 = vpack.c.bf16 %v1789, %v1788
  %v1884 = vpack.c.bf16 %v1791, %v1790
  %v1885 = vpack.c.bf16 %v1793, %v1792
  %v1886 = vpack.c.bf16 %v1795, %v1794
  %v1887 = vpack.c.bf16 %v1797, %v1796
  %v1888 = vpack.c.bf16 %v1799, %v1798
  %v1889 = vpack.c.bf16 %v1801, %v1800
  %v1890 = vpack.c.bf16 %v1803, %v1802
  %v1891 = vpack.c.bf16 %v1805, %v1804
  %v1892 = vpack.c.bf16 %v1807, %v1806
  %v1893 = vpack.c.bf16 %v1809, %v1808
  %v1894 = vpack.c.bf16 %v1811, %v1810
  %v1895 = vpack.c.bf16 %v1813, %v1812
  %v1896 = vpack.c.bf16 %v1815, %v1814
  %v1897 = vpack.c.bf16 %v1817, %v1816
  %v1898 = vpack.c.bf16 %v1819, %v1818
  %v1899 = vpack.c.bf16 %v1821, %v1820
  %v1900 = vpack.c.bf16 %v1823, %v1822
  %v1901 = vpack.c.bf16 %v1825, %v1824
  %v1902 = vpack.c.bf16 %v1827, %v1826
  %v1903 = vpack.c.bf16 %v1829, %v1828
  %v1904 = vpack.c.bf16 %v1831, %v1830
  %v1905 = vpack.c.bf16 %v1833, %v1832
  %v1906 = vpack.c.bf16 %v1835, %v1834
  %v1907 = vpack.c.bf16 %v1837, %v1836
  %v1908 = vpack.c.bf16 %v1839, %v1838
  %v1909 = vpack.c.bf16 %v1841, %v1840
  %v1910 = vpack.c.bf16 %v1843, %v1842
  %v1911 = vpack.c.bf16 %v1845, %v1844
  %v1912 = vpack.c.bf16 %v1847, %v1846
  %v1913 = vpack.c.bf16 %v1849, %v1848
  %v1914 = vpack.c.bf16 %v1851, %v1850
  %v1915 = vpack.c.bf16 %v1853, %v1852
  %v1916 = vpack.c.bf16 %v1855, %v1854
  %v1917 = vpack.c.bf16 %v1857, %v1856
  %v1918 = vpack.c.bf16 %v1859, %v1858
  %v1919 = vpack.c.bf16 %v1861, %v1860
  %v1920 = vpack.c.bf16 %v1863, %v1862
  %v1921 = vpack.c.bf16 %v1865, %v1864
  %v1922 = vpack.c.bf16 %v1867, %v1866
  %v1923 = vpack.c.bf16 %v1869, %v1868
  %v1924 = vpack.c.bf16 %v1871, %v1870
  %v1925 = vpack.c.bf16 %v1873, %v1872
  %v1926 = vpack.c.bf16 %v1875, %v1874
  %v1927 = vpack.c.bf16 %v1877, %v1876
  %v1928 = vpack.c.bf16 %v1879, %v1878
  %1962 = vrot.lane.b32.xlu0 %v1881, 16
  %v1963 = vpop.permute.xlu0 %1962
  %1964 = vrot.lane.b32.xlu0 %v1882, 16
  %v1965 = vpop.permute.xlu0 %1964
  %1966 = vrot.lane.b32.xlu0 %v1883, 16
  %v1967 = vpop.permute.xlu0 %1966
  %1968 = vrot.lane.b32.xlu0 %v1884, 16
  %v1969 = vpop.permute.xlu0 %1968
  %1970 = vrot.lane.b32.xlu0 %v1885, 16
  %v1971 = vpop.permute.xlu0 %1970
  %1972 = vrot.lane.b32.xlu0 %v1886, 16
  %v1973 = vpop.permute.xlu0 %1972
  %1974 = vrot.lane.b32.xlu0 %v1887, 16
  %v1975 = vpop.permute.xlu0 %1974
  %1976 = vrot.lane.b32.xlu0 %v1888, 16
  %v1977 = vpop.permute.xlu0 %1976
  %1978 = vrot.lane.b32.xlu0 %v1889, 16
  %v1979 = vpop.permute.xlu0 %1978
  %1980 = vrot.lane.b32.xlu0 %v1890, 16
  %v1981 = vpop.permute.xlu0 %1980
  %1982 = vrot.lane.b32.xlu0 %v1891, 16
  %v1983 = vpop.permute.xlu0 %1982
  %1984 = vrot.lane.b32.xlu0 %v1892, 16
  %v1985 = vpop.permute.xlu0 %1984
  %1986 = vrot.lane.b32.xlu0 %v1893, 16
  %v1987 = vpop.permute.xlu0 %1986
  %1988 = vrot.lane.b32.xlu0 %v1894, 16
  %v1989 = vpop.permute.xlu0 %1988
  %1990 = vrot.lane.b32.xlu0 %v1895, 16
  %v1991 = vpop.permute.xlu0 %1990
  %1992 = vrot.lane.b32.xlu0 %v1896, 16
  %v1993 = vpop.permute.xlu0 %1992
  %1994 = vrot.lane.b32.xlu0 %v1897, 16
  %v1995 = vpop.permute.xlu0 %1994
  %1996 = vrot.lane.b32.xlu0 %v1898, 16
  %v1997 = vpop.permute.xlu0 %1996
  %1998 = vrot.lane.b32.xlu0 %v1899, 16
  %v1999 = vpop.permute.xlu0 %1998
  %2000 = vrot.lane.b32.xlu0 %v1900, 16
  %v2001 = vpop.permute.xlu0 %2000
  %2002 = vrot.lane.b32.xlu0 %v1901, 16
  %v2003 = vpop.permute.xlu0 %2002
  %2004 = vrot.lane.b32.xlu0 %v1902, 16
  %v2005 = vpop.permute.xlu0 %2004
  %2006 = vrot.lane.b32.xlu0 %v1903, 16
  %v2007 = vpop.permute.xlu0 %2006
  %2008 = vrot.lane.b32.xlu0 %v1904, 16
  %v2009 = vpop.permute.xlu0 %2008
  %2010 = vrot.lane.b32.xlu0 %v1905, 16
  %v2011 = vpop.permute.xlu0 %2010
  %2012 = vrot.lane.b32.xlu0 %v1906, 16
  %v2013 = vpop.permute.xlu0 %2012
  %2014 = vrot.lane.b32.xlu0 %v1907, 16
  %v2015 = vpop.permute.xlu0 %2014
  %2016 = vrot.lane.b32.xlu0 %v1908, 16
  %v2017 = vpop.permute.xlu0 %2016
  %2018 = vrot.lane.b32.xlu0 %v1909, 16
  %v2019 = vpop.permute.xlu0 %2018
  %2020 = vrot.lane.b32.xlu0 %v1910, 16
  %v2021 = vpop.permute.xlu0 %2020
  %2022 = vrot.lane.b32.xlu0 %v1911, 16
  %v2023 = vpop.permute.xlu0 %2022
  %2024 = vrot.lane.b32.xlu0 %v1912, 16
  %v2025 = vpop.permute.xlu0 %2024
  %2026 = vrot.lane.b32.xlu0 %v1913, 16
  %v2027 = vpop.permute.xlu0 %2026
  %2029 = vrot.lane.b32.xlu0 %v1882, 32
  %v2030 = vpop.permute.xlu0 %2029
  %2031 = vrot.lane.b32.xlu0 %v1883, 32
  %v2032 = vpop.permute.xlu0 %2031
  %2033 = vrot.lane.b32.xlu0 %v1884, 32
  %v2034 = vpop.permute.xlu0 %2033
  %2035 = vrot.lane.b32.xlu0 %v1885, 32
  %v2036 = vpop.permute.xlu0 %2035
  %2037 = vrot.lane.b32.xlu0 %v1886, 32
  %v2038 = vpop.permute.xlu0 %2037
  %2039 = vrot.lane.b32.xlu0 %v1887, 32
  %v2040 = vpop.permute.xlu0 %2039
  %2041 = vrot.lane.b32.xlu0 %v1888, 32
  %v2042 = vpop.permute.xlu0 %2041
  %2043 = vrot.lane.b32.xlu0 %v1889, 32
  %v2044 = vpop.permute.xlu0 %2043
  %2045 = vrot.lane.b32.xlu0 %v1890, 32
  %v2046 = vpop.permute.xlu0 %2045
  %2047 = vrot.lane.b32.xlu0 %v1891, 32
  %v2048 = vpop.permute.xlu0 %2047
  %2049 = vrot.lane.b32.xlu0 %v1892, 32
  %v2050 = vpop.permute.xlu0 %2049
  %2051 = vrot.lane.b32.xlu0 %v1893, 32
  %v2052 = vpop.permute.xlu0 %2051
  %2053 = vrot.lane.b32.xlu0 %v1894, 32
  %v2054 = vpop.permute.xlu0 %2053
  %2055 = vrot.lane.b32.xlu0 %v1895, 32
  %v2056 = vpop.permute.xlu0 %2055
  %2057 = vrot.lane.b32.xlu0 %v1896, 32
  %v2058 = vpop.permute.xlu0 %2057
  %2059 = vrot.lane.b32.xlu0 %v1897, 32
  %v2060 = vpop.permute.xlu0 %2059
  %2061 = vrot.lane.b32.xlu0 %v1898, 32
  %v2062 = vpop.permute.xlu0 %2061
  %2063 = vrot.lane.b32.xlu0 %v1899, 32
  %v2064 = vpop.permute.xlu0 %2063
  %2065 = vrot.lane.b32.xlu0 %v1900, 32
  %v2066 = vpop.permute.xlu0 %2065
  %2067 = vrot.lane.b32.xlu0 %v1901, 32
  %v2068 = vpop.permute.xlu0 %2067
  %2069 = vrot.lane.b32.xlu0 %v1902, 32
  %v2070 = vpop.permute.xlu0 %2069
  %2071 = vrot.lane.b32.xlu0 %v1903, 32
  %v2072 = vpop.permute.xlu0 %2071
  %2073 = vrot.lane.b32.xlu0 %v1904, 32
  %v2074 = vpop.permute.xlu0 %2073
  %2075 = vrot.lane.b32.xlu0 %v1905, 32
  %v2076 = vpop.permute.xlu0 %2075
  %2077 = vrot.lane.b32.xlu0 %v1906, 32
  %v2078 = vpop.permute.xlu0 %2077
  %2079 = vrot.lane.b32.xlu0 %v1907, 32
  %v2080 = vpop.permute.xlu0 %2079
  %2081 = vrot.lane.b32.xlu0 %v1908, 32
  %v2082 = vpop.permute.xlu0 %2081
  %2083 = vrot.lane.b32.xlu0 %v1909, 32
  %v2084 = vpop.permute.xlu0 %2083
  %2085 = vrot.lane.b32.xlu0 %v1910, 32
  %v2086 = vpop.permute.xlu0 %2085
  %2087 = vrot.lane.b32.xlu0 %v1911, 32
  %v2088 = vpop.permute.xlu0 %2087
  %2089 = vrot.lane.b32.xlu0 %v1912, 32
  %v2090 = vpop.permute.xlu0 %2089
  %2091 = vrot.lane.b32.xlu0 %v1913, 32
  %v2092 = vpop.permute.xlu0 %2091
  %2093 = vrot.lane.b32.xlu0 %v1914, 32
  %v2094 = vpop.permute.xlu0 %2093
  %2100 = vrot.lane.b32.xlu0 %v1887, 48
  %v2101 = vpop.permute.xlu0 %2100
  %2102 = vrot.lane.b32.xlu0 %v1888, 48
  %v2103 = vpop.permute.xlu0 %2102
  %2104 = vrot.lane.b32.xlu0 %v1889, 48
  %v2105 = vpop.permute.xlu0 %2104
  %2106 = vrot.lane.b32.xlu0 %v1890, 48
  %v2107 = vpop.permute.xlu0 %2106
  %2108 = vrot.lane.b32.xlu0 %v1891, 48
  %v2109 = vpop.permute.xlu0 %2108
  %2110 = vrot.lane.b32.xlu0 %v1892, 48
  %v2111 = vpop.permute.xlu0 %2110
  %2112 = vrot.lane.b32.xlu0 %v1893, 48
  %v2113 = vpop.permute.xlu0 %2112
  %2114 = vrot.lane.b32.xlu0 %v1894, 48
  %v2115 = vpop.permute.xlu0 %2114
  %2116 = vrot.lane.b32.xlu0 %v1895, 48
  %v2117 = vpop.permute.xlu0 %2116
  %2118 = vrot.lane.b32.xlu0 %v1896, 48
  %v2119 = vpop.permute.xlu0 %2118
  %2120 = vrot.lane.b32.xlu0 %v1897, 48
  %v2121 = vpop.permute.xlu0 %2120
  %2122 = vrot.lane.b32.xlu0 %v1898, 48
  %v2123 = vpop.permute.xlu0 %2122
  %2124 = vrot.lane.b32.xlu0 %v1899, 48
  %v2125 = vpop.permute.xlu0 %2124
  %2126 = vrot.lane.b32.xlu0 %v1900, 48
  %v2127 = vpop.permute.xlu0 %2126
  %2128 = vrot.lane.b32.xlu0 %v1901, 48
  %v2129 = vpop.permute.xlu0 %2128
  %2130 = vrot.lane.b32.xlu0 %v1902, 48
  %v2131 = vpop.permute.xlu0 %2130
  %2132 = vrot.lane.b32.xlu0 %v1903, 48
  %v2133 = vpop.permute.xlu0 %2132
  %2134 = vrot.lane.b32.xlu0 %v1904, 48
  %v2135 = vpop.permute.xlu0 %2134
  %2136 = vrot.lane.b32.xlu0 %v1905, 48
  %v2137 = vpop.permute.xlu0 %2136
  %2138 = vrot.lane.b32.xlu0 %v1906, 48
  %v2139 = vpop.permute.xlu0 %2138
  %2140 = vrot.lane.b32.xlu0 %v1907, 48
  %v2141 = vpop.permute.xlu0 %2140
  %2142 = vrot.lane.b32.xlu0 %v1908, 48
  %v2143 = vpop.permute.xlu0 %2142
  %2144 = vrot.lane.b32.xlu0 %v1909, 48
  %v2145 = vpop.permute.xlu0 %2144
  %2146 = vrot.lane.b32.xlu0 %v1910, 48
  %v2147 = vpop.permute.xlu0 %2146
  %2148 = vrot.lane.b32.xlu0 %v1911, 48
  %v2149 = vpop.permute.xlu0 %2148
  %2150 = vrot.lane.b32.xlu0 %v1912, 48
  %v2151 = vpop.permute.xlu0 %2150
  %2152 = vrot.lane.b32.xlu0 %v1913, 48
  %v2153 = vpop.permute.xlu0 %2152
  %2154 = vrot.lane.b32.xlu0 %v1914, 48
  %v2155 = vpop.permute.xlu0 %2154
  %2156 = vrot.lane.b32.xlu0 %v1915, 48
  %v2157 = vpop.permute.xlu0 %2156
  %2158 = vrot.lane.b32.xlu0 %v1916, 48
  %v2159 = vpop.permute.xlu0 %2158
  %2160 = vrot.lane.b32.xlu0 %v1917, 48
  %v2161 = vpop.permute.xlu0 %2160
  %2162 = vrot.lane.b32.xlu0 %v1918, 48
  %v2163 = vpop.permute.xlu0 %2162
  %2164 = vrot.lane.b32.xlu0 %v1919, 48
  %v2165 = vpop.permute.xlu0 %2164
  %2167 = vrot.lane.b32.xlu0 %v1888, 64
  %v2168 = vpop.permute.xlu0 %2167
  %2169 = vrot.lane.b32.xlu0 %v1889, 64
  %v2170 = vpop.permute.xlu0 %2169
  %2171 = vrot.lane.b32.xlu0 %v1890, 64
  %v2172 = vpop.permute.xlu0 %2171
  %2173 = vrot.lane.b32.xlu0 %v1891, 64
  %v2174 = vpop.permute.xlu0 %2173
  %2175 = vrot.lane.b32.xlu0 %v1892, 64
  %v2176 = vpop.permute.xlu0 %2175
  %2177 = vrot.lane.b32.xlu0 %v1893, 64
  %v2178 = vpop.permute.xlu0 %2177
  %2179 = vrot.lane.b32.xlu0 %v1894, 64
  %v2180 = vpop.permute.xlu0 %2179
  %2181 = vrot.lane.b32.xlu0 %v1895, 64
  %v2182 = vpop.permute.xlu0 %2181
  %2183 = vrot.lane.b32.xlu0 %v1896, 64
  %v2184 = vpop.permute.xlu0 %2183
  %2185 = vrot.lane.b32.xlu0 %v1897, 64
  %v2186 = vpop.permute.xlu0 %2185
  %2187 = vrot.lane.b32.xlu0 %v1898, 64
  %v2188 = vpop.permute.xlu0 %2187
  %2189 = vrot.lane.b32.xlu0 %v1899, 64
  %v2190 = vpop.permute.xlu0 %2189
  %2191 = vrot.lane.b32.xlu0 %v1900, 64
  %v2192 = vpop.permute.xlu0 %2191
  %2193 = vrot.lane.b32.xlu0 %v1901, 64
  %v2194 = vpop.permute.xlu0 %2193
  %2195 = vrot.lane.b32.xlu0 %v1902, 64
  %v2196 = vpop.permute.xlu0 %2195
  %2197 = vrot.lane.b32.xlu0 %v1903, 64
  %v2198 = vpop.permute.xlu0 %2197
  %2199 = vrot.lane.b32.xlu0 %v1904, 64
  %v2200 = vpop.permute.xlu0 %2199
  %2201 = vrot.lane.b32.xlu0 %v1905, 64
  %v2202 = vpop.permute.xlu0 %2201
  %2203 = vrot.lane.b32.xlu0 %v1906, 64
  %v2204 = vpop.permute.xlu0 %2203
  %2205 = vrot.lane.b32.xlu0 %v1907, 64
  %v2206 = vpop.permute.xlu0 %2205
  %2207 = vrot.lane.b32.xlu0 %v1908, 64
  %v2208 = vpop.permute.xlu0 %2207
  %2209 = vrot.lane.b32.xlu0 %v1909, 64
  %v2210 = vpop.permute.xlu0 %2209
  %2211 = vrot.lane.b32.xlu0 %v1910, 64
  %v2212 = vpop.permute.xlu0 %2211
  %2213 = vrot.lane.b32.xlu0 %v1911, 64
  %v2214 = vpop.permute.xlu0 %2213
  %2215 = vrot.lane.b32.xlu0 %v1912, 64
  %v2216 = vpop.permute.xlu0 %2215
  %2217 = vrot.lane.b32.xlu0 %v1913, 64
  %v2218 = vpop.permute.xlu0 %2217
  %2219 = vrot.lane.b32.xlu0 %v1914, 64
  %v2220 = vpop.permute.xlu0 %2219
  %2221 = vrot.lane.b32.xlu0 %v1915, 64
  %v2222 = vpop.permute.xlu0 %2221
  %2223 = vrot.lane.b32.xlu0 %v1916, 64
  %v2224 = vpop.permute.xlu0 %2223
  %2225 = vrot.lane.b32.xlu0 %v1917, 64
  %v2226 = vpop.permute.xlu0 %2225
  %2227 = vrot.lane.b32.xlu0 %v1918, 64
  %v2228 = vpop.permute.xlu0 %2227
  %2229 = vrot.lane.b32.xlu0 %v1919, 64
  %v2230 = vpop.permute.xlu0 %2229
  %2231 = vrot.lane.b32.xlu0 %v1920, 64
  %v2232 = vpop.permute.xlu0 %2231
  %2234 = vrot.lane.b32.xlu0 %v1889, 80
  %v2235 = vpop.permute.xlu0 %2234
  %2236 = vrot.lane.b32.xlu0 %v1890, 80
  %v2237 = vpop.permute.xlu0 %2236
  %2238 = vrot.lane.b32.xlu0 %v1891, 80
  %v2239 = vpop.permute.xlu0 %2238
  %2240 = vrot.lane.b32.xlu0 %v1892, 80
  %v2241 = vpop.permute.xlu0 %2240
  %2242 = vrot.lane.b32.xlu0 %v1893, 80
  %v2243 = vpop.permute.xlu0 %2242
  %2244 = vrot.lane.b32.xlu0 %v1894, 80
  %v2245 = vpop.permute.xlu0 %2244
  %2246 = vrot.lane.b32.xlu0 %v1895, 80
  %v2247 = vpop.permute.xlu0 %2246
  %2248 = vrot.lane.b32.xlu0 %v1896, 80
  %v2249 = vpop.permute.xlu0 %2248
  %2250 = vrot.lane.b32.xlu0 %v1897, 80
  %v2251 = vpop.permute.xlu0 %2250
  %2252 = vrot.lane.b32.xlu0 %v1898, 80
  %v2253 = vpop.permute.xlu0 %2252
  %2254 = vrot.lane.b32.xlu0 %v1899, 80
  %v2255 = vpop.permute.xlu0 %2254
  %2256 = vrot.lane.b32.xlu0 %v1900, 80
  %v2257 = vpop.permute.xlu0 %2256
  %2258 = vrot.lane.b32.xlu0 %v1901, 80
  %v2259 = vpop.permute.xlu0 %2258
  %2260 = vrot.lane.b32.xlu0 %v1902, 80
  %v2261 = vpop.permute.xlu0 %2260
  %2262 = vrot.lane.b32.xlu0 %v1903, 80
  %v2263 = vpop.permute.xlu0 %2262
  %2264 = vrot.lane.b32.xlu0 %v1904, 80
  %v2265 = vpop.permute.xlu0 %2264
  %2266 = vrot.lane.b32.xlu0 %v1905, 80
  %v2267 = vpop.permute.xlu0 %2266
  %2268 = vrot.lane.b32.xlu0 %v1906, 80
  %v2269 = vpop.permute.xlu0 %2268
  %2270 = vrot.lane.b32.xlu0 %v1907, 80
  %v2271 = vpop.permute.xlu0 %2270
  %2272 = vrot.lane.b32.xlu0 %v1908, 80
  %v2273 = vpop.permute.xlu0 %2272
  %2274 = vrot.lane.b32.xlu0 %v1909, 80
  %v2275 = vpop.permute.xlu0 %2274
  %2276 = vrot.lane.b32.xlu0 %v1910, 80
  %v2277 = vpop.permute.xlu0 %2276
  %2278 = vrot.lane.b32.xlu0 %v1911, 80
  %v2279 = vpop.permute.xlu0 %2278
  %2280 = vrot.lane.b32.xlu0 %v1912, 80
  %v2281 = vpop.permute.xlu0 %2280
  %2282 = vrot.lane.b32.xlu0 %v1913, 80
  %v2283 = vpop.permute.xlu0 %2282
  %2284 = vrot.lane.b32.xlu0 %v1914, 80
  %v2285 = vpop.permute.xlu0 %2284
  %2286 = vrot.lane.b32.xlu0 %v1915, 80
  %v2287 = vpop.permute.xlu0 %2286
  %2288 = vrot.lane.b32.xlu0 %v1916, 80
  %v2289 = vpop.permute.xlu0 %2288
  %2290 = vrot.lane.b32.xlu0 %v1917, 80
  %v2291 = vpop.permute.xlu0 %2290
  %2292 = vrot.lane.b32.xlu0 %v1918, 80
  %v2293 = vpop.permute.xlu0 %2292
  %2294 = vrot.lane.b32.xlu0 %v1919, 80
  %v2295 = vpop.permute.xlu0 %2294
  %2296 = vrot.lane.b32.xlu0 %v1920, 80
  %v2297 = vpop.permute.xlu0 %2296
  %2298 = vrot.lane.b32.xlu0 %v1921, 80
  %v2299 = vpop.permute.xlu0 %2298
  %2305 = vrot.lane.b32.xlu0 %v1894, 96
  %v2306 = vpop.permute.xlu0 %2305
  %2307 = vrot.lane.b32.xlu0 %v1895, 96
  %v2308 = vpop.permute.xlu0 %2307
  %2309 = vrot.lane.b32.xlu0 %v1896, 96
  %v2310 = vpop.permute.xlu0 %2309
  %2311 = vrot.lane.b32.xlu0 %v1897, 96
  %v2312 = vpop.permute.xlu0 %2311
  %2313 = vrot.lane.b32.xlu0 %v1898, 96
  %v2314 = vpop.permute.xlu0 %2313
  %2315 = vrot.lane.b32.xlu0 %v1899, 96
  %v2316 = vpop.permute.xlu0 %2315
  %2317 = vrot.lane.b32.xlu0 %v1900, 96
  %v2318 = vpop.permute.xlu0 %2317
  %2319 = vrot.lane.b32.xlu0 %v1901, 96
  %v2320 = vpop.permute.xlu0 %2319
  %2321 = vrot.lane.b32.xlu0 %v1902, 96
  %v2322 = vpop.permute.xlu0 %2321
  %2323 = vrot.lane.b32.xlu0 %v1903, 96
  %v2324 = vpop.permute.xlu0 %2323
  %2325 = vrot.lane.b32.xlu0 %v1904, 96
  %v2326 = vpop.permute.xlu0 %2325
  %2327 = vrot.lane.b32.xlu0 %v1905, 96
  %v2328 = vpop.permute.xlu0 %2327
  %2329 = vrot.lane.b32.xlu0 %v1906, 96
  %v2330 = vpop.permute.xlu0 %2329
  %2331 = vrot.lane.b32.xlu0 %v1907, 96
  %v2332 = vpop.permute.xlu0 %2331
  %2333 = vrot.lane.b32.xlu0 %v1908, 96
  %v2334 = vpop.permute.xlu0 %2333
  %2335 = vrot.lane.b32.xlu0 %v1909, 96
  %v2336 = vpop.permute.xlu0 %2335
  %2337 = vrot.lane.b32.xlu0 %v1910, 96
  %v2338 = vpop.permute.xlu0 %2337
  %2339 = vrot.lane.b32.xlu0 %v1911, 96
  %v2340 = vpop.permute.xlu0 %2339
  %2341 = vrot.lane.b32.xlu0 %v1912, 96
  %v2342 = vpop.permute.xlu0 %2341
  %2343 = vrot.lane.b32.xlu0 %v1913, 96
  %v2344 = vpop.permute.xlu0 %2343
  %2345 = vrot.lane.b32.xlu0 %v1914, 96
  %v2346 = vpop.permute.xlu0 %2345
  %2347 = vrot.lane.b32.xlu0 %v1915, 96
  %v2348 = vpop.permute.xlu0 %2347
  %2349 = vrot.lane.b32.xlu0 %v1916, 96
  %v2350 = vpop.permute.xlu0 %2349
  %2351 = vrot.lane.b32.xlu0 %v1917, 96
  %v2352 = vpop.permute.xlu0 %2351
  %2353 = vrot.lane.b32.xlu0 %v1918, 96
  %v2354 = vpop.permute.xlu0 %2353
  %2355 = vrot.lane.b32.xlu0 %v1919, 96
  %v2356 = vpop.permute.xlu0 %2355
  %2357 = vrot.lane.b32.xlu0 %v1920, 96
  %v2358 = vpop.permute.xlu0 %2357
  %2359 = vrot.lane.b32.xlu0 %v1921, 96
  %v2360 = vpop.permute.xlu0 %2359
  %2361 = vrot.lane.b32.xlu0 %v1922, 96
  %v2362 = vpop.permute.xlu0 %2361
  %2363 = vrot.lane.b32.xlu0 %v1923, 96
  %v2364 = vpop.permute.xlu0 %2363
  %2365 = vrot.lane.b32.xlu0 %v1924, 96
  %v2366 = vpop.permute.xlu0 %2365
  %2367 = vrot.lane.b32.xlu0 %v1925, 96
  %v2368 = vpop.permute.xlu0 %2367
  %2369 = vrot.lane.b32.xlu0 %v1926, 96
  %v2370 = vpop.permute.xlu0 %2369
  %2372 = vrot.lane.b32.xlu0 %v1895, 112
  %v2373 = vpop.permute.xlu0 %2372
  %2374 = vrot.lane.b32.xlu0 %v1896, 112
  %v2375 = vpop.permute.xlu0 %2374
  %2376 = vrot.lane.b32.xlu0 %v1897, 112
  %v2377 = vpop.permute.xlu0 %2376
  %2378 = vrot.lane.b32.xlu0 %v1898, 112
  %v2379 = vpop.permute.xlu0 %2378
  %2380 = vrot.lane.b32.xlu0 %v1899, 112
  %v2381 = vpop.permute.xlu0 %2380
  %2382 = vrot.lane.b32.xlu0 %v1900, 112
  %v2383 = vpop.permute.xlu0 %2382
  %2384 = vrot.lane.b32.xlu0 %v1901, 112
  %v2385 = vpop.permute.xlu0 %2384
  %2386 = vrot.lane.b32.xlu0 %v1902, 112
  %v2387 = vpop.permute.xlu0 %2386
  %2388 = vrot.lane.b32.xlu0 %v1903, 112
  %v2389 = vpop.permute.xlu0 %2388
  %2390 = vrot.lane.b32.xlu0 %v1904, 112
  %v2391 = vpop.permute.xlu0 %2390
  %2392 = vrot.lane.b32.xlu0 %v1905, 112
  %v2393 = vpop.permute.xlu0 %2392
  %2394 = vrot.lane.b32.xlu0 %v1906, 112
  %v2395 = vpop.permute.xlu0 %2394
  %2396 = vrot.lane.b32.xlu0 %v1907, 112
  %v2397 = vpop.permute.xlu0 %2396
  %2398 = vrot.lane.b32.xlu0 %v1908, 112
  %v2399 = vpop.permute.xlu0 %2398
  %2400 = vrot.lane.b32.xlu0 %v1909, 112
  %v2401 = vpop.permute.xlu0 %2400
  %2402 = vrot.lane.b32.xlu0 %v1910, 112
  %v2403 = vpop.permute.xlu0 %2402
  %2404 = vrot.lane.b32.xlu0 %v1911, 112
  %v2405 = vpop.permute.xlu0 %2404
  %2406 = vrot.lane.b32.xlu0 %v1912, 112
  %v2407 = vpop.permute.xlu0 %2406
  %2408 = vrot.lane.b32.xlu0 %v1913, 112
  %v2409 = vpop.permute.xlu0 %2408
  %2410 = vrot.lane.b32.xlu0 %v1914, 112
  %v2411 = vpop.permute.xlu0 %2410
  %2412 = vrot.lane.b32.xlu0 %v1915, 112
  %v2413 = vpop.permute.xlu0 %2412
  %2414 = vrot.lane.b32.xlu0 %v1916, 112
  %v2415 = vpop.permute.xlu0 %2414
  %2416 = vrot.lane.b32.xlu0 %v1917, 112
  %v2417 = vpop.permute.xlu0 %2416
  %2418 = vrot.lane.b32.xlu0 %v1918, 112
  %v2419 = vpop.permute.xlu0 %2418
  %2420 = vrot.lane.b32.xlu0 %v1919, 112
  %v2421 = vpop.permute.xlu0 %2420
  %2422 = vrot.lane.b32.xlu0 %v1920, 112
  %v2423 = vpop.permute.xlu0 %2422
  %2424 = vrot.lane.b32.xlu0 %v1921, 112
  %v2425 = vpop.permute.xlu0 %2424
  %2426 = vrot.lane.b32.xlu0 %v1922, 112
  %v2427 = vpop.permute.xlu0 %2426
  %2428 = vrot.lane.b32.xlu0 %v1923, 112
  %v2429 = vpop.permute.xlu0 %2428
  %2430 = vrot.lane.b32.xlu0 %v1924, 112
  %v2431 = vpop.permute.xlu0 %2430
  %2432 = vrot.lane.b32.xlu0 %v1925, 112
  %v2433 = vpop.permute.xlu0 %2432
  %2434 = vrot.lane.b32.xlu0 %v1926, 112
  %v2435 = vpop.permute.xlu0 %2434
  %2436 = vrot.lane.b32.xlu0 %v1927, 112
  %v2437 = vpop.permute.xlu0 %2436
  %vm2438 = vcmask 130048
  %v2441 = vsel %vm2438, %v1880, %v1963
  %v2444 = vsel %vm2438, %v1881, %v1965
  %v2447 = vsel %vm2438, %v1882, %v1967
  %v2450 = vsel %vm2438, %v1883, %v1969
  %v2453 = vsel %vm2438, %v1884, %v1971
  %v2456 = vsel %vm2438, %v1885, %v1973
  %v2459 = vsel %vm2438, %v1886, %v1975
  %v2462 = vsel %vm2438, %v1887, %v1977
  %v2465 = vsel %vm2438, %v1888, %v1979
  %v2468 = vsel %vm2438, %v1889, %v1981
  %v2471 = vsel %vm2438, %v1890, %v1983
  %v2474 = vsel %vm2438, %v1891, %v1985
  %v2477 = vsel %vm2438, %v1892, %v1987
  %v2480 = vsel %vm2438, %v1893, %v1989
  %v2483 = vsel %vm2438, %v1894, %v1991
  %v2486 = vsel %vm2438, %v1895, %v1993
  %v2489 = vsel %vm2438, %v1896, %v1995
  %v2492 = vsel %vm2438, %v1897, %v1997
  %v2495 = vsel %vm2438, %v1898, %v1999
  %v2498 = vsel %vm2438, %v1899, %v2001
  %v2501 = vsel %vm2438, %v1900, %v2003
  %v2504 = vsel %vm2438, %v1901, %v2005
  %v2507 = vsel %vm2438, %v1902, %v2007
  %v2510 = vsel %vm2438, %v1903, %v2009
  %v2513 = vsel %vm2438, %v1904, %v2011
  %v2516 = vsel %vm2438, %v1905, %v2013
  %v2519 = vsel %vm2438, %v1906, %v2015
  %v2522 = vsel %vm2438, %v1907, %v2017
  %v2525 = vsel %vm2438, %v1908, %v2019
  %v2528 = vsel %vm2438, %v1909, %v2021
  %v2531 = vsel %vm2438, %v1910, %v2023
  %v2534 = vsel %vm2438, %v1911, %v2025
  %v2537 = vsel %vm2438, %v1912, %v2027
  %vm2538 = vcmask 261120
  %v2540 = vsel %vm2538, %v2441, %v2030
  %v2542 = vsel %vm2538, %v2444, %v2032
  %v2544 = vsel %vm2538, %v2447, %v2034
  %v2546 = vsel %vm2538, %v2450, %v2036
  %v2548 = vsel %vm2538, %v2453, %v2038
  %v2550 = vsel %vm2538, %v2456, %v2040
  %v2552 = vsel %vm2538, %v2459, %v2042
  %v2554 = vsel %vm2538, %v2462, %v2044
  %v2556 = vsel %vm2538, %v2465, %v2046
  %v2558 = vsel %vm2538, %v2468, %v2048
  %v2560 = vsel %vm2538, %v2471, %v2050
  %v2562 = vsel %vm2538, %v2474, %v2052
  %v2564 = vsel %vm2538, %v2477, %v2054
  %v2566 = vsel %vm2538, %v2480, %v2056
  %v2568 = vsel %vm2538, %v2483, %v2058
  %v2570 = vsel %vm2538, %v2486, %v2060
  %v2572 = vsel %vm2538, %v2489, %v2062
  %v2574 = vsel %vm2538, %v2492, %v2064
  %v2576 = vsel %vm2538, %v2495, %v2066
  %v2578 = vsel %vm2538, %v2498, %v2068
  %v2580 = vsel %vm2538, %v2501, %v2070
  %v2582 = vsel %vm2538, %v2504, %v2072
  %v2584 = vsel %vm2538, %v2507, %v2074
  %v2586 = vsel %vm2538, %v2510, %v2076
  %v2588 = vsel %vm2538, %v2513, %v2078
  %v2590 = vsel %vm2538, %v2516, %v2080
  %v2592 = vsel %vm2538, %v2519, %v2082
  %v2594 = vsel %vm2538, %v2522, %v2084
  %v2596 = vsel %vm2538, %v2525, %v2086
  %v2598 = vsel %vm2538, %v2528, %v2088
  %v2600 = vsel %vm2538, %v2531, %v2090
  %v2602 = vsel %vm2538, %v2534, %v2092
  %v2604 = vsel %vm2538, %v2537, %v2094
  %vm2605 = vcmask 392192
  %v2607 = vsel %vm2605, %v2540, %v2101
  %v2609 = vsel %vm2605, %v2542, %v2103
  %v2611 = vsel %vm2605, %v2544, %v2105
  %v2613 = vsel %vm2605, %v2546, %v2107
  %v2615 = vsel %vm2605, %v2548, %v2109
  %v2617 = vsel %vm2605, %v2550, %v2111
  %v2619 = vsel %vm2605, %v2552, %v2113
  %v2621 = vsel %vm2605, %v2554, %v2115
  %v2623 = vsel %vm2605, %v2556, %v2117
  %v2625 = vsel %vm2605, %v2558, %v2119
  %v2627 = vsel %vm2605, %v2560, %v2121
  %v2629 = vsel %vm2605, %v2562, %v2123
  %v2631 = vsel %vm2605, %v2564, %v2125
  %v2633 = vsel %vm2605, %v2566, %v2127
  %v2635 = vsel %vm2605, %v2568, %v2129
  %v2637 = vsel %vm2605, %v2570, %v2131
  %v2639 = vsel %vm2605, %v2572, %v2133
  %v2641 = vsel %vm2605, %v2574, %v2135
  %v2643 = vsel %vm2605, %v2576, %v2137
  %v2645 = vsel %vm2605, %v2578, %v2139
  %v2647 = vsel %vm2605, %v2580, %v2141
  %v2649 = vsel %vm2605, %v2582, %v2143
  %v2651 = vsel %vm2605, %v2584, %v2145
  %v2653 = vsel %vm2605, %v2586, %v2147
  %v2655 = vsel %vm2605, %v2588, %v2149
  %v2657 = vsel %vm2605, %v2590, %v2151
  %v2659 = vsel %vm2605, %v2592, %v2153
  %v2661 = vsel %vm2605, %v2594, %v2155
  %v2663 = vsel %vm2605, %v2596, %v2157
  %v2665 = vsel %vm2605, %v2598, %v2159
  %v2667 = vsel %vm2605, %v2600, %v2161
  %v2669 = vsel %vm2605, %v2602, %v2163
  %v2671 = vsel %vm2605, %v2604, %v2165
  %vm2672 = vcmask 523264
  %v2674 = vsel %vm2672, %v2607, %v2168
  %v2676 = vsel %vm2672, %v2609, %v2170
  %v2678 = vsel %vm2672, %v2611, %v2172
  %v2680 = vsel %vm2672, %v2613, %v2174
  %v2682 = vsel %vm2672, %v2615, %v2176
  %v2684 = vsel %vm2672, %v2617, %v2178
  %v2686 = vsel %vm2672, %v2619, %v2180
  %v2688 = vsel %vm2672, %v2621, %v2182
  %v2690 = vsel %vm2672, %v2623, %v2184
  %v2692 = vsel %vm2672, %v2625, %v2186
  %v2694 = vsel %vm2672, %v2627, %v2188
  %v2696 = vsel %vm2672, %v2629, %v2190
  %v2698 = vsel %vm2672, %v2631, %v2192
  %v2700 = vsel %vm2672, %v2633, %v2194
  %v2702 = vsel %vm2672, %v2635, %v2196
  %v2704 = vsel %vm2672, %v2637, %v2198
  %v2706 = vsel %vm2672, %v2639, %v2200
  %v2708 = vsel %vm2672, %v2641, %v2202
  %v2710 = vsel %vm2672, %v2643, %v2204
  %v2712 = vsel %vm2672, %v2645, %v2206
  %v2714 = vsel %vm2672, %v2647, %v2208
  %v2716 = vsel %vm2672, %v2649, %v2210
  %v2718 = vsel %vm2672, %v2651, %v2212
  %v2720 = vsel %vm2672, %v2653, %v2214
  %v2722 = vsel %vm2672, %v2655, %v2216
  %v2724 = vsel %vm2672, %v2657, %v2218
  %v2726 = vsel %vm2672, %v2659, %v2220
  %v2728 = vsel %vm2672, %v2661, %v2222
  %v2730 = vsel %vm2672, %v2663, %v2224
  %v2732 = vsel %vm2672, %v2665, %v2226
  %v2734 = vsel %vm2672, %v2667, %v2228
  %v2736 = vsel %vm2672, %v2669, %v2230
  %v2738 = vsel %vm2672, %v2671, %v2232
  %vm2739 = vcmask 654336
  %v2741 = vsel %vm2739, %v2674, %v2235
  %v2743 = vsel %vm2739, %v2676, %v2237
  %v2745 = vsel %vm2739, %v2678, %v2239
  %v2747 = vsel %vm2739, %v2680, %v2241
  %v2749 = vsel %vm2739, %v2682, %v2243
  %v2751 = vsel %vm2739, %v2684, %v2245
  %v2753 = vsel %vm2739, %v2686, %v2247
  %v2755 = vsel %vm2739, %v2688, %v2249
  %v2757 = vsel %vm2739, %v2690, %v2251
  %v2759 = vsel %vm2739, %v2692, %v2253
  %v2761 = vsel %vm2739, %v2694, %v2255
  %v2763 = vsel %vm2739, %v2696, %v2257
  %v2765 = vsel %vm2739, %v2698, %v2259
  %v2767 = vsel %vm2739, %v2700, %v2261
  %v2769 = vsel %vm2739, %v2702, %v2263
  %v2771 = vsel %vm2739, %v2704, %v2265
  %v2773 = vsel %vm2739, %v2706, %v2267
  %v2775 = vsel %vm2739, %v2708, %v2269
  %v2777 = vsel %vm2739, %v2710, %v2271
  %v2779 = vsel %vm2739, %v2712, %v2273
  %v2781 = vsel %vm2739, %v2714, %v2275
  %v2783 = vsel %vm2739, %v2716, %v2277
  %v2785 = vsel %vm2739, %v2718, %v2279
  %v2787 = vsel %vm2739, %v2720, %v2281
  %v2789 = vsel %vm2739, %v2722, %v2283
  %v2791 = vsel %vm2739, %v2724, %v2285
  %v2793 = vsel %vm2739, %v2726, %v2287
  %v2795 = vsel %vm2739, %v2728, %v2289
  %v2797 = vsel %vm2739, %v2730, %v2291
  %v2799 = vsel %vm2739, %v2732, %v2293
  %v2801 = vsel %vm2739, %v2734, %v2295
  %v2803 = vsel %vm2739, %v2736, %v2297
  %v2805 = vsel %vm2739, %v2738, %v2299
  %vm2806 = vcmask 785408
  %v2808 = vsel %vm2806, %v2741, %v2306
  %v2810 = vsel %vm2806, %v2743, %v2308
  %v2812 = vsel %vm2806, %v2745, %v2310
  %v2814 = vsel %vm2806, %v2747, %v2312
  %v2816 = vsel %vm2806, %v2749, %v2314
  %v2818 = vsel %vm2806, %v2751, %v2316
  %v2820 = vsel %vm2806, %v2753, %v2318
  %v2822 = vsel %vm2806, %v2755, %v2320
  %v2824 = vsel %vm2806, %v2757, %v2322
  %v2826 = vsel %vm2806, %v2759, %v2324
  %v2828 = vsel %vm2806, %v2761, %v2326
  %v2830 = vsel %vm2806, %v2763, %v2328
  %v2832 = vsel %vm2806, %v2765, %v2330
  %v2834 = vsel %vm2806, %v2767, %v2332
  %v2836 = vsel %vm2806, %v2769, %v2334
  %v2838 = vsel %vm2806, %v2771, %v2336
  %v2840 = vsel %vm2806, %v2773, %v2338
  %v2842 = vsel %vm2806, %v2775, %v2340
  %v2844 = vsel %vm2806, %v2777, %v2342
  %v2846 = vsel %vm2806, %v2779, %v2344
  %v2848 = vsel %vm2806, %v2781, %v2346
  %v2850 = vsel %vm2806, %v2783, %v2348
  %v2852 = vsel %vm2806, %v2785, %v2350
  %v2854 = vsel %vm2806, %v2787, %v2352
  %v2856 = vsel %vm2806, %v2789, %v2354
  %v2858 = vsel %vm2806, %v2791, %v2356
  %v2860 = vsel %vm2806, %v2793, %v2358
  %v2862 = vsel %vm2806, %v2795, %v2360
  %v2864 = vsel %vm2806, %v2797, %v2362
  %v2866 = vsel %vm2806, %v2799, %v2364
  %v2868 = vsel %vm2806, %v2801, %v2366
  %v2870 = vsel %vm2806, %v2803, %v2368
  %v2872 = vsel %vm2806, %v2805, %v2370
  %vm2873 = vcmask 916480
  %v2875 = vsel %vm2873, %v2808, %v2373
  %v2878 = vsel %vm2873, %v2810, %v2375
  %v2881 = vsel %vm2873, %v2812, %v2377
  %v2884 = vsel %vm2873, %v2814, %v2379
  %v2887 = vsel %vm2873, %v2816, %v2381
  %v2890 = vsel %vm2873, %v2818, %v2383
  %v2893 = vsel %vm2873, %v2820, %v2385
  %v2896 = vsel %vm2873, %v2822, %v2387
  %v2899 = vsel %vm2873, %v2824, %v2389
  %v2902 = vsel %vm2873, %v2826, %v2391
  %v2905 = vsel %vm2873, %v2828, %v2393
  %v2908 = vsel %vm2873, %v2830, %v2395
  %v2911 = vsel %vm2873, %v2832, %v2397
  %v2914 = vsel %vm2873, %v2834, %v2399
  %v2917 = vsel %vm2873, %v2836, %v2401
  %v2920 = vsel %vm2873, %v2838, %v2403
  %v2923 = vsel %vm2873, %v2840, %v2405
  %v2926 = vsel %vm2873, %v2842, %v2407
  %v2929 = vsel %vm2873, %v2844, %v2409
  %v2932 = vsel %vm2873, %v2846, %v2411
  %v2935 = vsel %vm2873, %v2848, %v2413
  %v2938 = vsel %vm2873, %v2850, %v2415
  %v2941 = vsel %vm2873, %v2852, %v2417
  %v2944 = vsel %vm2873, %v2854, %v2419
  %v2947 = vsel %vm2873, %v2856, %v2421
  %v2950 = vsel %vm2873, %v2858, %v2423
  %v2953 = vsel %vm2873, %v2860, %v2425
  %v2956 = vsel %vm2873, %v2862, %v2427
  %v2959 = vsel %vm2873, %v2864, %v2429
  %v2962 = vsel %vm2873, %v2866, %v2431
  %v2965 = vsel %vm2873, %v2868, %v2433
  %v2968 = vsel %vm2873, %v2870, %v2435
  %v2971 = vsel %vm2873, %v2872, %v2437
  %v2973 = vld [vmem:[%s19] sm:$0xf]
  %v2974 = vld [vmem:[%s19 + $0x4] sm:$0xf]
  %v2975 = vld [vmem:[%s19 + $0x8] sm:$0xf]
  %v2976 = vld [vmem:[%s19 + $0xc] sm:$0xf]
  %v2977 = vld [vmem:[%s19 + $0x10] sm:$0xf]
  %v2978 = vld [vmem:[%s19 + $0x14] sm:$0xf]
  %v2979 = vld [vmem:[%s19 + $0x18] sm:$0xf]
  %v2980 = vld [vmem:[%s19 + $0x1c] sm:$0xf]
  %v2981 = vld [vmem:[%s19 + $0x20] sm:$0xf]
  %v2982 = vld [vmem:[%s19 + $0x24] sm:$0xf]
  %v2983 = vld [vmem:[%s19 + $0x28] sm:$0xf]
  %v2984 = vld [vmem:[%s19 + $0x2c] sm:$0xf]
  %v2985 = vld [vmem:[%s19 + $0x30] sm:$0xf]
  %v2986 = vld [vmem:[%s19 + $0x34] sm:$0xf]
  %v2987 = vld [vmem:[%s19 + $0x38] sm:$0xf]
  %v2988 = vld [vmem:[%s19 + $0x3c] sm:$0xf]
  %v2989 = vld [vmem:[%s19 + $0x40] sm:$0xf]
  %v2990 = vld [vmem:[%s19 + $0x44] sm:$0xf]
  %v2991 = vld [vmem:[%s21] sm:$0x1]
  %v2993 = vlaneseq
  %v2994 = vshrl.u32 %v2993, 7
  %v2995 = vsub.s32 0, %v2994
  %v2996 = vrot.slane %v2991, %v2995
  %v3016 = vunpack.c.l.b16 %v2973
  %v3017 = vunpack.c.l.b16 %v2974
  %v3018 = vunpack.c.l.b16 %v2975
  %v3019 = vunpack.c.l.b16 %v2976
  %v3020 = vunpack.c.l.b16 %v2977
  %v3021 = vunpack.c.l.b16 %v2978
  %v3022 = vunpack.c.l.b16 %v2979
  %v3023 = vunpack.c.l.b16 %v2980
  %v3024 = vunpack.c.l.b16 %v2981
  %v3025 = vunpack.c.l.b16 %v2982
  %v3026 = vunpack.c.l.b16 %v2983
  %v3027 = vunpack.c.l.b16 %v2984
  %v3028 = vunpack.c.l.b16 %v2985
  %v3029 = vunpack.c.l.b16 %v2986
  %v3030 = vunpack.c.l.b16 %v2987
  %v3031 = vunpack.c.l.b16 %v2988
  %v3032 = vunpack.c.l.b16 %v2989
  %v3033 = vunpack.c.l.b16 %v2990
  %v3034 = vpack.c.b16 %v3017, %v3016
  %v3035 = vpack.c.b16 %v3019, %v3018
  %v3036 = vpack.c.b16 %v3021, %v3020
  %v3037 = vpack.c.b16 %v3023, %v3022
  %v3038 = vpack.c.b16 %v3025, %v3024
  %v3039 = vpack.c.b16 %v3027, %v3026
  %v3040 = vpack.c.b16 %v3029, %v3028
  %v3041 = vpack.c.b16 %v3031, %v3030
  %v3042 = vpack.c.b16 %v3033, %v3032
  %v3052 = vsel %vm2438, %v1896, 0
  %v3054 = vsel %vm2438, %v1897, 0
  %v3056 = vsel %vm2438, %v1898, 0
  %v3058 = vsel %vm2438, %v1899, 0
  %v3060 = vsel %vm2438, %v1900, 0
  %v3062 = vsel %vm2438, %v1901, 0
  %v3064 = vsel %vm2438, %v1902, 0
  %v3066 = vsel %vm2438, %v1903, 0
  %v3068 = vsel %vm2438, %v1904, 0
  %v3070 = vsel %vm2438, %v1905, 0
  %v3072 = vsel %vm2438, %v1906, 0
  %v3074 = vsel %vm2438, %v1907, 0
  %v3076 = vsel %vm2438, %v1908, 0
  %v3078 = vsel %vm2438, %v1909, 0
  %v3080 = vsel %vm2438, %v1910, 0
  %v3082 = vsel %vm2438, %v1911, 0
  %v3084 = vsel %vm2438, %v1912, 0
  %v3087 = vsel %vm2438, %v1913, 0
  %v3090 = vsel %vm2438, %v1914, 0
  %v3093 = vsel %vm2438, %v1915, 0
  %v3096 = vsel %vm2438, %v1916, 0
  %v3099 = vsel %vm2438, %v1917, 0
  %v3102 = vsel %vm2438, %v1918, 0
  %v3105 = vsel %vm2438, %v1919, 0
  %v3108 = vsel %vm2438, %v1920, 0
  %v3111 = vsel %vm2438, %v1921, 0
  %v3114 = vsel %vm2438, %v1922, 0
  %v3117 = vsel %vm2438, %v1923, 0
  %v3120 = vsel %vm2438, %v1924, 0
  %v3123 = vsel %vm2438, %v1925, 0
  %v3126 = vsel %vm2438, %v1926, 0
  %v3129 = vsel %vm2438, %v1927, 0
  %v3132 = vsel %vm2438, %v1928, 0
  %3134 = vmatprep.subr.bf16.mxu0 0
  %3135 = vmatpush1.bf16.msra.mxu0 %v3041
  %3136 = vmatprep.subr.bf16.mxu0 0
  %3137 = vmatpush1.bf16.msra.mxu0 %v3040
  %3138 = vmatprep.subr.bf16.mxu0 0
  %3139 = vmatpush1.bf16.msra.mxu0 %v3039
  %3140 = vmatprep.subr.bf16.mxu0 0
  %3141 = vmatpush1.bf16.msra.mxu0 %v3038
  %3142 = vmatprep.subr.bf16.mxu0 0
  %3143 = vmatpush1.bf16.msra.mxu0 %v3037
  %3144 = vmatprep.subr.bf16.mxu0 0
  %3145 = vmatpush1.bf16.msra.mxu0 %v3036
  %3146 = vmatprep.subr.bf16.mxu0 0
  %3147 = vmatpush1.bf16.msra.mxu0 %v3035
  %3148 = vmatprep.subr.bf16.mxu0 0
  %3149 = vmatpush1.bf16.msra.mxu0 %v3034
  %3150 = vmatprep.subr.bf16.mxu0 0
  %3151 = vmatpush2.bf16.msra.mxu0 0
  %3152 = vmatprep.subr.bf16.mxu0 0
  %3153 = vmatpush2.bf16.msra.mxu0 0
  %3154 = vmatprep.subr.bf16.mxu0 0
  %3155 = vmatpush2.bf16.msra.mxu0 0
  %3156 = vmatprep.subr.bf16.mxu0 0
  %3157 = vmatpush2.bf16.msra.mxu0 0
  %3158 = vmatprep.subr.bf16.mxu0 0
  %3159 = vmatpush2.bf16.msra.mxu0 0
  %3160 = vmatprep.subr.bf16.mxu0 0
  %3161 = vmatpush2.bf16.msra.mxu0 0
  %3162 = vmatprep.subr.bf16.mxu0 0
  %3163 = vmatpush2.bf16.msra.mxu0 0
  %3164 = vmatprep.subr.bf16.mxu0 0
  %3165 = vmatpush2.bf16.msra.mxu0 %v3042
  %3166 = vmatprep.mubr.bf16.mxu0 %v3052
  %3167 = vmatmul.mubr.bf16.gmra.mxu0 %v2875
  %v3168 = vpop.f32.mrf.mxu0
  %v3169 = vadd.f32 %v2996, %v3168
  %v3170 = vpop.f32.mrf.mxu0
  %v3171 = vpop.f32.mrf.mxu0
  %v3172 = vadd.f32 %v2996, %v3171
  %v3173 = vpop.f32.mrf.mxu0
  %3174 = vmatprep.mubr.bf16.mxu0 %v3054
  %3175 = vmatmul.mubr.bf16.gmra.mxu0 %v2878
  %v3176 = vpop.f32.mrf.mxu0
  %v3177 = vadd.f32 %v2996, %v3176
  %v3178 = vpop.f32.mrf.mxu0
  %v3179 = vpop.f32.mrf.mxu0
  %v3180 = vadd.f32 %v2996, %v3179
  %v3181 = vpop.f32.mrf.mxu0
  %3182 = vmatprep.mubr.bf16.mxu0 %v3056
  %3183 = vmatmul.mubr.bf16.gmra.mxu0 %v2881
  %v3184 = vpop.f32.mrf.mxu0
  %v3185 = vadd.f32 %v2996, %v3184
  %v3186 = vpop.f32.mrf.mxu0
  %v3187 = vpop.f32.mrf.mxu0
  %v3188 = vadd.f32 %v2996, %v3187
  %v3189 = vpop.f32.mrf.mxu0
  %3190 = vmatprep.mubr.bf16.mxu0 %v3058
  %3191 = vmatmul.mubr.bf16.gmra.mxu0 %v2884
  %v3192 = vpop.f32.mrf.mxu0
  %v3193 = vadd.f32 %v2996, %v3192
  %v3194 = vpop.f32.mrf.mxu0
  %v3195 = vpop.f32.mrf.mxu0
  %v3196 = vadd.f32 %v2996, %v3195
  %v3197 = vpop.f32.mrf.mxu0
  %3198 = vmatprep.mubr.bf16.mxu0 %v3060
  %3199 = vmatmul.mubr.bf16.gmra.mxu0 %v2887
  %v3200 = vpop.f32.mrf.mxu0
  %v3201 = vadd.f32 %v2996, %v3200
  %v3202 = vpop.f32.mrf.mxu0
  %v3203 = vpop.f32.mrf.mxu0
  %v3204 = vadd.f32 %v2996, %v3203
  %v3205 = vpop.f32.mrf.mxu0
  %3206 = vmatprep.mubr.bf16.mxu0 %v3062
  %3207 = vmatmul.mubr.bf16.gmra.mxu0 %v2890
  %v3208 = vpop.f32.mrf.mxu0
  %v3209 = vpop.f32.mrf.mxu0
  %v3210 = vpop.f32.mrf.mxu0
  %v3211 = vpop.f32.mrf.mxu0
  %3212 = vmatprep.mubr.bf16.mxu0 %v3064
  %3213 = vmatmul.mubr.bf16.gmra.mxu0 %v2893
  %v3214 = vpop.f32.mrf.mxu0
  %v3215 = vpop.f32.mrf.mxu0
  %v3216 = vpop.f32.mrf.mxu0
  %v3217 = vpop.f32.mrf.mxu0
  %3218 = vmatprep.mubr.bf16.mxu0 %v3066
  %3219 = vmatmul.mubr.bf16.gmra.mxu0 %v2896
  %v3220 = vpop.f32.mrf.mxu0
  %v3221 = vadd.f32 %v2996, %v3220
  %v3222 = vpop.f32.mrf.mxu0
  %v3223 = vpop.f32.mrf.mxu0
  %v3224 = vadd.f32 %v2996, %v3223
  %v3225 = vpop.f32.mrf.mxu0
  %3226 = vmatprep.mubr.bf16.mxu0 %v3068
  %3227 = vmatmul.mubr.bf16.gmra.mxu0 %v2899
  %v3228 = vpop.f32.mrf.mxu0
  %v3229 = vadd.f32 %v2996, %v3228
  %v3230 = vpop.f32.mrf.mxu0
  %v3231 = vpop.f32.mrf.mxu0
  %v3232 = vadd.f32 %v2996, %v3231
  %v3233 = vpop.f32.mrf.mxu0
  %3234 = vmatprep.mubr.bf16.mxu0 %v3070
  %3235 = vmatmul.mubr.bf16.gmra.mxu0 %v2902
  %v3236 = vpop.f32.mrf.mxu0
  %v3237 = vadd.f32 %v2996, %v3236
  %v3238 = vpop.f32.mrf.mxu0
  %v3239 = vpop.f32.mrf.mxu0
  %v3240 = vadd.f32 %v2996, %v3239
  %v3241 = vpop.f32.mrf.mxu0
  %3242 = vmatprep.mubr.bf16.mxu0 %v3072
  %3243 = vmatmul.mubr.bf16.gmra.mxu0 %v2905
  %v3244 = vpop.f32.mrf.mxu0
  %v3245 = vadd.f32 %v2996, %v3244
  %v3246 = vpop.f32.mrf.mxu0
  %v3247 = vpop.f32.mrf.mxu0
  %v3248 = vadd.f32 %v2996, %v3247
  %v3249 = vpop.f32.mrf.mxu0
  %3250 = vmatprep.mubr.bf16.mxu0 %v3074
  %3251 = vmatmul.mubr.bf16.gmra.mxu0 %v2908
  %v3252 = vpop.f32.mrf.mxu0
  %v3253 = vadd.f32 %v2996, %v3252
  %v3254 = vpop.f32.mrf.mxu0
  %v3255 = vpop.f32.mrf.mxu0
  %v3256 = vadd.f32 %v2996, %v3255
  %v3257 = vpop.f32.mrf.mxu0
  %3258 = vmatprep.mubr.bf16.mxu0 %v3076
  %3259 = vmatmul.mubr.bf16.gmra.mxu0 %v2911
  %v3260 = vpop.f32.mrf.mxu0
  %v3261 = vpop.f32.mrf.mxu0
  %v3262 = vpop.f32.mrf.mxu0
  %v3263 = vpop.f32.mrf.mxu0
  %3264 = vmatprep.mubr.bf16.mxu0 %v3078
  %3265 = vmatmul.mubr.bf16.gmra.mxu0 %v2914
  %v3266 = vpop.f32.mrf.mxu0
  %v3267 = vpop.f32.mrf.mxu0
  %v3268 = vpop.f32.mrf.mxu0
  %v3269 = vpop.f32.mrf.mxu0
  %3270 = vmatprep.mubr.bf16.mxu0 %v3080
  %3271 = vmatmul.mubr.bf16.gmra.mxu0 %v2917
  %v3272 = vpop.f32.mrf.mxu0
  %v3273 = vadd.f32 %v2996, %v3272
  %v3274 = vpop.f32.mrf.mxu0
  %v3275 = vpop.f32.mrf.mxu0
  %v3276 = vadd.f32 %v2996, %v3275
  %v3277 = vpop.f32.mrf.mxu0
  %3278 = vmatprep.mubr.bf16.mxu0 %v3082
  %3279 = vmatmul.mubr.bf16.gmra.mxu0 %v2920
  %v3280 = vpop.f32.mrf.mxu0
  %v3281 = vadd.f32 %v2996, %v3280
  %v3282 = vpop.f32.mrf.mxu0
  %v3283 = vpop.f32.mrf.mxu0
  %v3284 = vadd.f32 %v2996, %v3283
  %v3285 = vpop.f32.mrf.mxu0
  %3286 = vmatprep.mubr.bf16.mxu0 %v3084
  %3287 = vmatmul.mubr.bf16.gmra.mxu0 %v2923
  %v3288 = vpop.f32.mrf.mxu0
  %v3289 = vadd.f32 %v2996, %v3288
  %v3290 = vpop.f32.mrf.mxu0
  %v3291 = vpop.f32.mrf.mxu0
  %v3292 = vadd.f32 %v2996, %v3291
  %v3293 = vpop.f32.mrf.mxu0
  %3294 = vmatprep.mubr.bf16.mxu0 %v3087
  %3295 = vmatmul.mubr.bf16.gmra.mxu0 %v2926
  %v3296 = vpop.f32.mrf.mxu0
  %v3297 = vadd.f32 %v2996, %v3296
  %v3298 = vpop.f32.mrf.mxu0
  %v3299 = vpop.f32.mrf.mxu0
  %v3300 = vadd.f32 %v2996, %v3299
  %v3301 = vpop.f32.mrf.mxu0
  %3302 = vmatprep.mubr.bf16.mxu0 %v3090
  %3303 = vmatmul.mubr.bf16.gmra.mxu0 %v2929
  %v3304 = vpop.f32.mrf.mxu0
  %v3305 = vadd.f32 %v2996, %v3304
  %v3306 = vpop.f32.mrf.mxu0
  %v3307 = vpop.f32.mrf.mxu0
  %v3308 = vadd.f32 %v2996, %v3307
  %v3309 = vpop.f32.mrf.mxu0
  %3310 = vmatprep.mubr.bf16.mxu0 %v3093
  %3311 = vmatmul.mubr.bf16.gmra.mxu0 %v2932
  %v3312 = vpop.f32.mrf.mxu0
  %v3313 = vpop.f32.mrf.mxu0
  %v3314 = vpop.f32.mrf.mxu0
  %v3315 = vpop.f32.mrf.mxu0
  %3316 = vmatprep.mubr.bf16.mxu0 %v3096
  %3317 = vmatmul.mubr.bf16.gmra.mxu0 %v2935
  %v3318 = vpop.f32.mrf.mxu0
  %v3319 = vpop.f32.mrf.mxu0
  %v3320 = vpop.f32.mrf.mxu0
  %v3321 = vpop.f32.mrf.mxu0
  %3322 = vmatprep.mubr.bf16.mxu0 %v3099
  %3323 = vmatmul.mubr.bf16.gmra.mxu0 %v2938
  %v3324 = vpop.f32.mrf.mxu0
  %v3325 = vadd.f32 %v2996, %v3324
  %v3326 = vpop.f32.mrf.mxu0
  %v3327 = vpop.f32.mrf.mxu0
  %v3328 = vadd.f32 %v2996, %v3327
  %v3329 = vpop.f32.mrf.mxu0
  %3330 = vmatprep.mubr.bf16.mxu0 %v3102
  %3331 = vmatmul.mubr.bf16.gmra.mxu0 %v2941
  %v3332 = vpop.f32.mrf.mxu0
  %v3333 = vadd.f32 %v2996, %v3332
  %v3334 = vpop.f32.mrf.mxu0
  %v3335 = vpop.f32.mrf.mxu0
  %v3336 = vadd.f32 %v2996, %v3335
  %v3337 = vpop.f32.mrf.mxu0
  %3338 = vmatprep.mubr.bf16.mxu0 %v3105
  %3339 = vmatmul.mubr.bf16.gmra.mxu0 %v2944
  %v3340 = vpop.f32.mrf.mxu0
  %v3341 = vadd.f32 %v2996, %v3340
  %v3342 = vpop.f32.mrf.mxu0
  %v3343 = vpop.f32.mrf.mxu0
  %v3344 = vadd.f32 %v2996, %v3343
  %v3345 = vpop.f32.mrf.mxu0
  %3346 = vmatprep.mubr.bf16.mxu0 %v3108
  %3347 = vmatmul.mubr.bf16.gmra.mxu0 %v2947
  %v3348 = vpop.f32.mrf.mxu0
  %v3349 = vadd.f32 %v2996, %v3348
  %v3350 = vpop.f32.mrf.mxu0
  %v3351 = vpop.f32.mrf.mxu0
  %v3352 = vadd.f32 %v2996, %v3351
  %v3353 = vpop.f32.mrf.mxu0
  %3354 = vmatprep.mubr.bf16.mxu0 %v3111
  %3355 = vmatmul.mubr.bf16.gmra.mxu0 %v2950
  %v3356 = vpop.f32.mrf.mxu0
  %v3357 = vadd.f32 %v2996, %v3356
  %v3358 = vpop.f32.mrf.mxu0
  %v3359 = vpop.f32.mrf.mxu0
  %v3360 = vadd.f32 %v2996, %v3359
  %v3361 = vpop.f32.mrf.mxu0
  %3362 = vmatprep.mubr.bf16.mxu0 %v3114
  %3363 = vmatmul.mubr.bf16.gmra.mxu0 %v2953
  %v3364 = vpop.f32.mrf.mxu0
  %v3365 = vpop.f32.mrf.mxu0
  %v3366 = vpop.f32.mrf.mxu0
  %v3367 = vpop.f32.mrf.mxu0
  %3368 = vmatprep.mubr.bf16.mxu0 %v3117
  %3369 = vmatmul.mubr.bf16.gmra.mxu0 %v2956
  %v3370 = vpop.f32.mrf.mxu0
  %v3371 = vpop.f32.mrf.mxu0
  %v3372 = vpop.f32.mrf.mxu0
  %v3373 = vpop.f32.mrf.mxu0
  %3374 = vmatprep.mubr.bf16.mxu0 %v3120
  %3375 = vmatmul.mubr.bf16.gmra.mxu0 %v2959
  %v3376 = vpop.f32.mrf.mxu0
  %v3377 = vadd.f32 %v2996, %v3376
  %v3378 = vpop.f32.mrf.mxu0
  %v3379 = vpop.f32.mrf.mxu0
  %v3380 = vadd.f32 %v2996, %v3379
  %v3381 = vpop.f32.mrf.mxu0
  %3382 = vmatprep.mubr.bf16.mxu0 %v3123
  %3383 = vmatmul.mubr.bf16.gmra.mxu0 %v2962
  %v3384 = vpop.f32.mrf.mxu0
  %v3385 = vadd.f32 %v2996, %v3384
  %v3386 = vpop.f32.mrf.mxu0
  %v3387 = vpop.f32.mrf.mxu0
  %v3388 = vadd.f32 %v2996, %v3387
  %v3389 = vpop.f32.mrf.mxu0
  %3390 = vmatprep.mubr.bf16.mxu0 %v3126
  %3391 = vmatmul.mubr.bf16.gmra.mxu0 %v2965
  %v3392 = vpop.f32.mrf.mxu0
  %v3393 = vadd.f32 %v2996, %v3392
  %v3394 = vpop.f32.mrf.mxu0
  %v3395 = vpop.f32.mrf.mxu0
  %v3396 = vadd.f32 %v2996, %v3395
  %v3397 = vpop.f32.mrf.mxu0
  %3398 = vmatprep.mubr.bf16.mxu0 %v3129
  %3399 = vmatmul.mubr.bf16.gmra.mxu0 %v2968
  %v3400 = vpop.f32.mrf.mxu0
  %v3401 = vadd.f32 %v2996, %v3400
  %v3402 = vpop.f32.mrf.mxu0
  %v3403 = vpop.f32.mrf.mxu0
  %v3404 = vadd.f32 %v2996, %v3403
  %v3405 = vpop.f32.mrf.mxu0
  %3406 = vmatprep.mubr.bf16.mxu0 %v3132
  %3407 = vmatmul.mubr.bf16.gmra.mxu0 %v2971
  %v3408 = vpop.f32.mrf.mxu0
  %v3409 = vadd.f32 %v2996, %v3408
  %v3410 = vpop.f32.mrf.mxu0
  %v3411 = vpop.f32.mrf.mxu0
  %v3412 = vadd.f32 %v2996, %v3411
  %v3413 = vpop.f32.mrf.mxu0
  %3414 = vdwg.mxu0
  %v3415 = vmax.f32 %v3169, 0.0
  %v3416 = vmax.f32 %v3172, 0.0
  %v3417 = vmax.f32 %v3177, 0.0
  %v3418 = vmax.f32 %v3180, 0.0
  %v3419 = vmax.f32 %v3185, 0.0
  %v3420 = vmax.f32 %v3188, 0.0
  %v3421 = vmax.f32 %v3193, 0.0
  %v3422 = vmax.f32 %v3196, 0.0
  %v3423 = vmax.f32 %v3201, 0.0
  %v3424 = vmax.f32 %v3204, 0.0
  %v3425 = vmax.f32 %v3221, 0.0
  %v3426 = vmax.f32 %v3224, 0.0
  %v3427 = vmax.f32 %v3229, 0.0
  %v3428 = vmax.f32 %v3232, 0.0
  %v3429 = vmax.f32 %v3237, 0.0
  %v3430 = vmax.f32 %v3240, 0.0
  %v3431 = vmax.f32 %v3245, 0.0
  %v3432 = vmax.f32 %v3248, 0.0
  %v3433 = vmax.f32 %v3253, 0.0
  %v3434 = vmax.f32 %v3256, 0.0
  %v3435 = vmax.f32 %v3273, 0.0
  %v3436 = vmax.f32 %v3276, 0.0
  %v3437 = vmax.f32 %v3281, 0.0
  %v3438 = vmax.f32 %v3284, 0.0
  %v3439 = vmax.f32 %v3289, 0.0
  %v3440 = vmax.f32 %v3292, 0.0
  %v3441 = vmax.f32 %v3297, 0.0
  %v3442 = vmax.f32 %v3300, 0.0
  %v3443 = vmax.f32 %v3305, 0.0
  %v3444 = vmax.f32 %v3308, 0.0
  %v3445 = vmax.f32 %v3325, 0.0
  %v3446 = vmax.f32 %v3328, 0.0
  %v3447 = vmax.f32 %v3333, 0.0
  %v3448 = vmax.f32 %v3336, 0.0
  %v3449 = vmax.f32 %v3341, 0.0
  %v3450 = vmax.f32 %v3344, 0.0
  %v3451 = vmax.f32 %v3349, 0.0
  %v3452 = vmax.f32 %v3352, 0.0
  %v3453 = vmax.f32 %v3357, 0.0
  %v3454 = vmax.f32 %v3360, 0.0
  %v3455 = vmax.f32 %v3377, 0.0
  %v3456 = vmax.f32 %v3380, 0.0
  %v3457 = vmax.f32 %v3385, 0.0
  %v3458 = vmax.f32 %v3388, 0.0
  %v3459 = vmax.f32 %v3393, 0.0
  %v3460 = vmax.f32 %v3396, 0.0
  %v3461 = vmax.f32 %v3401, 0.0
  %v3462 = vmax.f32 %v3404, 0.0
  %v3463 = vmax.f32 %v3409, 0.0
  %v3464 = vmax.f32 %v3412, 0.0
  %v3465 = vadd.f32 %v3415, %v3417
  %v3466 = vadd.f32 %v3416, %v3418
  %v3467 = vadd.f32 %v3417, %v3419
  %v3468 = vadd.f32 %v3418, %v3420
  %v3469 = vadd.f32 %v3419, %v3421
  %v3470 = vadd.f32 %v3420, %v3422
  %v3471 = vadd.f32 %v3421, %v3423
  %v3472 = vadd.f32 %v3422, %v3424
  %v3473 = vadd.f32 %v3425, %v3427
  %v3474 = vadd.f32 %v3426, %v3428
  %v3475 = vadd.f32 %v3427, %v3429
  %v3476 = vadd.f32 %v3428, %v3430
  %v3477 = vadd.f32 %v3429, %v3431
  %v3478 = vadd.f32 %v3430, %v3432
  %v3479 = vadd.f32 %v3431, %v3433
  %v3480 = vadd.f32 %v3432, %v3434
  %v3481 = vadd.f32 %v3435, %v3437
  %v3482 = vadd.f32 %v3436, %v3438
  %v3483 = vadd.f32 %v3437, %v3439
  %v3484 = vadd.f32 %v3438, %v3440
  %v3485 = vadd.f32 %v3439, %v3441
  %v3486 = vadd.f32 %v3440, %v3442
  %v3487 = vadd.f32 %v3441, %v3443
  %v3488 = vadd.f32 %v3442, %v3444
  %v3489 = vadd.f32 %v3445, %v3447
  %v3490 = vadd.f32 %v3446, %v3448
  %v3491 = vadd.f32 %v3447, %v3449
  %v3492 = vadd.f32 %v3448, %v3450
  %v3493 = vadd.f32 %v3449, %v3451
  %v3494 = vadd.f32 %v3450, %v3452
  %v3495 = vadd.f32 %v3451, %v3453
  %v3496 = vadd.f32 %v3452, %v3454
  %v3497 = vadd.f32 %v3465, %v3425
  %v3498 = vadd.f32 %v3466, %v3426
  %v3499 = vadd.f32 %v3467, %v3427
  %v3500 = vadd.f32 %v3468, %v3428
  %v3501 = vadd.f32 %v3469, %v3429
  %v3502 = vadd.f32 %v3470, %v3430
  %v3503 = vadd.f32 %v3471, %v3431
  %v3504 = vadd.f32 %v3472, %v3432
  %v3505 = vadd.f32 %v3473, %v3435
  %v3506 = vadd.f32 %v3474, %v3436
  %v3507 = vadd.f32 %v3475, %v3437
  %v3508 = vadd.f32 %v3476, %v3438
  %v3509 = vadd.f32 %v3477, %v3439
  %v3510 = vadd.f32 %v3478, %v3440
  %v3511 = vadd.f32 %v3479, %v3441
  %v3512 = vadd.f32 %v3480, %v3442
  %v3513 = vadd.f32 %v3481, %v3445
  %v3514 = vadd.f32 %v3482, %v3446
  %v3515 = vadd.f32 %v3483, %v3447
  %v3516 = vadd.f32 %v3484, %v3448
  %v3517 = vadd.f32 %v3485, %v3449
  %v3518 = vadd.f32 %v3486, %v3450
  %v3519 = vadd.f32 %v3487, %v3451
  %v3520 = vadd.f32 %v3488, %v3452
  %v3521 = vadd.f32 %v3489, %v3455
  %v3522 = vadd.f32 %v3490, %v3456
  %v3523 = vadd.f32 %v3491, %v3457
  %v3524 = vadd.f32 %v3492, %v3458
  %v3525 = vadd.f32 %v3493, %v3459
  %v3526 = vadd.f32 %v3494, %v3460
  %v3527 = vadd.f32 %v3495, %v3461
  %v3528 = vadd.f32 %v3496, %v3462
  %v3529 = vadd.f32 %v3497, %v3427
  %v3530 = vadd.f32 %v3498, %v3428
  %v3531 = vadd.f32 %v3499, %v3429
  %v3532 = vadd.f32 %v3500, %v3430
  %v3533 = vadd.f32 %v3501, %v3431
  %v3534 = vadd.f32 %v3502, %v3432
  %v3535 = vadd.f32 %v3503, %v3433
  %v3536 = vadd.f32 %v3504, %v3434
  %v3537 = vadd.f32 %v3505, %v3437
  %v3538 = vadd.f32 %v3506, %v3438
  %v3539 = vadd.f32 %v3507, %v3439
  %v3540 = vadd.f32 %v3508, %v3440
  %v3541 = vadd.f32 %v3509, %v3441
  %v3542 = vadd.f32 %v3510, %v3442
  %v3543 = vadd.f32 %v3511, %v3443
  %v3544 = vadd.f32 %v3512, %v3444
  %v3545 = vadd.f32 %v3513, %v3447
  %v3546 = vadd.f32 %v3514, %v3448
  %v3547 = vadd.f32 %v3515, %v3449
  %v3548 = vadd.f32 %v3516, %v3450
  %v3549 = vadd.f32 %v3517, %v3451
  %v3550 = vadd.f32 %v3518, %v3452
  %v3551 = vadd.f32 %v3519, %v3453
  %v3552 = vadd.f32 %v3520, %v3454
  %v3553 = vadd.f32 %v3521, %v3457
  %v3554 = vadd.f32 %v3522, %v3458
  %v3555 = vadd.f32 %v3523, %v3459
  %v3556 = vadd.f32 %v3524, %v3460
  %v3557 = vadd.f32 %v3525, %v3461
  %v3558 = vadd.f32 %v3526, %v3462
  %v3559 = vadd.f32 %v3527, %v3463
  %v3560 = vadd.f32 %v3528, %v3464
  %3563 = vrot.lane.b32.xlu0 %v3531, 32
  %v3564 = vpop.permute.xlu0 %3563
  %3565 = vrot.lane.b32.xlu0 %v3532, 32
  %v3566 = vpop.permute.xlu0 %3565
  %3571 = vrot.lane.b32.xlu0 %v3533, 64
  %v3572 = vpop.permute.xlu0 %3571
  %3573 = vrot.lane.b32.xlu0 %v3534, 64
  %v3574 = vpop.permute.xlu0 %3573
  %3579 = vrot.lane.b32.xlu0 %v3535, 96
  %v3580 = vpop.permute.xlu0 %3579
  %3581 = vrot.lane.b32.xlu0 %v3536, 96
  %v3582 = vpop.permute.xlu0 %3581
  %3587 = vrot.lane.b32.xlu0 %v3539, 32
  %v3588 = vpop.permute.xlu0 %3587
  %3589 = vrot.lane.b32.xlu0 %v3540, 32
  %v3590 = vpop.permute.xlu0 %3589
  %3595 = vrot.lane.b32.xlu0 %v3541, 64
  %v3596 = vpop.permute.xlu0 %3595
  %3597 = vrot.lane.b32.xlu0 %v3542, 64
  %v3598 = vpop.permute.xlu0 %3597
  %3603 = vrot.lane.b32.xlu0 %v3543, 96
  %v3604 = vpop.permute.xlu0 %3603
  %3605 = vrot.lane.b32.xlu0 %v3544, 96
  %v3606 = vpop.permute.xlu0 %3605
  %3611 = vrot.lane.b32.xlu0 %v3547, 32
  %v3612 = vpop.permute.xlu0 %3611
  %3613 = vrot.lane.b32.xlu0 %v3548, 32
  %v3614 = vpop.permute.xlu0 %3613
  %3619 = vrot.lane.b32.xlu0 %v3549, 64
  %v3620 = vpop.permute.xlu0 %3619
  %3621 = vrot.lane.b32.xlu0 %v3550, 64
  %v3622 = vpop.permute.xlu0 %3621
  %3627 = vrot.lane.b32.xlu0 %v3551, 96
  %v3628 = vpop.permute.xlu0 %3627
  %3629 = vrot.lane.b32.xlu0 %v3552, 96
  %v3630 = vpop.permute.xlu0 %3629
  %3635 = vrot.lane.b32.xlu0 %v3555, 32
  %v3636 = vpop.permute.xlu0 %3635
  %3637 = vrot.lane.b32.xlu0 %v3556, 32
  %v3638 = vpop.permute.xlu0 %3637
  %3643 = vrot.lane.b32.xlu0 %v3557, 64
  %v3644 = vpop.permute.xlu0 %3643
  %3645 = vrot.lane.b32.xlu0 %v3558, 64
  %v3646 = vpop.permute.xlu0 %3645
  %3651 = vrot.lane.b32.xlu0 %v3559, 96
  %v3652 = vpop.permute.xlu0 %3651
  %3653 = vrot.lane.b32.xlu0 %v3560, 96
  %v3654 = vpop.permute.xlu0 %3653
  %v3657 = vsel %vm2538, %v3529, %v3564
  %v3658 = vsel %vm2538, %v3530, %v3566
  %v3659 = vsel %vm2672, %v3657, %v3572
  %v3660 = vsel %vm2672, %v3658, %v3574
  %v3661 = vsel %vm2806, %v3659, %v3580
  %v3662 = vsel %vm2806, %v3660, %v3582
  %v3663 = vsel %vm2538, %v3537, %v3588
  %v3664 = vsel %vm2538, %v3538, %v3590
  %v3665 = vsel %vm2672, %v3663, %v3596
  %v3666 = vsel %vm2672, %v3664, %v3598
  %v3667 = vsel %vm2806, %v3665, %v3604
  %v3668 = vsel %vm2806, %v3666, %v3606
  %v3669 = vsel %vm2538, %v3545, %v3612
  %v3670 = vsel %vm2538, %v3546, %v3614
  %v3671 = vsel %vm2672, %v3669, %v3620
  %v3672 = vsel %vm2672, %v3670, %v3622
  %v3673 = vsel %vm2806, %v3671, %v3628
  %v3674 = vsel %vm2806, %v3672, %v3630
  %v3675 = vsel %vm2538, %v3553, %v3636
  %v3676 = vsel %vm2538, %v3554, %v3638
  %v3677 = vsel %vm2672, %v3675, %v3644
  %v3678 = vsel %vm2672, %v3676, %v3646
  %v3679 = vsel %vm2806, %v3677, %v3652
  %v3680 = vsel %vm2806, %v3678, %v3654
  %v3681 = vld [vmem:[%s5] sm:$0xff]
  %v3682 = vld [vmem:[%s5 + $0x8] sm:$0xff]
  %3684 = vset.pattern.permute.xlu0 0
  %3685 = vperm.xlu0 %3684, %v3681
  %v3686 = vpop.permute.xlu0 %3685
  %3689 = vset.pattern.permute.xlu0 0
  %3690 = vperm.xlu0 %3689, %v3682
  %v3691 = vpop.permute.xlu0 %3690
  %v3693 = vmul.f32 %v3661, %v3686
  %v3694 = vmul.f32 %v3667, %v3686
  %v3695 = vmul.f32 %v3673, %v3686
  %v3696 = vmul.f32 %v3679, %v3686
  %v3697 = vmul.f32 %v3662, %v3691
  %v3698 = vmul.f32 %v3668, %v3691
  %v3699 = vmul.f32 %v3674, %v3691
  %v3700 = vmul.f32 %v3680, %v3691
  %v3701 = vld [vmem:[%s23] sm:$0xff]
  %v3702 = vld [vmem:[%s23 + $0x8] sm:$0xff]
  %v3703 = vld [vmem:[%s23 + $0x10] sm:$0xff]
  %v3704 = vld [vmem:[%s23 + $0x18] sm:$0xff]
  %v3705 = vld [vmem:[%s23 + $0x20] sm:$0xff]
  %v3706 = vld [vmem:[%s23 + $0x28] sm:$0xff]
  %v3707 = vld [vmem:[%s23 + $0x30] sm:$0xff]
  %v3708 = vld [vmem:[%s23 + $0x38] sm:$0xff]
  %v3709 = vld [vmem:[%s23 + $0x40] sm:$0xff]
  %v3710 = vld [vmem:[%s23 + $0x48] sm:$0xff]
  %v3711 = vld [vmem:[%s23 + $0x50] sm:$0xff]
  %v3712 = vld [vmem:[%s23 + $0x58] sm:$0xff]
  %v3713 = vld [vmem:[%s23 + $0x60] sm:$0xff]
  %v3714 = vld [vmem:[%s23 + $0x68] sm:$0xff]
  %v3715 = vld [vmem:[%s23 + $0x70] sm:$0xff]
  %v3716 = vld [vmem:[%s23 + $0x78] sm:$0xff]
  %v3717 = vld [vmem:[%s23 + $0x80] sm:$0xff]
  %v3718 = vld [vmem:[%s23 + $0x88] sm:$0xff]
  %v3719 = vld [vmem:[%s23 + $0x90] sm:$0xff]
  %v3720 = vld [vmem:[%s23 + $0x98] sm:$0xff]
  %v3721 = vld [vmem:[%s23 + $0xa0] sm:$0xff]
  %v3722 = vld [vmem:[%s23 + $0xa8] sm:$0xff]
  %v3723 = vld [vmem:[%s23 + $0xb0] sm:$0xff]
  %v3724 = vld [vmem:[%s23 + $0xb8] sm:$0xff]
  %v3725 = vld [vmem:[%s23 + $0xc0] sm:$0xff]
  %v3726 = vld [vmem:[%s23 + $0xc8] sm:$0xff]
  %v3727 = vld [vmem:[%s23 + $0xd0] sm:$0xff]
  %v3728 = vld [vmem:[%s23 + $0xd8] sm:$0xff]
  %v3729 = vld [vmem:[%s23 + $0xe0] sm:$0xff]
  %v3730 = vld [vmem:[%s23 + $0xe8] sm:$0xff]
  %v3731 = vld [vmem:[%s23 + $0xf0] sm:$0xff]
  %v3732 = vld [vmem:[%s23 + $0xf8] sm:$0xff]
  %v3733 = vld [vmem:[%s23 + $0x100] sm:$0xff]
  %v3734 = vld [vmem:[%s23 + $0x108] sm:$0xff]
  %v3735 = vld [vmem:[%s23 + $0x110] sm:$0xff]
  %v3736 = vld [vmem:[%s23 + $0x118] sm:$0xff]
  %v3737 = vld [vmem:[%s23 + $0x120] sm:$0xff]
  %v3738 = vld [vmem:[%s23 + $0x128] sm:$0xff]
  %v3739 = vld [vmem:[%s23 + $0x130] sm:$0xff]
  %v3740 = vld [vmem:[%s23 + $0x138] sm:$0xff]
  %v3741 = vld [vmem:[%s23 + $0x140] sm:$0xff]
  %v3742 = vld [vmem:[%s23 + $0x148] sm:$0xff]
  %v3743 = vld [vmem:[%s23 + $0x150] sm:$0xff]
  %v3744 = vld [vmem:[%s23 + $0x158] sm:$0xff]
  %v3745 = vld [vmem:[%s23 + $0x160] sm:$0xff]
  %v3746 = vld [vmem:[%s23 + $0x168] sm:$0xff]
  %v3747 = vld [vmem:[%s23 + $0x170] sm:$0xff]
  %v3748 = vld [vmem:[%s23 + $0x178] sm:$0xff]
  %v3749 = vld [vmem:[%s23 + $0x180] sm:$0xff]
  %v3750 = vld [vmem:[%s23 + $0x188] sm:$0xff]
  %v3751 = vld [vmem:[%s23 + $0x190] sm:$0xff]
  %v3752 = vld [vmem:[%s23 + $0x198] sm:$0xff]
  %v3753 = vld [vmem:[%s23 + $0x1a0] sm:$0xff]
  %v3754 = vld [vmem:[%s23 + $0x1a8] sm:$0xff]
  %v3755 = vld [vmem:[%s23 + $0x1b0] sm:$0xff]
  %v3756 = vld [vmem:[%s23 + $0x1b8] sm:$0xff]
  %v3757 = vld [vmem:[%s23 + $0x1c0] sm:$0xff]
  %v3758 = vld [vmem:[%s23 + $0x1c8] sm:$0xff]
  %v3759 = vld [vmem:[%s23 + $0x1d0] sm:$0xff]
  %v3760 = vld [vmem:[%s23 + $0x1d8] sm:$0xff]
  %v3761 = vld [vmem:[%s23 + $0x1e0] sm:$0xff]
  %v3762 = vld [vmem:[%s23 + $0x1e8] sm:$0xff]
  %v3763 = vld [vmem:[%s23 + $0x1f0] sm:$0xff]
  %v3764 = vld [vmem:[%s23 + $0x1f8] sm:$0xff]
  %v3765 = vld [vmem:[%s23 + $0x200] sm:$0xff]
  %v3766 = vld [vmem:[%s23 + $0x208] sm:$0xff]
  %v3767 = vld [vmem:[%s23 + $0x210] sm:$0xff]
  %v3768 = vld [vmem:[%s23 + $0x218] sm:$0xff]
  %v3769 = vld [vmem:[%s23 + $0x220] sm:$0xff]
  %v3770 = vld [vmem:[%s23 + $0x228] sm:$0xff]
  %v3771 = vld [vmem:[%s23 + $0x230] sm:$0xff]
  %v3772 = vld [vmem:[%s23 + $0x238] sm:$0xff]
  %v3773 = vld [vmem:[%s23 + $0x240] sm:$0xff]
  %v3774 = vld [vmem:[%s23 + $0x248] sm:$0xff]
  %v3775 = vld [vmem:[%s23 + $0x250] sm:$0xff]
  %v3776 = vld [vmem:[%s23 + $0x258] sm:$0xff]
  %v3777 = vld [vmem:[%s23 + $0x260] sm:$0xff]
  %v3778 = vld [vmem:[%s23 + $0x268] sm:$0xff]
  %v3779 = vld [vmem:[%s23 + $0x270] sm:$0xff]
  %v3780 = vld [vmem:[%s23 + $0x278] sm:$0xff]
  %v3781 = vld [vmem:[%s23 + $0x280] sm:$0xff]
  %v3782 = vld [vmem:[%s23 + $0x288] sm:$0xff]
  %v3783 = vld [vmem:[%s23 + $0x290] sm:$0xff]
  %v3784 = vld [vmem:[%s23 + $0x298] sm:$0xff]
  %v3785 = vld [vmem:[%s23 + $0x2a0] sm:$0xff]
  %v3786 = vld [vmem:[%s23 + $0x2a8] sm:$0xff]
  %v3787 = vld [vmem:[%s23 + $0x2b0] sm:$0xff]
  %v3788 = vld [vmem:[%s23 + $0x2b8] sm:$0xff]
  %v3789 = vld [vmem:[%s23 + $0x2c0] sm:$0xff]
  %v3790 = vld [vmem:[%s23 + $0x2c8] sm:$0xff]
  %v3791 = vld [vmem:[%s23 + $0x2d0] sm:$0xff]
  %v3792 = vld [vmem:[%s23 + $0x2d8] sm:$0xff]
  %v3793 = vld [vmem:[%s23 + $0x2e0] sm:$0xff]
  %v3794 = vld [vmem:[%s23 + $0x2e8] sm:$0xff]
  %v3795 = vld [vmem:[%s23 + $0x2f0] sm:$0xff]
  %v3796 = vld [vmem:[%s23 + $0x2f8] sm:$0xff]
  %v3797 = vld [vmem:[%s23 + $0x300] sm:$0xff]
  %v3798 = vld [vmem:[%s23 + $0x308] sm:$0xff]
  %v3799 = vld [vmem:[%s23 + $0x310] sm:$0xff]
  %v3800 = vld [vmem:[%s23 + $0x318] sm:$0xff]
  %v3801 = vld [vmem:[%s23 + $0x320] sm:$0xff]
  %v3802 = vld [vmem:[%s23 + $0x328] sm:$0xff]
  %v3803 = vld [vmem:[%s23 + $0x330] sm:$0xff]
  %v3804 = vld [vmem:[%s23 + $0x338] sm:$0xff]
  %v3805 = vld [vmem:[%s23 + $0x340] sm:$0xff]
  %v3806 = vld [vmem:[%s23 + $0x348] sm:$0xff]
  %v3807 = vld [vmem:[%s23 + $0x350] sm:$0xff]
  %v3808 = vld [vmem:[%s23 + $0x358] sm:$0xff]
  %v3809 = vld [vmem:[%s23 + $0x360] sm:$0xff]
  %v3810 = vld [vmem:[%s23 + $0x368] sm:$0xff]
  %v3811 = vld [vmem:[%s23 + $0x370] sm:$0xff]
  %v3812 = vld [vmem:[%s23 + $0x378] sm:$0xff]
  %v3813 = vld [vmem:[%s23 + $0x380] sm:$0xff]
  %v3814 = vld [vmem:[%s23 + $0x388] sm:$0xff]
  %v3815 = vld [vmem:[%s23 + $0x390] sm:$0xff]
  %v3816 = vld [vmem:[%s23 + $0x398] sm:$0xff]
  %v3817 = vld [vmem:[%s23 + $0x3a0] sm:$0xff]
  %v3818 = vld [vmem:[%s23 + $0x3a8] sm:$0xff]
  %v3819 = vld [vmem:[%s23 + $0x3b0] sm:$0xff]
  %v3820 = vld [vmem:[%s23 + $0x3b8] sm:$0xff]
  %v3821 = vld [vmem:[%s23 + $0x3c0] sm:$0xff]
  %v3822 = vld [vmem:[%s23 + $0x3c8] sm:$0xff]
  %v3823 = vld [vmem:[%s23 + $0x3d0] sm:$0xff]
  %v3824 = vld [vmem:[%s23 + $0x3d8] sm:$0xff]
  %v3825 = vld [vmem:[%s23 + $0x3e0] sm:$0xff]
  %v3826 = vld [vmem:[%s23 + $0x3e8] sm:$0xff]
  %v3827 = vld [vmem:[%s23 + $0x3f0] sm:$0xff]
  %v3828 = vld [vmem:[%s23 + $0x3f8] sm:$0xff]
  %v3829 = vld [vmem:[%s23 + $0x400] sm:$0xff]
  %v3830 = vld [vmem:[%s23 + $0x408] sm:$0xff]
  %v3831 = vld [vmem:[%s23 + $0x410] sm:$0xff]
  %v3832 = vld [vmem:[%s23 + $0x418] sm:$0xff]
  %v3833 = vld [vmem:[%s23 + $0x420] sm:$0xff]
  %v3834 = vld [vmem:[%s23 + $0x428] sm:$0xff]
  %v3835 = vld [vmem:[%s23 + $0x430] sm:$0xff]
  %v3836 = vld [vmem:[%s23 + $0x438] sm:$0xff]
  %v3837 = vld [vmem:[%s23 + $0x440] sm:$0xff]
  %v3838 = vld [vmem:[%s23 + $0x448] sm:$0xff]
  %v3839 = vld [vmem:[%s23 + $0x450] sm:$0xff]
  %v3840 = vld [vmem:[%s23 + $0x458] sm:$0xff]
  %v3841 = vld [vmem:[%s23 + $0x460] sm:$0xff]
  %v3842 = vld [vmem:[%s23 + $0x468] sm:$0xff]
  %v3843 = vld [vmem:[%s23 + $0x470] sm:$0xff]
  %v3844 = vld [vmem:[%s23 + $0x478] sm:$0xff]
  %v3845 = vld [vmem:[%s23 + $0x480] sm:$0xff]
  %v3846 = vld [vmem:[%s23 + $0x488] sm:$0xff]
  %v3847 = vld [vmem:[%s23 + $0x490] sm:$0xff]
  %v3848 = vld [vmem:[%s23 + $0x498] sm:$0xff]
  %v3849 = vld [vmem:[%s23 + $0x4a0] sm:$0xff]
  %v3850 = vld [vmem:[%s23 + $0x4a8] sm:$0xff]
  %v3851 = vld [vmem:[%s23 + $0x4b0] sm:$0xff]
  %v3852 = vld [vmem:[%s23 + $0x4b8] sm:$0xff]
  %v3853 = vld [vmem:[%s23 + $0x4c0] sm:$0xff]
  %v3854 = vld [vmem:[%s23 + $0x4c8] sm:$0xff]
  %v3855 = vld [vmem:[%s23 + $0x4d0] sm:$0xff]
  %v3856 = vld [vmem:[%s23 + $0x4d8] sm:$0xff]
  %v3857 = vld [vmem:[%s23 + $0x4e0] sm:$0xff]
  %v3858 = vld [vmem:[%s23 + $0x4e8] sm:$0xff]
  %v3859 = vld [vmem:[%s23 + $0x4f0] sm:$0xff]
  %v3860 = vld [vmem:[%s23 + $0x4f8] sm:$0xff]
  %v3861 = vld [vmem:[%s23 + $0x500] sm:$0xff]
  %v3862 = vld [vmem:[%s23 + $0x508] sm:$0xff]
  %v3863 = vld [vmem:[%s23 + $0x510] sm:$0xff]
  %v3864 = vld [vmem:[%s23 + $0x518] sm:$0xff]
  %v3865 = vld [vmem:[%s23 + $0x520] sm:$0xff]
  %v3866 = vld [vmem:[%s23 + $0x528] sm:$0xff]
  %v3867 = vld [vmem:[%s23 + $0x530] sm:$0xff]
  %v3868 = vld [vmem:[%s23 + $0x538] sm:$0xff]
  %v3869 = vld [vmem:[%s23 + $0x540] sm:$0xff]
  %v3870 = vld [vmem:[%s23 + $0x548] sm:$0xff]
  %v3871 = vld [vmem:[%s23 + $0x550] sm:$0xff]
  %v3872 = vld [vmem:[%s23 + $0x558] sm:$0xff]
  %v3873 = vld [vmem:[%s23 + $0x560] sm:$0xff]
  %v3874 = vld [vmem:[%s23 + $0x568] sm:$0xff]
  %v3875 = vld [vmem:[%s23 + $0x570] sm:$0xff]
  %v3876 = vld [vmem:[%s23 + $0x578] sm:$0xff]
  %v3877 = vld [vmem:[%s23 + $0x580] sm:$0xff]
  %v3878 = vld [vmem:[%s23 + $0x588] sm:$0xff]
  %v3879 = vld [vmem:[%s23 + $0x590] sm:$0xff]
  %v3880 = vld [vmem:[%s23 + $0x598] sm:$0xff]
  %v3881 = vld [vmem:[%s23 + $0x5a0] sm:$0xff]
  %v3882 = vld [vmem:[%s23 + $0x5a8] sm:$0xff]
  %v3883 = vld [vmem:[%s23 + $0x5b0] sm:$0xff]
  %v3884 = vld [vmem:[%s23 + $0x5b8] sm:$0xff]
  %v3885 = vld [vmem:[%s23 + $0x5c0] sm:$0xff]
  %v3886 = vld [vmem:[%s23 + $0x5c8] sm:$0xff]
  %v3887 = vld [vmem:[%s23 + $0x5d0] sm:$0xff]
  %v3888 = vld [vmem:[%s23 + $0x5d8] sm:$0xff]
  %v3889 = vld [vmem:[%s23 + $0x5e0] sm:$0xff]
  %v3890 = vld [vmem:[%s23 + $0x5e8] sm:$0xff]
  %v3891 = vld [vmem:[%s23 + $0x5f0] sm:$0xff]
  %v3892 = vld [vmem:[%s23 + $0x5f8] sm:$0xff]
  %v3893 = vld [vmem:[%s23 + $0x600] sm:$0xff]
  %v3894 = vld [vmem:[%s23 + $0x608] sm:$0xff]
  %v3895 = vld [vmem:[%s23 + $0x610] sm:$0xff]
  %v3896 = vld [vmem:[%s23 + $0x618] sm:$0xff]
  %v3897 = vld [vmem:[%s23 + $0x620] sm:$0xff]
  %v3898 = vld [vmem:[%s23 + $0x628] sm:$0xff]
  %v3899 = vld [vmem:[%s23 + $0x630] sm:$0xff]
  %v3900 = vld [vmem:[%s23 + $0x638] sm:$0xff]
  %v3901 = vld [vmem:[%s23 + $0x640] sm:$0xff]
  %v3902 = vld [vmem:[%s23 + $0x648] sm:$0xff]
  %v3903 = vld [vmem:[%s23 + $0x650] sm:$0xff]
  %v3904 = vld [vmem:[%s23 + $0x658] sm:$0xff]
  %v3905 = vld [vmem:[%s23 + $0x660] sm:$0xff]
  %v3906 = vld [vmem:[%s23 + $0x668] sm:$0xff]
  %v3907 = vld [vmem:[%s23 + $0x670] sm:$0xff]
  %v3908 = vld [vmem:[%s23 + $0x678] sm:$0xff]
  %v3909 = vld [vmem:[%s23 + $0x680] sm:$0xff]
  %v3910 = vld [vmem:[%s23 + $0x688] sm:$0xff]
  %v3911 = vld [vmem:[%s23 + $0x690] sm:$0xff]
  %v3912 = vld [vmem:[%s23 + $0x698] sm:$0xff]
  %v3913 = vld [vmem:[%s23 + $0x6a0] sm:$0xff]
  %v3914 = vld [vmem:[%s23 + $0x6a8] sm:$0xff]
  %v3915 = vld [vmem:[%s23 + $0x6b0] sm:$0xff]
  %v3916 = vld [vmem:[%s23 + $0x6b8] sm:$0xff]
  %v3917 = vld [vmem:[%s23 + $0x6c0] sm:$0xff]
  %v3918 = vld [vmem:[%s23 + $0x6c8] sm:$0xff]
  %v3919 = vld [vmem:[%s23 + $0x6d0] sm:$0xff]
  %v3920 = vld [vmem:[%s23 + $0x6d8] sm:$0xff]
  %v3921 = vld [vmem:[%s23 + $0x6e0] sm:$0xff]
  %v3922 = vld [vmem:[%s23 + $0x6e8] sm:$0xff]
  %v3923 = vld [vmem:[%s23 + $0x6f0] sm:$0xff]
  %v3924 = vld [vmem:[%s23 + $0x6f8] sm:$0xff]
  %v3925 = vld [vmem:[%s23 + $0x700] sm:$0xff]
  %v3926 = vld [vmem:[%s23 + $0x708] sm:$0xff]
  %v3927 = vld [vmem:[%s23 + $0x710] sm:$0xff]
  %v3928 = vld [vmem:[%s23 + $0x718] sm:$0xff]
  %v3929 = vld [vmem:[%s23 + $0x720] sm:$0xff]
  %v3930 = vld [vmem:[%s23 + $0x728] sm:$0xff]
  %v3931 = vld [vmem:[%s23 + $0x730] sm:$0xff]
  %v3932 = vld [vmem:[%s23 + $0x738] sm:$0xff]
  %v3933 = vld [vmem:[%s23 + $0x740] sm:$0xff]
  %v3934 = vld [vmem:[%s23 + $0x748] sm:$0xff]
  %v3935 = vld [vmem:[%s23 + $0x750] sm:$0xff]
  %v3936 = vld [vmem:[%s23 + $0x758] sm:$0xff]
  %v3937 = vld [vmem:[%s23 + $0x760] sm:$0xff]
  %v3938 = vld [vmem:[%s23 + $0x768] sm:$0xff]
  %v3939 = vld [vmem:[%s23 + $0x770] sm:$0xff]
  %v3940 = vld [vmem:[%s23 + $0x778] sm:$0xff]
  %v3941 = vld [vmem:[%s23 + $0x780] sm:$0xff]
  %v3942 = vld [vmem:[%s23 + $0x788] sm:$0xff]
  %v3943 = vld [vmem:[%s23 + $0x790] sm:$0xff]
  %v3944 = vld [vmem:[%s23 + $0x798] sm:$0xff]
  %v3945 = vld [vmem:[%s23 + $0x7a0] sm:$0xff]
  %v3946 = vld [vmem:[%s23 + $0x7a8] sm:$0xff]
  %v3947 = vld [vmem:[%s23 + $0x7b0] sm:$0xff]
  %v3948 = vld [vmem:[%s23 + $0x7b8] sm:$0xff]
  %v3949 = vld [vmem:[%s23 + $0x7c0] sm:$0xff]
  %v3950 = vld [vmem:[%s23 + $0x7c8] sm:$0xff]
  %v3951 = vld [vmem:[%s23 + $0x7d0] sm:$0xff]
  %v3952 = vld [vmem:[%s23 + $0x7d8] sm:$0xff]
  %v3953 = vld [vmem:[%s23 + $0x7e0] sm:$0xff]
  %v3954 = vld [vmem:[%s23 + $0x7e8] sm:$0xff]
  %v3955 = vld [vmem:[%s23 + $0x7f0] sm:$0xff]
  %v3956 = vld [vmem:[%s23 + $0x7f8] sm:$0xff]
  %v3957 = vpack.c.bf16 %v3697, %v3693
  %v3958 = vpack.c.bf16 %v3698, %v3694
  %v3959 = vpack.c.bf16 %v3699, %v3695
  %v3960 = vpack.c.bf16 %v3700, %v3696
  %v3961 = vld [vmem:[%s25] sm:$0xff]
  %v3963 = vlaneseq
  %v3964 = vshrl.u32 %v3963, 7
  %v3965 = vsub.s32 0, %v3964
  %v3966 = vrot.slane %v3961, %v3965
  %v3967 = vlaneseq
  %v3968 = vshrl.u32 %v3967, 7
  %v3969 = vsub.s32 1, %v3968
  %v3970 = vrot.slane %v3961, %v3969
  %v3971 = vlaneseq
  %v3972 = vshrl.u32 %v3971, 7
  %v3973 = vsub.s32 2, %v3972
  %v3974 = vrot.slane %v3961, %v3973
  %v3975 = vlaneseq
  %v3976 = vshrl.u32 %v3975, 7
  %v3977 = vsub.s32 3, %v3976
  %v3978 = vrot.slane %v3961, %v3977
  %v3979 = vlaneseq
  %v3980 = vshrl.u32 %v3979, 7
  %v3981 = vsub.s32 4, %v3980
  %v3982 = vrot.slane %v3961, %v3981
  %v3983 = vlaneseq
  %v3984 = vshrl.u32 %v3983, 7
  %v3985 = vsub.s32 5, %v3984
  %v3986 = vrot.slane %v3961, %v3985
  %v3987 = vlaneseq
  %v3988 = vshrl.u32 %v3987, 7
  %v3989 = vsub.s32 6, %v3988
  %v3990 = vrot.slane %v3961, %v3989
  %v3991 = vlaneseq
  %v3992 = vshrl.u32 %v3991, 7
  %v3993 = vsub.s32 7, %v3992
  %v3994 = vrot.slane %v3961, %v3993
  %v4259 = vunpack.c.l.b16 %v3701
  %v4260 = vunpack.c.h.b16 %v3701
  %v4261 = vunpack.c.l.b16 %v3702
  %v4262 = vunpack.c.h.b16 %v3702
  %v4263 = vunpack.c.l.b16 %v3703
  %v4264 = vunpack.c.h.b16 %v3703
  %v4265 = vunpack.c.l.b16 %v3704
  %v4266 = vunpack.c.h.b16 %v3704
  %v4267 = vunpack.c.l.b16 %v3705
  %v4268 = vunpack.c.h.b16 %v3705
  %v4269 = vunpack.c.l.b16 %v3706
  %v4270 = vunpack.c.h.b16 %v3706
  %v4271 = vunpack.c.l.b16 %v3707
  %v4272 = vunpack.c.h.b16 %v3707
  %v4273 = vunpack.c.l.b16 %v3708
  %v4274 = vunpack.c.h.b16 %v3708
  %v4275 = vunpack.c.l.b16 %v3709
  %v4276 = vunpack.c.h.b16 %v3709
  %v4277 = vunpack.c.l.b16 %v3710
  %v4278 = vunpack.c.h.b16 %v3710
  %v4279 = vunpack.c.l.b16 %v3711
  %v4280 = vunpack.c.h.b16 %v3711
  %v4281 = vunpack.c.l.b16 %v3712
  %v4282 = vunpack.c.h.b16 %v3712
  %v4283 = vunpack.c.l.b16 %v3713
  %v4284 = vunpack.c.h.b16 %v3713
  %v4285 = vunpack.c.l.b16 %v3714
  %v4286 = vunpack.c.h.b16 %v3714
  %v4287 = vunpack.c.l.b16 %v3715
  %v4288 = vunpack.c.h.b16 %v3715
  %v4289 = vunpack.c.l.b16 %v3716
  %v4290 = vunpack.c.h.b16 %v3716
  %v4291 = vunpack.c.l.b16 %v3717
  %v4292 = vunpack.c.h.b16 %v3717
  %v4293 = vunpack.c.l.b16 %v3718
  %v4294 = vunpack.c.h.b16 %v3718
  %v4295 = vunpack.c.l.b16 %v3719
  %v4296 = vunpack.c.h.b16 %v3719
  %v4297 = vunpack.c.l.b16 %v3720
  %v4298 = vunpack.c.h.b16 %v3720
  %v4299 = vunpack.c.l.b16 %v3721
  %v4300 = vunpack.c.h.b16 %v3721
  %v4301 = vunpack.c.l.b16 %v3722
  %v4302 = vunpack.c.h.b16 %v3722
  %v4303 = vunpack.c.l.b16 %v3723
  %v4304 = vunpack.c.h.b16 %v3723
  %v4305 = vunpack.c.l.b16 %v3724
  %v4306 = vunpack.c.h.b16 %v3724
  %v4307 = vunpack.c.l.b16 %v3725
  %v4308 = vunpack.c.h.b16 %v3725
  %v4309 = vunpack.c.l.b16 %v3726
  %v4310 = vunpack.c.h.b16 %v3726
  %v4311 = vunpack.c.l.b16 %v3727
  %v4312 = vunpack.c.h.b16 %v3727
  %v4313 = vunpack.c.l.b16 %v3728
  %v4314 = vunpack.c.h.b16 %v3728
  %v4315 = vunpack.c.l.b16 %v3729
  %v4316 = vunpack.c.h.b16 %v3729
  %v4317 = vunpack.c.l.b16 %v3730
  %v4318 = vunpack.c.h.b16 %v3730
  %v4319 = vunpack.c.l.b16 %v3731
  %v4320 = vunpack.c.h.b16 %v3731
  %v4321 = vunpack.c.l.b16 %v3732
  %v4322 = vunpack.c.h.b16 %v3732
  %v4323 = vunpack.c.l.b16 %v3733
  %v4324 = vunpack.c.h.b16 %v3733
  %v4325 = vunpack.c.l.b16 %v3734
  %v4326 = vunpack.c.h.b16 %v3734
  %v4327 = vunpack.c.l.b16 %v3735
  %v4328 = vunpack.c.h.b16 %v3735
  %v4329 = vunpack.c.l.b16 %v3736
  %v4330 = vunpack.c.h.b16 %v3736
  %v4331 = vunpack.c.l.b16 %v3737
  %v4332 = vunpack.c.h.b16 %v3737
  %v4333 = vunpack.c.l.b16 %v3738
  %v4334 = vunpack.c.h.b16 %v3738
  %v4335 = vunpack.c.l.b16 %v3739
  %v4336 = vunpack.c.h.b16 %v3739
  %v4337 = vunpack.c.l.b16 %v3740
  %v4338 = vunpack.c.h.b16 %v3740
  %v4339 = vunpack.c.l.b16 %v3741
  %v4340 = vunpack.c.h.b16 %v3741
  %v4341 = vunpack.c.l.b16 %v3742
  %v4342 = vunpack.c.h.b16 %v3742
  %v4343 = vunpack.c.l.b16 %v3743
  %v4344 = vunpack.c.h.b16 %v3743
  %v4345 = vunpack.c.l.b16 %v3744
  %v4346 = vunpack.c.h.b16 %v3744
  %v4347 = vunpack.c.l.b16 %v3745
  %v4348 = vunpack.c.h.b16 %v3745
  %v4349 = vunpack.c.l.b16 %v3746
  %v4350 = vunpack.c.h.b16 %v3746
  %v4351 = vunpack.c.l.b16 %v3747
  %v4352 = vunpack.c.h.b16 %v3747
  %v4353 = vunpack.c.l.b16 %v3748
  %v4354 = vunpack.c.h.b16 %v3748
  %v4355 = vunpack.c.l.b16 %v3749
  %v4356 = vunpack.c.h.b16 %v3749
  %v4357 = vunpack.c.l.b16 %v3750
  %v4358 = vunpack.c.h.b16 %v3750
  %v4359 = vunpack.c.l.b16 %v3751
  %v4360 = vunpack.c.h.b16 %v3751
  %v4361 = vunpack.c.l.b16 %v3752
  %v4362 = vunpack.c.h.b16 %v3752
  %v4363 = vunpack.c.l.b16 %v3753
  %v4364 = vunpack.c.h.b16 %v3753
  %v4365 = vunpack.c.l.b16 %v3754
  %v4366 = vunpack.c.h.b16 %v3754
  %v4367 = vunpack.c.l.b16 %v3755
  %v4368 = vunpack.c.h.b16 %v3755
  %v4369 = vunpack.c.l.b16 %v3756
  %v4370 = vunpack.c.h.b16 %v3756
  %v4371 = vunpack.c.l.b16 %v3757
  %v4372 = vunpack.c.h.b16 %v3757
  %v4373 = vunpack.c.l.b16 %v3758
  %v4374 = vunpack.c.h.b16 %v3758
  %v4375 = vunpack.c.l.b16 %v3759
  %v4376 = vunpack.c.h.b16 %v3759
  %v4377 = vunpack.c.l.b16 %v3760
  %v4378 = vunpack.c.h.b16 %v3760
  %v4379 = vunpack.c.l.b16 %v3761
  %v4380 = vunpack.c.h.b16 %v3761
  %v4381 = vunpack.c.l.b16 %v3762
  %v4382 = vunpack.c.h.b16 %v3762
  %v4383 = vunpack.c.l.b16 %v3763
  %v4384 = vunpack.c.h.b16 %v3763
  %v4385 = vunpack.c.l.b16 %v3764
  %v4386 = vunpack.c.h.b16 %v3764
  %v4387 = vunpack.c.l.b16 %v3765
  %v4388 = vunpack.c.h.b16 %v3765
  %v4389 = vunpack.c.l.b16 %v3766
  %v4390 = vunpack.c.h.b16 %v3766
  %v4391 = vunpack.c.l.b16 %v3767
  %v4392 = vunpack.c.h.b16 %v3767
  %v4393 = vunpack.c.l.b16 %v3768
  %v4394 = vunpack.c.h.b16 %v3768
  %v4395 = vunpack.c.l.b16 %v3769
  %v4396 = vunpack.c.h.b16 %v3769
  %v4397 = vunpack.c.l.b16 %v3770
  %v4398 = vunpack.c.h.b16 %v3770
  %v4399 = vunpack.c.l.b16 %v3771
  %v4400 = vunpack.c.h.b16 %v3771
  %v4401 = vunpack.c.l.b16 %v3772
  %v4402 = vunpack.c.h.b16 %v3772
  %v4403 = vunpack.c.l.b16 %v3773
  %v4404 = vunpack.c.h.b16 %v3773
  %v4405 = vunpack.c.l.b16 %v3774
  %v4406 = vunpack.c.h.b16 %v3774
  %v4407 = vunpack.c.l.b16 %v3775
  %v4408 = vunpack.c.h.b16 %v3775
  %v4409 = vunpack.c.l.b16 %v3776
  %v4410 = vunpack.c.h.b16 %v3776
  %v4411 = vunpack.c.l.b16 %v3777
  %v4412 = vunpack.c.h.b16 %v3777
  %v4413 = vunpack.c.l.b16 %v3778
  %v4414 = vunpack.c.h.b16 %v3778
  %v4415 = vunpack.c.l.b16 %v3779
  %v4416 = vunpack.c.h.b16 %v3779
  %v4417 = vunpack.c.l.b16 %v3780
  %v4418 = vunpack.c.h.b16 %v3780
  %v4419 = vunpack.c.l.b16 %v3781
  %v4420 = vunpack.c.h.b16 %v3781
  %v4421 = vunpack.c.l.b16 %v3782
  %v4422 = vunpack.c.h.b16 %v3782
  %v4423 = vunpack.c.l.b16 %v3783
  %v4424 = vunpack.c.h.b16 %v3783
  %v4425 = vunpack.c.l.b16 %v3784
  %v4426 = vunpack.c.h.b16 %v3784
  %v4427 = vunpack.c.l.b16 %v3785
  %v4428 = vunpack.c.h.b16 %v3785
  %v4429 = vunpack.c.l.b16 %v3786
  %v4430 = vunpack.c.h.b16 %v3786
  %v4431 = vunpack.c.l.b16 %v3787
  %v4432 = vunpack.c.h.b16 %v3787
  %v4433 = vunpack.c.l.b16 %v3788
  %v4434 = vunpack.c.h.b16 %v3788
  %v4435 = vunpack.c.l.b16 %v3789
  %v4436 = vunpack.c.h.b16 %v3789
  %v4437 = vunpack.c.l.b16 %v3790
  %v4438 = vunpack.c.h.b16 %v3790
  %v4439 = vunpack.c.l.b16 %v3791
  %v4440 = vunpack.c.h.b16 %v3791
  %v4441 = vunpack.c.l.b16 %v3792
  %v4442 = vunpack.c.h.b16 %v3792
  %v4443 = vunpack.c.l.b16 %v3793
  %v4444 = vunpack.c.h.b16 %v3793
  %v4445 = vunpack.c.l.b16 %v3794
  %v4446 = vunpack.c.h.b16 %v3794
  %v4447 = vunpack.c.l.b16 %v3795
  %v4448 = vunpack.c.h.b16 %v3795
  %v4449 = vunpack.c.l.b16 %v3796
  %v4450 = vunpack.c.h.b16 %v3796
  %v4451 = vunpack.c.l.b16 %v3797
  %v4452 = vunpack.c.h.b16 %v3797
  %v4453 = vunpack.c.l.b16 %v3798
  %v4454 = vunpack.c.h.b16 %v3798
  %v4455 = vunpack.c.l.b16 %v3799
  %v4456 = vunpack.c.h.b16 %v3799
  %v4457 = vunpack.c.l.b16 %v3800
  %v4458 = vunpack.c.h.b16 %v3800
  %v4459 = vunpack.c.l.b16 %v3801
  %v4460 = vunpack.c.h.b16 %v3801
  %v4461 = vunpack.c.l.b16 %v3802
  %v4462 = vunpack.c.h.b16 %v3802
  %v4463 = vunpack.c.l.b16 %v3803
  %v4464 = vunpack.c.h.b16 %v3803
  %v4465 = vunpack.c.l.b16 %v3804
  %v4466 = vunpack.c.h.b16 %v3804
  %v4467 = vunpack.c.l.b16 %v3805
  %v4468 = vunpack.c.h.b16 %v3805
  %v4469 = vunpack.c.l.b16 %v3806
  %v4470 = vunpack.c.h.b16 %v3806
  %v4471 = vunpack.c.l.b16 %v3807
  %v4472 = vunpack.c.h.b16 %v3807
  %v4473 = vunpack.c.l.b16 %v3808
  %v4474 = vunpack.c.h.b16 %v3808
  %v4475 = vunpack.c.l.b16 %v3809
  %v4476 = vunpack.c.h.b16 %v3809
  %v4477 = vunpack.c.l.b16 %v3810
  %v4478 = vunpack.c.h.b16 %v3810
  %v4479 = vunpack.c.l.b16 %v3811
  %v4480 = vunpack.c.h.b16 %v3811
  %v4481 = vunpack.c.l.b16 %v3812
  %v4482 = vunpack.c.h.b16 %v3812
  %v4483 = vunpack.c.l.b16 %v3813
  %v4484 = vunpack.c.h.b16 %v3813
  %v4485 = vunpack.c.l.b16 %v3814
  %v4486 = vunpack.c.h.b16 %v3814
  %v4487 = vunpack.c.l.b16 %v3815
  %v4488 = vunpack.c.h.b16 %v3815
  %v4489 = vunpack.c.l.b16 %v3816
  %v4490 = vunpack.c.h.b16 %v3816
  %v4491 = vunpack.c.l.b16 %v3817
  %v4492 = vunpack.c.h.b16 %v3817
  %v4493 = vunpack.c.l.b16 %v3818
  %v4494 = vunpack.c.h.b16 %v3818
  %v4495 = vunpack.c.l.b16 %v3819
  %v4496 = vunpack.c.h.b16 %v3819
  %v4497 = vunpack.c.l.b16 %v3820
  %v4498 = vunpack.c.h.b16 %v3820
  %v4499 = vunpack.c.l.b16 %v3821
  %v4500 = vunpack.c.h.b16 %v3821
  %v4501 = vunpack.c.l.b16 %v3822
  %v4502 = vunpack.c.h.b16 %v3822
  %v4503 = vunpack.c.l.b16 %v3823
  %v4504 = vunpack.c.h.b16 %v3823
  %v4505 = vunpack.c.l.b16 %v3824
  %v4506 = vunpack.c.h.b16 %v3824
  %v4507 = vunpack.c.l.b16 %v3825
  %v4508 = vunpack.c.h.b16 %v3825
  %v4509 = vunpack.c.l.b16 %v3826
  %v4510 = vunpack.c.h.b16 %v3826
  %v4511 = vunpack.c.l.b16 %v3827
  %v4512 = vunpack.c.h.b16 %v3827
  %v4513 = vunpack.c.l.b16 %v3828
  %v4514 = vunpack.c.h.b16 %v3828
  %v4515 = vunpack.c.l.b16 %v3829
  %v4516 = vunpack.c.h.b16 %v3829
  %v4517 = vunpack.c.l.b16 %v3830
  %v4518 = vunpack.c.h.b16 %v3830
  %v4519 = vunpack.c.l.b16 %v3831
  %v4520 = vunpack.c.h.b16 %v3831
  %v4521 = vunpack.c.l.b16 %v3832
  %v4522 = vunpack.c.h.b16 %v3832
  %v4523 = vunpack.c.l.b16 %v3833
  %v4524 = vunpack.c.h.b16 %v3833
  %v4525 = vunpack.c.l.b16 %v3834
  %v4526 = vunpack.c.h.b16 %v3834
  %v4527 = vunpack.c.l.b16 %v3835
  %v4528 = vunpack.c.h.b16 %v3835
  %v4529 = vunpack.c.l.b16 %v3836
  %v4530 = vunpack.c.h.b16 %v3836
  %v4531 = vunpack.c.l.b16 %v3837
  %v4532 = vunpack.c.h.b16 %v3837
  %v4533 = vunpack.c.l.b16 %v3838
  %v4534 = vunpack.c.h.b16 %v3838
  %v4535 = vunpack.c.l.b16 %v3839
  %v4536 = vunpack.c.h.b16 %v3839
  %v4537 = vunpack.c.l.b16 %v3840
  %v4538 = vunpack.c.h.b16 %v3840
  %v4539 = vunpack.c.l.b16 %v3841
  %v4540 = vunpack.c.h.b16 %v3841
  %v4541 = vunpack.c.l.b16 %v3842
  %v4542 = vunpack.c.h.b16 %v3842
  %v4543 = vunpack.c.l.b16 %v3843
  %v4544 = vunpack.c.h.b16 %v3843
  %v4545 = vunpack.c.l.b16 %v3844
  %v4546 = vunpack.c.h.b16 %v3844
  %v4547 = vunpack.c.l.b16 %v3845
  %v4548 = vunpack.c.h.b16 %v3845
  %v4549 = vunpack.c.l.b16 %v3846
  %v4550 = vunpack.c.h.b16 %v3846
  %v4551 = vunpack.c.l.b16 %v3847
  %v4552 = vunpack.c.h.b16 %v3847
  %v4553 = vunpack.c.l.b16 %v3848
  %v4554 = vunpack.c.h.b16 %v3848
  %v4555 = vunpack.c.l.b16 %v3849
  %v4556 = vunpack.c.h.b16 %v3849
  %v4557 = vunpack.c.l.b16 %v3850
  %v4558 = vunpack.c.h.b16 %v3850
  %v4559 = vunpack.c.l.b16 %v3851
  %v4560 = vunpack.c.h.b16 %v3851
  %v4561 = vunpack.c.l.b16 %v3852
  %v4562 = vunpack.c.h.b16 %v3852
  %v4563 = vunpack.c.l.b16 %v3853
  %v4564 = vunpack.c.h.b16 %v3853
  %v4565 = vunpack.c.l.b16 %v3854
  %v4566 = vunpack.c.h.b16 %v3854
  %v4567 = vunpack.c.l.b16 %v3855
  %v4568 = vunpack.c.h.b16 %v3855
  %v4569 = vunpack.c.l.b16 %v3856
  %v4570 = vunpack.c.h.b16 %v3856
  %v4571 = vunpack.c.l.b16 %v3857
  %v4572 = vunpack.c.h.b16 %v3857
  %v4573 = vunpack.c.l.b16 %v3858
  %v4574 = vunpack.c.h.b16 %v3858
  %v4575 = vunpack.c.l.b16 %v3859
  %v4576 = vunpack.c.h.b16 %v3859
  %v4577 = vunpack.c.l.b16 %v3860
  %v4578 = vunpack.c.h.b16 %v3860
  %v4579 = vunpack.c.l.b16 %v3861
  %v4580 = vunpack.c.h.b16 %v3861
  %v4581 = vunpack.c.l.b16 %v3862
  %v4582 = vunpack.c.h.b16 %v3862
  %v4583 = vunpack.c.l.b16 %v3863
  %v4584 = vunpack.c.h.b16 %v3863
  %v4585 = vunpack.c.l.b16 %v3864
  %v4586 = vunpack.c.h.b16 %v3864
  %v4587 = vunpack.c.l.b16 %v3865
  %v4588 = vunpack.c.h.b16 %v3865
  %v4589 = vunpack.c.l.b16 %v3866
  %v4590 = vunpack.c.h.b16 %v3866
  %v4591 = vunpack.c.l.b16 %v3867
  %v4592 = vunpack.c.h.b16 %v3867
  %v4593 = vunpack.c.l.b16 %v3868
  %v4594 = vunpack.c.h.b16 %v3868
  %v4595 = vunpack.c.l.b16 %v3869
  %v4596 = vunpack.c.h.b16 %v3869
  %v4597 = vunpack.c.l.b16 %v3870
  %v4598 = vunpack.c.h.b16 %v3870
  %v4599 = vunpack.c.l.b16 %v3871
  %v4600 = vunpack.c.h.b16 %v3871
  %v4601 = vunpack.c.l.b16 %v3872
  %v4602 = vunpack.c.h.b16 %v3872
  %v4603 = vunpack.c.l.b16 %v3873
  %v4604 = vunpack.c.h.b16 %v3873
  %v4605 = vunpack.c.l.b16 %v3874
  %v4606 = vunpack.c.h.b16 %v3874
  %v4607 = vunpack.c.l.b16 %v3875
  %v4608 = vunpack.c.h.b16 %v3875
  %v4609 = vunpack.c.l.b16 %v3876
  %v4610 = vunpack.c.h.b16 %v3876
  %v4611 = vunpack.c.l.b16 %v3877
  %v4612 = vunpack.c.h.b16 %v3877
  %v4613 = vunpack.c.l.b16 %v3878
  %v4614 = vunpack.c.h.b16 %v3878
  %v4615 = vunpack.c.l.b16 %v3879
  %v4616 = vunpack.c.h.b16 %v3879
  %v4617 = vunpack.c.l.b16 %v3880
  %v4618 = vunpack.c.h.b16 %v3880
  %v4619 = vunpack.c.l.b16 %v3881
  %v4620 = vunpack.c.h.b16 %v3881
  %v4621 = vunpack.c.l.b16 %v3882
  %v4622 = vunpack.c.h.b16 %v3882
  %v4623 = vunpack.c.l.b16 %v3883
  %v4624 = vunpack.c.h.b16 %v3883
  %v4625 = vunpack.c.l.b16 %v3884
  %v4626 = vunpack.c.h.b16 %v3884
  %v4627 = vunpack.c.l.b16 %v3885
  %v4628 = vunpack.c.h.b16 %v3885
  %v4629 = vunpack.c.l.b16 %v3886
  %v4630 = vunpack.c.h.b16 %v3886
  %v4631 = vunpack.c.l.b16 %v3887
  %v4632 = vunpack.c.h.b16 %v3887
  %v4633 = vunpack.c.l.b16 %v3888
  %v4634 = vunpack.c.h.b16 %v3888
  %v4635 = vunpack.c.l.b16 %v3889
  %v4636 = vunpack.c.h.b16 %v3889
  %v4637 = vunpack.c.l.b16 %v3890
  %v4638 = vunpack.c.h.b16 %v3890
  %v4639 = vunpack.c.l.b16 %v3891
  %v4640 = vunpack.c.h.b16 %v3891
  %v4641 = vunpack.c.l.b16 %v3892
  %v4642 = vunpack.c.h.b16 %v3892
  %v4643 = vunpack.c.l.b16 %v3893
  %v4644 = vunpack.c.h.b16 %v3893
  %v4645 = vunpack.c.l.b16 %v3894
  %v4646 = vunpack.c.h.b16 %v3894
  %v4647 = vunpack.c.l.b16 %v3895
  %v4648 = vunpack.c.h.b16 %v3895
  %v4649 = vunpack.c.l.b16 %v3896
  %v4650 = vunpack.c.h.b16 %v3896
  %v4651 = vunpack.c.l.b16 %v3897
  %v4652 = vunpack.c.h.b16 %v3897
  %v4653 = vunpack.c.l.b16 %v3898
  %v4654 = vunpack.c.h.b16 %v3898
  %v4655 = vunpack.c.l.b16 %v3899
  %v4656 = vunpack.c.h.b16 %v3899
  %v4657 = vunpack.c.l.b16 %v3900
  %v4658 = vunpack.c.h.b16 %v3900
  %v4659 = vunpack.c.l.b16 %v3901
  %v4660 = vunpack.c.h.b16 %v3901
  %v4661 = vunpack.c.l.b16 %v3902
  %v4662 = vunpack.c.h.b16 %v3902
  %v4663 = vunpack.c.l.b16 %v3903
  %v4664 = vunpack.c.h.b16 %v3903
  %v4665 = vunpack.c.l.b16 %v3904
  %v4666 = vunpack.c.h.b16 %v3904
  %v4667 = vunpack.c.l.b16 %v3905
  %v4668 = vunpack.c.h.b16 %v3905
  %v4669 = vunpack.c.l.b16 %v3906
  %v4670 = vunpack.c.h.b16 %v3906
  %v4671 = vunpack.c.l.b16 %v3907
  %v4672 = vunpack.c.h.b16 %v3907
  %v4673 = vunpack.c.l.b16 %v3908
  %v4674 = vunpack.c.h.b16 %v3908
  %v4675 = vunpack.c.l.b16 %v3909
  %v4676 = vunpack.c.h.b16 %v3909
  %v4677 = vunpack.c.l.b16 %v3910
  %v4678 = vunpack.c.h.b16 %v3910
  %v4679 = vunpack.c.l.b16 %v3911
  %v4680 = vunpack.c.h.b16 %v3911
  %v4681 = vunpack.c.l.b16 %v3912
  %v4682 = vunpack.c.h.b16 %v3912
  %v4683 = vunpack.c.l.b16 %v3913
  %v4684 = vunpack.c.h.b16 %v3913
  %v4685 = vunpack.c.l.b16 %v3914
  %v4686 = vunpack.c.h.b16 %v3914
  %v4687 = vunpack.c.l.b16 %v3915
  %v4688 = vunpack.c.h.b16 %v3915
  %v4689 = vunpack.c.l.b16 %v3916
  %v4690 = vunpack.c.h.b16 %v3916
  %v4691 = vunpack.c.l.b16 %v3917
  %v4692 = vunpack.c.h.b16 %v3917
  %v4693 = vunpack.c.l.b16 %v3918
  %v4694 = vunpack.c.h.b16 %v3918
  %v4695 = vunpack.c.l.b16 %v3919
  %v4696 = vunpack.c.h.b16 %v3919
  %v4697 = vunpack.c.l.b16 %v3920
  %v4698 = vunpack.c.h.b16 %v3920
  %v4699 = vunpack.c.l.b16 %v3921
  %v4700 = vunpack.c.h.b16 %v3921
  %v4701 = vunpack.c.l.b16 %v3922
  %v4702 = vunpack.c.h.b16 %v3922
  %v4703 = vunpack.c.l.b16 %v3923
  %v4704 = vunpack.c.h.b16 %v3923
  %v4705 = vunpack.c.l.b16 %v3924
  %v4706 = vunpack.c.h.b16 %v3924
  %v4707 = vunpack.c.l.b16 %v3925
  %v4708 = vunpack.c.h.b16 %v3925
  %v4709 = vunpack.c.l.b16 %v3926
  %v4710 = vunpack.c.h.b16 %v3926
  %v4711 = vunpack.c.l.b16 %v3927
  %v4712 = vunpack.c.h.b16 %v3927
  %v4713 = vunpack.c.l.b16 %v3928
  %v4714 = vunpack.c.h.b16 %v3928
  %v4715 = vunpack.c.l.b16 %v3929
  %v4716 = vunpack.c.h.b16 %v3929
  %v4717 = vunpack.c.l.b16 %v3930
  %v4718 = vunpack.c.h.b16 %v3930
  %v4719 = vunpack.c.l.b16 %v3931
  %v4720 = vunpack.c.h.b16 %v3931
  %v4721 = vunpack.c.l.b16 %v3932
  %v4722 = vunpack.c.h.b16 %v3932
  %v4723 = vunpack.c.l.b16 %v3933
  %v4724 = vunpack.c.h.b16 %v3933
  %v4725 = vunpack.c.l.b16 %v3934
  %v4726 = vunpack.c.h.b16 %v3934
  %v4727 = vunpack.c.l.b16 %v3935
  %v4728 = vunpack.c.h.b16 %v3935
  %v4729 = vunpack.c.l.b16 %v3936
  %v4730 = vunpack.c.h.b16 %v3936
  %v4731 = vunpack.c.l.b16 %v3937
  %v4732 = vunpack.c.h.b16 %v3937
  %v4733 = vunpack.c.l.b16 %v3938
  %v4734 = vunpack.c.h.b16 %v3938
  %v4735 = vunpack.c.l.b16 %v3939
  %v4736 = vunpack.c.h.b16 %v3939
  %v4737 = vunpack.c.l.b16 %v3940
  %v4738 = vunpack.c.h.b16 %v3940
  %v4739 = vunpack.c.l.b16 %v3941
  %v4740 = vunpack.c.h.b16 %v3941
  %v4741 = vunpack.c.l.b16 %v3942
  %v4742 = vunpack.c.h.b16 %v3942
  %v4743 = vunpack.c.l.b16 %v3943
  %v4744 = vunpack.c.h.b16 %v3943
  %v4745 = vunpack.c.l.b16 %v3944
  %v4746 = vunpack.c.h.b16 %v3944
  %v4747 = vunpack.c.l.b16 %v3945
  %v4748 = vunpack.c.h.b16 %v3945
  %v4749 = vunpack.c.l.b16 %v3946
  %v4750 = vunpack.c.h.b16 %v3946
  %v4751 = vunpack.c.l.b16 %v3947
  %v4752 = vunpack.c.h.b16 %v3947
  %v4753 = vunpack.c.l.b16 %v3948
  %v4754 = vunpack.c.h.b16 %v3948
  %v4755 = vunpack.c.l.b16 %v3949
  %v4756 = vunpack.c.h.b16 %v3949
  %v4757 = vunpack.c.l.b16 %v3950
  %v4758 = vunpack.c.h.b16 %v3950
  %v4759 = vunpack.c.l.b16 %v3951
  %v4760 = vunpack.c.h.b16 %v3951
  %v4761 = vunpack.c.l.b16 %v3952
  %v4762 = vunpack.c.h.b16 %v3952
  %v4763 = vunpack.c.l.b16 %v3953
  %v4764 = vunpack.c.h.b16 %v3953
  %v4765 = vunpack.c.l.b16 %v3954
  %v4766 = vunpack.c.h.b16 %v3954
  %v4767 = vunpack.c.l.b16 %v3955
  %v4768 = vunpack.c.h.b16 %v3955
  %v4769 = vunpack.c.l.b16 %v3956
  %v4770 = vunpack.c.h.b16 %v3956
  %v4771 = vpack.c.b16 %v4267, %v4259
  %v4772 = vpack.c.b16 %v4268, %v4260
  %v4773 = vpack.c.b16 %v4269, %v4261
  %v4774 = vpack.c.b16 %v4270, %v4262
  %v4775 = vpack.c.b16 %v4271, %v4263
  %v4776 = vpack.c.b16 %v4272, %v4264
  %v4777 = vpack.c.b16 %v4273, %v4265
  %v4778 = vpack.c.b16 %v4274, %v4266
  %v4779 = vpack.c.b16 %v4283, %v4275
  %v4780 = vpack.c.b16 %v4284, %v4276
  %v4781 = vpack.c.b16 %v4285, %v4277
  %v4782 = vpack.c.b16 %v4286, %v4278
  %v4783 = vpack.c.b16 %v4287, %v4279
  %v4784 = vpack.c.b16 %v4288, %v4280
  %v4785 = vpack.c.b16 %v4289, %v4281
  %v4786 = vpack.c.b16 %v4290, %v4282
  %v4787 = vpack.c.b16 %v4299, %v4291
  %v4788 = vpack.c.b16 %v4300, %v4292
  %v4789 = vpack.c.b16 %v4301, %v4293
  %v4790 = vpack.c.b16 %v4302, %v4294
  %v4791 = vpack.c.b16 %v4303, %v4295
  %v4792 = vpack.c.b16 %v4304, %v4296
  %v4793 = vpack.c.b16 %v4305, %v4297
  %v4794 = vpack.c.b16 %v4306, %v4298
  %v4795 = vpack.c.b16 %v4315, %v4307
  %v4796 = vpack.c.b16 %v4316, %v4308
  %v4797 = vpack.c.b16 %v4317, %v4309
  %v4798 = vpack.c.b16 %v4318, %v4310
  %v4799 = vpack.c.b16 %v4319, %v4311
  %v4800 = vpack.c.b16 %v4320, %v4312
  %v4801 = vpack.c.b16 %v4321, %v4313
  %v4802 = vpack.c.b16 %v4322, %v4314
  %v4803 = vpack.c.b16 %v4331, %v4323
  %v4804 = vpack.c.b16 %v4332, %v4324
  %v4805 = vpack.c.b16 %v4333, %v4325
  %v4806 = vpack.c.b16 %v4334, %v4326
  %v4807 = vpack.c.b16 %v4335, %v4327
  %v4808 = vpack.c.b16 %v4336, %v4328
  %v4809 = vpack.c.b16 %v4337, %v4329
  %v4810 = vpack.c.b16 %v4338, %v4330
  %v4811 = vpack.c.b16 %v4347, %v4339
  %v4812 = vpack.c.b16 %v4348, %v4340
  %v4813 = vpack.c.b16 %v4349, %v4341
  %v4814 = vpack.c.b16 %v4350, %v4342
  %v4815 = vpack.c.b16 %v4351, %v4343
  %v4816 = vpack.c.b16 %v4352, %v4344
  %v4817 = vpack.c.b16 %v4353, %v4345
  %v4818 = vpack.c.b16 %v4354, %v4346
  %v4819 = vpack.c.b16 %v4363, %v4355
  %v4820 = vpack.c.b16 %v4364, %v4356
  %v4821 = vpack.c.b16 %v4365, %v4357
  %v4822 = vpack.c.b16 %v4366, %v4358
  %v4823 = vpack.c.b16 %v4367, %v4359
  %v4824 = vpack.c.b16 %v4368, %v4360
  %v4825 = vpack.c.b16 %v4369, %v4361
  %v4826 = vpack.c.b16 %v4370, %v4362
  %v4827 = vpack.c.b16 %v4379, %v4371
  %v4828 = vpack.c.b16 %v4380, %v4372
  %v4829 = vpack.c.b16 %v4381, %v4373
  %v4830 = vpack.c.b16 %v4382, %v4374
  %v4831 = vpack.c.b16 %v4383, %v4375
  %v4832 = vpack.c.b16 %v4384, %v4376
  %v4833 = vpack.c.b16 %v4385, %v4377
  %v4834 = vpack.c.b16 %v4386, %v4378
  %v4835 = vpack.c.b16 %v4395, %v4387
  %v4836 = vpack.c.b16 %v4396, %v4388
  %v4837 = vpack.c.b16 %v4397, %v4389
  %v4838 = vpack.c.b16 %v4398, %v4390
  %v4839 = vpack.c.b16 %v4399, %v4391
  %v4840 = vpack.c.b16 %v4400, %v4392
  %v4841 = vpack.c.b16 %v4401, %v4393
  %v4842 = vpack.c.b16 %v4402, %v4394
  %v4843 = vpack.c.b16 %v4411, %v4403
  %v4844 = vpack.c.b16 %v4412, %v4404
  %v4845 = vpack.c.b16 %v4413, %v4405
  %v4846 = vpack.c.b16 %v4414, %v4406
  %v4847 = vpack.c.b16 %v4415, %v4407
  %v4848 = vpack.c.b16 %v4416, %v4408
  %v4849 = vpack.c.b16 %v4417, %v4409
  %v4850 = vpack.c.b16 %v4418, %v4410
  %v4851 = vpack.c.b16 %v4427, %v4419
  %v4852 = vpack.c.b16 %v4428, %v4420
  %v4853 = vpack.c.b16 %v4429, %v4421
  %v4854 = vpack.c.b16 %v4430, %v4422
  %v4855 = vpack.c.b16 %v4431, %v4423
  %v4856 = vpack.c.b16 %v4432, %v4424
  %v4857 = vpack.c.b16 %v4433, %v4425
  %v4858 = vpack.c.b16 %v4434, %v4426
  %v4859 = vpack.c.b16 %v4443, %v4435
  %v4860 = vpack.c.b16 %v4444, %v4436
  %v4861 = vpack.c.b16 %v4445, %v4437
  %v4862 = vpack.c.b16 %v4446, %v4438
  %v4863 = vpack.c.b16 %v4447, %v4439
  %v4864 = vpack.c.b16 %v4448, %v4440
  %v4865 = vpack.c.b16 %v4449, %v4441
  %v4866 = vpack.c.b16 %v4450, %v4442
  %v4867 = vpack.c.b16 %v4459, %v4451
  %v4868 = vpack.c.b16 %v4460, %v4452
  %v4869 = vpack.c.b16 %v4461, %v4453
  %v4870 = vpack.c.b16 %v4462, %v4454
  %v4871 = vpack.c.b16 %v4463, %v4455
  %v4872 = vpack.c.b16 %v4464, %v4456
  %v4873 = vpack.c.b16 %v4465, %v4457
  %v4874 = vpack.c.b16 %v4466, %v4458
  %v4875 = vpack.c.b16 %v4475, %v4467
  %v4876 = vpack.c.b16 %v4476, %v4468
  %v4877 = vpack.c.b16 %v4477, %v4469
  %v4878 = vpack.c.b16 %v4478, %v4470
  %v4879 = vpack.c.b16 %v4479, %v4471
  %v4880 = vpack.c.b16 %v4480, %v4472
  %v4881 = vpack.c.b16 %v4481, %v4473
  %v4882 = vpack.c.b16 %v4482, %v4474
  %v4883 = vpack.c.b16 %v4491, %v4483
  %v4884 = vpack.c.b16 %v4492, %v4484
  %v4885 = vpack.c.b16 %v4493, %v4485
  %v4886 = vpack.c.b16 %v4494, %v4486
  %v4887 = vpack.c.b16 %v4495, %v4487
  %v4888 = vpack.c.b16 %v4496, %v4488
  %v4889 = vpack.c.b16 %v4497, %v4489
  %v4890 = vpack.c.b16 %v4498, %v4490
  %v4891 = vpack.c.b16 %v4507, %v4499
  %v4892 = vpack.c.b16 %v4508, %v4500
  %v4893 = vpack.c.b16 %v4509, %v4501
  %v4894 = vpack.c.b16 %v4510, %v4502
  %v4895 = vpack.c.b16 %v4511, %v4503
  %v4896 = vpack.c.b16 %v4512, %v4504
  %v4897 = vpack.c.b16 %v4513, %v4505
  %v4898 = vpack.c.b16 %v4514, %v4506
  %v4899 = vpack.c.b16 %v4523, %v4515
  %v4900 = vpack.c.b16 %v4524, %v4516
  %v4901 = vpack.c.b16 %v4525, %v4517
  %v4902 = vpack.c.b16 %v4526, %v4518
  %v4903 = vpack.c.b16 %v4527, %v4519
  %v4904 = vpack.c.b16 %v4528, %v4520
  %v4905 = vpack.c.b16 %v4529, %v4521
  %v4906 = vpack.c.b16 %v4530, %v4522
  %v4907 = vpack.c.b16 %v4539, %v4531
  %v4908 = vpack.c.b16 %v4540, %v4532
  %v4909 = vpack.c.b16 %v4541, %v4533
  %v4910 = vpack.c.b16 %v4542, %v4534
  %v4911 = vpack.c.b16 %v4543, %v4535
  %v4912 = vpack.c.b16 %v4544, %v4536
  %v4913 = vpack.c.b16 %v4545, %v4537
  %v4914 = vpack.c.b16 %v4546, %v4538
  %v4915 = vpack.c.b16 %v4555, %v4547
  %v4916 = vpack.c.b16 %v4556, %v4548
  %v4917 = vpack.c.b16 %v4557, %v4549
  %v4918 = vpack.c.b16 %v4558, %v4550
  %v4919 = vpack.c.b16 %v4559, %v4551
  %v4920 = vpack.c.b16 %v4560, %v4552
  %v4921 = vpack.c.b16 %v4561, %v4553
  %v4922 = vpack.c.b16 %v4562, %v4554
  %v4923 = vpack.c.b16 %v4571, %v4563
  %v4924 = vpack.c.b16 %v4572, %v4564
  %v4925 = vpack.c.b16 %v4573, %v4565
  %v4926 = vpack.c.b16 %v4574, %v4566
  %v4927 = vpack.c.b16 %v4575, %v4567
  %v4928 = vpack.c.b16 %v4576, %v4568
  %v4929 = vpack.c.b16 %v4577, %v4569
  %v4930 = vpack.c.b16 %v4578, %v4570
  %v4931 = vpack.c.b16 %v4587, %v4579
  %v4932 = vpack.c.b16 %v4588, %v4580
  %v4933 = vpack.c.b16 %v4589, %v4581
  %v4934 = vpack.c.b16 %v4590, %v4582
  %v4935 = vpack.c.b16 %v4591, %v4583
  %v4936 = vpack.c.b16 %v4592, %v4584
  %v4937 = vpack.c.b16 %v4593, %v4585
  %v4938 = vpack.c.b16 %v4594, %v4586
  %v4939 = vpack.c.b16 %v4603, %v4595
  %v4940 = vpack.c.b16 %v4604, %v4596
  %v4941 = vpack.c.b16 %v4605, %v4597
  %v4942 = vpack.c.b16 %v4606, %v4598
  %v4943 = vpack.c.b16 %v4607, %v4599
  %v4944 = vpack.c.b16 %v4608, %v4600
  %v4945 = vpack.c.b16 %v4609, %v4601
  %v4946 = vpack.c.b16 %v4610, %v4602
  %v4947 = vpack.c.b16 %v4619, %v4611
  %v4948 = vpack.c.b16 %v4620, %v4612
  %v4949 = vpack.c.b16 %v4621, %v4613
  %v4950 = vpack.c.b16 %v4622, %v4614
  %v4951 = vpack.c.b16 %v4623, %v4615
  %v4952 = vpack.c.b16 %v4624, %v4616
  %v4953 = vpack.c.b16 %v4625, %v4617
  %v4954 = vpack.c.b16 %v4626, %v4618
  %v4955 = vpack.c.b16 %v4635, %v4627
  %v4956 = vpack.c.b16 %v4636, %v4628
  %v4957 = vpack.c.b16 %v4637, %v4629
  %v4958 = vpack.c.b16 %v4638, %v4630
  %v4959 = vpack.c.b16 %v4639, %v4631
  %v4960 = vpack.c.b16 %v4640, %v4632
  %v4961 = vpack.c.b16 %v4641, %v4633
  %v4962 = vpack.c.b16 %v4642, %v4634
  %v4963 = vpack.c.b16 %v4651, %v4643
  %v4964 = vpack.c.b16 %v4652, %v4644
  %v4965 = vpack.c.b16 %v4653, %v4645
  %v4966 = vpack.c.b16 %v4654, %v4646
  %v4967 = vpack.c.b16 %v4655, %v4647
  %v4968 = vpack.c.b16 %v4656, %v4648
  %v4969 = vpack.c.b16 %v4657, %v4649
  %v4970 = vpack.c.b16 %v4658, %v4650
  %v4971 = vpack.c.b16 %v4667, %v4659
  %v4972 = vpack.c.b16 %v4668, %v4660
  %v4973 = vpack.c.b16 %v4669, %v4661
  %v4974 = vpack.c.b16 %v4670, %v4662
  %v4975 = vpack.c.b16 %v4671, %v4663
  %v4976 = vpack.c.b16 %v4672, %v4664
  %v4977 = vpack.c.b16 %v4673, %v4665
  %v4978 = vpack.c.b16 %v4674, %v4666
  %v4979 = vpack.c.b16 %v4683, %v4675
  %v4980 = vpack.c.b16 %v4684, %v4676
  %v4981 = vpack.c.b16 %v4685, %v4677
  %v4982 = vpack.c.b16 %v4686, %v4678
  %v4983 = vpack.c.b16 %v4687, %v4679
  %v4984 = vpack.c.b16 %v4688, %v4680
  %v4985 = vpack.c.b16 %v4689, %v4681
  %v4986 = vpack.c.b16 %v4690, %v4682
  %v4987 = vpack.c.b16 %v4699, %v4691
  %v4988 = vpack.c.b16 %v4700, %v4692
  %v4989 = vpack.c.b16 %v4701, %v4693
  %v4990 = vpack.c.b16 %v4702, %v4694
  %v4991 = vpack.c.b16 %v4703, %v4695
  %v4992 = vpack.c.b16 %v4704, %v4696
  %v4993 = vpack.c.b16 %v4705, %v4697
  %v4994 = vpack.c.b16 %v4706, %v4698
  %v4995 = vpack.c.b16 %v4715, %v4707
  %v4996 = vpack.c.b16 %v4716, %v4708
  %v4997 = vpack.c.b16 %v4717, %v4709
  %v4998 = vpack.c.b16 %v4718, %v4710
  %v4999 = vpack.c.b16 %v4719, %v4711
  %v5000 = vpack.c.b16 %v4720, %v4712
  %v5001 = vpack.c.b16 %v4721, %v4713
  %v5002 = vpack.c.b16 %v4722, %v4714
  %v5003 = vpack.c.b16 %v4731, %v4723
  %v5004 = vpack.c.b16 %v4732, %v4724
  %v5005 = vpack.c.b16 %v4733, %v4725
  %v5006 = vpack.c.b16 %v4734, %v4726
  %v5007 = vpack.c.b16 %v4735, %v4727
  %v5008 = vpack.c.b16 %v4736, %v4728
  %v5009 = vpack.c.b16 %v4737, %v4729
  %v5010 = vpack.c.b16 %v4738, %v4730
  %v5011 = vpack.c.b16 %v4747, %v4739
  %v5012 = vpack.c.b16 %v4748, %v4740
  %v5013 = vpack.c.b16 %v4749, %v4741
  %v5014 = vpack.c.b16 %v4750, %v4742
  %v5015 = vpack.c.b16 %v4751, %v4743
  %v5016 = vpack.c.b16 %v4752, %v4744
  %v5017 = vpack.c.b16 %v4753, %v4745
  %v5018 = vpack.c.b16 %v4754, %v4746
  %v5019 = vpack.c.b16 %v4763, %v4755
  %v5020 = vpack.c.b16 %v4764, %v4756
  %v5021 = vpack.c.b16 %v4765, %v4757
  %v5022 = vpack.c.b16 %v4766, %v4758
  %v5023 = vpack.c.b16 %v4767, %v4759
  %v5024 = vpack.c.b16 %v4768, %v4760
  %v5025 = vpack.c.b16 %v4769, %v4761
  %v5026 = vpack.c.b16 %v4770, %v4762
  %5283 = vmatprep.subr.bf16.mxu0 %v4828
  %5284 = vmatpush1.bf16.msra.mxu0 %v4827
  %5285 = vmatprep.subr.bf16.mxu0 %v4820
  %5286 = vmatpush1.bf16.msra.mxu0 %v4819
  %5287 = vmatprep.subr.bf16.mxu0 %v4812
  %5288 = vmatpush1.bf16.msra.mxu0 %v4811
  %5289 = vmatprep.subr.bf16.mxu0 %v4804
  %5290 = vmatpush1.bf16.msra.mxu0 %v4803
  %5291 = vmatprep.subr.bf16.mxu0 %v4796
  %5292 = vmatpush1.bf16.msra.mxu0 %v4795
  %5293 = vmatprep.subr.bf16.mxu0 %v4788
  %5294 = vmatpush1.bf16.msra.mxu0 %v4787
  %5295 = vmatprep.subr.bf16.mxu0 %v4780
  %5296 = vmatpush1.bf16.msra.mxu0 %v4779
  %5297 = vmatprep.subr.bf16.mxu0 %v4772
  %5298 = vmatpush1.bf16.msra.mxu0 %v4771
  %5299 = vmatprep.subr.bf16.mxu0 %v4892
  %5300 = vmatpush2.bf16.msra.mxu0 %v4891
  %5301 = vmatprep.subr.bf16.mxu0 %v4884
  %5302 = vmatpush2.bf16.msra.mxu0 %v4883
  %5303 = vmatprep.subr.bf16.mxu0 %v4876
  %5304 = vmatpush2.bf16.msra.mxu0 %v4875
  %5305 = vmatprep.subr.bf16.mxu0 %v4868
  %5306 = vmatpush2.bf16.msra.mxu0 %v4867
  %5307 = vmatprep.subr.bf16.mxu0 %v4860
  %5308 = vmatpush2.bf16.msra.mxu0 %v4859
  %5309 = vmatprep.subr.bf16.mxu0 %v4852
  %5310 = vmatpush2.bf16.msra.mxu0 %v4851
  %5311 = vmatprep.subr.bf16.mxu0 %v4844
  %5312 = vmatpush2.bf16.msra.mxu0 %v4843
  %5313 = vmatprep.subr.bf16.mxu0 %v4836
  %5314 = vmatpush2.bf16.msra.mxu0 %v4835
  %5315 = vmatprep.mubr.bf16.mxu0 %v3958
  %5316 = vmatmul.mubr.bf16.gmra.mxu0 %v3957
  %v5317 = vpop.f32.mrf.mxu0
  %v5318 = vadd.f32 %v3966, %v5317
  %v5319 = vpop.f32.mrf.mxu0
  %v5320 = vadd.f32 %v3970, %v5319
  %v5321 = vpop.f32.mrf.mxu0
  %v5322 = vadd.f32 %v3966, %v5321
  %v5323 = vpop.f32.mrf.mxu0
  %v5324 = vadd.f32 %v3970, %v5323
  %5325 = vdwg.mxu0
  %5326 = vmatprep.subr.bf16.mxu0 %v4956
  %5327 = vmatpush1.bf16.msra.mxu0 %v4955
  %5328 = vmatprep.subr.bf16.mxu0 %v4948
  %5329 = vmatpush1.bf16.msra.mxu0 %v4947
  %5330 = vmatprep.subr.bf16.mxu0 %v4940
  %5331 = vmatpush1.bf16.msra.mxu0 %v4939
  %5332 = vmatprep.subr.bf16.mxu0 %v4932
  %5333 = vmatpush1.bf16.msra.mxu0 %v4931
  %5334 = vmatprep.subr.bf16.mxu0 %v4924
  %5335 = vmatpush1.bf16.msra.mxu0 %v4923
  %5336 = vmatprep.subr.bf16.mxu0 %v4916
  %5337 = vmatpush1.bf16.msra.mxu0 %v4915
  %5338 = vmatprep.subr.bf16.mxu0 %v4908
  %5339 = vmatpush1.bf16.msra.mxu0 %v4907
  %5340 = vmatprep.subr.bf16.mxu0 %v4900
  %5341 = vmatpush1.bf16.msra.mxu0 %v4899
  %5342 = vmatprep.subr.bf16.mxu0 %v5020
  %5343 = vmatpush2.bf16.msra.mxu0 %v5019
  %5344 = vmatprep.subr.bf16.mxu0 %v5012
  %5345 = vmatpush2.bf16.msra.mxu0 %v5011
  %5346 = vmatprep.subr.bf16.mxu0 %v5004
  %5347 = vmatpush2.bf16.msra.mxu0 %v5003
  %5348 = vmatprep.subr.bf16.mxu0 %v4996
  %5349 = vmatpush2.bf16.msra.mxu0 %v4995
  %5350 = vmatprep.subr.bf16.mxu0 %v4988
  %5351 = vmatpush2.bf16.msra.mxu0 %v4987
  %5352 = vmatprep.subr.bf16.mxu0 %v4980
  %5353 = vmatpush2.bf16.msra.mxu0 %v4979
  %5354 = vmatprep.subr.bf16.mxu0 %v4972
  %5355 = vmatpush2.bf16.msra.mxu0 %v4971
  %5356 = vmatprep.subr.bf16.mxu0 %v4964
  %5357 = vmatpush2.bf16.msra.mxu0 %v4963
  %5358 = vmatprep.mubr.bf16.mxu0 %v3960
  %5359 = vmatmul.mubr.bf16.gmra.mxu0 %v3959
  %v5360 = vpop.f32.mrf.mxu0
  %v5361 = vadd.f32 %v5318, %v5360
  %v5362 = vpop.f32.mrf.mxu0
  %v5363 = vadd.f32 %v5320, %v5362
  %v5364 = vpop.f32.mrf.mxu0
  %v5365 = vadd.f32 %v5322, %v5364
  %v5366 = vpop.f32.mrf.mxu0
  %v5367 = vadd.f32 %v5324, %v5366
  %5368 = vdwg.mxu0
  %5369 = vmatprep.subr.bf16.mxu0 %v4830
  %5370 = vmatpush1.bf16.msra.mxu0 %v4829
  %5371 = vmatprep.subr.bf16.mxu0 %v4822
  %5372 = vmatpush1.bf16.msra.mxu0 %v4821
  %5373 = vmatprep.subr.bf16.mxu0 %v4814
  %5374 = vmatpush1.bf16.msra.mxu0 %v4813
  %5375 = vmatprep.subr.bf16.mxu0 %v4806
  %5376 = vmatpush1.bf16.msra.mxu0 %v4805
  %5377 = vmatprep.subr.bf16.mxu0 %v4798
  %5378 = vmatpush1.bf16.msra.mxu0 %v4797
  %5379 = vmatprep.subr.bf16.mxu0 %v4790
  %5380 = vmatpush1.bf16.msra.mxu0 %v4789
  %5381 = vmatprep.subr.bf16.mxu0 %v4782
  %5382 = vmatpush1.bf16.msra.mxu0 %v4781
  %5383 = vmatprep.subr.bf16.mxu0 %v4774
  %5384 = vmatpush1.bf16.msra.mxu0 %v4773
  %5385 = vmatprep.subr.bf16.mxu0 %v4894
  %5386 = vmatpush2.bf16.msra.mxu0 %v4893
  %5387 = vmatprep.subr.bf16.mxu0 %v4886
  %5388 = vmatpush2.bf16.msra.mxu0 %v4885
  %5389 = vmatprep.subr.bf16.mxu0 %v4878
  %5390 = vmatpush2.bf16.msra.mxu0 %v4877
  %5391 = vmatprep.subr.bf16.mxu0 %v4870
  %5392 = vmatpush2.bf16.msra.mxu0 %v4869
  %5393 = vmatprep.subr.bf16.mxu0 %v4862
  %5394 = vmatpush2.bf16.msra.mxu0 %v4861
  %5395 = vmatprep.subr.bf16.mxu0 %v4854
  %5396 = vmatpush2.bf16.msra.mxu0 %v4853
  %5397 = vmatprep.subr.bf16.mxu0 %v4846
  %5398 = vmatpush2.bf16.msra.mxu0 %v4845
  %5399 = vmatprep.subr.bf16.mxu0 %v4838
  %5400 = vmatpush2.bf16.msra.mxu0 %v4837
  %5401 = vmatprep.mubr.bf16.mxu0 %v3958
  %5402 = vmatmul.mubr.bf16.gmra.mxu0 %v3957
  %v5403 = vpop.f32.mrf.mxu0
  %v5404 = vadd.f32 %v3974, %v5403
  %v5405 = vpop.f32.mrf.mxu0
  %v5406 = vadd.f32 %v3978, %v5405
  %v5407 = vpop.f32.mrf.mxu0
  %v5408 = vadd.f32 %v3974, %v5407
  %v5409 = vpop.f32.mrf.mxu0
  %v5410 = vadd.f32 %v3978, %v5409
  %5411 = vdwg.mxu0
  %5412 = vmatprep.subr.bf16.mxu0 %v4958
  %5413 = vmatpush1.bf16.msra.mxu0 %v4957
  %5414 = vmatprep.subr.bf16.mxu0 %v4950
  %5415 = vmatpush1.bf16.msra.mxu0 %v4949
  %5416 = vmatprep.subr.bf16.mxu0 %v4942
  %5417 = vmatpush1.bf16.msra.mxu0 %v4941
  %5418 = vmatprep.subr.bf16.mxu0 %v4934
  %5419 = vmatpush1.bf16.msra.mxu0 %v4933
  %5420 = vmatprep.subr.bf16.mxu0 %v4926
  %5421 = vmatpush1.bf16.msra.mxu0 %v4925
  %5422 = vmatprep.subr.bf16.mxu0 %v4918
  %5423 = vmatpush1.bf16.msra.mxu0 %v4917
  %5424 = vmatprep.subr.bf16.mxu0 %v4910
  %5425 = vmatpush1.bf16.msra.mxu0 %v4909
  %5426 = vmatprep.subr.bf16.mxu0 %v4902
  %5427 = vmatpush1.bf16.msra.mxu0 %v4901
  %5428 = vmatprep.subr.bf16.mxu0 %v5022
  %5429 = vmatpush2.bf16.msra.mxu0 %v5021
  %5430 = vmatprep.subr.bf16.mxu0 %v5014
  %5431 = vmatpush2.bf16.msra.mxu0 %v5013
  %5432 = vmatprep.subr.bf16.mxu0 %v5006
  %5433 = vmatpush2.bf16.msra.mxu0 %v5005
  %5434 = vmatprep.subr.bf16.mxu0 %v4998
  %5435 = vmatpush2.bf16.msra.mxu0 %v4997
  %5436 = vmatprep.subr.bf16.mxu0 %v4990
  %5437 = vmatpush2.bf16.msra.mxu0 %v4989
  %5438 = vmatprep.subr.bf16.mxu0 %v4982
  %5439 = vmatpush2.bf16.msra.mxu0 %v4981
  %5440 = vmatprep.subr.bf16.mxu0 %v4974
  %5441 = vmatpush2.bf16.msra.mxu0 %v4973
  %5442 = vmatprep.subr.bf16.mxu0 %v4966
  %5443 = vmatpush2.bf16.msra.mxu0 %v4965
  %5444 = vmatprep.mubr.bf16.mxu0 %v3960
  %5445 = vmatmul.mubr.bf16.gmra.mxu0 %v3959
  %v5446 = vpop.f32.mrf.mxu0
  %v5447 = vadd.f32 %v5404, %v5446
  %v5448 = vpop.f32.mrf.mxu0
  %v5449 = vadd.f32 %v5406, %v5448
  %v5450 = vpop.f32.mrf.mxu0
  %v5451 = vadd.f32 %v5408, %v5450
  %v5452 = vpop.f32.mrf.mxu0
  %v5453 = vadd.f32 %v5410, %v5452
  %5454 = vdwg.mxu0
  %5455 = vmatprep.subr.bf16.mxu0 %v4832
  %5456 = vmatpush1.bf16.msra.mxu0 %v4831
  %5457 = vmatprep.subr.bf16.mxu0 %v4824
  %5458 = vmatpush1.bf16.msra.mxu0 %v4823
  %5459 = vmatprep.subr.bf16.mxu0 %v4816
  %5460 = vmatpush1.bf16.msra.mxu0 %v4815
  %5461 = vmatprep.subr.bf16.mxu0 %v4808
  %5462 = vmatpush1.bf16.msra.mxu0 %v4807
  %5463 = vmatprep.subr.bf16.mxu0 %v4800
  %5464 = vmatpush1.bf16.msra.mxu0 %v4799
  %5465 = vmatprep.subr.bf16.mxu0 %v4792
  %5466 = vmatpush1.bf16.msra.mxu0 %v4791
  %5467 = vmatprep.subr.bf16.mxu0 %v4784
  %5468 = vmatpush1.bf16.msra.mxu0 %v4783
  %5469 = vmatprep.subr.bf16.mxu0 %v4776
  %5470 = vmatpush1.bf16.msra.mxu0 %v4775
  %5471 = vmatprep.subr.bf16.mxu0 %v4896
  %5472 = vmatpush2.bf16.msra.mxu0 %v4895
  %5473 = vmatprep.subr.bf16.mxu0 %v4888
  %5474 = vmatpush2.bf16.msra.mxu0 %v4887
  %5475 = vmatprep.subr.bf16.mxu0 %v4880
  %5476 = vmatpush2.bf16.msra.mxu0 %v4879
  %5477 = vmatprep.subr.bf16.mxu0 %v4872
  %5478 = vmatpush2.bf16.msra.mxu0 %v4871
  %5479 = vmatprep.subr.bf16.mxu0 %v4864
  %5480 = vmatpush2.bf16.msra.mxu0 %v4863
  %5481 = vmatprep.subr.bf16.mxu0 %v4856
  %5482 = vmatpush2.bf16.msra.mxu0 %v4855
  %5483 = vmatprep.subr.bf16.mxu0 %v4848
  %5484 = vmatpush2.bf16.msra.mxu0 %v4847
  %5485 = vmatprep.subr.bf16.mxu0 %v4840
  %5486 = vmatpush2.bf16.msra.mxu0 %v4839
  %5487 = vmatprep.mubr.bf16.mxu0 %v3958
  %5488 = vmatmul.mubr.bf16.gmra.mxu0 %v3957
  %v5489 = vpop.f32.mrf.mxu0
  %v5490 = vadd.f32 %v3982, %v5489
  %v5491 = vpop.f32.mrf.mxu0
  %v5492 = vadd.f32 %v3986, %v5491
  %v5493 = vpop.f32.mrf.mxu0
  %v5494 = vadd.f32 %v3982, %v5493
  %v5495 = vpop.f32.mrf.mxu0
  %v5496 = vadd.f32 %v3986, %v5495
  %5497 = vdwg.mxu0
  %5498 = vmatprep.subr.bf16.mxu0 %v4960
  %5499 = vmatpush1.bf16.msra.mxu0 %v4959
  %5500 = vmatprep.subr.bf16.mxu0 %v4952
  %5501 = vmatpush1.bf16.msra.mxu0 %v4951
  %5502 = vmatprep.subr.bf16.mxu0 %v4944
  %5503 = vmatpush1.bf16.msra.mxu0 %v4943
  %5504 = vmatprep.subr.bf16.mxu0 %v4936
  %5505 = vmatpush1.bf16.msra.mxu0 %v4935
  %5506 = vmatprep.subr.bf16.mxu0 %v4928
  %5507 = vmatpush1.bf16.msra.mxu0 %v4927
  %5508 = vmatprep.subr.bf16.mxu0 %v4920
  %5509 = vmatpush1.bf16.msra.mxu0 %v4919
  %5510 = vmatprep.subr.bf16.mxu0 %v4912
  %5511 = vmatpush1.bf16.msra.mxu0 %v4911
  %5512 = vmatprep.subr.bf16.mxu0 %v4904
  %5513 = vmatpush1.bf16.msra.mxu0 %v4903
  %5514 = vmatprep.subr.bf16.mxu0 %v5024
  %5515 = vmatpush2.bf16.msra.mxu0 %v5023
  %5516 = vmatprep.subr.bf16.mxu0 %v5016
  %5517 = vmatpush2.bf16.msra.mxu0 %v5015
  %5518 = vmatprep.subr.bf16.mxu0 %v5008
  %5519 = vmatpush2.bf16.msra.mxu0 %v5007
  %5520 = vmatprep.subr.bf16.mxu0 %v5000
  %5521 = vmatpush2.bf16.msra.mxu0 %v4999
  %5522 = vmatprep.subr.bf16.mxu0 %v4992
  %5523 = vmatpush2.bf16.msra.mxu0 %v4991
  %5524 = vmatprep.subr.bf16.mxu0 %v4984
  %5525 = vmatpush2.bf16.msra.mxu0 %v4983
  %5526 = vmatprep.subr.bf16.mxu0 %v4976
  %5527 = vmatpush2.bf16.msra.mxu0 %v4975
  %5528 = vmatprep.subr.bf16.mxu0 %v4968
  %5529 = vmatpush2.bf16.msra.mxu0 %v4967
  %5530 = vmatprep.mubr.bf16.mxu0 %v3960
  %5531 = vmatmul.mubr.bf16.gmra.mxu0 %v3959
  %v5532 = vpop.f32.mrf.mxu0
  %v5533 = vadd.f32 %v5490, %v5532
  %v5534 = vpop.f32.mrf.mxu0
  %v5535 = vadd.f32 %v5492, %v5534
  %v5536 = vpop.f32.mrf.mxu0
  %v5537 = vadd.f32 %v5494, %v5536
  %v5538 = vpop.f32.mrf.mxu0
  %v5539 = vadd.f32 %v5496, %v5538
  %5540 = vdwg.mxu0
  %5541 = vmatprep.subr.bf16.mxu0 %v4834
  %5542 = vmatpush1.bf16.msra.mxu0 %v4833
  %5543 = vmatprep.subr.bf16.mxu0 %v4826
  %5544 = vmatpush1.bf16.msra.mxu0 %v4825
  %5545 = vmatprep.subr.bf16.mxu0 %v4818
  %5546 = vmatpush1.bf16.msra.mxu0 %v4817
  %5547 = vmatprep.subr.bf16.mxu0 %v4810
  %5548 = vmatpush1.bf16.msra.mxu0 %v4809
  %5549 = vmatprep.subr.bf16.mxu0 %v4802
  %5550 = vmatpush1.bf16.msra.mxu0 %v4801
  %5551 = vmatprep.subr.bf16.mxu0 %v4794
  %5552 = vmatpush1.bf16.msra.mxu0 %v4793
  %5553 = vmatprep.subr.bf16.mxu0 %v4786
  %5554 = vmatpush1.bf16.msra.mxu0 %v4785
  %5555 = vmatprep.subr.bf16.mxu0 %v4778
  %5556 = vmatpush1.bf16.msra.mxu0 %v4777
  %5557 = vmatprep.subr.bf16.mxu0 %v4898
  %5558 = vmatpush2.bf16.msra.mxu0 %v4897
  %5559 = vmatprep.subr.bf16.mxu0 %v4890
  %5560 = vmatpush2.bf16.msra.mxu0 %v4889
  %5561 = vmatprep.subr.bf16.mxu0 %v4882
  %5562 = vmatpush2.bf16.msra.mxu0 %v4881
  %5563 = vmatprep.subr.bf16.mxu0 %v4874
  %5564 = vmatpush2.bf16.msra.mxu0 %v4873
  %5565 = vmatprep.subr.bf16.mxu0 %v4866
  %5566 = vmatpush2.bf16.msra.mxu0 %v4865
  %5567 = vmatprep.subr.bf16.mxu0 %v4858
  %5568 = vmatpush2.bf16.msra.mxu0 %v4857
  %5569 = vmatprep.subr.bf16.mxu0 %v4850
  %5570 = vmatpush2.bf16.msra.mxu0 %v4849
  %5571 = vmatprep.subr.bf16.mxu0 %v4842
  %5572 = vmatpush2.bf16.msra.mxu0 %v4841
  %5573 = vmatprep.mubr.bf16.mxu0 %v3958
  %5574 = vmatmul.mubr.bf16.gmra.mxu0 %v3957
  %v5575 = vpop.f32.mrf.mxu0
  %v5576 = vadd.f32 %v3990, %v5575
  %v5577 = vpop.f32.mrf.mxu0
  %v5578 = vadd.f32 %v3994, %v5577
  %v5579 = vpop.f32.mrf.mxu0
  %v5580 = vadd.f32 %v3990, %v5579
  %v5581 = vpop.f32.mrf.mxu0
  %v5582 = vadd.f32 %v3994, %v5581
  %5583 = vdwg.mxu0
  %5584 = vmatprep.subr.bf16.mxu0 %v4962
  %5585 = vmatpush1.bf16.msra.mxu0 %v4961
  %5586 = vmatprep.subr.bf16.mxu0 %v4954
  %5587 = vmatpush1.bf16.msra.mxu0 %v4953
  %5588 = vmatprep.subr.bf16.mxu0 %v4946
  %5589 = vmatpush1.bf16.msra.mxu0 %v4945
  %5590 = vmatprep.subr.bf16.mxu0 %v4938
  %5591 = vmatpush1.bf16.msra.mxu0 %v4937
  %5592 = vmatprep.subr.bf16.mxu0 %v4930
  %5593 = vmatpush1.bf16.msra.mxu0 %v4929
  %5594 = vmatprep.subr.bf16.mxu0 %v4922
  %5595 = vmatpush1.bf16.msra.mxu0 %v4921
  %5596 = vmatprep.subr.bf16.mxu0 %v4914
  %5597 = vmatpush1.bf16.msra.mxu0 %v4913
  %5598 = vmatprep.subr.bf16.mxu0 %v4906
  %5599 = vmatpush1.bf16.msra.mxu0 %v4905
  %5600 = vmatprep.subr.bf16.mxu0 %v5026
  %5601 = vmatpush2.bf16.msra.mxu0 %v5025
  %5602 = vmatprep.subr.bf16.mxu0 %v5018
  %5603 = vmatpush2.bf16.msra.mxu0 %v5017
  %5604 = vmatprep.subr.bf16.mxu0 %v5010
  %5605 = vmatpush2.bf16.msra.mxu0 %v5009
  %5606 = vmatprep.subr.bf16.mxu0 %v5002
  %5607 = vmatpush2.bf16.msra.mxu0 %v5001
  %5608 = vmatprep.subr.bf16.mxu0 %v4994
  %5609 = vmatpush2.bf16.msra.mxu0 %v4993
  %5610 = vmatprep.subr.bf16.mxu0 %v4986
  %5611 = vmatpush2.bf16.msra.mxu0 %v4985
  %5612 = vmatprep.subr.bf16.mxu0 %v4978
  %5613 = vmatpush2.bf16.msra.mxu0 %v4977
  %5614 = vmatprep.subr.bf16.mxu0 %v4970
  %5615 = vmatpush2.bf16.msra.mxu0 %v4969
  %5616 = vmatprep.mubr.bf16.mxu0 %v3960
  %5617 = vmatmul.mubr.bf16.gmra.mxu0 %v3959
  %v5618 = vpop.f32.mrf.mxu0
  %v5619 = vadd.f32 %v5576, %v5618
  %v5620 = vpop.f32.mrf.mxu0
  %v5621 = vadd.f32 %v5578, %v5620
  %v5622 = vpop.f32.mrf.mxu0
  %v5623 = vadd.f32 %v5580, %v5622
  %v5624 = vpop.f32.mrf.mxu0
  %v5625 = vadd.f32 %v5582, %v5624
  %5626 = vdwg.mxu0
  %v5627 = vmax.f32 %v5361, 0.0
  %v5628 = vmax.f32 %v5363, 0.0
  %v5629 = vmax.f32 %v5447, 0.0
  %v5630 = vmax.f32 %v5449, 0.0
  %v5631 = vmax.f32 %v5365, 0.0
  %v5632 = vmax.f32 %v5367, 0.0
  %v5633 = vmax.f32 %v5451, 0.0
  %v5634 = vmax.f32 %v5453, 0.0
  %v5635 = vld [vmem:[%s27] sm:$0xff]
  %v5636 = vld [vmem:[%s27 + $0x8] sm:$0xff]
  %v5637 = vld [vmem:[%s27 + $0x10] sm:$0xff]
  %v5638 = vld [vmem:[%s27 + $0x18] sm:$0xff]
  %v5639 = vld [vmem:[%s27 + $0x20] sm:$0xff]
  %v5640 = vld [vmem:[%s27 + $0x28] sm:$0xff]
  %v5641 = vld [vmem:[%s27 + $0x30] sm:$0xff]
  %v5642 = vld [vmem:[%s27 + $0x38] sm:$0xff]
  %v5643 = vld [vmem:[%s27 + $0x40] sm:$0xff]
  %v5644 = vld [vmem:[%s27 + $0x48] sm:$0xff]
  %v5645 = vld [vmem:[%s27 + $0x50] sm:$0xff]
  %v5646 = vld [vmem:[%s27 + $0x58] sm:$0xff]
  %v5647 = vld [vmem:[%s27 + $0x60] sm:$0xff]
  %v5648 = vld [vmem:[%s27 + $0x68] sm:$0xff]
  %v5649 = vld [vmem:[%s27 + $0x70] sm:$0xff]
  %v5650 = vld [vmem:[%s27 + $0x78] sm:$0xff]
  %v5651 = vld [vmem:[%s27 + $0x80] sm:$0xff]
  %v5652 = vld [vmem:[%s27 + $0x88] sm:$0xff]
  %v5653 = vld [vmem:[%s27 + $0x90] sm:$0xff]
  %v5654 = vld [vmem:[%s27 + $0x98] sm:$0xff]
  %v5655 = vld [vmem:[%s27 + $0xa0] sm:$0xff]
  %v5656 = vld [vmem:[%s27 + $0xa8] sm:$0xff]
  %v5657 = vld [vmem:[%s27 + $0xb0] sm:$0xff]
  %v5658 = vld [vmem:[%s27 + $0xb8] sm:$0xff]
  %v5659 = vld [vmem:[%s27 + $0xc0] sm:$0xff]
  %v5660 = vld [vmem:[%s27 + $0xc8] sm:$0xff]
  %v5661 = vld [vmem:[%s27 + $0xd0] sm:$0xff]
  %v5662 = vld [vmem:[%s27 + $0xd8] sm:$0xff]
  %v5663 = vld [vmem:[%s27 + $0xe0] sm:$0xff]
  %v5664 = vld [vmem:[%s27 + $0xe8] sm:$0xff]
  %v5665 = vld [vmem:[%s27 + $0xf0] sm:$0xff]
  %v5666 = vld [vmem:[%s27 + $0xf8] sm:$0xff]
  %v5667 = vld [vmem:[%s27 + $0x100] sm:$0xff]
  %v5668 = vld [vmem:[%s27 + $0x108] sm:$0xff]
  %v5669 = vld [vmem:[%s27 + $0x110] sm:$0xff]
  %v5670 = vld [vmem:[%s27 + $0x118] sm:$0xff]
  %v5671 = vld [vmem:[%s27 + $0x120] sm:$0xff]
  %v5672 = vld [vmem:[%s27 + $0x128] sm:$0xff]
  %v5673 = vld [vmem:[%s27 + $0x130] sm:$0xff]
  %v5674 = vld [vmem:[%s27 + $0x138] sm:$0xff]
  %v5675 = vld [vmem:[%s27 + $0x140] sm:$0xff]
  %v5676 = vld [vmem:[%s27 + $0x148] sm:$0xff]
  %v5677 = vld [vmem:[%s27 + $0x150] sm:$0xff]
  %v5678 = vld [vmem:[%s27 + $0x158] sm:$0xff]
  %v5679 = vld [vmem:[%s27 + $0x160] sm:$0xff]
  %v5680 = vld [vmem:[%s27 + $0x168] sm:$0xff]
  %v5681 = vld [vmem:[%s27 + $0x170] sm:$0xff]
  %v5682 = vld [vmem:[%s27 + $0x178] sm:$0xff]
  %v5683 = vld [vmem:[%s27 + $0x180] sm:$0xff]
  %v5684 = vld [vmem:[%s27 + $0x188] sm:$0xff]
  %v5685 = vld [vmem:[%s27 + $0x190] sm:$0xff]
  %v5686 = vld [vmem:[%s27 + $0x198] sm:$0xff]
  %v5687 = vld [vmem:[%s27 + $0x1a0] sm:$0xff]
  %v5688 = vld [vmem:[%s27 + $0x1a8] sm:$0xff]
  %v5689 = vld [vmem:[%s27 + $0x1b0] sm:$0xff]
  %v5690 = vld [vmem:[%s27 + $0x1b8] sm:$0xff]
  %v5691 = vld [vmem:[%s27 + $0x1c0] sm:$0xff]
  %v5692 = vld [vmem:[%s27 + $0x1c8] sm:$0xff]
  %v5693 = vld [vmem:[%s27 + $0x1d0] sm:$0xff]
  %v5694 = vld [vmem:[%s27 + $0x1d8] sm:$0xff]
  %v5695 = vld [vmem:[%s27 + $0x1e0] sm:$0xff]
  %v5696 = vld [vmem:[%s27 + $0x1e8] sm:$0xff]
  %v5697 = vld [vmem:[%s27 + $0x1f0] sm:$0xff]
  %v5698 = vld [vmem:[%s27 + $0x1f8] sm:$0xff]
  %v5699 = vld [vmem:[%s27 + $0x200] sm:$0xff]
  %v5700 = vld [vmem:[%s27 + $0x208] sm:$0xff]
  %v5701 = vld [vmem:[%s27 + $0x210] sm:$0xff]
  %v5702 = vld [vmem:[%s27 + $0x218] sm:$0xff]
  %v5703 = vld [vmem:[%s27 + $0x220] sm:$0xff]
  %v5704 = vld [vmem:[%s27 + $0x228] sm:$0xff]
  %v5705 = vld [vmem:[%s27 + $0x230] sm:$0xff]
  %v5706 = vld [vmem:[%s27 + $0x238] sm:$0xff]
  %v5707 = vld [vmem:[%s27 + $0x240] sm:$0xff]
  %v5708 = vld [vmem:[%s27 + $0x248] sm:$0xff]
  %v5709 = vld [vmem:[%s27 + $0x250] sm:$0xff]
  %v5710 = vld [vmem:[%s27 + $0x258] sm:$0xff]
  %v5711 = vld [vmem:[%s27 + $0x260] sm:$0xff]
  %v5712 = vld [vmem:[%s27 + $0x268] sm:$0xff]
  %v5713 = vld [vmem:[%s27 + $0x270] sm:$0xff]
  %v5714 = vld [vmem:[%s27 + $0x278] sm:$0xff]
  %v5715 = vld [vmem:[%s27 + $0x280] sm:$0xff]
  %v5716 = vld [vmem:[%s27 + $0x288] sm:$0xff]
  %v5717 = vld [vmem:[%s27 + $0x290] sm:$0xff]
  %v5718 = vld [vmem:[%s27 + $0x298] sm:$0xff]
  %v5719 = vld [vmem:[%s27 + $0x2a0] sm:$0xff]
  %v5720 = vld [vmem:[%s27 + $0x2a8] sm:$0xff]
  %v5721 = vld [vmem:[%s27 + $0x2b0] sm:$0xff]
  %v5722 = vld [vmem:[%s27 + $0x2b8] sm:$0xff]
  %v5723 = vld [vmem:[%s27 + $0x2c0] sm:$0xff]
  %v5724 = vld [vmem:[%s27 + $0x2c8] sm:$0xff]
  %v5725 = vld [vmem:[%s27 + $0x2d0] sm:$0xff]
  %v5726 = vld [vmem:[%s27 + $0x2d8] sm:$0xff]
  %v5727 = vld [vmem:[%s27 + $0x2e0] sm:$0xff]
  %v5728 = vld [vmem:[%s27 + $0x2e8] sm:$0xff]
  %v5729 = vld [vmem:[%s27 + $0x2f0] sm:$0xff]
  %v5730 = vld [vmem:[%s27 + $0x2f8] sm:$0xff]
  %v5731 = vld [vmem:[%s27 + $0x300] sm:$0xff]
  %v5732 = vld [vmem:[%s27 + $0x308] sm:$0xff]
  %v5733 = vld [vmem:[%s27 + $0x310] sm:$0xff]
  %v5734 = vld [vmem:[%s27 + $0x318] sm:$0xff]
  %v5735 = vld [vmem:[%s27 + $0x320] sm:$0xff]
  %v5736 = vld [vmem:[%s27 + $0x328] sm:$0xff]
  %v5737 = vld [vmem:[%s27 + $0x330] sm:$0xff]
  %v5738 = vld [vmem:[%s27 + $0x338] sm:$0xff]
  %v5739 = vld [vmem:[%s27 + $0x340] sm:$0xff]
  %v5740 = vld [vmem:[%s27 + $0x348] sm:$0xff]
  %v5741 = vld [vmem:[%s27 + $0x350] sm:$0xff]
  %v5742 = vld [vmem:[%s27 + $0x358] sm:$0xff]
  %v5743 = vld [vmem:[%s27 + $0x360] sm:$0xff]
  %v5744 = vld [vmem:[%s27 + $0x368] sm:$0xff]
  %v5745 = vld [vmem:[%s27 + $0x370] sm:$0xff]
  %v5746 = vld [vmem:[%s27 + $0x378] sm:$0xff]
  %v5747 = vld [vmem:[%s27 + $0x380] sm:$0xff]
  %v5748 = vld [vmem:[%s27 + $0x388] sm:$0xff]
  %v5749 = vld [vmem:[%s27 + $0x390] sm:$0xff]
  %v5750 = vld [vmem:[%s27 + $0x398] sm:$0xff]
  %v5751 = vld [vmem:[%s27 + $0x3a0] sm:$0xff]
  %v5752 = vld [vmem:[%s27 + $0x3a8] sm:$0xff]
  %v5753 = vld [vmem:[%s27 + $0x3b0] sm:$0xff]
  %v5754 = vld [vmem:[%s27 + $0x3b8] sm:$0xff]
  %v5755 = vld [vmem:[%s27 + $0x3c0] sm:$0xff]
  %v5756 = vld [vmem:[%s27 + $0x3c8] sm:$0xff]
  %v5757 = vld [vmem:[%s27 + $0x3d0] sm:$0xff]
  %v5758 = vld [vmem:[%s27 + $0x3d8] sm:$0xff]
  %v5759 = vld [vmem:[%s27 + $0x3e0] sm:$0xff]
  %v5760 = vld [vmem:[%s27 + $0x3e8] sm:$0xff]
  %v5761 = vld [vmem:[%s27 + $0x3f0] sm:$0xff]
  %v5762 = vld [vmem:[%s27 + $0x3f8] sm:$0xff]
  %v5763 = vpack.c.bf16 %v5631, %v5627
  %v5764 = vpack.c.bf16 %v5632, %v5628
  %v5765 = vpack.c.bf16 %v5633, %v5629
  %v5766 = vpack.c.bf16 %v5634, %v5630
  %v5767 = vld [vmem:[%s29] sm:$0xf]
  %v5769 = vlaneseq
  %v5770 = vshrl.u32 %v5769, 7
  %v5771 = vsub.s32 0, %v5770
  %v5772 = vrot.slane %v5767, %v5771
  %v5773 = vlaneseq
  %v5774 = vshrl.u32 %v5773, 7
  %v5775 = vsub.s32 1, %v5774
  %v5776 = vrot.slane %v5767, %v5775
  %v5777 = vlaneseq
  %v5778 = vshrl.u32 %v5777, 7
  %v5779 = vsub.s32 2, %v5778
  %v5780 = vrot.slane %v5767, %v5779
  %v5781 = vlaneseq
  %v5782 = vshrl.u32 %v5781, 7
  %v5783 = vsub.s32 3, %v5782
  %v5784 = vrot.slane %v5767, %v5783
  %v5917 = vunpack.c.l.b16 %v5635
  %v5918 = vunpack.c.h.b16 %v5635
  %v5919 = vunpack.c.l.b16 %v5636
  %v5920 = vunpack.c.h.b16 %v5636
  %v5921 = vunpack.c.l.b16 %v5637
  %v5922 = vunpack.c.h.b16 %v5637
  %v5923 = vunpack.c.l.b16 %v5638
  %v5924 = vunpack.c.h.b16 %v5638
  %v5925 = vunpack.c.l.b16 %v5639
  %v5926 = vunpack.c.h.b16 %v5639
  %v5927 = vunpack.c.l.b16 %v5640
  %v5928 = vunpack.c.h.b16 %v5640
  %v5929 = vunpack.c.l.b16 %v5641
  %v5930 = vunpack.c.h.b16 %v5641
  %v5931 = vunpack.c.l.b16 %v5642
  %v5932 = vunpack.c.h.b16 %v5642
  %v5933 = vunpack.c.l.b16 %v5643
  %v5934 = vunpack.c.h.b16 %v5643
  %v5935 = vunpack.c.l.b16 %v5644
  %v5936 = vunpack.c.h.b16 %v5644
  %v5937 = vunpack.c.l.b16 %v5645
  %v5938 = vunpack.c.h.b16 %v5645
  %v5939 = vunpack.c.l.b16 %v5646
  %v5940 = vunpack.c.h.b16 %v5646
  %v5941 = vunpack.c.l.b16 %v5647
  %v5942 = vunpack.c.h.b16 %v5647
  %v5943 = vunpack.c.l.b16 %v5648
  %v5944 = vunpack.c.h.b16 %v5648
  %v5945 = vunpack.c.l.b16 %v5649
  %v5946 = vunpack.c.h.b16 %v5649
  %v5947 = vunpack.c.l.b16 %v5650
  %v5948 = vunpack.c.h.b16 %v5650
  %v5949 = vunpack.c.l.b16 %v5651
  %v5950 = vunpack.c.h.b16 %v5651
  %v5951 = vunpack.c.l.b16 %v5652
  %v5952 = vunpack.c.h.b16 %v5652
  %v5953 = vunpack.c.l.b16 %v5653
  %v5954 = vunpack.c.h.b16 %v5653
  %v5955 = vunpack.c.l.b16 %v5654
  %v5956 = vunpack.c.h.b16 %v5654
  %v5957 = vunpack.c.l.b16 %v5655
  %v5958 = vunpack.c.h.b16 %v5655
  %v5959 = vunpack.c.l.b16 %v5656
  %v5960 = vunpack.c.h.b16 %v5656
  %v5961 = vunpack.c.l.b16 %v5657
  %v5962 = vunpack.c.h.b16 %v5657
  %v5963 = vunpack.c.l.b16 %v5658
  %v5964 = vunpack.c.h.b16 %v5658
  %v5965 = vunpack.c.l.b16 %v5659
  %v5966 = vunpack.c.h.b16 %v5659
  %v5967 = vunpack.c.l.b16 %v5660
  %v5968 = vunpack.c.h.b16 %v5660
  %v5969 = vunpack.c.l.b16 %v5661
  %v5970 = vunpack.c.h.b16 %v5661
  %v5971 = vunpack.c.l.b16 %v5662
  %v5972 = vunpack.c.h.b16 %v5662
  %v5973 = vunpack.c.l.b16 %v5663
  %v5974 = vunpack.c.h.b16 %v5663
  %v5975 = vunpack.c.l.b16 %v5664
  %v5976 = vunpack.c.h.b16 %v5664
  %v5977 = vunpack.c.l.b16 %v5665
  %v5978 = vunpack.c.h.b16 %v5665
  %v5979 = vunpack.c.l.b16 %v5666
  %v5980 = vunpack.c.h.b16 %v5666
  %v5981 = vunpack.c.l.b16 %v5667
  %v5982 = vunpack.c.h.b16 %v5667
  %v5983 = vunpack.c.l.b16 %v5668
  %v5984 = vunpack.c.h.b16 %v5668
  %v5985 = vunpack.c.l.b16 %v5669
  %v5986 = vunpack.c.h.b16 %v5669
  %v5987 = vunpack.c.l.b16 %v5670
  %v5988 = vunpack.c.h.b16 %v5670
  %v5989 = vunpack.c.l.b16 %v5671
  %v5990 = vunpack.c.h.b16 %v5671
  %v5991 = vunpack.c.l.b16 %v5672
  %v5992 = vunpack.c.h.b16 %v5672
  %v5993 = vunpack.c.l.b16 %v5673
  %v5994 = vunpack.c.h.b16 %v5673
  %v5995 = vunpack.c.l.b16 %v5674
  %v5996 = vunpack.c.h.b16 %v5674
  %v5997 = vunpack.c.l.b16 %v5675
  %v5998 = vunpack.c.h.b16 %v5675
  %v5999 = vunpack.c.l.b16 %v5676
  %v6000 = vunpack.c.h.b16 %v5676
  %v6001 = vunpack.c.l.b16 %v5677
  %v6002 = vunpack.c.h.b16 %v5677
  %v6003 = vunpack.c.l.b16 %v5678
  %v6004 = vunpack.c.h.b16 %v5678
  %v6005 = vunpack.c.l.b16 %v5679
  %v6006 = vunpack.c.h.b16 %v5679
  %v6007 = vunpack.c.l.b16 %v5680
  %v6008 = vunpack.c.h.b16 %v5680
  %v6009 = vunpack.c.l.b16 %v5681
  %v6010 = vunpack.c.h.b16 %v5681
  %v6011 = vunpack.c.l.b16 %v5682
  %v6012 = vunpack.c.h.b16 %v5682
  %v6013 = vunpack.c.l.b16 %v5683
  %v6014 = vunpack.c.h.b16 %v5683
  %v6015 = vunpack.c.l.b16 %v5684
  %v6016 = vunpack.c.h.b16 %v5684
  %v6017 = vunpack.c.l.b16 %v5685
  %v6018 = vunpack.c.h.b16 %v5685
  %v6019 = vunpack.c.l.b16 %v5686
  %v6020 = vunpack.c.h.b16 %v5686
  %v6021 = vunpack.c.l.b16 %v5687
  %v6022 = vunpack.c.h.b16 %v5687
  %v6023 = vunpack.c.l.b16 %v5688
  %v6024 = vunpack.c.h.b16 %v5688
  %v6025 = vunpack.c.l.b16 %v5689
  %v6026 = vunpack.c.h.b16 %v5689
  %v6027 = vunpack.c.l.b16 %v5690
  %v6028 = vunpack.c.h.b16 %v5690
  %v6029 = vunpack.c.l.b16 %v5691
  %v6030 = vunpack.c.h.b16 %v5691
  %v6031 = vunpack.c.l.b16 %v5692
  %v6032 = vunpack.c.h.b16 %v5692
  %v6033 = vunpack.c.l.b16 %v5693
  %v6034 = vunpack.c.h.b16 %v5693
  %v6035 = vunpack.c.l.b16 %v5694
  %v6036 = vunpack.c.h.b16 %v5694
  %v6037 = vunpack.c.l.b16 %v5695
  %v6038 = vunpack.c.h.b16 %v5695
  %v6039 = vunpack.c.l.b16 %v5696
  %v6040 = vunpack.c.h.b16 %v5696
  %v6041 = vunpack.c.l.b16 %v5697
  %v6042 = vunpack.c.h.b16 %v5697
  %v6043 = vunpack.c.l.b16 %v5698
  %v6044 = vunpack.c.h.b16 %v5698
  %v6045 = vunpack.c.l.b16 %v5699
  %v6046 = vunpack.c.h.b16 %v5699
  %v6047 = vunpack.c.l.b16 %v5700
  %v6048 = vunpack.c.h.b16 %v5700
  %v6049 = vunpack.c.l.b16 %v5701
  %v6050 = vunpack.c.h.b16 %v5701
  %v6051 = vunpack.c.l.b16 %v5702
  %v6052 = vunpack.c.h.b16 %v5702
  %v6053 = vunpack.c.l.b16 %v5703
  %v6054 = vunpack.c.h.b16 %v5703
  %v6055 = vunpack.c.l.b16 %v5704
  %v6056 = vunpack.c.h.b16 %v5704
  %v6057 = vunpack.c.l.b16 %v5705
  %v6058 = vunpack.c.h.b16 %v5705
  %v6059 = vunpack.c.l.b16 %v5706
  %v6060 = vunpack.c.h.b16 %v5706
  %v6061 = vunpack.c.l.b16 %v5707
  %v6062 = vunpack.c.h.b16 %v5707
  %v6063 = vunpack.c.l.b16 %v5708
  %v6064 = vunpack.c.h.b16 %v5708
  %v6065 = vunpack.c.l.b16 %v5709
  %v6066 = vunpack.c.h.b16 %v5709
  %v6067 = vunpack.c.l.b16 %v5710
  %v6068 = vunpack.c.h.b16 %v5710
  %v6069 = vunpack.c.l.b16 %v5711
  %v6070 = vunpack.c.h.b16 %v5711
  %v6071 = vunpack.c.l.b16 %v5712
  %v6072 = vunpack.c.h.b16 %v5712
  %v6073 = vunpack.c.l.b16 %v5713
  %v6074 = vunpack.c.h.b16 %v5713
  %v6075 = vunpack.c.l.b16 %v5714
  %v6076 = vunpack.c.h.b16 %v5714
  %v6077 = vunpack.c.l.b16 %v5715
  %v6078 = vunpack.c.h.b16 %v5715
  %v6079 = vunpack.c.l.b16 %v5716
  %v6080 = vunpack.c.h.b16 %v5716
  %v6081 = vunpack.c.l.b16 %v5717
  %v6082 = vunpack.c.h.b16 %v5717
  %v6083 = vunpack.c.l.b16 %v5718
  %v6084 = vunpack.c.h.b16 %v5718
  %v6085 = vunpack.c.l.b16 %v5719
  %v6086 = vunpack.c.h.b16 %v5719
  %v6087 = vunpack.c.l.b16 %v5720
  %v6088 = vunpack.c.h.b16 %v5720
  %v6089 = vunpack.c.l.b16 %v5721
  %v6090 = vunpack.c.h.b16 %v5721
  %v6091 = vunpack.c.l.b16 %v5722
  %v6092 = vunpack.c.h.b16 %v5722
  %v6093 = vunpack.c.l.b16 %v5723
  %v6094 = vunpack.c.h.b16 %v5723
  %v6095 = vunpack.c.l.b16 %v5724
  %v6096 = vunpack.c.h.b16 %v5724
  %v6097 = vunpack.c.l.b16 %v5725
  %v6098 = vunpack.c.h.b16 %v5725
  %v6099 = vunpack.c.l.b16 %v5726
  %v6100 = vunpack.c.h.b16 %v5726
  %v6101 = vunpack.c.l.b16 %v5727
  %v6102 = vunpack.c.h.b16 %v5727
  %v6103 = vunpack.c.l.b16 %v5728
  %v6104 = vunpack.c.h.b16 %v5728
  %v6105 = vunpack.c.l.b16 %v5729
  %v6106 = vunpack.c.h.b16 %v5729
  %v6107 = vunpack.c.l.b16 %v5730
  %v6108 = vunpack.c.h.b16 %v5730
  %v6109 = vunpack.c.l.b16 %v5731
  %v6110 = vunpack.c.h.b16 %v5731
  %v6111 = vunpack.c.l.b16 %v5732
  %v6112 = vunpack.c.h.b16 %v5732
  %v6113 = vunpack.c.l.b16 %v5733
  %v6114 = vunpack.c.h.b16 %v5733
  %v6115 = vunpack.c.l.b16 %v5734
  %v6116 = vunpack.c.h.b16 %v5734
  %v6117 = vunpack.c.l.b16 %v5735
  %v6118 = vunpack.c.h.b16 %v5735
  %v6119 = vunpack.c.l.b16 %v5736
  %v6120 = vunpack.c.h.b16 %v5736
  %v6121 = vunpack.c.l.b16 %v5737
  %v6122 = vunpack.c.h.b16 %v5737
  %v6123 = vunpack.c.l.b16 %v5738
  %v6124 = vunpack.c.h.b16 %v5738
  %v6125 = vunpack.c.l.b16 %v5739
  %v6126 = vunpack.c.h.b16 %v5739
  %v6127 = vunpack.c.l.b16 %v5740
  %v6128 = vunpack.c.h.b16 %v5740
  %v6129 = vunpack.c.l.b16 %v5741
  %v6130 = vunpack.c.h.b16 %v5741
  %v6131 = vunpack.c.l.b16 %v5742
  %v6132 = vunpack.c.h.b16 %v5742
  %v6133 = vunpack.c.l.b16 %v5743
  %v6134 = vunpack.c.h.b16 %v5743
  %v6135 = vunpack.c.l.b16 %v5744
  %v6136 = vunpack.c.h.b16 %v5744
  %v6137 = vunpack.c.l.b16 %v5745
  %v6138 = vunpack.c.h.b16 %v5745
  %v6139 = vunpack.c.l.b16 %v5746
  %v6140 = vunpack.c.h.b16 %v5746
  %v6141 = vunpack.c.l.b16 %v5747
  %v6142 = vunpack.c.h.b16 %v5747
  %v6143 = vunpack.c.l.b16 %v5748
  %v6144 = vunpack.c.h.b16 %v5748
  %v6145 = vunpack.c.l.b16 %v5749
  %v6146 = vunpack.c.h.b16 %v5749
  %v6147 = vunpack.c.l.b16 %v5750
  %v6148 = vunpack.c.h.b16 %v5750
  %v6149 = vunpack.c.l.b16 %v5751
  %v6150 = vunpack.c.h.b16 %v5751
  %v6151 = vunpack.c.l.b16 %v5752
  %v6152 = vunpack.c.h.b16 %v5752
  %v6153 = vunpack.c.l.b16 %v5753
  %v6154 = vunpack.c.h.b16 %v5753
  %v6155 = vunpack.c.l.b16 %v5754
  %v6156 = vunpack.c.h.b16 %v5754
  %v6157 = vunpack.c.l.b16 %v5755
  %v6158 = vunpack.c.h.b16 %v5755
  %v6159 = vunpack.c.l.b16 %v5756
  %v6160 = vunpack.c.h.b16 %v5756
  %v6161 = vunpack.c.l.b16 %v5757
  %v6162 = vunpack.c.h.b16 %v5757
  %v6163 = vunpack.c.l.b16 %v5758
  %v6164 = vunpack.c.h.b16 %v5758
  %v6165 = vunpack.c.l.b16 %v5759
  %v6166 = vunpack.c.h.b16 %v5759
  %v6167 = vunpack.c.l.b16 %v5760
  %v6168 = vunpack.c.h.b16 %v5760
  %v6169 = vunpack.c.l.b16 %v5761
  %v6170 = vunpack.c.h.b16 %v5761
  %v6171 = vunpack.c.l.b16 %v5762
  %v6172 = vunpack.c.h.b16 %v5762
  %v6173 = vpack.c.b16 %v5921, %v5917
  %v6174 = vpack.c.b16 %v5922, %v5918
  %v6175 = vpack.c.b16 %v5923, %v5919
  %v6176 = vpack.c.b16 %v5924, %v5920
  %v6177 = vpack.c.b16 %v5929, %v5925
  %v6178 = vpack.c.b16 %v5930, %v5926
  %v6179 = vpack.c.b16 %v5931, %v5927
  %v6180 = vpack.c.b16 %v5932, %v5928
  %v6181 = vpack.c.b16 %v5937, %v5933
  %v6182 = vpack.c.b16 %v5938, %v5934
  %v6183 = vpack.c.b16 %v5939, %v5935
  %v6184 = vpack.c.b16 %v5940, %v5936
  %v6185 = vpack.c.b16 %v5945, %v5941
  %v6186 = vpack.c.b16 %v5946, %v5942
  %v6187 = vpack.c.b16 %v5947, %v5943
  %v6188 = vpack.c.b16 %v5948, %v5944
  %v6189 = vpack.c.b16 %v5953, %v5949
  %v6190 = vpack.c.b16 %v5954, %v5950
  %v6191 = vpack.c.b16 %v5955, %v5951
  %v6192 = vpack.c.b16 %v5956, %v5952
  %v6193 = vpack.c.b16 %v5961, %v5957
  %v6194 = vpack.c.b16 %v5962, %v5958
  %v6195 = vpack.c.b16 %v5963, %v5959
  %v6196 = vpack.c.b16 %v5964, %v5960
  %v6197 = vpack.c.b16 %v5969, %v5965
  %v6198 = vpack.c.b16 %v5970, %v5966
  %v6199 = vpack.c.b16 %v5971, %v5967
  %v6200 = vpack.c.b16 %v5972, %v5968
  %v6201 = vpack.c.b16 %v5977, %v5973
  %v6202 = vpack.c.b16 %v5978, %v5974
  %v6203 = vpack.c.b16 %v5979, %v5975
  %v6204 = vpack.c.b16 %v5980, %v5976
  %v6205 = vpack.c.b16 %v5985, %v5981
  %v6206 = vpack.c.b16 %v5986, %v5982
  %v6207 = vpack.c.b16 %v5987, %v5983
  %v6208 = vpack.c.b16 %v5988, %v5984
  %v6209 = vpack.c.b16 %v5993, %v5989
  %v6210 = vpack.c.b16 %v5994, %v5990
  %v6211 = vpack.c.b16 %v5995, %v5991
  %v6212 = vpack.c.b16 %v5996, %v5992
  %v6213 = vpack.c.b16 %v6001, %v5997
  %v6214 = vpack.c.b16 %v6002, %v5998
  %v6215 = vpack.c.b16 %v6003, %v5999
  %v6216 = vpack.c.b16 %v6004, %v6000
  %v6217 = vpack.c.b16 %v6009, %v6005
  %v6218 = vpack.c.b16 %v6010, %v6006
  %v6219 = vpack.c.b16 %v6011, %v6007
  %v6220 = vpack.c.b16 %v6012, %v6008
  %v6221 = vpack.c.b16 %v6017, %v6013
  %v6222 = vpack.c.b16 %v6018, %v6014
  %v6223 = vpack.c.b16 %v6019, %v6015
  %v6224 = vpack.c.b16 %v6020, %v6016
  %v6225 = vpack.c.b16 %v6025, %v6021
  %v6226 = vpack.c.b16 %v6026, %v6022
  %v6227 = vpack.c.b16 %v6027, %v6023
  %v6228 = vpack.c.b16 %v6028, %v6024
  %v6229 = vpack.c.b16 %v6033, %v6029
  %v6230 = vpack.c.b16 %v6034, %v6030
  %v6231 = vpack.c.b16 %v6035, %v6031
  %v6232 = vpack.c.b16 %v6036, %v6032
  %v6233 = vpack.c.b16 %v6041, %v6037
  %v6234 = vpack.c.b16 %v6042, %v6038
  %v6235 = vpack.c.b16 %v6043, %v6039
  %v6236 = vpack.c.b16 %v6044, %v6040
  %v6237 = vpack.c.b16 %v6049, %v6045
  %v6238 = vpack.c.b16 %v6050, %v6046
  %v6239 = vpack.c.b16 %v6051, %v6047
  %v6240 = vpack.c.b16 %v6052, %v6048
  %v6241 = vpack.c.b16 %v6057, %v6053
  %v6242 = vpack.c.b16 %v6058, %v6054
  %v6243 = vpack.c.b16 %v6059, %v6055
  %v6244 = vpack.c.b16 %v6060, %v6056
  %v6245 = vpack.c.b16 %v6065, %v6061
  %v6246 = vpack.c.b16 %v6066, %v6062
  %v6247 = vpack.c.b16 %v6067, %v6063
  %v6248 = vpack.c.b16 %v6068, %v6064
  %v6249 = vpack.c.b16 %v6073, %v6069
  %v6250 = vpack.c.b16 %v6074, %v6070
  %v6251 = vpack.c.b16 %v6075, %v6071
  %v6252 = vpack.c.b16 %v6076, %v6072
  %v6253 = vpack.c.b16 %v6081, %v6077
  %v6254 = vpack.c.b16 %v6082, %v6078
  %v6255 = vpack.c.b16 %v6083, %v6079
  %v6256 = vpack.c.b16 %v6084, %v6080
  %v6257 = vpack.c.b16 %v6089, %v6085
  %v6258 = vpack.c.b16 %v6090, %v6086
  %v6259 = vpack.c.b16 %v6091, %v6087
  %v6260 = vpack.c.b16 %v6092, %v6088
  %v6261 = vpack.c.b16 %v6097, %v6093
  %v6262 = vpack.c.b16 %v6098, %v6094
  %v6263 = vpack.c.b16 %v6099, %v6095
  %v6264 = vpack.c.b16 %v6100, %v6096
  %v6265 = vpack.c.b16 %v6105, %v6101
  %v6266 = vpack.c.b16 %v6106, %v6102
  %v6267 = vpack.c.b16 %v6107, %v6103
  %v6268 = vpack.c.b16 %v6108, %v6104
  %v6269 = vpack.c.b16 %v6113, %v6109
  %v6270 = vpack.c.b16 %v6114, %v6110
  %v6271 = vpack.c.b16 %v6115, %v6111
  %v6272 = vpack.c.b16 %v6116, %v6112
  %v6273 = vpack.c.b16 %v6121, %v6117
  %v6274 = vpack.c.b16 %v6122, %v6118
  %v6275 = vpack.c.b16 %v6123, %v6119
  %v6276 = vpack.c.b16 %v6124, %v6120
  %v6277 = vpack.c.b16 %v6129, %v6125
  %v6278 = vpack.c.b16 %v6130, %v6126
  %v6279 = vpack.c.b16 %v6131, %v6127
  %v6280 = vpack.c.b16 %v6132, %v6128
  %v6281 = vpack.c.b16 %v6137, %v6133
  %v6282 = vpack.c.b16 %v6138, %v6134
  %v6283 = vpack.c.b16 %v6139, %v6135
  %v6284 = vpack.c.b16 %v6140, %v6136
  %v6285 = vpack.c.b16 %v6145, %v6141
  %v6286 = vpack.c.b16 %v6146, %v6142
  %v6287 = vpack.c.b16 %v6147, %v6143
  %v6288 = vpack.c.b16 %v6148, %v6144
  %v6289 = vpack.c.b16 %v6153, %v6149
  %v6290 = vpack.c.b16 %v6154, %v6150
  %v6291 = vpack.c.b16 %v6155, %v6151
  %v6292 = vpack.c.b16 %v6156, %v6152
  %v6293 = vpack.c.b16 %v6161, %v6157
  %v6294 = vpack.c.b16 %v6162, %v6158
  %v6295 = vpack.c.b16 %v6163, %v6159
  %v6296 = vpack.c.b16 %v6164, %v6160
  %v6297 = vpack.c.b16 %v6169, %v6165
  %v6298 = vpack.c.b16 %v6170, %v6166
  %v6299 = vpack.c.b16 %v6171, %v6167
  %v6300 = vpack.c.b16 %v6172, %v6168
  %6429 = vmatprep.subr.bf16.mxu0 %v6202
  %6430 = vmatpush1.bf16.msra.mxu0 %v6201
  %6431 = vmatprep.subr.bf16.mxu0 %v6198
  %6432 = vmatpush1.bf16.msra.mxu0 %v6197
  %6433 = vmatprep.subr.bf16.mxu0 %v6194
  %6434 = vmatpush1.bf16.msra.mxu0 %v6193
  %6435 = vmatprep.subr.bf16.mxu0 %v6190
  %6436 = vmatpush1.bf16.msra.mxu0 %v6189
  %6437 = vmatprep.subr.bf16.mxu0 %v6186
  %6438 = vmatpush1.bf16.msra.mxu0 %v6185
  %6439 = vmatprep.subr.bf16.mxu0 %v6182
  %6440 = vmatpush1.bf16.msra.mxu0 %v6181
  %6441 = vmatprep.subr.bf16.mxu0 %v6178
  %6442 = vmatpush1.bf16.msra.mxu0 %v6177
  %6443 = vmatprep.subr.bf16.mxu0 %v6174
  %6444 = vmatpush1.bf16.msra.mxu0 %v6173
  %6445 = vmatprep.subr.bf16.mxu0 %v6234
  %6446 = vmatpush2.bf16.msra.mxu0 %v6233
  %6447 = vmatprep.subr.bf16.mxu0 %v6230
  %6448 = vmatpush2.bf16.msra.mxu0 %v6229
  %6449 = vmatprep.subr.bf16.mxu0 %v6226
  %6450 = vmatpush2.bf16.msra.mxu0 %v6225
  %6451 = vmatprep.subr.bf16.mxu0 %v6222
  %6452 = vmatpush2.bf16.msra.mxu0 %v6221
  %6453 = vmatprep.subr.bf16.mxu0 %v6218
  %6454 = vmatpush2.bf16.msra.mxu0 %v6217
  %6455 = vmatprep.subr.bf16.mxu0 %v6214
  %6456 = vmatpush2.bf16.msra.mxu0 %v6213
  %6457 = vmatprep.subr.bf16.mxu0 %v6210
  %6458 = vmatpush2.bf16.msra.mxu0 %v6209
  %6459 = vmatprep.subr.bf16.mxu0 %v6206
  %6460 = vmatpush2.bf16.msra.mxu0 %v6205
  %6461 = vmatprep.mubr.bf16.mxu0 %v5764
  %6462 = vmatmul.mubr.bf16.gmra.mxu0 %v5763
  %v6463 = vpop.f32.mrf.mxu0
  %v6464 = vadd.f32 %v5772, %v6463
  %v6465 = vpop.f32.mrf.mxu0
  %v6466 = vadd.f32 %v5776, %v6465
  %v6467 = vpop.f32.mrf.mxu0
  %v6468 = vadd.f32 %v5772, %v6467
  %v6469 = vpop.f32.mrf.mxu0
  %v6470 = vadd.f32 %v5776, %v6469
  %6471 = vdwg.mxu0
  %6472 = vmatprep.subr.bf16.mxu0 %v6266
  %6473 = vmatpush1.bf16.msra.mxu0 %v6265
  %6474 = vmatprep.subr.bf16.mxu0 %v6262
  %6475 = vmatpush1.bf16.msra.mxu0 %v6261
  %6476 = vmatprep.subr.bf16.mxu0 %v6258
  %6477 = vmatpush1.bf16.msra.mxu0 %v6257
  %6478 = vmatprep.subr.bf16.mxu0 %v6254
  %6479 = vmatpush1.bf16.msra.mxu0 %v6253
  %6480 = vmatprep.subr.bf16.mxu0 %v6250
  %6481 = vmatpush1.bf16.msra.mxu0 %v6249
  %6482 = vmatprep.subr.bf16.mxu0 %v6246
  %6483 = vmatpush1.bf16.msra.mxu0 %v6245
  %6484 = vmatprep.subr.bf16.mxu0 %v6242
  %6485 = vmatpush1.bf16.msra.mxu0 %v6241
  %6486 = vmatprep.subr.bf16.mxu0 %v6238
  %6487 = vmatpush1.bf16.msra.mxu0 %v6237
  %6488 = vmatprep.subr.bf16.mxu0 %v6298
  %6489 = vmatpush2.bf16.msra.mxu0 %v6297
  %6490 = vmatprep.subr.bf16.mxu0 %v6294
  %6491 = vmatpush2.bf16.msra.mxu0 %v6293
  %6492 = vmatprep.subr.bf16.mxu0 %v6290
  %6493 = vmatpush2.bf16.msra.mxu0 %v6289
  %6494 = vmatprep.subr.bf16.mxu0 %v6286
  %6495 = vmatpush2.bf16.msra.mxu0 %v6285
  %6496 = vmatprep.subr.bf16.mxu0 %v6282
  %6497 = vmatpush2.bf16.msra.mxu0 %v6281
  %6498 = vmatprep.subr.bf16.mxu0 %v6278
  %6499 = vmatpush2.bf16.msra.mxu0 %v6277
  %6500 = vmatprep.subr.bf16.mxu0 %v6274
  %6501 = vmatpush2.bf16.msra.mxu0 %v6273
  %6502 = vmatprep.subr.bf16.mxu0 %v6270
  %6503 = vmatpush2.bf16.msra.mxu0 %v6269
  %6504 = vmatprep.mubr.bf16.mxu0 %v5766
  %6505 = vmatmul.mubr.bf16.gmra.mxu0 %v5765
  %v6506 = vpop.f32.mrf.mxu0
  %v6507 = vadd.f32 %v6464, %v6506
  %v6508 = vpop.f32.mrf.mxu0
  %v6509 = vadd.f32 %v6466, %v6508
  %v6510 = vpop.f32.mrf.mxu0
  %v6511 = vadd.f32 %v6468, %v6510
  %v6512 = vpop.f32.mrf.mxu0
  %v6513 = vadd.f32 %v6470, %v6512
  %6514 = vdwg.mxu0
  %6515 = vmatprep.subr.bf16.mxu0 %v6204
  %6516 = vmatpush1.bf16.msra.mxu0 %v6203
  %6517 = vmatprep.subr.bf16.mxu0 %v6200
  %6518 = vmatpush1.bf16.msra.mxu0 %v6199
  %6519 = vmatprep.subr.bf16.mxu0 %v6196
  %6520 = vmatpush1.bf16.msra.mxu0 %v6195
  %6521 = vmatprep.subr.bf16.mxu0 %v6192
  %6522 = vmatpush1.bf16.msra.mxu0 %v6191
  %6523 = vmatprep.subr.bf16.mxu0 %v6188
  %6524 = vmatpush1.bf16.msra.mxu0 %v6187
  %6525 = vmatprep.subr.bf16.mxu0 %v6184
  %6526 = vmatpush1.bf16.msra.mxu0 %v6183
  %6527 = vmatprep.subr.bf16.mxu0 %v6180
  %6528 = vmatpush1.bf16.msra.mxu0 %v6179
  %6529 = vmatprep.subr.bf16.mxu0 %v6176
  %6530 = vmatpush1.bf16.msra.mxu0 %v6175
  %6531 = vmatprep.subr.bf16.mxu0 %v6236
  %6532 = vmatpush2.bf16.msra.mxu0 %v6235
  %6533 = vmatprep.subr.bf16.mxu0 %v6232
  %6534 = vmatpush2.bf16.msra.mxu0 %v6231
  %6535 = vmatprep.subr.bf16.mxu0 %v6228
  %6536 = vmatpush2.bf16.msra.mxu0 %v6227
  %6537 = vmatprep.subr.bf16.mxu0 %v6224
  %6538 = vmatpush2.bf16.msra.mxu0 %v6223
  %6539 = vmatprep.subr.bf16.mxu0 %v6220
  %6540 = vmatpush2.bf16.msra.mxu0 %v6219
  %6541 = vmatprep.subr.bf16.mxu0 %v6216
  %6542 = vmatpush2.bf16.msra.mxu0 %v6215
  %6543 = vmatprep.subr.bf16.mxu0 %v6212
  %6544 = vmatpush2.bf16.msra.mxu0 %v6211
  %6545 = vmatprep.subr.bf16.mxu0 %v6208
  %6546 = vmatpush2.bf16.msra.mxu0 %v6207
  %6547 = vmatprep.mubr.bf16.mxu0 %v5764
  %6548 = vmatmul.mubr.bf16.gmra.mxu0 %v5763
  %v6549 = vpop.f32.mrf.mxu0
  %v6550 = vadd.f32 %v5780, %v6549
  %v6551 = vpop.f32.mrf.mxu0
  %v6552 = vadd.f32 %v5784, %v6551
  %v6553 = vpop.f32.mrf.mxu0
  %v6554 = vadd.f32 %v5780, %v6553
  %v6555 = vpop.f32.mrf.mxu0
  %v6556 = vadd.f32 %v5784, %v6555
  %6557 = vdwg.mxu0
  %6558 = vmatprep.subr.bf16.mxu0 %v6268
  %6559 = vmatpush1.bf16.msra.mxu0 %v6267
  %6560 = vmatprep.subr.bf16.mxu0 %v6264
  %6561 = vmatpush1.bf16.msra.mxu0 %v6263
  %6562 = vmatprep.subr.bf16.mxu0 %v6260
  %6563 = vmatpush1.bf16.msra.mxu0 %v6259
  %6564 = vmatprep.subr.bf16.mxu0 %v6256
  %6565 = vmatpush1.bf16.msra.mxu0 %v6255
  %6566 = vmatprep.subr.bf16.mxu0 %v6252
  %6567 = vmatpush1.bf16.msra.mxu0 %v6251
  %6568 = vmatprep.subr.bf16.mxu0 %v6248
  %6569 = vmatpush1.bf16.msra.mxu0 %v6247
  %6570 = vmatprep.subr.bf16.mxu0 %v6244
  %6571 = vmatpush1.bf16.msra.mxu0 %v6243
  %6572 = vmatprep.subr.bf16.mxu0 %v6240
  %6573 = vmatpush1.bf16.msra.mxu0 %v6239
  %6574 = vmatprep.subr.bf16.mxu0 %v6300
  %6575 = vmatpush2.bf16.msra.mxu0 %v6299
  %6576 = vmatprep.subr.bf16.mxu0 %v6296
  %6577 = vmatpush2.bf16.msra.mxu0 %v6295
  %6578 = vmatprep.subr.bf16.mxu0 %v6292
  %6579 = vmatpush2.bf16.msra.mxu0 %v6291
  %6580 = vmatprep.subr.bf16.mxu0 %v6288
  %6581 = vmatpush2.bf16.msra.mxu0 %v6287
  %6582 = vmatprep.subr.bf16.mxu0 %v6284
  %6583 = vmatpush2.bf16.msra.mxu0 %v6283
  %6584 = vmatprep.subr.bf16.mxu0 %v6280
  %6585 = vmatpush2.bf16.msra.mxu0 %v6279
  %6586 = vmatprep.subr.bf16.mxu0 %v6276
  %6587 = vmatpush2.bf16.msra.mxu0 %v6275
  %6588 = vmatprep.subr.bf16.mxu0 %v6272
  %6589 = vmatpush2.bf16.msra.mxu0 %v6271
  %6590 = vmatprep.mubr.bf16.mxu0 %v5766
  %6591 = vmatmul.mubr.bf16.gmra.mxu0 %v5765
  %v6592 = vpop.f32.mrf.mxu0
  %v6593 = vadd.f32 %v6550, %v6592
  %v6594 = vpop.f32.mrf.mxu0
  %v6595 = vadd.f32 %v6552, %v6594
  %v6596 = vpop.f32.mrf.mxu0
  %v6597 = vadd.f32 %v6554, %v6596
  %v6598 = vpop.f32.mrf.mxu0
  %v6599 = vadd.f32 %v6556, %v6598
  %6600 = vdwg.mxu0
  %v6601 = vsub.f32 0.0, %v5533
  %v6602 = vsub.f32 0.0, %v5535
  %v6603 = vsub.f32 0.0, %v5619
  %v6604 = vsub.f32 0.0, %v5621
  %v6605 = vsub.f32 0.0, %v5537
  %v6606 = vsub.f32 0.0, %v5539
  %v6607 = vsub.f32 0.0, %v5623
  %v6608 = vsub.f32 0.0, %v5625
  %v6609 = vmul.f32 %v6601, 1.442695
  %v6610 = vpow.pop %v6609
  %v6611 = vmul.f32 %v6602, 1.442695
  %v6612 = vpow.pop %v6611
  %v6613 = vmul.f32 %v6603, 1.442695
  %v6614 = vpow.pop %v6613
  %v6615 = vmul.f32 %v6604, 1.442695
  %v6616 = vpow.pop %v6615
  %v6617 = vmul.f32 %v6605, 1.442695
  %v6618 = vpow.pop %v6617
  %v6619 = vmul.f32 %v6606, 1.442695
  %v6620 = vpow.pop %v6619
  %v6621 = vmul.f32 %v6607, 1.442695
  %v6622 = vpow.pop %v6621
  %v6623 = vmul.f32 %v6608, 1.442695
  %v6624 = vpow.pop %v6623
  %v6625 = vadd.f32 %v6610, 1.0
  %v6626 = vadd.f32 %v6612, 1.0
  %v6627 = vadd.f32 %v6614, 1.0
  %v6628 = vadd.f32 %v6616, 1.0
  %v6629 = vadd.f32 %v6618, 1.0
  %v6630 = vadd.f32 %v6620, 1.0
  %v6631 = vadd.f32 %v6622, 1.0
  %v6632 = vadd.f32 %v6624, 1.0
  %v6633 = vrcp.pop %v6625
  %v6634 = vmul.f32 1.0, %v6633
  %v6635 = vrcp.pop %v6626
  %v6636 = vmul.f32 1.0, %v6635
  %v6637 = vrcp.pop %v6627
  %v6638 = vmul.f32 1.0, %v6637
  %v6639 = vrcp.pop %v6628
  %v6640 = vmul.f32 1.0, %v6639
  %v6641 = vrcp.pop %v6629
  %v6642 = vmul.f32 1.0, %v6641
  %v6643 = vrcp.pop %v6630
  %v6644 = vmul.f32 1.0, %v6643
  %v6645 = vrcp.pop %v6631
  %v6646 = vmul.f32 1.0, %v6645
  %v6647 = vrcp.pop %v6632
  %v6648 = vmul.f32 1.0, %v6647
  %v6649 = vmul.f32 %v6634, %v6507
  %v6650 = vmul.f32 %v6636, %v6509
  %v6651 = vmul.f32 %v6638, %v6593
  %v6652 = vmul.f32 %v6640, %v6595
  %v6653 = vmul.f32 %v6642, %v6511
  %v6654 = vmul.f32 %v6644, %v6513
  %v6655 = vmul.f32 %v6646, %v6597
  %v6656 = vmul.f32 %v6648, %v6599
  %v6657 = vadd.f32 %v6649, %v3693
  %v6658 = vadd.f32 %v6650, %v3694
  %v6659 = vadd.f32 %v6651, %v3695
  %v6660 = vadd.f32 %v6652, %v3696
  %v6661 = vadd.f32 %v6653, %v3697
  %v6662 = vadd.f32 %v6654, %v3698
  %v6663 = vadd.f32 %v6655, %v3699
  %v6664 = vadd.f32 %v6656, %v3700
  %v6665 = vld [vmem:[%s31] sm:$0xf]
  %v6666 = vld [vmem:[%s33] sm:$0xf]
  %v6667 = vadd.f32 %v6657, %v6658
  %v6668 = vadd.f32 %v6667, %v6659
  %v6669 = vadd.f32 %v6668, %v6660
  %6670 = vadd.xlane.f32.xlu0 %v6669
  %v6671 = vpop.xlane.xlu0 %6670
  %v6672 = vadd.f32 %v6661, %v6662
  %v6673 = vadd.f32 %v6672, %v6663
  %v6674 = vadd.f32 %v6673, %v6664
  %6675 = vadd.xlane.f32.xlu0 %v6674
  %v6676 = vpop.xlane.xlu0 %6675
  %v6677 = vrcp.pop 512.0
  %v6678 = vmul.f32 %v6671, %v6677
  %v6679 = vmul.f32 %v6676, %v6677
  %v6680 = vsub.f32 %v6657, %v6678
  %v6681 = vsub.f32 %v6658, %v6678
  %v6682 = vsub.f32 %v6659, %v6678
  %v6683 = vsub.f32 %v6660, %v6678
  %v6684 = vsub.f32 %v6661, %v6679
  %v6685 = vsub.f32 %v6662, %v6679
  %v6686 = vsub.f32 %v6663, %v6679
  %v6687 = vsub.f32 %v6664, %v6679
  %v6688 = vmul.f32 %v6680, %v6680
  %v6689 = vmul.f32 %v6681, %v6681
  %v6690 = vmul.f32 %v6682, %v6682
  %v6691 = vmul.f32 %v6683, %v6683
  %v6692 = vmul.f32 %v6684, %v6684
  %v6693 = vmul.f32 %v6685, %v6685
  %v6694 = vmul.f32 %v6686, %v6686
  %v6695 = vmul.f32 %v6687, %v6687
  %v6696 = vadd.f32 %v6688, %v6689
  %v6697 = vadd.f32 %v6696, %v6690
  %v6698 = vadd.f32 %v6697, %v6691
  %6699 = vadd.xlane.f32.xlu0 %v6698
  %v6700 = vpop.xlane.xlu0 %6699
  %v6701 = vadd.f32 %v6692, %v6693
  %v6702 = vadd.f32 %v6701, %v6694
  %v6703 = vadd.f32 %v6702, %v6695
  %6704 = vadd.xlane.f32.xlu0 %v6703
  %v6705 = vpop.xlane.xlu0 %6704
  %v6706 = vmul.f32 %v6700, %v6677
  %v6707 = vmul.f32 %v6705, %v6677
  %v6708 = vadd.f32 %v6706, 1e-05
  %v6709 = vadd.f32 %v6707, 1e-05
  %v6710 = vrsqrt.pop %v6708
  %v6711 = vrsqrt.pop %v6709
  %v6712 = vmul.f32 %v6680, %v6710
  %v6713 = vmul.f32 %v6681, %v6710
  %v6714 = vmul.f32 %v6682, %v6710
  %v6715 = vmul.f32 %v6683, %v6710
  %v6716 = vmul.f32 %v6684, %v6711
  %v6717 = vmul.f32 %v6685, %v6711
  %v6718 = vmul.f32 %v6686, %v6711
  %v6719 = vmul.f32 %v6687, %v6711
  %v6721 = vlaneseq
  %v6722 = vshrl.u32 %v6721, 7
  %v6723 = vsub.s32 0, %v6722
  %v6724 = vrot.slane %v6665, %v6723
  %v6725 = vlaneseq
  %v6726 = vshrl.u32 %v6725, 7
  %v6727 = vsub.s32 1, %v6726
  %v6728 = vrot.slane %v6665, %v6727
  %v6729 = vlaneseq
  %v6730 = vshrl.u32 %v6729, 7
  %v6731 = vsub.s32 2, %v6730
  %v6732 = vrot.slane %v6665, %v6731
  %v6733 = vlaneseq
  %v6734 = vshrl.u32 %v6733, 7
  %v6735 = vsub.s32 3, %v6734
  %v6736 = vrot.slane %v6665, %v6735
  %v6741 = vmul.f32 %v6712, %v6724
  %v6742 = vmul.f32 %v6713, %v6728
  %v6743 = vmul.f32 %v6714, %v6732
  %v6744 = vmul.f32 %v6715, %v6736
  %v6745 = vmul.f32 %v6716, %v6724
  %v6746 = vmul.f32 %v6717, %v6728
  %v6747 = vmul.f32 %v6718, %v6732
  %v6748 = vmul.f32 %v6719, %v6736
  %v6750 = vlaneseq
  %v6751 = vshrl.u32 %v6750, 7
  %v6752 = vsub.s32 0, %v6751
  %v6753 = vrot.slane %v6666, %v6752
  %v6754 = vlaneseq
  %v6755 = vshrl.u32 %v6754, 7
  %v6756 = vsub.s32 1, %v6755
  %v6757 = vrot.slane %v6666, %v6756
  %v6758 = vlaneseq
  %v6759 = vshrl.u32 %v6758, 7
  %v6760 = vsub.s32 2, %v6759
  %v6761 = vrot.slane %v6666, %v6760
  %v6762 = vlaneseq
  %v6763 = vshrl.u32 %v6762, 7
  %v6764 = vsub.s32 3, %v6763
  %v6765 = vrot.slane %v6666, %v6764
  %v6770 = vadd.f32 %v6741, %v6753
  %v6771 = vadd.f32 %v6742, %v6757
  %v6772 = vadd.f32 %v6743, %v6761
  %v6773 = vadd.f32 %v6744, %v6765
  %v6774 = vadd.f32 %v6745, %v6753
  %v6775 = vadd.f32 %v6746, %v6757
  %v6776 = vadd.f32 %v6747, %v6761
  %v6777 = vadd.f32 %v6748, %v6765
  %v6778 = vld [vmem:[%s9] sm:$0xff]
  %v6779 = vld [vmem:[%s9 + $0x8] sm:$0xff]
  %v6780 = vld [vmem:[%s9 + $0x10] sm:$0xff]
  %v6781 = vld [vmem:[%s9 + $0x18] sm:$0xff]
  %v6782 = vld [vmem:[%s9 + $0x20] sm:$0xff]
  %v6783 = vld [vmem:[%s9 + $0x28] sm:$0xff]
  %v6784 = vld [vmem:[%s9 + $0x30] sm:$0xff]
  %v6785 = vld [vmem:[%s9 + $0x38] sm:$0xff]
  %v6786 = vadd.f32 %v6770, %v6778
  %v6787 = vadd.f32 %v6771, %v6779
  %v6788 = vadd.f32 %v6772, %v6780
  %v6789 = vadd.f32 %v6773, %v6781
  %v6790 = vadd.f32 %v6774, %v6782
  %v6791 = vadd.f32 %v6775, %v6783
  %v6792 = vadd.f32 %v6776, %v6784
  %v6793 = vadd.f32 %v6777, %v6785
  %v6794 = vld [vmem:[%s35] sm:$0xff]
  %v6795 = vld [vmem:[%s35 + $0x8] sm:$0xff]
  %v6796 = vld [vmem:[%s35 + $0x10] sm:$0xff]
  %v6797 = vld [vmem:[%s35 + $0x18] sm:$0xff]
  %v6798 = vld [vmem:[%s35 + $0x20] sm:$0xff]
  %v6799 = vld [vmem:[%s35 + $0x28] sm:$0xff]
  %v6800 = vld [vmem:[%s35 + $0x30] sm:$0xff]
  %v6801 = vld [vmem:[%s35 + $0x38] sm:$0xff]
  %v6802 = vld [vmem:[%s35 + $0x40] sm:$0xff]
  %v6803 = vld [vmem:[%s35 + $0x48] sm:$0xff]
  %v6804 = vld [vmem:[%s35 + $0x50] sm:$0xff]
  %v6805 = vld [vmem:[%s35 + $0x58] sm:$0xff]
  %v6806 = vld [vmem:[%s35 + $0x60] sm:$0xff]
  %v6807 = vld [vmem:[%s35 + $0x68] sm:$0xff]
  %v6808 = vld [vmem:[%s35 + $0x70] sm:$0xff]
  %v6809 = vld [vmem:[%s35 + $0x78] sm:$0xff]
  %v6810 = vld [vmem:[%s35 + $0x80] sm:$0xff]
  %v6811 = vld [vmem:[%s35 + $0x88] sm:$0xff]
  %v6812 = vld [vmem:[%s35 + $0x90] sm:$0xff]
  %v6813 = vld [vmem:[%s35 + $0x98] sm:$0xff]
  %v6814 = vld [vmem:[%s35 + $0xa0] sm:$0xff]
  %v6815 = vld [vmem:[%s35 + $0xa8] sm:$0xff]
  %v6816 = vld [vmem:[%s35 + $0xb0] sm:$0xff]
  %v6817 = vld [vmem:[%s35 + $0xb8] sm:$0xff]
  %v6818 = vld [vmem:[%s35 + $0xc0] sm:$0xff]
  %v6819 = vld [vmem:[%s35 + $0xc8] sm:$0xff]
  %v6820 = vld [vmem:[%s35 + $0xd0] sm:$0xff]
  %v6821 = vld [vmem:[%s35 + $0xd8] sm:$0xff]
  %v6822 = vld [vmem:[%s35 + $0xe0] sm:$0xff]
  %v6823 = vld [vmem:[%s35 + $0xe8] sm:$0xff]
  %v6824 = vld [vmem:[%s35 + $0xf0] sm:$0xff]
  %v6825 = vld [vmem:[%s35 + $0xf8] sm:$0xff]
  %v6826 = vld [vmem:[%s35 + $0x100] sm:$0xff]
  %v6827 = vld [vmem:[%s35 + $0x108] sm:$0xff]
  %v6828 = vld [vmem:[%s35 + $0x110] sm:$0xff]
  %v6829 = vld [vmem:[%s35 + $0x118] sm:$0xff]
  %v6830 = vld [vmem:[%s35 + $0x120] sm:$0xff]
  %v6831 = vld [vmem:[%s35 + $0x128] sm:$0xff]
  %v6832 = vld [vmem:[%s35 + $0x130] sm:$0xff]
  %v6833 = vld [vmem:[%s35 + $0x138] sm:$0xff]
  %v6834 = vld [vmem:[%s35 + $0x140] sm:$0xff]
  %v6835 = vld [vmem:[%s35 + $0x148] sm:$0xff]
  %v6836 = vld [vmem:[%s35 + $0x150] sm:$0xff]
  %v6837 = vld [vmem:[%s35 + $0x158] sm:$0xff]
  %v6838 = vld [vmem:[%s35 + $0x160] sm:$0xff]
  %v6839 = vld [vmem:[%s35 + $0x168] sm:$0xff]
  %v6840 = vld [vmem:[%s35 + $0x170] sm:$0xff]
  %v6841 = vld [vmem:[%s35 + $0x178] sm:$0xff]
  %v6842 = vld [vmem:[%s35 + $0x180] sm:$0xff]
  %v6843 = vld [vmem:[%s35 + $0x188] sm:$0xff]
  %v6844 = vld [vmem:[%s35 + $0x190] sm:$0xff]
  %v6845 = vld [vmem:[%s35 + $0x198] sm:$0xff]
  %v6846 = vld [vmem:[%s35 + $0x1a0] sm:$0xff]
  %v6847 = vld [vmem:[%s35 + $0x1a8] sm:$0xff]
  %v6848 = vld [vmem:[%s35 + $0x1b0] sm:$0xff]
  %v6849 = vld [vmem:[%s35 + $0x1b8] sm:$0xff]
  %v6850 = vld [vmem:[%s35 + $0x1c0] sm:$0xff]
  %v6851 = vld [vmem:[%s35 + $0x1c8] sm:$0xff]
  %v6852 = vld [vmem:[%s35 + $0x1d0] sm:$0xff]
  %v6853 = vld [vmem:[%s35 + $0x1d8] sm:$0xff]
  %v6854 = vld [vmem:[%s35 + $0x1e0] sm:$0xff]
  %v6855 = vld [vmem:[%s35 + $0x1e8] sm:$0xff]
  %v6856 = vld [vmem:[%s35 + $0x1f0] sm:$0xff]
  %v6857 = vld [vmem:[%s35 + $0x1f8] sm:$0xff]
  %v6858 = vld [vmem:[%s35 + $0x200] sm:$0xff]
  %v6859 = vld [vmem:[%s35 + $0x208] sm:$0xff]
  %v6860 = vld [vmem:[%s35 + $0x210] sm:$0xff]
  %v6861 = vld [vmem:[%s35 + $0x218] sm:$0xff]
  %v6862 = vld [vmem:[%s35 + $0x220] sm:$0xff]
  %v6863 = vld [vmem:[%s35 + $0x228] sm:$0xff]
  %v6864 = vld [vmem:[%s35 + $0x230] sm:$0xff]
  %v6865 = vld [vmem:[%s35 + $0x238] sm:$0xff]
  %v6866 = vld [vmem:[%s35 + $0x240] sm:$0xff]
  %v6867 = vld [vmem:[%s35 + $0x248] sm:$0xff]
  %v6868 = vld [vmem:[%s35 + $0x250] sm:$0xff]
  %v6869 = vld [vmem:[%s35 + $0x258] sm:$0xff]
  %v6870 = vld [vmem:[%s35 + $0x260] sm:$0xff]
  %v6871 = vld [vmem:[%s35 + $0x268] sm:$0xff]
  %v6872 = vld [vmem:[%s35 + $0x270] sm:$0xff]
  %v6873 = vld [vmem:[%s35 + $0x278] sm:$0xff]
  %v6874 = vld [vmem:[%s35 + $0x280] sm:$0xff]
  %v6875 = vld [vmem:[%s35 + $0x288] sm:$0xff]
  %v6876 = vld [vmem:[%s35 + $0x290] sm:$0xff]
  %v6877 = vld [vmem:[%s35 + $0x298] sm:$0xff]
  %v6878 = vld [vmem:[%s35 + $0x2a0] sm:$0xff]
  %v6879 = vld [vmem:[%s35 + $0x2a8] sm:$0xff]
  %v6880 = vld [vmem:[%s35 + $0x2b0] sm:$0xff]
  %v6881 = vld [vmem:[%s35 + $0x2b8] sm:$0xff]
  %v6882 = vld [vmem:[%s35 + $0x2c0] sm:$0xff]
  %v6883 = vld [vmem:[%s35 + $0x2c8] sm:$0xff]
  %v6884 = vld [vmem:[%s35 + $0x2d0] sm:$0xff]
  %v6885 = vld [vmem:[%s35 + $0x2d8] sm:$0xff]
  %v6886 = vld [vmem:[%s35 + $0x2e0] sm:$0xff]
  %v6887 = vld [vmem:[%s35 + $0x2e8] sm:$0xff]
  %v6888 = vld [vmem:[%s35 + $0x2f0] sm:$0xff]
  %v6889 = vld [vmem:[%s35 + $0x2f8] sm:$0xff]
  %v6890 = vld [vmem:[%s35 + $0x300] sm:$0xff]
  %v6891 = vld [vmem:[%s35 + $0x308] sm:$0xff]
  %v6892 = vld [vmem:[%s35 + $0x310] sm:$0xff]
  %v6893 = vld [vmem:[%s35 + $0x318] sm:$0xff]
  %v6894 = vld [vmem:[%s35 + $0x320] sm:$0xff]
  %v6895 = vld [vmem:[%s35 + $0x328] sm:$0xff]
  %v6896 = vld [vmem:[%s35 + $0x330] sm:$0xff]
  %v6897 = vld [vmem:[%s35 + $0x338] sm:$0xff]
  %v6898 = vld [vmem:[%s35 + $0x340] sm:$0xff]
  %v6899 = vld [vmem:[%s35 + $0x348] sm:$0xff]
  %v6900 = vld [vmem:[%s35 + $0x350] sm:$0xff]
  %v6901 = vld [vmem:[%s35 + $0x358] sm:$0xff]
  %v6902 = vld [vmem:[%s35 + $0x360] sm:$0xff]
  %v6903 = vld [vmem:[%s35 + $0x368] sm:$0xff]
  %v6904 = vld [vmem:[%s35 + $0x370] sm:$0xff]
  %v6905 = vld [vmem:[%s35 + $0x378] sm:$0xff]
  %v6906 = vld [vmem:[%s35 + $0x380] sm:$0xff]
  %v6907 = vld [vmem:[%s35 + $0x388] sm:$0xff]
  %v6908 = vld [vmem:[%s35 + $0x390] sm:$0xff]
  %v6909 = vld [vmem:[%s35 + $0x398] sm:$0xff]
  %v6910 = vld [vmem:[%s35 + $0x3a0] sm:$0xff]
  %v6911 = vld [vmem:[%s35 + $0x3a8] sm:$0xff]
  %v6912 = vld [vmem:[%s35 + $0x3b0] sm:$0xff]
  %v6913 = vld [vmem:[%s35 + $0x3b8] sm:$0xff]
  %v6914 = vld [vmem:[%s35 + $0x3c0] sm:$0xff]
  %v6915 = vld [vmem:[%s35 + $0x3c8] sm:$0xff]
  %v6916 = vld [vmem:[%s35 + $0x3d0] sm:$0xff]
  %v6917 = vld [vmem:[%s35 + $0x3d8] sm:$0xff]
  %v6918 = vld [vmem:[%s35 + $0x3e0] sm:$0xff]
  %v6919 = vld [vmem:[%s35 + $0x3e8] sm:$0xff]
  %v6920 = vld [vmem:[%s35 + $0x3f0] sm:$0xff]
  %v6921 = vld [vmem:[%s35 + $0x3f8] sm:$0xff]
  %v6922 = vld [vmem:[%s35 + $0x400] sm:$0xff]
  %v6923 = vld [vmem:[%s35 + $0x408] sm:$0xff]
  %v6924 = vld [vmem:[%s35 + $0x410] sm:$0xff]
  %v6925 = vld [vmem:[%s35 + $0x418] sm:$0xff]
  %v6926 = vld [vmem:[%s35 + $0x420] sm:$0xff]
  %v6927 = vld [vmem:[%s35 + $0x428] sm:$0xff]
  %v6928 = vld [vmem:[%s35 + $0x430] sm:$0xff]
  %v6929 = vld [vmem:[%s35 + $0x438] sm:$0xff]
  %v6930 = vld [vmem:[%s35 + $0x440] sm:$0xff]
  %v6931 = vld [vmem:[%s35 + $0x448] sm:$0xff]
  %v6932 = vld [vmem:[%s35 + $0x450] sm:$0xff]
  %v6933 = vld [vmem:[%s35 + $0x458] sm:$0xff]
  %v6934 = vld [vmem:[%s35 + $0x460] sm:$0xff]
  %v6935 = vld [vmem:[%s35 + $0x468] sm:$0xff]
  %v6936 = vld [vmem:[%s35 + $0x470] sm:$0xff]
  %v6937 = vld [vmem:[%s35 + $0x478] sm:$0xff]
  %v6938 = vld [vmem:[%s35 + $0x480] sm:$0xff]
  %v6939 = vld [vmem:[%s35 + $0x488] sm:$0xff]
  %v6940 = vld [vmem:[%s35 + $0x490] sm:$0xff]
  %v6941 = vld [vmem:[%s35 + $0x498] sm:$0xff]
  %v6942 = vld [vmem:[%s35 + $0x4a0] sm:$0xff]
  %v6943 = vld [vmem:[%s35 + $0x4a8] sm:$0xff]
  %v6944 = vld [vmem:[%s35 + $0x4b0] sm:$0xff]
  %v6945 = vld [vmem:[%s35 + $0x4b8] sm:$0xff]
  %v6946 = vld [vmem:[%s35 + $0x4c0] sm:$0xff]
  %v6947 = vld [vmem:[%s35 + $0x4c8] sm:$0xff]
  %v6948 = vld [vmem:[%s35 + $0x4d0] sm:$0xff]
  %v6949 = vld [vmem:[%s35 + $0x4d8] sm:$0xff]
  %v6950 = vld [vmem:[%s35 + $0x4e0] sm:$0xff]
  %v6951 = vld [vmem:[%s35 + $0x4e8] sm:$0xff]
  %v6952 = vld [vmem:[%s35 + $0x4f0] sm:$0xff]
  %v6953 = vld [vmem:[%s35 + $0x4f8] sm:$0xff]
  %v6954 = vld [vmem:[%s35 + $0x500] sm:$0xff]
  %v6955 = vld [vmem:[%s35 + $0x508] sm:$0xff]
  %v6956 = vld [vmem:[%s35 + $0x510] sm:$0xff]
  %v6957 = vld [vmem:[%s35 + $0x518] sm:$0xff]
  %v6958 = vld [vmem:[%s35 + $0x520] sm:$0xff]
  %v6959 = vld [vmem:[%s35 + $0x528] sm:$0xff]
  %v6960 = vld [vmem:[%s35 + $0x530] sm:$0xff]
  %v6961 = vld [vmem:[%s35 + $0x538] sm:$0xff]
  %v6962 = vld [vmem:[%s35 + $0x540] sm:$0xff]
  %v6963 = vld [vmem:[%s35 + $0x548] sm:$0xff]
  %v6964 = vld [vmem:[%s35 + $0x550] sm:$0xff]
  %v6965 = vld [vmem:[%s35 + $0x558] sm:$0xff]
  %v6966 = vld [vmem:[%s35 + $0x560] sm:$0xff]
  %v6967 = vld [vmem:[%s35 + $0x568] sm:$0xff]
  %v6968 = vld [vmem:[%s35 + $0x570] sm:$0xff]
  %v6969 = vld [vmem:[%s35 + $0x578] sm:$0xff]
  %v6970 = vld [vmem:[%s35 + $0x580] sm:$0xff]
  %v6971 = vld [vmem:[%s35 + $0x588] sm:$0xff]
  %v6972 = vld [vmem:[%s35 + $0x590] sm:$0xff]
  %v6973 = vld [vmem:[%s35 + $0x598] sm:$0xff]
  %v6974 = vld [vmem:[%s35 + $0x5a0] sm:$0xff]
  %v6975 = vld [vmem:[%s35 + $0x5a8] sm:$0xff]
  %v6976 = vld [vmem:[%s35 + $0x5b0] sm:$0xff]
  %v6977 = vld [vmem:[%s35 + $0x5b8] sm:$0xff]
  %v6978 = vld [vmem:[%s35 + $0x5c0] sm:$0xff]
  %v6979 = vld [vmem:[%s35 + $0x5c8] sm:$0xff]
  %v6980 = vld [vmem:[%s35 + $0x5d0] sm:$0xff]
  %v6981 = vld [vmem:[%s35 + $0x5d8] sm:$0xff]
  %v6982 = vld [vmem:[%s35 + $0x5e0] sm:$0xff]
  %v6983 = vld [vmem:[%s35 + $0x5e8] sm:$0xff]
  %v6984 = vld [vmem:[%s35 + $0x5f0] sm:$0xff]
  %v6985 = vld [vmem:[%s35 + $0x5f8] sm:$0xff]
  %v6986 = vld [vmem:[%s35 + $0x600] sm:$0xff]
  %v6987 = vld [vmem:[%s35 + $0x608] sm:$0xff]
  %v6988 = vld [vmem:[%s35 + $0x610] sm:$0xff]
  %v6989 = vld [vmem:[%s35 + $0x618] sm:$0xff]
  %v6990 = vld [vmem:[%s35 + $0x620] sm:$0xff]
  %v6991 = vld [vmem:[%s35 + $0x628] sm:$0xff]
  %v6992 = vld [vmem:[%s35 + $0x630] sm:$0xff]
  %v6993 = vld [vmem:[%s35 + $0x638] sm:$0xff]
  %v6994 = vld [vmem:[%s35 + $0x640] sm:$0xff]
  %v6995 = vld [vmem:[%s35 + $0x648] sm:$0xff]
  %v6996 = vld [vmem:[%s35 + $0x650] sm:$0xff]
  %v6997 = vld [vmem:[%s35 + $0x658] sm:$0xff]
  %v6998 = vld [vmem:[%s35 + $0x660] sm:$0xff]
  %v6999 = vld [vmem:[%s35 + $0x668] sm:$0xff]
  %v7000 = vld [vmem:[%s35 + $0x670] sm:$0xff]
  %v7001 = vld [vmem:[%s35 + $0x678] sm:$0xff]
  %v7002 = vld [vmem:[%s35 + $0x680] sm:$0xff]
  %v7003 = vld [vmem:[%s35 + $0x688] sm:$0xff]
  %v7004 = vld [vmem:[%s35 + $0x690] sm:$0xff]
  %v7005 = vld [vmem:[%s35 + $0x698] sm:$0xff]
  %v7006 = vld [vmem:[%s35 + $0x6a0] sm:$0xff]
  %v7007 = vld [vmem:[%s35 + $0x6a8] sm:$0xff]
  %v7008 = vld [vmem:[%s35 + $0x6b0] sm:$0xff]
  %v7009 = vld [vmem:[%s35 + $0x6b8] sm:$0xff]
  %v7010 = vld [vmem:[%s35 + $0x6c0] sm:$0xff]
  %v7011 = vld [vmem:[%s35 + $0x6c8] sm:$0xff]
  %v7012 = vld [vmem:[%s35 + $0x6d0] sm:$0xff]
  %v7013 = vld [vmem:[%s35 + $0x6d8] sm:$0xff]
  %v7014 = vld [vmem:[%s35 + $0x6e0] sm:$0xff]
  %v7015 = vld [vmem:[%s35 + $0x6e8] sm:$0xff]
  %v7016 = vld [vmem:[%s35 + $0x6f0] sm:$0xff]
  %v7017 = vld [vmem:[%s35 + $0x6f8] sm:$0xff]
  %v7018 = vld [vmem:[%s35 + $0x700] sm:$0xff]
  %v7019 = vld [vmem:[%s35 + $0x708] sm:$0xff]
  %v7020 = vld [vmem:[%s35 + $0x710] sm:$0xff]
  %v7021 = vld [vmem:[%s35 + $0x718] sm:$0xff]
  %v7022 = vld [vmem:[%s35 + $0x720] sm:$0xff]
  %v7023 = vld [vmem:[%s35 + $0x728] sm:$0xff]
  %v7024 = vld [vmem:[%s35 + $0x730] sm:$0xff]
  %v7025 = vld [vmem:[%s35 + $0x738] sm:$0xff]
  %v7026 = vld [vmem:[%s35 + $0x740] sm:$0xff]
  %v7027 = vld [vmem:[%s35 + $0x748] sm:$0xff]
  %v7028 = vld [vmem:[%s35 + $0x750] sm:$0xff]
  %v7029 = vld [vmem:[%s35 + $0x758] sm:$0xff]
  %v7030 = vld [vmem:[%s35 + $0x760] sm:$0xff]
  %v7031 = vld [vmem:[%s35 + $0x768] sm:$0xff]
  %v7032 = vld [vmem:[%s35 + $0x770] sm:$0xff]
  %v7033 = vld [vmem:[%s35 + $0x778] sm:$0xff]
  %v7034 = vld [vmem:[%s35 + $0x780] sm:$0xff]
  %v7035 = vld [vmem:[%s35 + $0x788] sm:$0xff]
  %v7036 = vld [vmem:[%s35 + $0x790] sm:$0xff]
  %v7037 = vld [vmem:[%s35 + $0x798] sm:$0xff]
  %v7038 = vld [vmem:[%s35 + $0x7a0] sm:$0xff]
  %v7039 = vld [vmem:[%s35 + $0x7a8] sm:$0xff]
  %v7040 = vld [vmem:[%s35 + $0x7b0] sm:$0xff]
  %v7041 = vld [vmem:[%s35 + $0x7b8] sm:$0xff]
  %v7042 = vld [vmem:[%s35 + $0x7c0] sm:$0xff]
  %v7043 = vld [vmem:[%s35 + $0x7c8] sm:$0xff]
  %v7044 = vld [vmem:[%s35 + $0x7d0] sm:$0xff]
  %v7045 = vld [vmem:[%s35 + $0x7d8] sm:$0xff]
  %v7046 = vld [vmem:[%s35 + $0x7e0] sm:$0xff]
  %v7047 = vld [vmem:[%s35 + $0x7e8] sm:$0xff]
  %v7048 = vld [vmem:[%s35 + $0x7f0] sm:$0xff]
  %v7049 = vld [vmem:[%s35 + $0x7f8] sm:$0xff]
  %v7050 = vld [vmem:[%s35 + $0x800] sm:$0xff]
  %v7051 = vld [vmem:[%s35 + $0x808] sm:$0xff]
  %v7052 = vld [vmem:[%s35 + $0x810] sm:$0xff]
  %v7053 = vld [vmem:[%s35 + $0x818] sm:$0xff]
  %v7054 = vld [vmem:[%s35 + $0x820] sm:$0xff]
  %v7055 = vld [vmem:[%s35 + $0x828] sm:$0xff]
  %v7056 = vld [vmem:[%s35 + $0x830] sm:$0xff]
  %v7057 = vld [vmem:[%s35 + $0x838] sm:$0xff]
  %v7058 = vld [vmem:[%s35 + $0x840] sm:$0xff]
  %v7059 = vld [vmem:[%s35 + $0x848] sm:$0xff]
  %v7060 = vld [vmem:[%s35 + $0x850] sm:$0xff]
  %v7061 = vld [vmem:[%s35 + $0x858] sm:$0xff]
  %v7062 = vld [vmem:[%s35 + $0x860] sm:$0xff]
  %v7063 = vld [vmem:[%s35 + $0x868] sm:$0xff]
  %v7064 = vld [vmem:[%s35 + $0x870] sm:$0xff]
  %v7065 = vld [vmem:[%s35 + $0x878] sm:$0xff]
  %v7066 = vld [vmem:[%s35 + $0x880] sm:$0xff]
  %v7067 = vld [vmem:[%s35 + $0x888] sm:$0xff]
  %v7068 = vld [vmem:[%s35 + $0x890] sm:$0xff]
  %v7069 = vld [vmem:[%s35 + $0x898] sm:$0xff]
  %v7070 = vld [vmem:[%s35 + $0x8a0] sm:$0xff]
  %v7071 = vld [vmem:[%s35 + $0x8a8] sm:$0xff]
  %v7072 = vld [vmem:[%s35 + $0x8b0] sm:$0xff]
  %v7073 = vld [vmem:[%s35 + $0x8b8] sm:$0xff]
  %v7074 = vld [vmem:[%s35 + $0x8c0] sm:$0xff]
  %v7075 = vld [vmem:[%s35 + $0x8c8] sm:$0xff]
  %v7076 = vld [vmem:[%s35 + $0x8d0] sm:$0xff]
  %v7077 = vld [vmem:[%s35 + $0x8d8] sm:$0xff]
  %v7078 = vld [vmem:[%s35 + $0x8e0] sm:$0xff]
  %v7079 = vld [vmem:[%s35 + $0x8e8] sm:$0xff]
  %v7080 = vld [vmem:[%s35 + $0x8f0] sm:$0xff]
  %v7081 = vld [vmem:[%s35 + $0x8f8] sm:$0xff]
  %v7082 = vld [vmem:[%s35 + $0x900] sm:$0xff]
  %v7083 = vld [vmem:[%s35 + $0x908] sm:$0xff]
  %v7084 = vld [vmem:[%s35 + $0x910] sm:$0xff]
  %v7085 = vld [vmem:[%s35 + $0x918] sm:$0xff]
  %v7086 = vld [vmem:[%s35 + $0x920] sm:$0xff]
  %v7087 = vld [vmem:[%s35 + $0x928] sm:$0xff]
  %v7088 = vld [vmem:[%s35 + $0x930] sm:$0xff]
  %v7089 = vld [vmem:[%s35 + $0x938] sm:$0xff]
  %v7090 = vld [vmem:[%s35 + $0x940] sm:$0xff]
  %v7091 = vld [vmem:[%s35 + $0x948] sm:$0xff]
  %v7092 = vld [vmem:[%s35 + $0x950] sm:$0xff]
  %v7093 = vld [vmem:[%s35 + $0x958] sm:$0xff]
  %v7094 = vld [vmem:[%s35 + $0x960] sm:$0xff]
  %v7095 = vld [vmem:[%s35 + $0x968] sm:$0xff]
  %v7096 = vld [vmem:[%s35 + $0x970] sm:$0xff]
  %v7097 = vld [vmem:[%s35 + $0x978] sm:$0xff]
  %v7098 = vld [vmem:[%s35 + $0x980] sm:$0xff]
  %v7099 = vld [vmem:[%s35 + $0x988] sm:$0xff]
  %v7100 = vld [vmem:[%s35 + $0x990] sm:$0xff]
  %v7101 = vld [vmem:[%s35 + $0x998] sm:$0xff]
  %v7102 = vld [vmem:[%s35 + $0x9a0] sm:$0xff]
  %v7103 = vld [vmem:[%s35 + $0x9a8] sm:$0xff]
  %v7104 = vld [vmem:[%s35 + $0x9b0] sm:$0xff]
  %v7105 = vld [vmem:[%s35 + $0x9b8] sm:$0xff]
  %v7106 = vld [vmem:[%s35 + $0x9c0] sm:$0xff]
  %v7107 = vld [vmem:[%s35 + $0x9c8] sm:$0xff]
  %v7108 = vld [vmem:[%s35 + $0x9d0] sm:$0xff]
  %v7109 = vld [vmem:[%s35 + $0x9d8] sm:$0xff]
  %v7110 = vld [vmem:[%s35 + $0x9e0] sm:$0xff]
  %v7111 = vld [vmem:[%s35 + $0x9e8] sm:$0xff]
  %v7112 = vld [vmem:[%s35 + $0x9f0] sm:$0xff]
  %v7113 = vld [vmem:[%s35 + $0x9f8] sm:$0xff]
  %v7114 = vld [vmem:[%s35 + $0xa00] sm:$0xff]
  %v7115 = vld [vmem:[%s35 + $0xa08] sm:$0xff]
  %v7116 = vld [vmem:[%s35 + $0xa10] sm:$0xff]
  %v7117 = vld [vmem:[%s35 + $0xa18] sm:$0xff]
  %v7118 = vld [vmem:[%s35 + $0xa20] sm:$0xff]
  %v7119 = vld [vmem:[%s35 + $0xa28] sm:$0xff]
  %v7120 = vld [vmem:[%s35 + $0xa30] sm:$0xff]
  %v7121 = vld [vmem:[%s35 + $0xa38] sm:$0xff]
  %v7122 = vld [vmem:[%s35 + $0xa40] sm:$0xff]
  %v7123 = vld [vmem:[%s35 + $0xa48] sm:$0xff]
  %v7124 = vld [vmem:[%s35 + $0xa50] sm:$0xff]
  %v7125 = vld [vmem:[%s35 + $0xa58] sm:$0xff]
  %v7126 = vld [vmem:[%s35 + $0xa60] sm:$0xff]
  %v7127 = vld [vmem:[%s35 + $0xa68] sm:$0xff]
  %v7128 = vld [vmem:[%s35 + $0xa70] sm:$0xff]
  %v7129 = vld [vmem:[%s35 + $0xa78] sm:$0xff]
  %v7130 = vld [vmem:[%s35 + $0xa80] sm:$0xff]
  %v7131 = vld [vmem:[%s35 + $0xa88] sm:$0xff]
  %v7132 = vld [vmem:[%s35 + $0xa90] sm:$0xff]
  %v7133 = vld [vmem:[%s35 + $0xa98] sm:$0xff]
  %v7134 = vld [vmem:[%s35 + $0xaa0] sm:$0xff]
  %v7135 = vld [vmem:[%s35 + $0xaa8] sm:$0xff]
  %v7136 = vld [vmem:[%s35 + $0xab0] sm:$0xff]
  %v7137 = vld [vmem:[%s35 + $0xab8] sm:$0xff]
  %v7138 = vld [vmem:[%s35 + $0xac0] sm:$0xff]
  %v7139 = vld [vmem:[%s35 + $0xac8] sm:$0xff]
  %v7140 = vld [vmem:[%s35 + $0xad0] sm:$0xff]
  %v7141 = vld [vmem:[%s35 + $0xad8] sm:$0xff]
  %v7142 = vld [vmem:[%s35 + $0xae0] sm:$0xff]
  %v7143 = vld [vmem:[%s35 + $0xae8] sm:$0xff]
  %v7144 = vld [vmem:[%s35 + $0xaf0] sm:$0xff]
  %v7145 = vld [vmem:[%s35 + $0xaf8] sm:$0xff]
  %v7146 = vld [vmem:[%s35 + $0xb00] sm:$0xff]
  %v7147 = vld [vmem:[%s35 + $0xb08] sm:$0xff]
  %v7148 = vld [vmem:[%s35 + $0xb10] sm:$0xff]
  %v7149 = vld [vmem:[%s35 + $0xb18] sm:$0xff]
  %v7150 = vld [vmem:[%s35 + $0xb20] sm:$0xff]
  %v7151 = vld [vmem:[%s35 + $0xb28] sm:$0xff]
  %v7152 = vld [vmem:[%s35 + $0xb30] sm:$0xff]
  %v7153 = vld [vmem:[%s35 + $0xb38] sm:$0xff]
  %v7154 = vld [vmem:[%s35 + $0xb40] sm:$0xff]
  %v7155 = vld [vmem:[%s35 + $0xb48] sm:$0xff]
  %v7156 = vld [vmem:[%s35 + $0xb50] sm:$0xff]
  %v7157 = vld [vmem:[%s35 + $0xb58] sm:$0xff]
  %v7158 = vld [vmem:[%s35 + $0xb60] sm:$0xff]
  %v7159 = vld [vmem:[%s35 + $0xb68] sm:$0xff]
  %v7160 = vld [vmem:[%s35 + $0xb70] sm:$0xff]
  %v7161 = vld [vmem:[%s35 + $0xb78] sm:$0xff]
  %v7162 = vld [vmem:[%s35 + $0xb80] sm:$0xff]
  %v7163 = vld [vmem:[%s35 + $0xb88] sm:$0xff]
  %v7164 = vld [vmem:[%s35 + $0xb90] sm:$0xff]
  %v7165 = vld [vmem:[%s35 + $0xb98] sm:$0xff]
  %v7166 = vld [vmem:[%s35 + $0xba0] sm:$0xff]
  %v7167 = vld [vmem:[%s35 + $0xba8] sm:$0xff]
  %v7168 = vld [vmem:[%s35 + $0xbb0] sm:$0xff]
  %v7169 = vld [vmem:[%s35 + $0xbb8] sm:$0xff]
  %v7170 = vld [vmem:[%s35 + $0xbc0] sm:$0xff]
  %v7171 = vld [vmem:[%s35 + $0xbc8] sm:$0xff]
  %v7172 = vld [vmem:[%s35 + $0xbd0] sm:$0xff]
  %v7173 = vld [vmem:[%s35 + $0xbd8] sm:$0xff]
  %v7174 = vld [vmem:[%s35 + $0xbe0] sm:$0xff]
  %v7175 = vld [vmem:[%s35 + $0xbe8] sm:$0xff]
  %v7176 = vld [vmem:[%s35 + $0xbf0] sm:$0xff]
  %v7177 = vld [vmem:[%s35 + $0xbf8] sm:$0xff]
  %v7178 = vpack.c.bf16 %v6790, %v6786
  %v7179 = vpack.c.bf16 %v6791, %v6787
  %v7180 = vpack.c.bf16 %v6792, %v6788
  %v7181 = vpack.c.bf16 %v6793, %v6789
  %v7182 = vld [vmem:[%s37] sm:$0xff]
  %v7183 = vld [vmem:[%s37 + $0x8] sm:$0xf]
  %v7186 = vlaneseq
  %v7187 = vshrl.u32 %v7186, 7
  %v7188 = vsub.s32 0, %v7187
  %v7189 = vrot.slane %v7182, %v7188
  %v7190 = vlaneseq
  %v7191 = vshrl.u32 %v7190, 7
  %v7192 = vsub.s32 1, %v7191
  %v7193 = vrot.slane %v7182, %v7192
  %v7194 = vlaneseq
  %v7195 = vshrl.u32 %v7194, 7
  %v7196 = vsub.s32 2, %v7195
  %v7197 = vrot.slane %v7182, %v7196
  %v7198 = vlaneseq
  %v7199 = vshrl.u32 %v7198, 7
  %v7200 = vsub.s32 3, %v7199
  %v7201 = vrot.slane %v7182, %v7200
  %v7202 = vlaneseq
  %v7203 = vshrl.u32 %v7202, 7
  %v7204 = vsub.s32 4, %v7203
  %v7205 = vrot.slane %v7182, %v7204
  %v7206 = vlaneseq
  %v7207 = vshrl.u32 %v7206, 7
  %v7208 = vsub.s32 5, %v7207
  %v7209 = vrot.slane %v7182, %v7208
  %v7210 = vlaneseq
  %v7211 = vshrl.u32 %v7210, 7
  %v7212 = vsub.s32 6, %v7211
  %v7213 = vrot.slane %v7182, %v7212
  %v7214 = vlaneseq
  %v7215 = vshrl.u32 %v7214, 7
  %v7216 = vsub.s32 7, %v7215
  %v7217 = vrot.slane %v7182, %v7216
  %v7218 = vlaneseq
  %v7219 = vshrl.u32 %v7218, 7
  %v7220 = vsub.s32 0, %v7219
  %v7221 = vrot.slane %v7183, %v7220
  %v7222 = vlaneseq
  %v7223 = vshrl.u32 %v7222, 7
  %v7224 = vsub.s32 1, %v7223
  %v7225 = vrot.slane %v7183, %v7224
  %v7226 = vlaneseq
  %v7227 = vshrl.u32 %v7226, 7
  %v7228 = vsub.s32 2, %v7227
  %v7229 = vrot.slane %v7183, %v7228
  %v7230 = vlaneseq
  %v7231 = vshrl.u32 %v7230, 7
  %v7232 = vsub.s32 3, %v7231
  %v7233 = vrot.slane %v7183, %v7232
  %v7630 = vunpack.c.l.b16 %v6794
  %v7631 = vunpack.c.h.b16 %v6794
  %v7632 = vunpack.c.l.b16 %v6795
  %v7633 = vunpack.c.h.b16 %v6795
  %v7634 = vunpack.c.l.b16 %v6796
  %v7635 = vunpack.c.h.b16 %v6796
  %v7636 = vunpack.c.l.b16 %v6797
  %v7637 = vunpack.c.h.b16 %v6797
  %v7638 = vunpack.c.l.b16 %v6798
  %v7639 = vunpack.c.h.b16 %v6798
  %v7640 = vunpack.c.l.b16 %v6799
  %v7641 = vunpack.c.h.b16 %v6799
  %v7642 = vunpack.c.l.b16 %v6800
  %v7643 = vunpack.c.h.b16 %v6800
  %v7644 = vunpack.c.l.b16 %v6801
  %v7645 = vunpack.c.h.b16 %v6801
  %v7646 = vunpack.c.l.b16 %v6802
  %v7647 = vunpack.c.h.b16 %v6802
  %v7648 = vunpack.c.l.b16 %v6803
  %v7649 = vunpack.c.h.b16 %v6803
  %v7650 = vunpack.c.l.b16 %v6804
  %v7651 = vunpack.c.h.b16 %v6804
  %v7652 = vunpack.c.l.b16 %v6805
  %v7653 = vunpack.c.h.b16 %v6805
  %v7654 = vunpack.c.l.b16 %v6806
  %v7655 = vunpack.c.h.b16 %v6806
  %v7656 = vunpack.c.l.b16 %v6807
  %v7657 = vunpack.c.h.b16 %v6807
  %v7658 = vunpack.c.l.b16 %v6808
  %v7659 = vunpack.c.h.b16 %v6808
  %v7660 = vunpack.c.l.b16 %v6809
  %v7661 = vunpack.c.h.b16 %v6809
  %v7662 = vunpack.c.l.b16 %v6810
  %v7663 = vunpack.c.h.b16 %v6810
  %v7664 = vunpack.c.l.b16 %v6811
  %v7665 = vunpack.c.h.b16 %v6811
  %v7666 = vunpack.c.l.b16 %v6812
  %v7667 = vunpack.c.h.b16 %v6812
  %v7668 = vunpack.c.l.b16 %v6813
  %v7669 = vunpack.c.h.b16 %v6813
  %v7670 = vunpack.c.l.b16 %v6814
  %v7671 = vunpack.c.h.b16 %v6814
  %v7672 = vunpack.c.l.b16 %v6815
  %v7673 = vunpack.c.h.b16 %v6815
  %v7674 = vunpack.c.l.b16 %v6816
  %v7675 = vunpack.c.h.b16 %v6816
  %v7676 = vunpack.c.l.b16 %v6817
  %v7677 = vunpack.c.h.b16 %v6817
  %v7678 = vunpack.c.l.b16 %v6818
  %v7679 = vunpack.c.h.b16 %v6818
  %v7680 = vunpack.c.l.b16 %v6819
  %v7681 = vunpack.c.h.b16 %v6819
  %v7682 = vunpack.c.l.b16 %v6820
  %v7683 = vunpack.c.h.b16 %v6820
  %v7684 = vunpack.c.l.b16 %v6821
  %v7685 = vunpack.c.h.b16 %v6821
  %v7686 = vunpack.c.l.b16 %v6822
  %v7687 = vunpack.c.h.b16 %v6822
  %v7688 = vunpack.c.l.b16 %v6823
  %v7689 = vunpack.c.h.b16 %v6823
  %v7690 = vunpack.c.l.b16 %v6824
  %v7691 = vunpack.c.h.b16 %v6824
  %v7692 = vunpack.c.l.b16 %v6825
  %v7693 = vunpack.c.h.b16 %v6825
  %v7694 = vunpack.c.l.b16 %v6826
  %v7695 = vunpack.c.h.b16 %v6826
  %v7696 = vunpack.c.l.b16 %v6827
  %v7697 = vunpack.c.h.b16 %v6827
  %v7698 = vunpack.c.l.b16 %v6828
  %v7699 = vunpack.c.h.b16 %v6828
  %v7700 = vunpack.c.l.b16 %v6829
  %v7701 = vunpack.c.h.b16 %v6829
  %v7702 = vunpack.c.l.b16 %v6830
  %v7703 = vunpack.c.h.b16 %v6830
  %v7704 = vunpack.c.l.b16 %v6831
  %v7705 = vunpack.c.h.b16 %v6831
  %v7706 = vunpack.c.l.b16 %v6832
  %v7707 = vunpack.c.h.b16 %v6832
  %v7708 = vunpack.c.l.b16 %v6833
  %v7709 = vunpack.c.h.b16 %v6833
  %v7710 = vunpack.c.l.b16 %v6834
  %v7711 = vunpack.c.h.b16 %v6834
  %v7712 = vunpack.c.l.b16 %v6835
  %v7713 = vunpack.c.h.b16 %v6835
  %v7714 = vunpack.c.l.b16 %v6836
  %v7715 = vunpack.c.h.b16 %v6836
  %v7716 = vunpack.c.l.b16 %v6837
  %v7717 = vunpack.c.h.b16 %v6837
  %v7718 = vunpack.c.l.b16 %v6838
  %v7719 = vunpack.c.h.b16 %v6838
  %v7720 = vunpack.c.l.b16 %v6839
  %v7721 = vunpack.c.h.b16 %v6839
  %v7722 = vunpack.c.l.b16 %v6840
  %v7723 = vunpack.c.h.b16 %v6840
  %v7724 = vunpack.c.l.b16 %v6841
  %v7725 = vunpack.c.h.b16 %v6841
  %v7726 = vunpack.c.l.b16 %v6842
  %v7727 = vunpack.c.h.b16 %v6842
  %v7728 = vunpack.c.l.b16 %v6843
  %v7729 = vunpack.c.h.b16 %v6843
  %v7730 = vunpack.c.l.b16 %v6844
  %v7731 = vunpack.c.h.b16 %v6844
  %v7732 = vunpack.c.l.b16 %v6845
  %v7733 = vunpack.c.h.b16 %v6845
  %v7734 = vunpack.c.l.b16 %v6846
  %v7735 = vunpack.c.h.b16 %v6846
  %v7736 = vunpack.c.l.b16 %v6847
  %v7737 = vunpack.c.h.b16 %v6847
  %v7738 = vunpack.c.l.b16 %v6848
  %v7739 = vunpack.c.h.b16 %v6848
  %v7740 = vunpack.c.l.b16 %v6849
  %v7741 = vunpack.c.h.b16 %v6849
  %v7742 = vunpack.c.l.b16 %v6850
  %v7743 = vunpack.c.h.b16 %v6850
  %v7744 = vunpack.c.l.b16 %v6851
  %v7745 = vunpack.c.h.b16 %v6851
  %v7746 = vunpack.c.l.b16 %v6852
  %v7747 = vunpack.c.h.b16 %v6852
  %v7748 = vunpack.c.l.b16 %v6853
  %v7749 = vunpack.c.h.b16 %v6853
  %v7750 = vunpack.c.l.b16 %v6854
  %v7751 = vunpack.c.h.b16 %v6854
  %v7752 = vunpack.c.l.b16 %v6855
  %v7753 = vunpack.c.h.b16 %v6855
  %v7754 = vunpack.c.l.b16 %v6856
  %v7755 = vunpack.c.h.b16 %v6856
  %v7756 = vunpack.c.l.b16 %v6857
  %v7757 = vunpack.c.h.b16 %v6857
  %v7758 = vunpack.c.l.b16 %v6858
  %v7759 = vunpack.c.h.b16 %v6858
  %v7760 = vunpack.c.l.b16 %v6859
  %v7761 = vunpack.c.h.b16 %v6859
  %v7762 = vunpack.c.l.b16 %v6860
  %v7763 = vunpack.c.h.b16 %v6860
  %v7764 = vunpack.c.l.b16 %v6861
  %v7765 = vunpack.c.h.b16 %v6861
  %v7766 = vunpack.c.l.b16 %v6862
  %v7767 = vunpack.c.h.b16 %v6862
  %v7768 = vunpack.c.l.b16 %v6863
  %v7769 = vunpack.c.h.b16 %v6863
  %v7770 = vunpack.c.l.b16 %v6864
  %v7771 = vunpack.c.h.b16 %v6864
  %v7772 = vunpack.c.l.b16 %v6865
  %v7773 = vunpack.c.h.b16 %v6865
  %v7774 = vunpack.c.l.b16 %v6866
  %v7775 = vunpack.c.h.b16 %v6866
  %v7776 = vunpack.c.l.b16 %v6867
  %v7777 = vunpack.c.h.b16 %v6867
  %v7778 = vunpack.c.l.b16 %v6868
  %v7779 = vunpack.c.h.b16 %v6868
  %v7780 = vunpack.c.l.b16 %v6869
  %v7781 = vunpack.c.h.b16 %v6869
  %v7782 = vunpack.c.l.b16 %v6870
  %v7783 = vunpack.c.h.b16 %v6870
  %v7784 = vunpack.c.l.b16 %v6871
  %v7785 = vunpack.c.h.b16 %v6871
  %v7786 = vunpack.c.l.b16 %v6872
  %v7787 = vunpack.c.h.b16 %v6872
  %v7788 = vunpack.c.l.b16 %v6873
  %v7789 = vunpack.c.h.b16 %v6873
  %v7790 = vunpack.c.l.b16 %v6874
  %v7791 = vunpack.c.h.b16 %v6874
  %v7792 = vunpack.c.l.b16 %v6875
  %v7793 = vunpack.c.h.b16 %v6875
  %v7794 = vunpack.c.l.b16 %v6876
  %v7795 = vunpack.c.h.b16 %v6876
  %v7796 = vunpack.c.l.b16 %v6877
  %v7797 = vunpack.c.h.b16 %v6877
  %v7798 = vunpack.c.l.b16 %v6878
  %v7799 = vunpack.c.h.b16 %v6878
  %v7800 = vunpack.c.l.b16 %v6879
  %v7801 = vunpack.c.h.b16 %v6879
  %v7802 = vunpack.c.l.b16 %v6880
  %v7803 = vunpack.c.h.b16 %v6880
  %v7804 = vunpack.c.l.b16 %v6881
  %v7805 = vunpack.c.h.b16 %v6881
  %v7806 = vunpack.c.l.b16 %v6882
  %v7807 = vunpack.c.h.b16 %v6882
  %v7808 = vunpack.c.l.b16 %v6883
  %v7809 = vunpack.c.h.b16 %v6883
  %v7810 = vunpack.c.l.b16 %v6884
  %v7811 = vunpack.c.h.b16 %v6884
  %v7812 = vunpack.c.l.b16 %v6885
  %v7813 = vunpack.c.h.b16 %v6885
  %v7814 = vunpack.c.l.b16 %v6886
  %v7815 = vunpack.c.h.b16 %v6886
  %v7816 = vunpack.c.l.b16 %v6887
  %v7817 = vunpack.c.h.b16 %v6887
  %v7818 = vunpack.c.l.b16 %v6888
  %v7819 = vunpack.c.h.b16 %v6888
  %v7820 = vunpack.c.l.b16 %v6889
  %v7821 = vunpack.c.h.b16 %v6889
  %v7822 = vunpack.c.l.b16 %v6890
  %v7823 = vunpack.c.h.b16 %v6890
  %v7824 = vunpack.c.l.b16 %v6891
  %v7825 = vunpack.c.h.b16 %v6891
  %v7826 = vunpack.c.l.b16 %v6892
  %v7827 = vunpack.c.h.b16 %v6892
  %v7828 = vunpack.c.l.b16 %v6893
  %v7829 = vunpack.c.h.b16 %v6893
  %v7830 = vunpack.c.l.b16 %v6894
  %v7831 = vunpack.c.h.b16 %v6894
  %v7832 = vunpack.c.l.b16 %v6895
  %v7833 = vunpack.c.h.b16 %v6895
  %v7834 = vunpack.c.l.b16 %v6896
  %v7835 = vunpack.c.h.b16 %v6896
  %v7836 = vunpack.c.l.b16 %v6897
  %v7837 = vunpack.c.h.b16 %v6897
  %v7838 = vunpack.c.l.b16 %v6898
  %v7839 = vunpack.c.h.b16 %v6898
  %v7840 = vunpack.c.l.b16 %v6899
  %v7841 = vunpack.c.h.b16 %v6899
  %v7842 = vunpack.c.l.b16 %v6900
  %v7843 = vunpack.c.h.b16 %v6900
  %v7844 = vunpack.c.l.b16 %v6901
  %v7845 = vunpack.c.h.b16 %v6901
  %v7846 = vunpack.c.l.b16 %v6902
  %v7847 = vunpack.c.h.b16 %v6902
  %v7848 = vunpack.c.l.b16 %v6903
  %v7849 = vunpack.c.h.b16 %v6903
  %v7850 = vunpack.c.l.b16 %v6904
  %v7851 = vunpack.c.h.b16 %v6904
  %v7852 = vunpack.c.l.b16 %v6905
  %v7853 = vunpack.c.h.b16 %v6905
  %v7854 = vunpack.c.l.b16 %v6906
  %v7855 = vunpack.c.h.b16 %v6906
  %v7856 = vunpack.c.l.b16 %v6907
  %v7857 = vunpack.c.h.b16 %v6907
  %v7858 = vunpack.c.l.b16 %v6908
  %v7859 = vunpack.c.h.b16 %v6908
  %v7860 = vunpack.c.l.b16 %v6909
  %v7861 = vunpack.c.h.b16 %v6909
  %v7862 = vunpack.c.l.b16 %v6910
  %v7863 = vunpack.c.h.b16 %v6910
  %v7864 = vunpack.c.l.b16 %v6911
  %v7865 = vunpack.c.h.b16 %v6911
  %v7866 = vunpack.c.l.b16 %v6912
  %v7867 = vunpack.c.h.b16 %v6912
  %v7868 = vunpack.c.l.b16 %v6913
  %v7869 = vunpack.c.h.b16 %v6913
  %v7870 = vunpack.c.l.b16 %v6914
  %v7871 = vunpack.c.h.b16 %v6914
  %v7872 = vunpack.c.l.b16 %v6915
  %v7873 = vunpack.c.h.b16 %v6915
  %v7874 = vunpack.c.l.b16 %v6916
  %v7875 = vunpack.c.h.b16 %v6916
  %v7876 = vunpack.c.l.b16 %v6917
  %v7877 = vunpack.c.h.b16 %v6917
  %v7878 = vunpack.c.l.b16 %v6918
  %v7879 = vunpack.c.h.b16 %v6918
  %v7880 = vunpack.c.l.b16 %v6919
  %v7881 = vunpack.c.h.b16 %v6919
  %v7882 = vunpack.c.l.b16 %v6920
  %v7883 = vunpack.c.h.b16 %v6920
  %v7884 = vunpack.c.l.b16 %v6921
  %v7885 = vunpack.c.h.b16 %v6921
  %v7886 = vunpack.c.l.b16 %v6922
  %v7887 = vunpack.c.h.b16 %v6922
  %v7888 = vunpack.c.l.b16 %v6923
  %v7889 = vunpack.c.h.b16 %v6923
  %v7890 = vunpack.c.l.b16 %v6924
  %v7891 = vunpack.c.h.b16 %v6924
  %v7892 = vunpack.c.l.b16 %v6925
  %v7893 = vunpack.c.h.b16 %v6925
  %v7894 = vunpack.c.l.b16 %v6926
  %v7895 = vunpack.c.h.b16 %v6926
  %v7896 = vunpack.c.l.b16 %v6927
  %v7897 = vunpack.c.h.b16 %v6927
  %v7898 = vunpack.c.l.b16 %v6928
  %v7899 = vunpack.c.h.b16 %v6928
  %v7900 = vunpack.c.l.b16 %v6929
  %v7901 = vunpack.c.h.b16 %v6929
  %v7902 = vunpack.c.l.b16 %v6930
  %v7903 = vunpack.c.h.b16 %v6930
  %v7904 = vunpack.c.l.b16 %v6931
  %v7905 = vunpack.c.h.b16 %v6931
  %v7906 = vunpack.c.l.b16 %v6932
  %v7907 = vunpack.c.h.b16 %v6932
  %v7908 = vunpack.c.l.b16 %v6933
  %v7909 = vunpack.c.h.b16 %v6933
  %v7910 = vunpack.c.l.b16 %v6934
  %v7911 = vunpack.c.h.b16 %v6934
  %v7912 = vunpack.c.l.b16 %v6935
  %v7913 = vunpack.c.h.b16 %v6935
  %v7914 = vunpack.c.l.b16 %v6936
  %v7915 = vunpack.c.h.b16 %v6936
  %v7916 = vunpack.c.l.b16 %v6937
  %v7917 = vunpack.c.h.b16 %v6937
  %v7918 = vunpack.c.l.b16 %v6938
  %v7919 = vunpack.c.h.b16 %v6938
  %v7920 = vunpack.c.l.b16 %v6939
  %v7921 = vunpack.c.h.b16 %v6939
  %v7922 = vunpack.c.l.b16 %v6940
  %v7923 = vunpack.c.h.b16 %v6940
  %v7924 = vunpack.c.l.b16 %v6941
  %v7925 = vunpack.c.h.b16 %v6941
  %v7926 = vunpack.c.l.b16 %v6942
  %v7927 = vunpack.c.h.b16 %v6942
  %v7928 = vunpack.c.l.b16 %v6943
  %v7929 = vunpack.c.h.b16 %v6943
  %v7930 = vunpack.c.l.b16 %v6944
  %v7931 = vunpack.c.h.b16 %v6944
  %v7932 = vunpack.c.l.b16 %v6945
  %v7933 = vunpack.c.h.b16 %v6945
  %v7934 = vunpack.c.l.b16 %v6946
  %v7935 = vunpack.c.h.b16 %v6946
  %v7936 = vunpack.c.l.b16 %v6947
  %v7937 = vunpack.c.h.b16 %v6947
  %v7938 = vunpack.c.l.b16 %v6948
  %v7939 = vunpack.c.h.b16 %v6948
  %v7940 = vunpack.c.l.b16 %v6949
  %v7941 = vunpack.c.h.b16 %v6949
  %v7942 = vunpack.c.l.b16 %v6950
  %v7943 = vunpack.c.h.b16 %v6950
  %v7944 = vunpack.c.l.b16 %v6951
  %v7945 = vunpack.c.h.b16 %v6951
  %v7946 = vunpack.c.l.b16 %v6952
  %v7947 = vunpack.c.h.b16 %v6952
  %v7948 = vunpack.c.l.b16 %v6953
  %v7949 = vunpack.c.h.b16 %v6953
  %v7950 = vunpack.c.l.b16 %v6954
  %v7951 = vunpack.c.h.b16 %v6954
  %v7952 = vunpack.c.l.b16 %v6955
  %v7953 = vunpack.c.h.b16 %v6955
  %v7954 = vunpack.c.l.b16 %v6956
  %v7955 = vunpack.c.h.b16 %v6956
  %v7956 = vunpack.c.l.b16 %v6957
  %v7957 = vunpack.c.h.b16 %v6957
  %v7958 = vunpack.c.l.b16 %v6958
  %v7959 = vunpack.c.h.b16 %v6958
  %v7960 = vunpack.c.l.b16 %v6959
  %v7961 = vunpack.c.h.b16 %v6959
  %v7962 = vunpack.c.l.b16 %v6960
  %v7963 = vunpack.c.h.b16 %v6960
  %v7964 = vunpack.c.l.b16 %v6961
  %v7965 = vunpack.c.h.b16 %v6961
  %v7966 = vunpack.c.l.b16 %v6962
  %v7967 = vunpack.c.h.b16 %v6962
  %v7968 = vunpack.c.l.b16 %v6963
  %v7969 = vunpack.c.h.b16 %v6963
  %v7970 = vunpack.c.l.b16 %v6964
  %v7971 = vunpack.c.h.b16 %v6964
  %v7972 = vunpack.c.l.b16 %v6965
  %v7973 = vunpack.c.h.b16 %v6965
  %v7974 = vunpack.c.l.b16 %v6966
  %v7975 = vunpack.c.h.b16 %v6966
  %v7976 = vunpack.c.l.b16 %v6967
  %v7977 = vunpack.c.h.b16 %v6967
  %v7978 = vunpack.c.l.b16 %v6968
  %v7979 = vunpack.c.h.b16 %v6968
  %v7980 = vunpack.c.l.b16 %v6969
  %v7981 = vunpack.c.h.b16 %v6969
  %v7982 = vunpack.c.l.b16 %v6970
  %v7983 = vunpack.c.h.b16 %v6970
  %v7984 = vunpack.c.l.b16 %v6971
  %v7985 = vunpack.c.h.b16 %v6971
  %v7986 = vunpack.c.l.b16 %v6972
  %v7987 = vunpack.c.h.b16 %v6972
  %v7988 = vunpack.c.l.b16 %v6973
  %v7989 = vunpack.c.h.b16 %v6973
  %v7990 = vunpack.c.l.b16 %v6974
  %v7991 = vunpack.c.h.b16 %v6974
  %v7992 = vunpack.c.l.b16 %v6975
  %v7993 = vunpack.c.h.b16 %v6975
  %v7994 = vunpack.c.l.b16 %v6976
  %v7995 = vunpack.c.h.b16 %v6976
  %v7996 = vunpack.c.l.b16 %v6977
  %v7997 = vunpack.c.h.b16 %v6977
  %v7998 = vunpack.c.l.b16 %v6978
  %v7999 = vunpack.c.h.b16 %v6978
  %v8000 = vunpack.c.l.b16 %v6979
  %v8001 = vunpack.c.h.b16 %v6979
  %v8002 = vunpack.c.l.b16 %v6980
  %v8003 = vunpack.c.h.b16 %v6980
  %v8004 = vunpack.c.l.b16 %v6981
  %v8005 = vunpack.c.h.b16 %v6981
  %v8006 = vunpack.c.l.b16 %v6982
  %v8007 = vunpack.c.h.b16 %v6982
  %v8008 = vunpack.c.l.b16 %v6983
  %v8009 = vunpack.c.h.b16 %v6983
  %v8010 = vunpack.c.l.b16 %v6984
  %v8011 = vunpack.c.h.b16 %v6984
  %v8012 = vunpack.c.l.b16 %v6985
  %v8013 = vunpack.c.h.b16 %v6985
  %v8014 = vunpack.c.l.b16 %v6986
  %v8015 = vunpack.c.h.b16 %v6986
  %v8016 = vunpack.c.l.b16 %v6987
  %v8017 = vunpack.c.h.b16 %v6987
  %v8018 = vunpack.c.l.b16 %v6988
  %v8019 = vunpack.c.h.b16 %v6988
  %v8020 = vunpack.c.l.b16 %v6989
  %v8021 = vunpack.c.h.b16 %v6989
  %v8022 = vunpack.c.l.b16 %v6990
  %v8023 = vunpack.c.h.b16 %v6990
  %v8024 = vunpack.c.l.b16 %v6991
  %v8025 = vunpack.c.h.b16 %v6991
  %v8026 = vunpack.c.l.b16 %v6992
  %v8027 = vunpack.c.h.b16 %v6992
  %v8028 = vunpack.c.l.b16 %v6993
  %v8029 = vunpack.c.h.b16 %v6993
  %v8030 = vunpack.c.l.b16 %v6994
  %v8031 = vunpack.c.h.b16 %v6994
  %v8032 = vunpack.c.l.b16 %v6995
  %v8033 = vunpack.c.h.b16 %v6995
  %v8034 = vunpack.c.l.b16 %v6996
  %v8035 = vunpack.c.h.b16 %v6996
  %v8036 = vunpack.c.l.b16 %v6997
  %v8037 = vunpack.c.h.b16 %v6997
  %v8038 = vunpack.c.l.b16 %v6998
  %v8039 = vunpack.c.h.b16 %v6998
  %v8040 = vunpack.c.l.b16 %v6999
  %v8041 = vunpack.c.h.b16 %v6999
  %v8042 = vunpack.c.l.b16 %v7000
  %v8043 = vunpack.c.h.b16 %v7000
  %v8044 = vunpack.c.l.b16 %v7001
  %v8045 = vunpack.c.h.b16 %v7001
  %v8046 = vunpack.c.l.b16 %v7002
  %v8047 = vunpack.c.h.b16 %v7002
  %v8048 = vunpack.c.l.b16 %v7003
  %v8049 = vunpack.c.h.b16 %v7003
  %v8050 = vunpack.c.l.b16 %v7004
  %v8051 = vunpack.c.h.b16 %v7004
  %v8052 = vunpack.c.l.b16 %v7005
  %v8053 = vunpack.c.h.b16 %v7005
  %v8054 = vunpack.c.l.b16 %v7006
  %v8055 = vunpack.c.h.b16 %v7006
  %v8056 = vunpack.c.l.b16 %v7007
  %v8057 = vunpack.c.h.b16 %v7007
  %v8058 = vunpack.c.l.b16 %v7008
  %v8059 = vunpack.c.h.b16 %v7008
  %v8060 = vunpack.c.l.b16 %v7009
  %v8061 = vunpack.c.h.b16 %v7009
  %v8062 = vunpack.c.l.b16 %v7010
  %v8063 = vunpack.c.h.b16 %v7010
  %v8064 = vunpack.c.l.b16 %v7011
  %v8065 = vunpack.c.h.b16 %v7011
  %v8066 = vunpack.c.l.b16 %v7012
  %v8067 = vunpack.c.h.b16 %v7012
  %v8068 = vunpack.c.l.b16 %v7013
  %v8069 = vunpack.c.h.b16 %v7013
  %v8070 = vunpack.c.l.b16 %v7014
  %v8071 = vunpack.c.h.b16 %v7014
  %v8072 = vunpack.c.l.b16 %v7015
  %v8073 = vunpack.c.h.b16 %v7015
  %v8074 = vunpack.c.l.b16 %v7016
  %v8075 = vunpack.c.h.b16 %v7016
  %v8076 = vunpack.c.l.b16 %v7017
  %v8077 = vunpack.c.h.b16 %v7017
  %v8078 = vunpack.c.l.b16 %v7018
  %v8079 = vunpack.c.h.b16 %v7018
  %v8080 = vunpack.c.l.b16 %v7019
  %v8081 = vunpack.c.h.b16 %v7019
  %v8082 = vunpack.c.l.b16 %v7020
  %v8083 = vunpack.c.h.b16 %v7020
  %v8084 = vunpack.c.l.b16 %v7021
  %v8085 = vunpack.c.h.b16 %v7021
  %v8086 = vunpack.c.l.b16 %v7022
  %v8087 = vunpack.c.h.b16 %v7022
  %v8088 = vunpack.c.l.b16 %v7023
  %v8089 = vunpack.c.h.b16 %v7023
  %v8090 = vunpack.c.l.b16 %v7024
  %v8091 = vunpack.c.h.b16 %v7024
  %v8092 = vunpack.c.l.b16 %v7025
  %v8093 = vunpack.c.h.b16 %v7025
  %v8094 = vunpack.c.l.b16 %v7026
  %v8095 = vunpack.c.h.b16 %v7026
  %v8096 = vunpack.c.l.b16 %v7027
  %v8097 = vunpack.c.h.b16 %v7027
  %v8098 = vunpack.c.l.b16 %v7028
  %v8099 = vunpack.c.h.b16 %v7028
  %v8100 = vunpack.c.l.b16 %v7029
  %v8101 = vunpack.c.h.b16 %v7029
  %v8102 = vunpack.c.l.b16 %v7030
  %v8103 = vunpack.c.h.b16 %v7030
  %v8104 = vunpack.c.l.b16 %v7031
  %v8105 = vunpack.c.h.b16 %v7031
  %v8106 = vunpack.c.l.b16 %v7032
  %v8107 = vunpack.c.h.b16 %v7032
  %v8108 = vunpack.c.l.b16 %v7033
  %v8109 = vunpack.c.h.b16 %v7033
  %v8110 = vunpack.c.l.b16 %v7034
  %v8111 = vunpack.c.h.b16 %v7034
  %v8112 = vunpack.c.l.b16 %v7035
  %v8113 = vunpack.c.h.b16 %v7035
  %v8114 = vunpack.c.l.b16 %v7036
  %v8115 = vunpack.c.h.b16 %v7036
  %v8116 = vunpack.c.l.b16 %v7037
  %v8117 = vunpack.c.h.b16 %v7037
  %v8118 = vunpack.c.l.b16 %v7038
  %v8119 = vunpack.c.h.b16 %v7038
  %v8120 = vunpack.c.l.b16 %v7039
  %v8121 = vunpack.c.h.b16 %v7039
  %v8122 = vunpack.c.l.b16 %v7040
  %v8123 = vunpack.c.h.b16 %v7040
  %v8124 = vunpack.c.l.b16 %v7041
  %v8125 = vunpack.c.h.b16 %v7041
  %v8126 = vunpack.c.l.b16 %v7042
  %v8127 = vunpack.c.h.b16 %v7042
  %v8128 = vunpack.c.l.b16 %v7043
  %v8129 = vunpack.c.h.b16 %v7043
  %v8130 = vunpack.c.l.b16 %v7044
  %v8131 = vunpack.c.h.b16 %v7044
  %v8132 = vunpack.c.l.b16 %v7045
  %v8133 = vunpack.c.h.b16 %v7045
  %v8134 = vunpack.c.l.b16 %v7046
  %v8135 = vunpack.c.h.b16 %v7046
  %v8136 = vunpack.c.l.b16 %v7047
  %v8137 = vunpack.c.h.b16 %v7047
  %v8138 = vunpack.c.l.b16 %v7048
  %v8139 = vunpack.c.h.b16 %v7048
  %v8140 = vunpack.c.l.b16 %v7049
  %v8141 = vunpack.c.h.b16 %v7049
  %v8142 = vunpack.c.l.b16 %v7050
  %v8143 = vunpack.c.h.b16 %v7050
  %v8144 = vunpack.c.l.b16 %v7051
  %v8145 = vunpack.c.h.b16 %v7051
  %v8146 = vunpack.c.l.b16 %v7052
  %v8147 = vunpack.c.h.b16 %v7052
  %v8148 = vunpack.c.l.b16 %v7053
  %v8149 = vunpack.c.h.b16 %v7053
  %v8150 = vunpack.c.l.b16 %v7054
  %v8151 = vunpack.c.h.b16 %v7054
  %v8152 = vunpack.c.l.b16 %v7055
  %v8153 = vunpack.c.h.b16 %v7055
  %v8154 = vunpack.c.l.b16 %v7056
  %v8155 = vunpack.c.h.b16 %v7056
  %v8156 = vunpack.c.l.b16 %v7057
  %v8157 = vunpack.c.h.b16 %v7057
  %v8158 = vunpack.c.l.b16 %v7058
  %v8159 = vunpack.c.h.b16 %v7058
  %v8160 = vunpack.c.l.b16 %v7059
  %v8161 = vunpack.c.h.b16 %v7059
  %v8162 = vunpack.c.l.b16 %v7060
  %v8163 = vunpack.c.h.b16 %v7060
  %v8164 = vunpack.c.l.b16 %v7061
  %v8165 = vunpack.c.h.b16 %v7061
  %v8166 = vunpack.c.l.b16 %v7062
  %v8167 = vunpack.c.h.b16 %v7062
  %v8168 = vunpack.c.l.b16 %v7063
  %v8169 = vunpack.c.h.b16 %v7063
  %v8170 = vunpack.c.l.b16 %v7064
  %v8171 = vunpack.c.h.b16 %v7064
  %v8172 = vunpack.c.l.b16 %v7065
  %v8173 = vunpack.c.h.b16 %v7065
  %v8174 = vunpack.c.l.b16 %v7066
  %v8175 = vunpack.c.h.b16 %v7066
  %v8176 = vunpack.c.l.b16 %v7067
  %v8177 = vunpack.c.h.b16 %v7067
  %v8178 = vunpack.c.l.b16 %v7068
  %v8179 = vunpack.c.h.b16 %v7068
  %v8180 = vunpack.c.l.b16 %v7069
  %v8181 = vunpack.c.h.b16 %v7069
  %v8182 = vunpack.c.l.b16 %v7070
  %v8183 = vunpack.c.h.b16 %v7070
  %v8184 = vunpack.c.l.b16 %v7071
  %v8185 = vunpack.c.h.b16 %v7071
  %v8186 = vunpack.c.l.b16 %v7072
  %v8187 = vunpack.c.h.b16 %v7072
  %v8188 = vunpack.c.l.b16 %v7073
  %v8189 = vunpack.c.h.b16 %v7073
  %v8190 = vunpack.c.l.b16 %v7074
  %v8191 = vunpack.c.h.b16 %v7074
  %v8192 = vunpack.c.l.b16 %v7075
  %v8193 = vunpack.c.h.b16 %v7075
  %v8194 = vunpack.c.l.b16 %v7076
  %v8195 = vunpack.c.h.b16 %v7076
  %v8196 = vunpack.c.l.b16 %v7077
  %v8197 = vunpack.c.h.b16 %v7077
  %v8198 = vunpack.c.l.b16 %v7078
  %v8199 = vunpack.c.h.b16 %v7078
  %v8200 = vunpack.c.l.b16 %v7079
  %v8201 = vunpack.c.h.b16 %v7079
  %v8202 = vunpack.c.l.b16 %v7080
  %v8203 = vunpack.c.h.b16 %v7080
  %v8204 = vunpack.c.l.b16 %v7081
  %v8205 = vunpack.c.h.b16 %v7081
  %v8206 = vunpack.c.l.b16 %v7082
  %v8207 = vunpack.c.h.b16 %v7082
  %v8208 = vunpack.c.l.b16 %v7083
  %v8209 = vunpack.c.h.b16 %v7083
  %v8210 = vunpack.c.l.b16 %v7084
  %v8211 = vunpack.c.h.b16 %v7084
  %v8212 = vunpack.c.l.b16 %v7085
  %v8213 = vunpack.c.h.b16 %v7085
  %v8214 = vunpack.c.l.b16 %v7086
  %v8215 = vunpack.c.h.b16 %v7086
  %v8216 = vunpack.c.l.b16 %v7087
  %v8217 = vunpack.c.h.b16 %v7087
  %v8218 = vunpack.c.l.b16 %v7088
  %v8219 = vunpack.c.h.b16 %v7088
  %v8220 = vunpack.c.l.b16 %v7089
  %v8221 = vunpack.c.h.b16 %v7089
  %v8222 = vunpack.c.l.b16 %v7090
  %v8223 = vunpack.c.h.b16 %v7090
  %v8224 = vunpack.c.l.b16 %v7091
  %v8225 = vunpack.c.h.b16 %v7091
  %v8226 = vunpack.c.l.b16 %v7092
  %v8227 = vunpack.c.h.b16 %v7092
  %v8228 = vunpack.c.l.b16 %v7093
  %v8229 = vunpack.c.h.b16 %v7093
  %v8230 = vunpack.c.l.b16 %v7094
  %v8231 = vunpack.c.h.b16 %v7094
  %v8232 = vunpack.c.l.b16 %v7095
  %v8233 = vunpack.c.h.b16 %v7095
  %v8234 = vunpack.c.l.b16 %v7096
  %v8235 = vunpack.c.h.b16 %v7096
  %v8236 = vunpack.c.l.b16 %v7097
  %v8237 = vunpack.c.h.b16 %v7097
  %v8238 = vunpack.c.l.b16 %v7098
  %v8239 = vunpack.c.h.b16 %v7098
  %v8240 = vunpack.c.l.b16 %v7099
  %v8241 = vunpack.c.h.b16 %v7099
  %v8242 = vunpack.c.l.b16 %v7100
  %v8243 = vunpack.c.h.b16 %v7100
  %v8244 = vunpack.c.l.b16 %v7101
  %v8245 = vunpack.c.h.b16 %v7101
  %v8246 = vunpack.c.l.b16 %v7102
  %v8247 = vunpack.c.h.b16 %v7102
  %v8248 = vunpack.c.l.b16 %v7103
  %v8249 = vunpack.c.h.b16 %v7103
  %v8250 = vunpack.c.l.b16 %v7104
  %v8251 = vunpack.c.h.b16 %v7104
  %v8252 = vunpack.c.l.b16 %v7105
  %v8253 = vunpack.c.h.b16 %v7105
  %v8254 = vunpack.c.l.b16 %v7106
  %v8255 = vunpack.c.h.b16 %v7106
  %v8256 = vunpack.c.l.b16 %v7107
  %v8257 = vunpack.c.h.b16 %v7107
  %v8258 = vunpack.c.l.b16 %v7108
  %v8259 = vunpack.c.h.b16 %v7108
  %v8260 = vunpack.c.l.b16 %v7109
  %v8261 = vunpack.c.h.b16 %v7109
  %v8262 = vunpack.c.l.b16 %v7110
  %v8263 = vunpack.c.h.b16 %v7110
  %v8264 = vunpack.c.l.b16 %v7111
  %v8265 = vunpack.c.h.b16 %v7111
  %v8266 = vunpack.c.l.b16 %v7112
  %v8267 = vunpack.c.h.b16 %v7112
  %v8268 = vunpack.c.l.b16 %v7113
  %v8269 = vunpack.c.h.b16 %v7113
  %v8270 = vunpack.c.l.b16 %v7114
  %v8271 = vunpack.c.h.b16 %v7114
  %v8272 = vunpack.c.l.b16 %v7115
  %v8273 = vunpack.c.h.b16 %v7115
  %v8274 = vunpack.c.l.b16 %v7116
  %v8275 = vunpack.c.h.b16 %v7116
  %v8276 = vunpack.c.l.b16 %v7117
  %v8277 = vunpack.c.h.b16 %v7117
  %v8278 = vunpack.c.l.b16 %v7118
  %v8279 = vunpack.c.h.b16 %v7118
  %v8280 = vunpack.c.l.b16 %v7119
  %v8281 = vunpack.c.h.b16 %v7119
  %v8282 = vunpack.c.l.b16 %v7120
  %v8283 = vunpack.c.h.b16 %v7120
  %v8284 = vunpack.c.l.b16 %v7121
  %v8285 = vunpack.c.h.b16 %v7121
  %v8286 = vunpack.c.l.b16 %v7122
  %v8287 = vunpack.c.h.b16 %v7122
  %v8288 = vunpack.c.l.b16 %v7123
  %v8289 = vunpack.c.h.b16 %v7123
  %v8290 = vunpack.c.l.b16 %v7124
  %v8291 = vunpack.c.h.b16 %v7124
  %v8292 = vunpack.c.l.b16 %v7125
  %v8293 = vunpack.c.h.b16 %v7125
  %v8294 = vunpack.c.l.b16 %v7126
  %v8295 = vunpack.c.h.b16 %v7126
  %v8296 = vunpack.c.l.b16 %v7127
  %v8297 = vunpack.c.h.b16 %v7127
  %v8298 = vunpack.c.l.b16 %v7128
  %v8299 = vunpack.c.h.b16 %v7128
  %v8300 = vunpack.c.l.b16 %v7129
  %v8301 = vunpack.c.h.b16 %v7129
  %v8302 = vunpack.c.l.b16 %v7130
  %v8303 = vunpack.c.h.b16 %v7130
  %v8304 = vunpack.c.l.b16 %v7131
  %v8305 = vunpack.c.h.b16 %v7131
  %v8306 = vunpack.c.l.b16 %v7132
  %v8307 = vunpack.c.h.b16 %v7132
  %v8308 = vunpack.c.l.b16 %v7133
  %v8309 = vunpack.c.h.b16 %v7133
  %v8310 = vunpack.c.l.b16 %v7134
  %v8311 = vunpack.c.h.b16 %v7134
  %v8312 = vunpack.c.l.b16 %v7135
  %v8313 = vunpack.c.h.b16 %v7135
  %v8314 = vunpack.c.l.b16 %v7136
  %v8315 = vunpack.c.h.b16 %v7136
  %v8316 = vunpack.c.l.b16 %v7137
  %v8317 = vunpack.c.h.b16 %v7137
  %v8318 = vunpack.c.l.b16 %v7138
  %v8319 = vunpack.c.h.b16 %v7138
  %v8320 = vunpack.c.l.b16 %v7139
  %v8321 = vunpack.c.h.b16 %v7139
  %v8322 = vunpack.c.l.b16 %v7140
  %v8323 = vunpack.c.h.b16 %v7140
  %v8324 = vunpack.c.l.b16 %v7141
  %v8325 = vunpack.c.h.b16 %v7141
  %v8326 = vunpack.c.l.b16 %v7142
  %v8327 = vunpack.c.h.b16 %v7142
  %v8328 = vunpack.c.l.b16 %v7143
  %v8329 = vunpack.c.h.b16 %v7143
  %v8330 = vunpack.c.l.b16 %v7144
  %v8331 = vunpack.c.h.b16 %v7144
  %v8332 = vunpack.c.l.b16 %v7145
  %v8333 = vunpack.c.h.b16 %v7145
  %v8334 = vunpack.c.l.b16 %v7146
  %v8335 = vunpack.c.h.b16 %v7146
  %v8336 = vunpack.c.l.b16 %v7147
  %v8337 = vunpack.c.h.b16 %v7147
  %v8338 = vunpack.c.l.b16 %v7148
  %v8339 = vunpack.c.h.b16 %v7148
  %v8340 = vunpack.c.l.b16 %v7149
  %v8341 = vunpack.c.h.b16 %v7149
  %v8342 = vunpack.c.l.b16 %v7150
  %v8343 = vunpack.c.h.b16 %v7150
  %v8344 = vunpack.c.l.b16 %v7151
  %v8345 = vunpack.c.h.b16 %v7151
  %v8346 = vunpack.c.l.b16 %v7152
  %v8347 = vunpack.c.h.b16 %v7152
  %v8348 = vunpack.c.l.b16 %v7153
  %v8349 = vunpack.c.h.b16 %v7153
  %v8350 = vunpack.c.l.b16 %v7154
  %v8351 = vunpack.c.h.b16 %v7154
  %v8352 = vunpack.c.l.b16 %v7155
  %v8353 = vunpack.c.h.b16 %v7155
  %v8354 = vunpack.c.l.b16 %v7156
  %v8355 = vunpack.c.h.b16 %v7156
  %v8356 = vunpack.c.l.b16 %v7157
  %v8357 = vunpack.c.h.b16 %v7157
  %v8358 = vunpack.c.l.b16 %v7158
  %v8359 = vunpack.c.h.b16 %v7158
  %v8360 = vunpack.c.l.b16 %v7159
  %v8361 = vunpack.c.h.b16 %v7159
  %v8362 = vunpack.c.l.b16 %v7160
  %v8363 = vunpack.c.h.b16 %v7160
  %v8364 = vunpack.c.l.b16 %v7161
  %v8365 = vunpack.c.h.b16 %v7161
  %v8366 = vunpack.c.l.b16 %v7162
  %v8367 = vunpack.c.h.b16 %v7162
  %v8368 = vunpack.c.l.b16 %v7163
  %v8369 = vunpack.c.h.b16 %v7163
  %v8370 = vunpack.c.l.b16 %v7164
  %v8371 = vunpack.c.h.b16 %v7164
  %v8372 = vunpack.c.l.b16 %v7165
  %v8373 = vunpack.c.h.b16 %v7165
  %v8374 = vunpack.c.l.b16 %v7166
  %v8375 = vunpack.c.h.b16 %v7166
  %v8376 = vunpack.c.l.b16 %v7167
  %v8377 = vunpack.c.h.b16 %v7167
  %v8378 = vunpack.c.l.b16 %v7168
  %v8379 = vunpack.c.h.b16 %v7168
  %v8380 = vunpack.c.l.b16 %v7169
  %v8381 = vunpack.c.h.b16 %v7169
  %v8382 = vunpack.c.l.b16 %v7170
  %v8383 = vunpack.c.h.b16 %v7170
  %v8384 = vunpack.c.l.b16 %v7171
  %v8385 = vunpack.c.h.b16 %v7171
  %v8386 = vunpack.c.l.b16 %v7172
  %v8387 = vunpack.c.h.b16 %v7172
  %v8388 = vunpack.c.l.b16 %v7173
  %v8389 = vunpack.c.h.b16 %v7173
  %v8390 = vunpack.c.l.b16 %v7174
  %v8391 = vunpack.c.h.b16 %v7174
  %v8392 = vunpack.c.l.b16 %v7175
  %v8393 = vunpack.c.h.b16 %v7175
  %v8394 = vunpack.c.l.b16 %v7176
  %v8395 = vunpack.c.h.b16 %v7176
  %v8396 = vunpack.c.l.b16 %v7177
  %v8397 = vunpack.c.h.b16 %v7177
  %v8398 = vpack.c.b16 %v7642, %v7630
  %v8399 = vpack.c.b16 %v7643, %v7631
  %v8400 = vpack.c.b16 %v7644, %v7632
  %v8401 = vpack.c.b16 %v7645, %v7633
  %v8402 = vpack.c.b16 %v7646, %v7634
  %v8403 = vpack.c.b16 %v7647, %v7635
  %v8404 = vpack.c.b16 %v7648, %v7636
  %v8405 = vpack.c.b16 %v7649, %v7637
  %v8406 = vpack.c.b16 %v7650, %v7638
  %v8407 = vpack.c.b16 %v7651, %v7639
  %v8408 = vpack.c.b16 %v7652, %v7640
  %v8409 = vpack.c.b16 %v7653, %v7641
  %v8410 = vpack.c.b16 %v7666, %v7654
  %v8411 = vpack.c.b16 %v7667, %v7655
  %v8412 = vpack.c.b16 %v7668, %v7656
  %v8413 = vpack.c.b16 %v7669, %v7657
  %v8414 = vpack.c.b16 %v7670, %v7658
  %v8415 = vpack.c.b16 %v7671, %v7659
  %v8416 = vpack.c.b16 %v7672, %v7660
  %v8417 = vpack.c.b16 %v7673, %v7661
  %v8418 = vpack.c.b16 %v7674, %v7662
  %v8419 = vpack.c.b16 %v7675, %v7663
  %v8420 = vpack.c.b16 %v7676, %v7664
  %v8421 = vpack.c.b16 %v7677, %v7665
  %v8422 = vpack.c.b16 %v7690, %v7678
  %v8423 = vpack.c.b16 %v7691, %v7679
  %v8424 = vpack.c.b16 %v7692, %v7680
  %v8425 = vpack.c.b16 %v7693, %v7681
  %v8426 = vpack.c.b16 %v7694, %v7682
  %v8427 = vpack.c.b16 %v7695, %v7683
  %v8428 = vpack.c.b16 %v7696, %v7684
  %v8429 = vpack.c.b16 %v7697, %v7685
  %v8430 = vpack.c.b16 %v7698, %v7686
  %v8431 = vpack.c.b16 %v7699, %v7687
  %v8432 = vpack.c.b16 %v7700, %v7688
  %v8433 = vpack.c.b16 %v7701, %v7689
  %v8434 = vpack.c.b16 %v7714, %v7702
  %v8435 = vpack.c.b16 %v7715, %v7703
  %v8436 = vpack.c.b16 %v7716, %v7704
  %v8437 = vpack.c.b16 %v7717, %v7705
  %v8438 = vpack.c.b16 %v7718, %v7706
  %v8439 = vpack.c.b16 %v7719, %v7707
  %v8440 = vpack.c.b16 %v7720, %v7708
  %v8441 = vpack.c.b16 %v7721, %v7709
  %v8442 = vpack.c.b16 %v7722, %v7710
  %v8443 = vpack.c.b16 %v7723, %v7711
  %v8444 = vpack.c.b16 %v7724, %v7712
  %v8445 = vpack.c.b16 %v7725, %v7713
  %v8446 = vpack.c.b16 %v7738, %v7726
  %v8447 = vpack.c.b16 %v7739, %v7727
  %v8448 = vpack.c.b16 %v7740, %v7728
  %v8449 = vpack.c.b16 %v7741, %v7729
  %v8450 = vpack.c.b16 %v7742, %v7730
  %v8451 = vpack.c.b16 %v7743, %v7731
  %v8452 = vpack.c.b16 %v7744, %v7732
  %v8453 = vpack.c.b16 %v7745, %v7733
  %v8454 = vpack.c.b16 %v7746, %v7734
  %v8455 = vpack.c.b16 %v7747, %v7735
  %v8456 = vpack.c.b16 %v7748, %v7736
  %v8457 = vpack.c.b16 %v7749, %v7737
  %v8458 = vpack.c.b16 %v7762, %v7750
  %v8459 = vpack.c.b16 %v7763, %v7751
  %v8460 = vpack.c.b16 %v7764, %v7752
  %v8461 = vpack.c.b16 %v7765, %v7753
  %v8462 = vpack.c.b16 %v7766, %v7754
  %v8463 = vpack.c.b16 %v7767, %v7755
  %v8464 = vpack.c.b16 %v7768, %v7756
  %v8465 = vpack.c.b16 %v7769, %v7757
  %v8466 = vpack.c.b16 %v7770, %v7758
  %v8467 = vpack.c.b16 %v7771, %v7759
  %v8468 = vpack.c.b16 %v7772, %v7760
  %v8469 = vpack.c.b16 %v7773, %v7761
  %v8470 = vpack.c.b16 %v7786, %v7774
  %v8471 = vpack.c.b16 %v7787, %v7775
  %v8472 = vpack.c.b16 %v7788, %v7776
  %v8473 = vpack.c.b16 %v7789, %v7777
  %v8474 = vpack.c.b16 %v7790, %v7778
  %v8475 = vpack.c.b16 %v7791, %v7779
  %v8476 = vpack.c.b16 %v7792, %v7780
  %v8477 = vpack.c.b16 %v7793, %v7781
  %v8478 = vpack.c.b16 %v7794, %v7782
  %v8479 = vpack.c.b16 %v7795, %v7783
  %v8480 = vpack.c.b16 %v7796, %v7784
  %v8481 = vpack.c.b16 %v7797, %v7785
  %v8482 = vpack.c.b16 %v7810, %v7798
  %v8483 = vpack.c.b16 %v7811, %v7799
  %v8484 = vpack.c.b16 %v7812, %v7800
  %v8485 = vpack.c.b16 %v7813, %v7801
  %v8486 = vpack.c.b16 %v7814, %v7802
  %v8487 = vpack.c.b16 %v7815, %v7803
  %v8488 = vpack.c.b16 %v7816, %v7804
  %v8489 = vpack.c.b16 %v7817, %v7805
  %v8490 = vpack.c.b16 %v7818, %v7806
  %v8491 = vpack.c.b16 %v7819, %v7807
  %v8492 = vpack.c.b16 %v7820, %v7808
  %v8493 = vpack.c.b16 %v7821, %v7809
  %v8494 = vpack.c.b16 %v7834, %v7822
  %v8495 = vpack.c.b16 %v7835, %v7823
  %v8496 = vpack.c.b16 %v7836, %v7824
  %v8497 = vpack.c.b16 %v7837, %v7825
  %v8498 = vpack.c.b16 %v7838, %v7826
  %v8499 = vpack.c.b16 %v7839, %v7827
  %v8500 = vpack.c.b16 %v7840, %v7828
  %v8501 = vpack.c.b16 %v7841, %v7829
  %v8502 = vpack.c.b16 %v7842, %v7830
  %v8503 = vpack.c.b16 %v7843, %v7831
  %v8504 = vpack.c.b16 %v7844, %v7832
  %v8505 = vpack.c.b16 %v7845, %v7833
  %v8506 = vpack.c.b16 %v7858, %v7846
  %v8507 = vpack.c.b16 %v7859, %v7847
  %v8508 = vpack.c.b16 %v7860, %v7848
  %v8509 = vpack.c.b16 %v7861, %v7849
  %v8510 = vpack.c.b16 %v7862, %v7850
  %v8511 = vpack.c.b16 %v7863, %v7851
  %v8512 = vpack.c.b16 %v7864, %v7852
  %v8513 = vpack.c.b16 %v7865, %v7853
  %v8514 = vpack.c.b16 %v7866, %v7854
  %v8515 = vpack.c.b16 %v7867, %v7855
  %v8516 = vpack.c.b16 %v7868, %v7856
  %v8517 = vpack.c.b16 %v7869, %v7857
  %v8518 = vpack.c.b16 %v7882, %v7870
  %v8519 = vpack.c.b16 %v7883, %v7871
  %v8520 = vpack.c.b16 %v7884, %v7872
  %v8521 = vpack.c.b16 %v7885, %v7873
  %v8522 = vpack.c.b16 %v7886, %v7874
  %v8523 = vpack.c.b16 %v7887, %v7875
  %v8524 = vpack.c.b16 %v7888, %v7876
  %v8525 = vpack.c.b16 %v7889, %v7877
  %v8526 = vpack.c.b16 %v7890, %v7878
  %v8527 = vpack.c.b16 %v7891, %v7879
  %v8528 = vpack.c.b16 %v7892, %v7880
  %v8529 = vpack.c.b16 %v7893, %v7881
  %v8530 = vpack.c.b16 %v7906, %v7894
  %v8531 = vpack.c.b16 %v7907, %v7895
  %v8532 = vpack.c.b16 %v7908, %v7896
  %v8533 = vpack.c.b16 %v7909, %v7897
  %v8534 = vpack.c.b16 %v7910, %v7898
  %v8535 = vpack.c.b16 %v7911, %v7899
  %v8536 = vpack.c.b16 %v7912, %v7900
  %v8537 = vpack.c.b16 %v7913, %v7901
  %v8538 = vpack.c.b16 %v7914, %v7902
  %v8539 = vpack.c.b16 %v7915, %v7903
  %v8540 = vpack.c.b16 %v7916, %v7904
  %v8541 = vpack.c.b16 %v7917, %v7905
  %v8542 = vpack.c.b16 %v7930, %v7918
  %v8543 = vpack.c.b16 %v7931, %v7919
  %v8544 = vpack.c.b16 %v7932, %v7920
  %v8545 = vpack.c.b16 %v7933, %v7921
  %v8546 = vpack.c.b16 %v7934, %v7922
  %v8547 = vpack.c.b16 %v7935, %v7923
  %v8548 = vpack.c.b16 %v7936, %v7924
  %v8549 = vpack.c.b16 %v7937, %v7925
  %v8550 = vpack.c.b16 %v7938, %v7926
  %v8551 = vpack.c.b16 %v7939, %v7927
  %v8552 = vpack.c.b16 %v7940, %v7928
  %v8553 = vpack.c.b16 %v7941, %v7929
  %v8554 = vpack.c.b16 %v7954, %v7942
  %v8555 = vpack.c.b16 %v7955, %v7943
  %v8556 = vpack.c.b16 %v7956, %v7944
  %v8557 = vpack.c.b16 %v7957, %v7945
  %v8558 = vpack.c.b16 %v7958, %v7946
  %v8559 = vpack.c.b16 %v7959, %v7947
  %v8560 = vpack.c.b16 %v7960, %v7948
  %v8561 = vpack.c.b16 %v7961, %v7949
  %v8562 = vpack.c.b16 %v7962, %v7950
  %v8563 = vpack.c.b16 %v7963, %v7951
  %v8564 = vpack.c.b16 %v7964, %v7952
  %v8565 = vpack.c.b16 %v7965, %v7953
  %v8566 = vpack.c.b16 %v7978, %v7966
  %v8567 = vpack.c.b16 %v7979, %v7967
  %v8568 = vpack.c.b16 %v7980, %v7968
  %v8569 = vpack.c.b16 %v7981, %v7969
  %v8570 = vpack.c.b16 %v7982, %v7970
  %v8571 = vpack.c.b16 %v7983, %v7971
  %v8572 = vpack.c.b16 %v7984, %v7972
  %v8573 = vpack.c.b16 %v7985, %v7973
  %v8574 = vpack.c.b16 %v7986, %v7974
  %v8575 = vpack.c.b16 %v7987, %v7975
  %v8576 = vpack.c.b16 %v7988, %v7976
  %v8577 = vpack.c.b16 %v7989, %v7977
  %v8578 = vpack.c.b16 %v8002, %v7990
  %v8579 = vpack.c.b16 %v8003, %v7991
  %v8580 = vpack.c.b16 %v8004, %v7992
  %v8581 = vpack.c.b16 %v8005, %v7993
  %v8582 = vpack.c.b16 %v8006, %v7994
  %v8583 = vpack.c.b16 %v8007, %v7995
  %v8584 = vpack.c.b16 %v8008, %v7996
  %v8585 = vpack.c.b16 %v8009, %v7997
  %v8586 = vpack.c.b16 %v8010, %v7998
  %v8587 = vpack.c.b16 %v8011, %v7999
  %v8588 = vpack.c.b16 %v8012, %v8000
  %v8589 = vpack.c.b16 %v8013, %v8001
  %v8590 = vpack.c.b16 %v8026, %v8014
  %v8591 = vpack.c.b16 %v8027, %v8015
  %v8592 = vpack.c.b16 %v8028, %v8016
  %v8593 = vpack.c.b16 %v8029, %v8017
  %v8594 = vpack.c.b16 %v8030, %v8018
  %v8595 = vpack.c.b16 %v8031, %v8019
  %v8596 = vpack.c.b16 %v8032, %v8020
  %v8597 = vpack.c.b16 %v8033, %v8021
  %v8598 = vpack.c.b16 %v8034, %v8022
  %v8599 = vpack.c.b16 %v8035, %v8023
  %v8600 = vpack.c.b16 %v8036, %v8024
  %v8601 = vpack.c.b16 %v8037, %v8025
  %v8602 = vpack.c.b16 %v8050, %v8038
  %v8603 = vpack.c.b16 %v8051, %v8039
  %v8604 = vpack.c.b16 %v8052, %v8040
  %v8605 = vpack.c.b16 %v8053, %v8041
  %v8606 = vpack.c.b16 %v8054, %v8042
  %v8607 = vpack.c.b16 %v8055, %v8043
  %v8608 = vpack.c.b16 %v8056, %v8044
  %v8609 = vpack.c.b16 %v8057, %v8045
  %v8610 = vpack.c.b16 %v8058, %v8046
  %v8611 = vpack.c.b16 %v8059, %v8047
  %v8612 = vpack.c.b16 %v8060, %v8048
  %v8613 = vpack.c.b16 %v8061, %v8049
  %v8614 = vpack.c.b16 %v8074, %v8062
  %v8615 = vpack.c.b16 %v8075, %v8063
  %v8616 = vpack.c.b16 %v8076, %v8064
  %v8617 = vpack.c.b16 %v8077, %v8065
  %v8618 = vpack.c.b16 %v8078, %v8066
  %v8619 = vpack.c.b16 %v8079, %v8067
  %v8620 = vpack.c.b16 %v8080, %v8068
  %v8621 = vpack.c.b16 %v8081, %v8069
  %v8622 = vpack.c.b16 %v8082, %v8070
  %v8623 = vpack.c.b16 %v8083, %v8071
  %v8624 = vpack.c.b16 %v8084, %v8072
  %v8625 = vpack.c.b16 %v8085, %v8073
  %v8626 = vpack.c.b16 %v8098, %v8086
  %v8627 = vpack.c.b16 %v8099, %v8087
  %v8628 = vpack.c.b16 %v8100, %v8088
  %v8629 = vpack.c.b16 %v8101, %v8089
  %v8630 = vpack.c.b16 %v8102, %v8090
  %v8631 = vpack.c.b16 %v8103, %v8091
  %v8632 = vpack.c.b16 %v8104, %v8092
  %v8633 = vpack.c.b16 %v8105, %v8093
  %v8634 = vpack.c.b16 %v8106, %v8094
  %v8635 = vpack.c.b16 %v8107, %v8095
  %v8636 = vpack.c.b16 %v8108, %v8096
  %v8637 = vpack.c.b16 %v8109, %v8097
  %v8638 = vpack.c.b16 %v8122, %v8110
  %v8639 = vpack.c.b16 %v8123, %v8111
  %v8640 = vpack.c.b16 %v8124, %v8112
  %v8641 = vpack.c.b16 %v8125, %v8113
  %v8642 = vpack.c.b16 %v8126, %v8114
  %v8643 = vpack.c.b16 %v8127, %v8115
  %v8644 = vpack.c.b16 %v8128, %v8116
  %v8645 = vpack.c.b16 %v8129, %v8117
  %v8646 = vpack.c.b16 %v8130, %v8118
  %v8647 = vpack.c.b16 %v8131, %v8119
  %v8648 = vpack.c.b16 %v8132, %v8120
  %v8649 = vpack.c.b16 %v8133, %v8121
  %v8650 = vpack.c.b16 %v8146, %v8134
  %v8651 = vpack.c.b16 %v8147, %v8135
  %v8652 = vpack.c.b16 %v8148, %v8136
  %v8653 = vpack.c.b16 %v8149, %v8137
  %v8654 = vpack.c.b16 %v8150, %v8138
  %v8655 = vpack.c.b16 %v8151, %v8139
  %v8656 = vpack.c.b16 %v8152, %v8140
  %v8657 = vpack.c.b16 %v8153, %v8141
  %v8658 = vpack.c.b16 %v8154, %v8142
  %v8659 = vpack.c.b16 %v8155, %v8143
  %v8660 = vpack.c.b16 %v8156, %v8144
  %v8661 = vpack.c.b16 %v8157, %v8145
  %v8662 = vpack.c.b16 %v8170, %v8158
  %v8663 = vpack.c.b16 %v8171, %v8159
  %v8664 = vpack.c.b16 %v8172, %v8160
  %v8665 = vpack.c.b16 %v8173, %v8161
  %v8666 = vpack.c.b16 %v8174, %v8162
  %v8667 = vpack.c.b16 %v8175, %v8163
  %v8668 = vpack.c.b16 %v8176, %v8164
  %v8669 = vpack.c.b16 %v8177, %v8165
  %v8670 = vpack.c.b16 %v8178, %v8166
  %v8671 = vpack.c.b16 %v8179, %v8167
  %v8672 = vpack.c.b16 %v8180, %v8168
  %v8673 = vpack.c.b16 %v8181, %v8169
  %v8674 = vpack.c.b16 %v8194, %v8182
  %v8675 = vpack.c.b16 %v8195, %v8183
  %v8676 = vpack.c.b16 %v8196, %v8184
  %v8677 = vpack.c.b16 %v8197, %v8185
  %v8678 = vpack.c.b16 %v8198, %v8186
  %v8679 = vpack.c.b16 %v8199, %v8187
  %v8680 = vpack.c.b16 %v8200, %v8188
  %v8681 = vpack.c.b16 %v8201, %v8189
  %v8682 = vpack.c.b16 %v8202, %v8190
  %v8683 = vpack.c.b16 %v8203, %v8191
  %v8684 = vpack.c.b16 %v8204, %v8192
  %v8685 = vpack.c.b16 %v8205, %v8193
  %v8686 = vpack.c.b16 %v8218, %v8206
  %v8687 = vpack.c.b16 %v8219, %v8207
  %v8688 = vpack.c.b16 %v8220, %v8208
  %v8689 = vpack.c.b16 %v8221, %v8209
  %v8690 = vpack.c.b16 %v8222, %v8210
  %v8691 = vpack.c.b16 %v8223, %v8211
  %v8692 = vpack.c.b16 %v8224, %v8212
  %v8693 = vpack.c.b16 %v8225, %v8213
  %v8694 = vpack.c.b16 %v8226, %v8214
  %v8695 = vpack.c.b16 %v8227, %v8215
  %v8696 = vpack.c.b16 %v8228, %v8216
  %v8697 = vpack.c.b16 %v8229, %v8217
  %v8698 = vpack.c.b16 %v8242, %v8230
  %v8699 = vpack.c.b16 %v8243, %v8231
  %v8700 = vpack.c.b16 %v8244, %v8232
  %v8701 = vpack.c.b16 %v8245, %v8233
  %v8702 = vpack.c.b16 %v8246, %v8234
  %v8703 = vpack.c.b16 %v8247, %v8235
  %v8704 = vpack.c.b16 %v8248, %v8236
  %v8705 = vpack.c.b16 %v8249, %v8237
  %v8706 = vpack.c.b16 %v8250, %v8238
  %v8707 = vpack.c.b16 %v8251, %v8239
  %v8708 = vpack.c.b16 %v8252, %v8240
  %v8709 = vpack.c.b16 %v8253, %v8241
  %v8710 = vpack.c.b16 %v8266, %v8254
  %v8711 = vpack.c.b16 %v8267, %v8255
  %v8712 = vpack.c.b16 %v8268, %v8256
  %v8713 = vpack.c.b16 %v8269, %v8257
  %v8714 = vpack.c.b16 %v8270, %v8258
  %v8715 = vpack.c.b16 %v8271, %v8259
  %v8716 = vpack.c.b16 %v8272, %v8260
  %v8717 = vpack.c.b16 %v8273, %v8261
  %v8718 = vpack.c.b16 %v8274, %v8262
  %v8719 = vpack.c.b16 %v8275, %v8263
  %v8720 = vpack.c.b16 %v8276, %v8264
  %v8721 = vpack.c.b16 %v8277, %v8265
  %v8722 = vpack.c.b16 %v8290, %v8278
  %v8723 = vpack.c.b16 %v8291, %v8279
  %v8724 = vpack.c.b16 %v8292, %v8280
  %v8725 = vpack.c.b16 %v8293, %v8281
  %v8726 = vpack.c.b16 %v8294, %v8282
  %v8727 = vpack.c.b16 %v8295, %v8283
  %v8728 = vpack.c.b16 %v8296, %v8284
  %v8729 = vpack.c.b16 %v8297, %v8285
  %v8730 = vpack.c.b16 %v8298, %v8286
  %v8731 = vpack.c.b16 %v8299, %v8287
  %v8732 = vpack.c.b16 %v8300, %v8288
  %v8733 = vpack.c.b16 %v8301, %v8289
  %v8734 = vpack.c.b16 %v8314, %v8302
  %v8735 = vpack.c.b16 %v8315, %v8303
  %v8736 = vpack.c.b16 %v8316, %v8304
  %v8737 = vpack.c.b16 %v8317, %v8305
  %v8738 = vpack.c.b16 %v8318, %v8306
  %v8739 = vpack.c.b16 %v8319, %v8307
  %v8740 = vpack.c.b16 %v8320, %v8308
  %v8741 = vpack.c.b16 %v8321, %v8309
  %v8742 = vpack.c.b16 %v8322, %v8310
  %v8743 = vpack.c.b16 %v8323, %v8311
  %v8744 = vpack.c.b16 %v8324, %v8312
  %v8745 = vpack.c.b16 %v8325, %v8313
  %v8746 = vpack.c.b16 %v8338, %v8326
  %v8747 = vpack.c.b16 %v8339, %v8327
  %v8748 = vpack.c.b16 %v8340, %v8328
  %v8749 = vpack.c.b16 %v8341, %v8329
  %v8750 = vpack.c.b16 %v8342, %v8330
  %v8751 = vpack.c.b16 %v8343, %v8331
  %v8752 = vpack.c.b16 %v8344, %v8332
  %v8753 = vpack.c.b16 %v8345, %v8333
  %v8754 = vpack.c.b16 %v8346, %v8334
  %v8755 = vpack.c.b16 %v8347, %v8335
  %v8756 = vpack.c.b16 %v8348, %v8336
  %v8757 = vpack.c.b16 %v8349, %v8337
  %v8758 = vpack.c.b16 %v8362, %v8350
  %v8759 = vpack.c.b16 %v8363, %v8351
  %v8760 = vpack.c.b16 %v8364, %v8352
  %v8761 = vpack.c.b16 %v8365, %v8353
  %v8762 = vpack.c.b16 %v8366, %v8354
  %v8763 = vpack.c.b16 %v8367, %v8355
  %v8764 = vpack.c.b16 %v8368, %v8356
  %v8765 = vpack.c.b16 %v8369, %v8357
  %v8766 = vpack.c.b16 %v8370, %v8358
  %v8767 = vpack.c.b16 %v8371, %v8359
  %v8768 = vpack.c.b16 %v8372, %v8360
  %v8769 = vpack.c.b16 %v8373, %v8361
  %v8770 = vpack.c.b16 %v8386, %v8374
  %v8771 = vpack.c.b16 %v8387, %v8375
  %v8772 = vpack.c.b16 %v8388, %v8376
  %v8773 = vpack.c.b16 %v8389, %v8377
  %v8774 = vpack.c.b16 %v8390, %v8378
  %v8775 = vpack.c.b16 %v8391, %v8379
  %v8776 = vpack.c.b16 %v8392, %v8380
  %v8777 = vpack.c.b16 %v8393, %v8381
  %v8778 = vpack.c.b16 %v8394, %v8382
  %v8779 = vpack.c.b16 %v8395, %v8383
  %v8780 = vpack.c.b16 %v8396, %v8384
  %v8781 = vpack.c.b16 %v8397, %v8385
  %9166 = vmatprep.subr.bf16.mxu0 %v8483
  %9167 = vmatpush1.bf16.msra.mxu0 %v8482
  %9168 = vmatprep.subr.bf16.mxu0 %v8471
  %9169 = vmatpush1.bf16.msra.mxu0 %v8470
  %9170 = vmatprep.subr.bf16.mxu0 %v8459
  %9171 = vmatpush1.bf16.msra.mxu0 %v8458
  %9172 = vmatprep.subr.bf16.mxu0 %v8447
  %9173 = vmatpush1.bf16.msra.mxu0 %v8446
  %9174 = vmatprep.subr.bf16.mxu0 %v8435
  %9175 = vmatpush1.bf16.msra.mxu0 %v8434
  %9176 = vmatprep.subr.bf16.mxu0 %v8423
  %9177 = vmatpush1.bf16.msra.mxu0 %v8422
  %9178 = vmatprep.subr.bf16.mxu0 %v8411
  %9179 = vmatpush1.bf16.msra.mxu0 %v8410
  %9180 = vmatprep.subr.bf16.mxu0 %v8399
  %9181 = vmatpush1.bf16.msra.mxu0 %v8398
  %9182 = vmatprep.subr.bf16.mxu0 %v8579
  %9183 = vmatpush2.bf16.msra.mxu0 %v8578
  %9184 = vmatprep.subr.bf16.mxu0 %v8567
  %9185 = vmatpush2.bf16.msra.mxu0 %v8566
  %9186 = vmatprep.subr.bf16.mxu0 %v8555
  %9187 = vmatpush2.bf16.msra.mxu0 %v8554
  %9188 = vmatprep.subr.bf16.mxu0 %v8543
  %9189 = vmatpush2.bf16.msra.mxu0 %v8542
  %9190 = vmatprep.subr.bf16.mxu0 %v8531
  %9191 = vmatpush2.bf16.msra.mxu0 %v8530
  %9192 = vmatprep.subr.bf16.mxu0 %v8519
  %9193 = vmatpush2.bf16.msra.mxu0 %v8518
  %9194 = vmatprep.subr.bf16.mxu0 %v8507
  %9195 = vmatpush2.bf16.msra.mxu0 %v8506
  %9196 = vmatprep.subr.bf16.mxu0 %v8495
  %9197 = vmatpush2.bf16.msra.mxu0 %v8494
  %9198 = vmatprep.mubr.bf16.mxu0 %v7179
  %9199 = vmatmul.mubr.bf16.gmra.mxu0 %v7178
  %v9200 = vpop.f32.mrf.mxu0
  %v9201 = vadd.f32 %v7189, %v9200
  %v9202 = vpop.f32.mrf.mxu0
  %v9203 = vadd.f32 %v7193, %v9202
  %v9204 = vpop.f32.mrf.mxu0
  %v9205 = vadd.f32 %v7189, %v9204
  %v9206 = vpop.f32.mrf.mxu0
  %v9207 = vadd.f32 %v7193, %v9206
  %9208 = vdwg.mxu0
  %9209 = vmatprep.subr.bf16.mxu0 %v8675
  %9210 = vmatpush1.bf16.msra.mxu0 %v8674
  %9211 = vmatprep.subr.bf16.mxu0 %v8663
  %9212 = vmatpush1.bf16.msra.mxu0 %v8662
  %9213 = vmatprep.subr.bf16.mxu0 %v8651
  %9214 = vmatpush1.bf16.msra.mxu0 %v8650
  %9215 = vmatprep.subr.bf16.mxu0 %v8639
  %9216 = vmatpush1.bf16.msra.mxu0 %v8638
  %9217 = vmatprep.subr.bf16.mxu0 %v8627
  %9218 = vmatpush1.bf16.msra.mxu0 %v8626
  %9219 = vmatprep.subr.bf16.mxu0 %v8615
  %9220 = vmatpush1.bf16.msra.mxu0 %v8614
  %9221 = vmatprep.subr.bf16.mxu0 %v8603
  %9222 = vmatpush1.bf16.msra.mxu0 %v8602
  %9223 = vmatprep.subr.bf16.mxu0 %v8591
  %9224 = vmatpush1.bf16.msra.mxu0 %v8590
  %9225 = vmatprep.subr.bf16.mxu0 %v8771
  %9226 = vmatpush2.bf16.msra.mxu0 %v8770
  %9227 = vmatprep.subr.bf16.mxu0 %v8759
  %9228 = vmatpush2.bf16.msra.mxu0 %v8758
  %9229 = vmatprep.subr.bf16.mxu0 %v8747
  %9230 = vmatpush2.bf16.msra.mxu0 %v8746
  %9231 = vmatprep.subr.bf16.mxu0 %v8735
  %9232 = vmatpush2.bf16.msra.mxu0 %v8734
  %9233 = vmatprep.subr.bf16.mxu0 %v8723
  %9234 = vmatpush2.bf16.msra.mxu0 %v8722
  %9235 = vmatprep.subr.bf16.mxu0 %v8711
  %9236 = vmatpush2.bf16.msra.mxu0 %v8710
  %9237 = vmatprep.subr.bf16.mxu0 %v8699
  %9238 = vmatpush2.bf16.msra.mxu0 %v8698
  %9239 = vmatprep.subr.bf16.mxu0 %v8687
  %9240 = vmatpush2.bf16.msra.mxu0 %v8686
  %9241 = vmatprep.mubr.bf16.mxu0 %v7181
  %9242 = vmatmul.mubr.bf16.gmra.mxu0 %v7180
  %v9243 = vpop.f32.mrf.mxu0
  %v9244 = vadd.f32 %v9201, %v9243
  %v9245 = vpop.f32.mrf.mxu0
  %v9246 = vadd.f32 %v9203, %v9245
  %v9247 = vpop.f32.mrf.mxu0
  %v9248 = vadd.f32 %v9205, %v9247
  %v9249 = vpop.f32.mrf.mxu0
  %v9250 = vadd.f32 %v9207, %v9249
  %9251 = vdwg.mxu0
  %9252 = vmatprep.subr.bf16.mxu0 %v8485
  %9253 = vmatpush1.bf16.msra.mxu0 %v8484
  %9254 = vmatprep.subr.bf16.mxu0 %v8473
  %9255 = vmatpush1.bf16.msra.mxu0 %v8472
  %9256 = vmatprep.subr.bf16.mxu0 %v8461
  %9257 = vmatpush1.bf16.msra.mxu0 %v8460
  %9258 = vmatprep.subr.bf16.mxu0 %v8449
  %9259 = vmatpush1.bf16.msra.mxu0 %v8448
  %9260 = vmatprep.subr.bf16.mxu0 %v8437
  %9261 = vmatpush1.bf16.msra.mxu0 %v8436
  %9262 = vmatprep.subr.bf16.mxu0 %v8425
  %9263 = vmatpush1.bf16.msra.mxu0 %v8424
  %9264 = vmatprep.subr.bf16.mxu0 %v8413
  %9265 = vmatpush1.bf16.msra.mxu0 %v8412
  %9266 = vmatprep.subr.bf16.mxu0 %v8401
  %9267 = vmatpush1.bf16.msra.mxu0 %v8400
  %9268 = vmatprep.subr.bf16.mxu0 %v8581
  %9269 = vmatpush2.bf16.msra.mxu0 %v8580
  %9270 = vmatprep.subr.bf16.mxu0 %v8569
  %9271 = vmatpush2.bf16.msra.mxu0 %v8568
  %9272 = vmatprep.subr.bf16.mxu0 %v8557
  %9273 = vmatpush2.bf16.msra.mxu0 %v8556
  %9274 = vmatprep.subr.bf16.mxu0 %v8545
  %9275 = vmatpush2.bf16.msra.mxu0 %v8544
  %9276 = vmatprep.subr.bf16.mxu0 %v8533
  %9277 = vmatpush2.bf16.msra.mxu0 %v8532
  %9278 = vmatprep.subr.bf16.mxu0 %v8521
  %9279 = vmatpush2.bf16.msra.mxu0 %v8520
  %9280 = vmatprep.subr.bf16.mxu0 %v8509
  %9281 = vmatpush2.bf16.msra.mxu0 %v8508
  %9282 = vmatprep.subr.bf16.mxu0 %v8497
  %9283 = vmatpush2.bf16.msra.mxu0 %v8496
  %9284 = vmatprep.mubr.bf16.mxu0 %v7179
  %9285 = vmatmul.mubr.bf16.gmra.mxu0 %v7178
  %v9286 = vpop.f32.mrf.mxu0
  %v9287 = vadd.f32 %v7197, %v9286
  %v9288 = vpop.f32.mrf.mxu0
  %v9289 = vadd.f32 %v7201, %v9288
  %v9290 = vpop.f32.mrf.mxu0
  %v9291 = vadd.f32 %v7197, %v9290
  %v9292 = vpop.f32.mrf.mxu0
  %v9293 = vadd.f32 %v7201, %v9292
  %9294 = vdwg.mxu0
  %9295 = vmatprep.subr.bf16.mxu0 %v8677
  %9296 = vmatpush1.bf16.msra.mxu0 %v8676
  %9297 = vmatprep.subr.bf16.mxu0 %v8665
  %9298 = vmatpush1.bf16.msra.mxu0 %v8664
  %9299 = vmatprep.subr.bf16.mxu0 %v8653
  %9300 = vmatpush1.bf16.msra.mxu0 %v8652
  %9301 = vmatprep.subr.bf16.mxu0 %v8641
  %9302 = vmatpush1.bf16.msra.mxu0 %v8640
  %9303 = vmatprep.subr.bf16.mxu0 %v8629
  %9304 = vmatpush1.bf16.msra.mxu0 %v8628
  %9305 = vmatprep.subr.bf16.mxu0 %v8617
  %9306 = vmatpush1.bf16.msra.mxu0 %v8616
  %9307 = vmatprep.subr.bf16.mxu0 %v8605
  %9308 = vmatpush1.bf16.msra.mxu0 %v8604
  %9309 = vmatprep.subr.bf16.mxu0 %v8593
  %9310 = vmatpush1.bf16.msra.mxu0 %v8592
  %9311 = vmatprep.subr.bf16.mxu0 %v8773
  %9312 = vmatpush2.bf16.msra.mxu0 %v8772
  %9313 = vmatprep.subr.bf16.mxu0 %v8761
  %9314 = vmatpush2.bf16.msra.mxu0 %v8760
  %9315 = vmatprep.subr.bf16.mxu0 %v8749
  %9316 = vmatpush2.bf16.msra.mxu0 %v8748
  %9317 = vmatprep.subr.bf16.mxu0 %v8737
  %9318 = vmatpush2.bf16.msra.mxu0 %v8736
  %9319 = vmatprep.subr.bf16.mxu0 %v8725
  %9320 = vmatpush2.bf16.msra.mxu0 %v8724
  %9321 = vmatprep.subr.bf16.mxu0 %v8713
  %9322 = vmatpush2.bf16.msra.mxu0 %v8712
  %9323 = vmatprep.subr.bf16.mxu0 %v8701
  %9324 = vmatpush2.bf16.msra.mxu0 %v8700
  %9325 = vmatprep.subr.bf16.mxu0 %v8689
  %9326 = vmatpush2.bf16.msra.mxu0 %v8688
  %9327 = vmatprep.mubr.bf16.mxu0 %v7181
  %9328 = vmatmul.mubr.bf16.gmra.mxu0 %v7180
  %v9329 = vpop.f32.mrf.mxu0
  %v9330 = vadd.f32 %v9287, %v9329
  %v9331 = vpop.f32.mrf.mxu0
  %v9332 = vadd.f32 %v9289, %v9331
  %v9333 = vpop.f32.mrf.mxu0
  %v9334 = vadd.f32 %v9291, %v9333
  %v9335 = vpop.f32.mrf.mxu0
  %v9336 = vadd.f32 %v9293, %v9335
  %9337 = vdwg.mxu0
  %9338 = vmatprep.subr.bf16.mxu0 %v8487
  %9339 = vmatpush1.bf16.msra.mxu0 %v8486
  %9340 = vmatprep.subr.bf16.mxu0 %v8475
  %9341 = vmatpush1.bf16.msra.mxu0 %v8474
  %9342 = vmatprep.subr.bf16.mxu0 %v8463
  %9343 = vmatpush1.bf16.msra.mxu0 %v8462
  %9344 = vmatprep.subr.bf16.mxu0 %v8451
  %9345 = vmatpush1.bf16.msra.mxu0 %v8450
  %9346 = vmatprep.subr.bf16.mxu0 %v8439
  %9347 = vmatpush1.bf16.msra.mxu0 %v8438
  %9348 = vmatprep.subr.bf16.mxu0 %v8427
  %9349 = vmatpush1.bf16.msra.mxu0 %v8426
  %9350 = vmatprep.subr.bf16.mxu0 %v8415
  %9351 = vmatpush1.bf16.msra.mxu0 %v8414
  %9352 = vmatprep.subr.bf16.mxu0 %v8403
  %9353 = vmatpush1.bf16.msra.mxu0 %v8402
  %9354 = vmatprep.subr.bf16.mxu0 %v8583
  %9355 = vmatpush2.bf16.msra.mxu0 %v8582
  %9356 = vmatprep.subr.bf16.mxu0 %v8571
  %9357 = vmatpush2.bf16.msra.mxu0 %v8570
  %9358 = vmatprep.subr.bf16.mxu0 %v8559
  %9359 = vmatpush2.bf16.msra.mxu0 %v8558
  %9360 = vmatprep.subr.bf16.mxu0 %v8547
  %9361 = vmatpush2.bf16.msra.mxu0 %v8546
  %9362 = vmatprep.subr.bf16.mxu0 %v8535
  %9363 = vmatpush2.bf16.msra.mxu0 %v8534
  %9364 = vmatprep.subr.bf16.mxu0 %v8523
  %9365 = vmatpush2.bf16.msra.mxu0 %v8522
  %9366 = vmatprep.subr.bf16.mxu0 %v8511
  %9367 = vmatpush2.bf16.msra.mxu0 %v8510
  %9368 = vmatprep.subr.bf16.mxu0 %v8499
  %9369 = vmatpush2.bf16.msra.mxu0 %v8498
  %9370 = vmatprep.mubr.bf16.mxu0 %v7179
  %9371 = vmatmul.mubr.bf16.gmra.mxu0 %v7178
  %v9372 = vpop.f32.mrf.mxu0
  %v9373 = vadd.f32 %v7205, %v9372
  %v9374 = vpop.f32.mrf.mxu0
  %v9375 = vadd.f32 %v7209, %v9374
  %v9376 = vpop.f32.mrf.mxu0
  %v9377 = vadd.f32 %v7205, %v9376
  %v9378 = vpop.f32.mrf.mxu0
  %v9379 = vadd.f32 %v7209, %v9378
  %9380 = vdwg.mxu0
  %9381 = vmatprep.subr.bf16.mxu0 %v8679
  %9382 = vmatpush1.bf16.msra.mxu0 %v8678
  %9383 = vmatprep.subr.bf16.mxu0 %v8667
  %9384 = vmatpush1.bf16.msra.mxu0 %v8666
  %9385 = vmatprep.subr.bf16.mxu0 %v8655
  %9386 = vmatpush1.bf16.msra.mxu0 %v8654
  %9387 = vmatprep.subr.bf16.mxu0 %v8643
  %9388 = vmatpush1.bf16.msra.mxu0 %v8642
  %9389 = vmatprep.subr.bf16.mxu0 %v8631
  %9390 = vmatpush1.bf16.msra.mxu0 %v8630
  %9391 = vmatprep.subr.bf16.mxu0 %v8619
  %9392 = vmatpush1.bf16.msra.mxu0 %v8618
  %9393 = vmatprep.subr.bf16.mxu0 %v8607
  %9394 = vmatpush1.bf16.msra.mxu0 %v8606
  %9395 = vmatprep.subr.bf16.mxu0 %v8595
  %9396 = vmatpush1.bf16.msra.mxu0 %v8594
  %9397 = vmatprep.subr.bf16.mxu0 %v8775
  %9398 = vmatpush2.bf16.msra.mxu0 %v8774
  %9399 = vmatprep.subr.bf16.mxu0 %v8763
  %9400 = vmatpush2.bf16.msra.mxu0 %v8762
  %9401 = vmatprep.subr.bf16.mxu0 %v8751
  %9402 = vmatpush2.bf16.msra.mxu0 %v8750
  %9403 = vmatprep.subr.bf16.mxu0 %v8739
  %9404 = vmatpush2.bf16.msra.mxu0 %v8738
  %9405 = vmatprep.subr.bf16.mxu0 %v8727
  %9406 = vmatpush2.bf16.msra.mxu0 %v8726
  %9407 = vmatprep.subr.bf16.mxu0 %v8715
  %9408 = vmatpush2.bf16.msra.mxu0 %v8714
  %9409 = vmatprep.subr.bf16.mxu0 %v8703
  %9410 = vmatpush2.bf16.msra.mxu0 %v8702
  %9411 = vmatprep.subr.bf16.mxu0 %v8691
  %9412 = vmatpush2.bf16.msra.mxu0 %v8690
  %9413 = vmatprep.mubr.bf16.mxu0 %v7181
  %9414 = vmatmul.mubr.bf16.gmra.mxu0 %v7180
  %v9415 = vpop.f32.mrf.mxu0
  %v9416 = vadd.f32 %v9373, %v9415
  %v9417 = vpop.f32.mrf.mxu0
  %v9418 = vadd.f32 %v9375, %v9417
  %v9419 = vpop.f32.mrf.mxu0
  %v9420 = vadd.f32 %v9377, %v9419
  %v9421 = vpop.f32.mrf.mxu0
  %v9422 = vadd.f32 %v9379, %v9421
  %9423 = vdwg.mxu0
  %9424 = vmatprep.subr.bf16.mxu0 %v8489
  %9425 = vmatpush1.bf16.msra.mxu0 %v8488
  %9426 = vmatprep.subr.bf16.mxu0 %v8477
  %9427 = vmatpush1.bf16.msra.mxu0 %v8476
  %9428 = vmatprep.subr.bf16.mxu0 %v8465
  %9429 = vmatpush1.bf16.msra.mxu0 %v8464
  %9430 = vmatprep.subr.bf16.mxu0 %v8453
  %9431 = vmatpush1.bf16.msra.mxu0 %v8452
  %9432 = vmatprep.subr.bf16.mxu0 %v8441
  %9433 = vmatpush1.bf16.msra.mxu0 %v8440
  %9434 = vmatprep.subr.bf16.mxu0 %v8429
  %9435 = vmatpush1.bf16.msra.mxu0 %v8428
  %9436 = vmatprep.subr.bf16.mxu0 %v8417
  %9437 = vmatpush1.bf16.msra.mxu0 %v8416
  %9438 = vmatprep.subr.bf16.mxu0 %v8405
  %9439 = vmatpush1.bf16.msra.mxu0 %v8404
  %9440 = vmatprep.subr.bf16.mxu0 %v8585
  %9441 = vmatpush2.bf16.msra.mxu0 %v8584
  %9442 = vmatprep.subr.bf16.mxu0 %v8573
  %9443 = vmatpush2.bf16.msra.mxu0 %v8572
  %9444 = vmatprep.subr.bf16.mxu0 %v8561
  %9445 = vmatpush2.bf16.msra.mxu0 %v8560
  %9446 = vmatprep.subr.bf16.mxu0 %v8549
  %9447 = vmatpush2.bf16.msra.mxu0 %v8548
  %9448 = vmatprep.subr.bf16.mxu0 %v8537
  %9449 = vmatpush2.bf16.msra.mxu0 %v8536
  %9450 = vmatprep.subr.bf16.mxu0 %v8525
  %9451 = vmatpush2.bf16.msra.mxu0 %v8524
  %9452 = vmatprep.subr.bf16.mxu0 %v8513
  %9453 = vmatpush2.bf16.msra.mxu0 %v8512
  %9454 = vmatprep.subr.bf16.mxu0 %v8501
  %9455 = vmatpush2.bf16.msra.mxu0 %v8500
  %9456 = vmatprep.mubr.bf16.mxu0 %v7179
  %9457 = vmatmul.mubr.bf16.gmra.mxu0 %v7178
  %v9458 = vpop.f32.mrf.mxu0
  %v9459 = vadd.f32 %v7213, %v9458
  %v9460 = vpop.f32.mrf.mxu0
  %v9461 = vadd.f32 %v7217, %v9460
  %v9462 = vpop.f32.mrf.mxu0
  %v9463 = vadd.f32 %v7213, %v9462
  %v9464 = vpop.f32.mrf.mxu0
  %v9465 = vadd.f32 %v7217, %v9464
  %9466 = vdwg.mxu0
  %9467 = vmatprep.subr.bf16.mxu0 %v8681
  %9468 = vmatpush1.bf16.msra.mxu0 %v8680
  %9469 = vmatprep.subr.bf16.mxu0 %v8669
  %9470 = vmatpush1.bf16.msra.mxu0 %v8668
  %9471 = vmatprep.subr.bf16.mxu0 %v8657
  %9472 = vmatpush1.bf16.msra.mxu0 %v8656
  %9473 = vmatprep.subr.bf16.mxu0 %v8645
  %9474 = vmatpush1.bf16.msra.mxu0 %v8644
  %9475 = vmatprep.subr.bf16.mxu0 %v8633
  %9476 = vmatpush1.bf16.msra.mxu0 %v8632
  %9477 = vmatprep.subr.bf16.mxu0 %v8621
  %9478 = vmatpush1.bf16.msra.mxu0 %v8620
  %9479 = vmatprep.subr.bf16.mxu0 %v8609
  %9480 = vmatpush1.bf16.msra.mxu0 %v8608
  %9481 = vmatprep.subr.bf16.mxu0 %v8597
  %9482 = vmatpush1.bf16.msra.mxu0 %v8596
  %9483 = vmatprep.subr.bf16.mxu0 %v8777
  %9484 = vmatpush2.bf16.msra.mxu0 %v8776
  %9485 = vmatprep.subr.bf16.mxu0 %v8765
  %9486 = vmatpush2.bf16.msra.mxu0 %v8764
  %9487 = vmatprep.subr.bf16.mxu0 %v8753
  %9488 = vmatpush2.bf16.msra.mxu0 %v8752
  %9489 = vmatprep.subr.bf16.mxu0 %v8741
  %9490 = vmatpush2.bf16.msra.mxu0 %v8740
  %9491 = vmatprep.subr.bf16.mxu0 %v8729
  %9492 = vmatpush2.bf16.msra.mxu0 %v8728
  %9493 = vmatprep.subr.bf16.mxu0 %v8717
  %9494 = vmatpush2.bf16.msra.mxu0 %v8716
  %9495 = vmatprep.subr.bf16.mxu0 %v8705
  %9496 = vmatpush2.bf16.msra.mxu0 %v8704
  %9497 = vmatprep.subr.bf16.mxu0 %v8693
  %9498 = vmatpush2.bf16.msra.mxu0 %v8692
  %9499 = vmatprep.mubr.bf16.mxu0 %v7181
  %9500 = vmatmul.mubr.bf16.gmra.mxu0 %v7180
  %v9501 = vpop.f32.mrf.mxu0
  %v9502 = vadd.f32 %v9459, %v9501
  %v9503 = vpop.f32.mrf.mxu0
  %v9504 = vadd.f32 %v9461, %v9503
  %v9505 = vpop.f32.mrf.mxu0
  %v9506 = vadd.f32 %v9463, %v9505
  %v9507 = vpop.f32.mrf.mxu0
  %v9508 = vadd.f32 %v9465, %v9507
  %9509 = vdwg.mxu0
  %9510 = vmatprep.subr.bf16.mxu0 %v8491
  %9511 = vmatpush1.bf16.msra.mxu0 %v8490
  %9512 = vmatprep.subr.bf16.mxu0 %v8479
  %9513 = vmatpush1.bf16.msra.mxu0 %v8478
  %9514 = vmatprep.subr.bf16.mxu0 %v8467
  %9515 = vmatpush1.bf16.msra.mxu0 %v8466
  %9516 = vmatprep.subr.bf16.mxu0 %v8455
  %9517 = vmatpush1.bf16.msra.mxu0 %v8454
  %9518 = vmatprep.subr.bf16.mxu0 %v8443
  %9519 = vmatpush1.bf16.msra.mxu0 %v8442
  %9520 = vmatprep.subr.bf16.mxu0 %v8431
  %9521 = vmatpush1.bf16.msra.mxu0 %v8430
  %9522 = vmatprep.subr.bf16.mxu0 %v8419
  %9523 = vmatpush1.bf16.msra.mxu0 %v8418
  %9524 = vmatprep.subr.bf16.mxu0 %v8407
  %9525 = vmatpush1.bf16.msra.mxu0 %v8406
  %9526 = vmatprep.subr.bf16.mxu0 %v8587
  %9527 = vmatpush2.bf16.msra.mxu0 %v8586
  %9528 = vmatprep.subr.bf16.mxu0 %v8575
  %9529 = vmatpush2.bf16.msra.mxu0 %v8574
  %9530 = vmatprep.subr.bf16.mxu0 %v8563
  %9531 = vmatpush2.bf16.msra.mxu0 %v8562
  %9532 = vmatprep.subr.bf16.mxu0 %v8551
  %9533 = vmatpush2.bf16.msra.mxu0 %v8550
  %9534 = vmatprep.subr.bf16.mxu0 %v8539
  %9535 = vmatpush2.bf16.msra.mxu0 %v8538
  %9536 = vmatprep.subr.bf16.mxu0 %v8527
  %9537 = vmatpush2.bf16.msra.mxu0 %v8526
  %9538 = vmatprep.subr.bf16.mxu0 %v8515
  %9539 = vmatpush2.bf16.msra.mxu0 %v8514
  %9540 = vmatprep.subr.bf16.mxu0 %v8503
  %9541 = vmatpush2.bf16.msra.mxu0 %v8502
  %9542 = vmatprep.mubr.bf16.mxu0 %v7179
  %9543 = vmatmul.mubr.bf16.gmra.mxu0 %v7178
  %v9544 = vpop.f32.mrf.mxu0
  %v9545 = vadd.f32 %v7221, %v9544
  %v9546 = vpop.f32.mrf.mxu0
  %v9547 = vadd.f32 %v7225, %v9546
  %v9548 = vpop.f32.mrf.mxu0
  %v9549 = vadd.f32 %v7221, %v9548
  %v9550 = vpop.f32.mrf.mxu0
  %v9551 = vadd.f32 %v7225, %v9550
  %9552 = vdwg.mxu0
  %9553 = vmatprep.subr.bf16.mxu0 %v8683
  %9554 = vmatpush1.bf16.msra.mxu0 %v8682
  %9555 = vmatprep.subr.bf16.mxu0 %v8671
  %9556 = vmatpush1.bf16.msra.mxu0 %v8670
  %9557 = vmatprep.subr.bf16.mxu0 %v8659
  %9558 = vmatpush1.bf16.msra.mxu0 %v8658
  %9559 = vmatprep.subr.bf16.mxu0 %v8647
  %9560 = vmatpush1.bf16.msra.mxu0 %v8646
  %9561 = vmatprep.subr.bf16.mxu0 %v8635
  %9562 = vmatpush1.bf16.msra.mxu0 %v8634
  %9563 = vmatprep.subr.bf16.mxu0 %v8623
  %9564 = vmatpush1.bf16.msra.mxu0 %v8622
  %9565 = vmatprep.subr.bf16.mxu0 %v8611
  %9566 = vmatpush1.bf16.msra.mxu0 %v8610
  %9567 = vmatprep.subr.bf16.mxu0 %v8599
  %9568 = vmatpush1.bf16.msra.mxu0 %v8598
  %9569 = vmatprep.subr.bf16.mxu0 %v8779
  %9570 = vmatpush2.bf16.msra.mxu0 %v8778
  %9571 = vmatprep.subr.bf16.mxu0 %v8767
  %9572 = vmatpush2.bf16.msra.mxu0 %v8766
  %9573 = vmatprep.subr.bf16.mxu0 %v8755
  %9574 = vmatpush2.bf16.msra.mxu0 %v8754
  %9575 = vmatprep.subr.bf16.mxu0 %v8743
  %9576 = vmatpush2.bf16.msra.mxu0 %v8742
  %9577 = vmatprep.subr.bf16.mxu0 %v8731
  %9578 = vmatpush2.bf16.msra.mxu0 %v8730
  %9579 = vmatprep.subr.bf16.mxu0 %v8719
  %9580 = vmatpush2.bf16.msra.mxu0 %v8718
  %9581 = vmatprep.subr.bf16.mxu0 %v8707
  %9582 = vmatpush2.bf16.msra.mxu0 %v8706
  %9583 = vmatprep.subr.bf16.mxu0 %v8695
  %9584 = vmatpush2.bf16.msra.mxu0 %v8694
  %9585 = vmatprep.mubr.bf16.mxu0 %v7181
  %9586 = vmatmul.mubr.bf16.gmra.mxu0 %v7180
  %v9587 = vpop.f32.mrf.mxu0
  %v9588 = vadd.f32 %v9545, %v9587
  %v9589 = vpop.f32.mrf.mxu0
  %v9590 = vadd.f32 %v9547, %v9589
  %v9591 = vpop.f32.mrf.mxu0
  %v9592 = vadd.f32 %v9549, %v9591
  %v9593 = vpop.f32.mrf.mxu0
  %v9594 = vadd.f32 %v9551, %v9593
  %9595 = vdwg.mxu0
  %9596 = vmatprep.subr.bf16.mxu0 %v8493
  %9597 = vmatpush1.bf16.msra.mxu0 %v8492
  %9598 = vmatprep.subr.bf16.mxu0 %v8481
  %9599 = vmatpush1.bf16.msra.mxu0 %v8480
  %9600 = vmatprep.subr.bf16.mxu0 %v8469
  %9601 = vmatpush1.bf16.msra.mxu0 %v8468
  %9602 = vmatprep.subr.bf16.mxu0 %v8457
  %9603 = vmatpush1.bf16.msra.mxu0 %v8456
  %9604 = vmatprep.subr.bf16.mxu0 %v8445
  %9605 = vmatpush1.bf16.msra.mxu0 %v8444
  %9606 = vmatprep.subr.bf16.mxu0 %v8433
  %9607 = vmatpush1.bf16.msra.mxu0 %v8432
  %9608 = vmatprep.subr.bf16.mxu0 %v8421
  %9609 = vmatpush1.bf16.msra.mxu0 %v8420
  %9610 = vmatprep.subr.bf16.mxu0 %v8409
  %9611 = vmatpush1.bf16.msra.mxu0 %v8408
  %9612 = vmatprep.subr.bf16.mxu0 %v8589
  %9613 = vmatpush2.bf16.msra.mxu0 %v8588
  %9614 = vmatprep.subr.bf16.mxu0 %v8577
  %9615 = vmatpush2.bf16.msra.mxu0 %v8576
  %9616 = vmatprep.subr.bf16.mxu0 %v8565
  %9617 = vmatpush2.bf16.msra.mxu0 %v8564
  %9618 = vmatprep.subr.bf16.mxu0 %v8553
  %9619 = vmatpush2.bf16.msra.mxu0 %v8552
  %9620 = vmatprep.subr.bf16.mxu0 %v8541
  %9621 = vmatpush2.bf16.msra.mxu0 %v8540
  %9622 = vmatprep.subr.bf16.mxu0 %v8529
  %9623 = vmatpush2.bf16.msra.mxu0 %v8528
  %9624 = vmatprep.subr.bf16.mxu0 %v8517
  %9625 = vmatpush2.bf16.msra.mxu0 %v8516
  %9626 = vmatprep.subr.bf16.mxu0 %v8505
  %9627 = vmatpush2.bf16.msra.mxu0 %v8504
  %9628 = vmatprep.mubr.bf16.mxu0 %v7179
  %9629 = vmatmul.mubr.bf16.gmra.mxu0 %v7178
  %v9630 = vpop.f32.mrf.mxu0
  %v9631 = vadd.f32 %v7229, %v9630
  %v9632 = vpop.f32.mrf.mxu0
  %v9633 = vadd.f32 %v7233, %v9632
  %v9634 = vpop.f32.mrf.mxu0
  %v9635 = vadd.f32 %v7229, %v9634
  %v9636 = vpop.f32.mrf.mxu0
  %v9637 = vadd.f32 %v7233, %v9636
  %9638 = vdwg.mxu0
  %9639 = vmatprep.subr.bf16.mxu0 %v8685
  %9640 = vmatpush1.bf16.msra.mxu0 %v8684
  %9641 = vmatprep.subr.bf16.mxu0 %v8673
  %9642 = vmatpush1.bf16.msra.mxu0 %v8672
  %9643 = vmatprep.subr.bf16.mxu0 %v8661
  %9644 = vmatpush1.bf16.msra.mxu0 %v8660
  %9645 = vmatprep.subr.bf16.mxu0 %v8649
  %9646 = vmatpush1.bf16.msra.mxu0 %v8648
  %9647 = vmatprep.subr.bf16.mxu0 %v8637
  %9648 = vmatpush1.bf16.msra.mxu0 %v8636
  %9649 = vmatprep.subr.bf16.mxu0 %v8625
  %9650 = vmatpush1.bf16.msra.mxu0 %v8624
  %9651 = vmatprep.subr.bf16.mxu0 %v8613
  %9652 = vmatpush1.bf16.msra.mxu0 %v8612
  %9653 = vmatprep.subr.bf16.mxu0 %v8601
  %9654 = vmatpush1.bf16.msra.mxu0 %v8600
  %9655 = vmatprep.subr.bf16.mxu0 %v8781
  %9656 = vmatpush2.bf16.msra.mxu0 %v8780
  %9657 = vmatprep.subr.bf16.mxu0 %v8769
  %9658 = vmatpush2.bf16.msra.mxu0 %v8768
  %9659 = vmatprep.subr.bf16.mxu0 %v8757
  %9660 = vmatpush2.bf16.msra.mxu0 %v8756
  %9661 = vmatprep.subr.bf16.mxu0 %v8745
  %9662 = vmatpush2.bf16.msra.mxu0 %v8744
  %9663 = vmatprep.subr.bf16.mxu0 %v8733
  %9664 = vmatpush2.bf16.msra.mxu0 %v8732
  %9665 = vmatprep.subr.bf16.mxu0 %v8721
  %9666 = vmatpush2.bf16.msra.mxu0 %v8720
  %9667 = vmatprep.subr.bf16.mxu0 %v8709
  %9668 = vmatpush2.bf16.msra.mxu0 %v8708
  %9669 = vmatprep.subr.bf16.mxu0 %v8697
  %9670 = vmatpush2.bf16.msra.mxu0 %v8696
  %9671 = vmatprep.mubr.bf16.mxu0 %v7181
  %9672 = vmatmul.mubr.bf16.gmra.mxu0 %v7180
  %v9673 = vpop.f32.mrf.mxu0
  %v9674 = vadd.f32 %v9631, %v9673
  %v9675 = vpop.f32.mrf.mxu0
  %v9676 = vadd.f32 %v9633, %v9675
  %v9677 = vpop.f32.mrf.mxu0
  %v9678 = vadd.f32 %v9635, %v9677
  %v9679 = vpop.f32.mrf.mxu0
  %v9680 = vadd.f32 %v9637, %v9679
  %9681 = vdwg.mxu0
  %v9682 = vld [vmem:[%s7] sm:$0xff]
  %v9683 = vld [vmem:[%s7 + $0x8] sm:$0xff]
  %v9684 = vld [vmem:[%s41] sm:$0xf]
  %v9686 = vlaneseq
  %v9687 = vshrl.u32 %v9686, 7
  %v9688 = vsub.s32 0, %v9687
  %v9689 = vrot.slane %v9684, %v9688
  %v9690 = vlaneseq
  %v9691 = vshrl.u32 %v9690, 7
  %v9692 = vsub.s32 1, %v9691
  %v9693 = vrot.slane %v9684, %v9692
  %v9694 = vlaneseq
  %v9695 = vshrl.u32 %v9694, 7
  %v9696 = vsub.s32 2, %v9695
  %v9697 = vrot.slane %v9684, %v9696
  %v9698 = vlaneseq
  %v9699 = vshrl.u32 %v9698, 7
  %v9700 = vsub.s32 3, %v9699
  %v9701 = vrot.slane %v9684, %v9700
  %v9706 = vadd.f32 %v9689, 0.0
  %v9707 = vadd.f32 %v9693, 0.0
  %v9708 = vadd.f32 %v9697, 0.0
  %v9709 = vadd.f32 %v9701, 0.0
  %v9710 = vpack.c.bf16 %v9248, %v9244
  %v9711 = vpack.c.bf16 %v9420, %v9416
  %v9712 = vpack.c.bf16 %v9592, %v9588
  %9713 = vmatprep.subr.bf16.mxu0 0
  %9714 = vmatpush1.bf16.xpose.msra.mxu0 0
  %9715 = vmatprep.subr.bf16.mxu0 0
  %9716 = vmatpush1.bf16.xpose.msra.mxu0 0
  %9717 = vmatprep.subr.bf16.mxu0 0
  %9718 = vmatpush1.bf16.xpose.msra.mxu0 0
  %9719 = vmatprep.subr.bf16.mxu0 0
  %9720 = vmatpush1.bf16.xpose.msra.mxu0 0
  %9721 = vmatprep.subr.bf16.mxu0 0
  %9722 = vmatpush1.bf16.xpose.msra.mxu0 0
  %9723 = vmatprep.subr.bf16.mxu0 0
  %9724 = vmatpush1.bf16.xpose.msra.mxu0 0
  %9725 = vmatprep.subr.bf16.mxu0 0
  %9726 = vmatpush1.bf16.xpose.msra.mxu0 0
  %9727 = vmatprep.subr.bf16.mxu0 0
  %9728 = vmatpush1.bf16.xpose.msra.mxu0 %v9711
  %9729 = vmatprep.subr.bf16.mxu0 0
  %9730 = vmatpush2.bf16.xpose.msra.mxu0 0
  %9731 = vmatprep.subr.bf16.mxu0 0
  %9732 = vmatpush2.bf16.xpose.msra.mxu0 0
  %9733 = vmatprep.subr.bf16.mxu0 0
  %9734 = vmatpush2.bf16.xpose.msra.mxu0 0
  %9735 = vmatprep.subr.bf16.mxu0 0
  %9736 = vmatpush2.bf16.xpose.msra.mxu0 0
  %9737 = vmatprep.subr.bf16.mxu0 0
  %9738 = vmatpush2.bf16.xpose.msra.mxu0 0
  %9739 = vmatprep.subr.bf16.mxu0 0
  %9740 = vmatpush2.bf16.xpose.msra.mxu0 0
  %9741 = vmatprep.subr.bf16.mxu0 0
  %9742 = vmatpush2.bf16.xpose.msra.mxu0 0
  %9743 = vmatprep.subr.bf16.mxu0 0
  %9744 = vmatpush2.bf16.xpose.msra.mxu0 0
  %9745 = vmatprep.mubr.bf16.mxu0 0
  %9746 = vmatmul.mubr.bf16.gmra.mxu0 %v9710
  %v9747 = vpop.f32.mrf.mxu0
  %v9748 = vadd.f32 %v9682, %v9747
  %v9749 = vpop.f32.mrf.mxu0
  %v9750 = vpop.f32.mrf.mxu0
  %v9751 = vadd.f32 %v9683, %v9750
  %v9752 = vpop.f32.mrf.mxu0
  %9753 = vdwg.mxu0
  %v9754 = vsel %vm2438, %v9748, -inf
  %9755 = vmax.xlane.f32.xlu0 %v9754
  %v9756 = vpop.xlane.xlu0 %9755
  %v9757 = vsel %vm2438, %v9751, -inf
  %9758 = vmax.xlane.f32.xlu0 %v9757
  %v9759 = vpop.xlane.xlu0 %9758
  %v9760 = vsub.f32 %v9748, %v9756
  %v9761 = vsub.f32 %v9751, %v9759
  %v9762 = vmul.f32 %v9760, 1.442695
  %v9763 = vpow.pop %v9762
  %v9764 = vmul.f32 %v9761, 1.442695
  %v9765 = vpow.pop %v9764
  %v9766 = vsel %vm2438, %v9763, 0.0
  %9767 = vadd.xlane.f32.xlu0 %v9766
  %v9768 = vpop.xlane.xlu0 %9767
  %v9769 = vsel %vm2438, %v9765, 0.0
  %9770 = vadd.xlane.f32.xlu0 %v9769
  %v9771 = vpop.xlane.xlu0 %9770
  %v9772 = vrcp.pop %v9768
  %v9773 = vrcp.pop %v9771
  %v9774 = vmul.f32 %v9763, %v9772
  %v9775 = vmul.f32 %v9765, %v9773
  %v9776 = vpack.c.bf16 %v9775, %v9774
  %v9778 = vsel %vm2438, %v9776, 0
  %9780 = vmatprep.subr.bf16.mxu0 0
  %9781 = vmatpush1.bf16.msra.mxu0 0
  %9782 = vmatprep.subr.bf16.mxu0 0
  %9783 = vmatpush1.bf16.msra.mxu0 0
  %9784 = vmatprep.subr.bf16.mxu0 0
  %9785 = vmatpush1.bf16.msra.mxu0 0
  %9786 = vmatprep.subr.bf16.mxu0 0
  %9787 = vmatpush1.bf16.msra.mxu0 0
  %9788 = vmatprep.subr.bf16.mxu0 0
  %9789 = vmatpush1.bf16.msra.mxu0 0
  %9790 = vmatprep.subr.bf16.mxu0 0
  %9791 = vmatpush1.bf16.msra.mxu0 0
  %9792 = vmatprep.subr.bf16.mxu0 0
  %9793 = vmatpush1.bf16.msra.mxu0 0
  %9794 = vmatprep.subr.bf16.mxu0 0
  %9795 = vmatpush1.bf16.msra.mxu0 %v9712
  %9796 = vmatprep.subr.bf16.mxu0 0
  %9797 = vmatpush2.bf16.msra.mxu0 0
  %9798 = vmatprep.subr.bf16.mxu0 0
  %9799 = vmatpush2.bf16.msra.mxu0 0
  %9800 = vmatprep.subr.bf16.mxu0 0
  %9801 = vmatpush2.bf16.msra.mxu0 0
  %9802 = vmatprep.subr.bf16.mxu0 0
  %9803 = vmatpush2.bf16.msra.mxu0 0
  %9804 = vmatprep.subr.bf16.mxu0 0
  %9805 = vmatpush2.bf16.msra.mxu0 0
  %9806 = vmatprep.subr.bf16.mxu0 0
  %9807 = vmatpush2.bf16.msra.mxu0 0
  %9808 = vmatprep.subr.bf16.mxu0 0
  %9809 = vmatpush2.bf16.msra.mxu0 0
  %9810 = vmatprep.subr.bf16.mxu0 0
  %9811 = vmatpush2.bf16.msra.mxu0 0
  %9812 = vmatprep.mubr.bf16.mxu0 0
  %9813 = vmatmul.mubr.bf16.gmra.mxu0 %v9778
  %v9814 = vpop.f32.mrf.mxu0
  %v9815 = vadd.f32 0.0, %v9814
  %v9816 = vpop.f32.mrf.mxu0
  %v9817 = vpop.f32.mrf.mxu0
  %v9818 = vadd.f32 0.0, %v9817
  %v9819 = vpop.f32.mrf.mxu0
  %9820 = vdwg.mxu0
  %v9821 = vpack.c.bf16 %v9818, %v9815
  %v9822 = vld [vmem:[%s39] sm:$0xff]
  %v9823 = vld [vmem:[%s39 + $0x8] sm:$0xff]
  %v9824 = vld [vmem:[%s39 + $0x10] sm:$0xff]
  %v9825 = vld [vmem:[%s39 + $0x18] sm:$0xff]
  %v9826 = vld [vmem:[%s39 + $0x20] sm:$0xff]
  %v9827 = vld [vmem:[%s39 + $0x28] sm:$0xff]
  %v9828 = vld [vmem:[%s39 + $0x30] sm:$0xff]
  %v9829 = vld [vmem:[%s39 + $0x38] sm:$0xff]
  %v9830 = vld [vmem:[%s39 + $0x40] sm:$0xff]
  %v9831 = vld [vmem:[%s39 + $0x48] sm:$0xff]
  %v9832 = vld [vmem:[%s39 + $0x50] sm:$0xff]
  %v9833 = vld [vmem:[%s39 + $0x58] sm:$0xff]
  %v9834 = vld [vmem:[%s39 + $0x60] sm:$0xff]
  %v9835 = vld [vmem:[%s39 + $0x68] sm:$0xff]
  %v9836 = vld [vmem:[%s39 + $0x70] sm:$0xff]
  %v9837 = vld [vmem:[%s39 + $0x78] sm:$0xff]
  %v9838 = vld [vmem:[%s39 + $0x80] sm:$0xff]
  %v9839 = vld [vmem:[%s39 + $0x88] sm:$0xff]
  %v9840 = vld [vmem:[%s39 + $0x90] sm:$0xff]
  %v9841 = vld [vmem:[%s39 + $0x98] sm:$0xff]
  %v9842 = vld [vmem:[%s39 + $0xa0] sm:$0xff]
  %v9843 = vld [vmem:[%s39 + $0xa8] sm:$0xff]
  %v9844 = vld [vmem:[%s39 + $0xb0] sm:$0xff]
  %v9845 = vld [vmem:[%s39 + $0xb8] sm:$0xff]
  %v9846 = vld [vmem:[%s39 + $0xc0] sm:$0xff]
  %v9847 = vld [vmem:[%s39 + $0xc8] sm:$0xff]
  %v9848 = vld [vmem:[%s39 + $0xd0] sm:$0xff]
  %v9849 = vld [vmem:[%s39 + $0xd8] sm:$0xff]
  %v9850 = vld [vmem:[%s39 + $0xe0] sm:$0xff]
  %v9851 = vld [vmem:[%s39 + $0xe8] sm:$0xff]
  %v9852 = vld [vmem:[%s39 + $0xf0] sm:$0xff]
  %v9853 = vld [vmem:[%s39 + $0xf8] sm:$0xff]
  %v9886 = vunpack.c.l.b16 %v9822
  %v9887 = vunpack.c.h.b16 %v9822
  %v9888 = vunpack.c.l.b16 %v9823
  %v9889 = vunpack.c.h.b16 %v9823
  %v9890 = vunpack.c.l.b16 %v9824
  %v9891 = vunpack.c.h.b16 %v9824
  %v9892 = vunpack.c.l.b16 %v9825
  %v9893 = vunpack.c.h.b16 %v9825
  %v9894 = vunpack.c.l.b16 %v9826
  %v9895 = vunpack.c.h.b16 %v9826
  %v9896 = vunpack.c.l.b16 %v9827
  %v9897 = vunpack.c.h.b16 %v9827
  %v9898 = vunpack.c.l.b16 %v9828
  %v9899 = vunpack.c.h.b16 %v9828
  %v9900 = vunpack.c.l.b16 %v9829
  %v9901 = vunpack.c.h.b16 %v9829
  %v9902 = vunpack.c.l.b16 %v9830
  %v9903 = vunpack.c.h.b16 %v9830
  %v9904 = vunpack.c.l.b16 %v9831
  %v9905 = vunpack.c.h.b16 %v9831
  %v9906 = vunpack.c.l.b16 %v9832
  %v9907 = vunpack.c.h.b16 %v9832
  %v9908 = vunpack.c.l.b16 %v9833
  %v9909 = vunpack.c.h.b16 %v9833
  %v9910 = vunpack.c.l.b16 %v9834
  %v9911 = vunpack.c.h.b16 %v9834
  %v9912 = vunpack.c.l.b16 %v9835
  %v9913 = vunpack.c.h.b16 %v9835
  %v9914 = vunpack.c.l.b16 %v9836
  %v9915 = vunpack.c.h.b16 %v9836
  %v9916 = vunpack.c.l.b16 %v9837
  %v9917 = vunpack.c.h.b16 %v9837
  %v9918 = vunpack.c.l.b16 %v9838
  %v9919 = vunpack.c.h.b16 %v9838
  %v9920 = vunpack.c.l.b16 %v9839
  %v9921 = vunpack.c.h.b16 %v9839
  %v9922 = vunpack.c.l.b16 %v9840
  %v9923 = vunpack.c.h.b16 %v9840
  %v9924 = vunpack.c.l.b16 %v9841
  %v9925 = vunpack.c.h.b16 %v9841
  %v9926 = vunpack.c.l.b16 %v9842
  %v9927 = vunpack.c.h.b16 %v9842
  %v9928 = vunpack.c.l.b16 %v9843
  %v9929 = vunpack.c.h.b16 %v9843
  %v9930 = vunpack.c.l.b16 %v9844
  %v9931 = vunpack.c.h.b16 %v9844
  %v9932 = vunpack.c.l.b16 %v9845
  %v9933 = vunpack.c.h.b16 %v9845
  %v9934 = vunpack.c.l.b16 %v9846
  %v9935 = vunpack.c.h.b16 %v9846
  %v9936 = vunpack.c.l.b16 %v9847
  %v9937 = vunpack.c.h.b16 %v9847
  %v9938 = vunpack.c.l.b16 %v9848
  %v9939 = vunpack.c.h.b16 %v9848
  %v9940 = vunpack.c.l.b16 %v9849
  %v9941 = vunpack.c.h.b16 %v9849
  %v9942 = vunpack.c.l.b16 %v9850
  %v9943 = vunpack.c.h.b16 %v9850
  %v9944 = vunpack.c.l.b16 %v9851
  %v9945 = vunpack.c.h.b16 %v9851
  %v9946 = vunpack.c.l.b16 %v9852
  %v9947 = vunpack.c.h.b16 %v9852
  %v9948 = vunpack.c.l.b16 %v9853
  %v9949 = vunpack.c.h.b16 %v9853
  %v9950 = vpack.c.b16 %v9890, %v9886
  %v9951 = vpack.c.b16 %v9891, %v9887
  %v9952 = vpack.c.b16 %v9892, %v9888
  %v9953 = vpack.c.b16 %v9893, %v9889
  %v9954 = vpack.c.b16 %v9898, %v9894
  %v9955 = vpack.c.b16 %v9899, %v9895
  %v9956 = vpack.c.b16 %v9900, %v9896
  %v9957 = vpack.c.b16 %v9901, %v9897
  %v9958 = vpack.c.b16 %v9906, %v9902
  %v9959 = vpack.c.b16 %v9907, %v9903
  %v9960 = vpack.c.b16 %v9908, %v9904
  %v9961 = vpack.c.b16 %v9909, %v9905
  %v9962 = vpack.c.b16 %v9914, %v9910
  %v9963 = vpack.c.b16 %v9915, %v9911
  %v9964 = vpack.c.b16 %v9916, %v9912
  %v9965 = vpack.c.b16 %v9917, %v9913
  %v9966 = vpack.c.b16 %v9922, %v9918
  %v9967 = vpack.c.b16 %v9923, %v9919
  %v9968 = vpack.c.b16 %v9924, %v9920
  %v9969 = vpack.c.b16 %v9925, %v9921
  %v9970 = vpack.c.b16 %v9930, %v9926
  %v9971 = vpack.c.b16 %v9931, %v9927
  %v9972 = vpack.c.b16 %v9932, %v9928
  %v9973 = vpack.c.b16 %v9933, %v9929
  %v9974 = vpack.c.b16 %v9938, %v9934
  %v9975 = vpack.c.b16 %v9939, %v9935
  %v9976 = vpack.c.b16 %v9940, %v9936
  %v9977 = vpack.c.b16 %v9941, %v9937
  %v9978 = vpack.c.b16 %v9946, %v9942
  %v9979 = vpack.c.b16 %v9947, %v9943
  %v9980 = vpack.c.b16 %v9948, %v9944
  %v9981 = vpack.c.b16 %v9949, %v9945
  %10014 = vmatprep.subr.bf16.mxu0 %v9979
  %10015 = vmatpush1.bf16.msra.mxu0 %v9978
  %10016 = vmatprep.subr.bf16.mxu0 %v9975
  %10017 = vmatpush1.bf16.msra.mxu0 %v9974
  %10018 = vmatprep.subr.bf16.mxu0 %v9971
  %10019 = vmatpush1.bf16.msra.mxu0 %v9970
  %10020 = vmatprep.subr.bf16.mxu0 %v9967
  %10021 = vmatpush1.bf16.msra.mxu0 %v9966
  %10022 = vmatprep.subr.bf16.mxu0 %v9963
  %10023 = vmatpush1.bf16.msra.mxu0 %v9962
  %10024 = vmatprep.subr.bf16.mxu0 %v9959
  %10025 = vmatpush1.bf16.msra.mxu0 %v9958
  %10026 = vmatprep.subr.bf16.mxu0 %v9955
  %10027 = vmatpush1.bf16.msra.mxu0 %v9954
  %10028 = vmatprep.subr.bf16.mxu0 %v9951
  %10029 = vmatpush1.bf16.msra.mxu0 %v9950
  %10030 = vmatprep.subr.bf16.mxu0 0
  %10031 = vmatpush2.bf16.msra.mxu0 0
  %10032 = vmatprep.subr.bf16.mxu0 0
  %10033 = vmatpush2.bf16.msra.mxu0 0
  %10034 = vmatprep.subr.bf16.mxu0 0
  %10035 = vmatpush2.bf16.msra.mxu0 0
  %10036 = vmatprep.subr.bf16.mxu0 0
  %10037 = vmatpush2.bf16.msra.mxu0 0
  %10038 = vmatprep.subr.bf16.mxu0 0
  %10039 = vmatpush2.bf16.msra.mxu0 0
  %10040 = vmatprep.subr.bf16.mxu0 0
  %10041 = vmatpush2.bf16.msra.mxu0 0
  %10042 = vmatprep.subr.bf16.mxu0 0
  %10043 = vmatpush2.bf16.msra.mxu0 0
  %10044 = vmatprep.subr.bf16.mxu0 0
  %10045 = vmatpush2.bf16.msra.mxu0 0
  %10046 = vmatprep.mubr.bf16.mxu0 0
  %10047 = vmatmul.mubr.bf16.gmra.mxu0 %v9821
  %v10048 = vpop.f32.mrf.mxu0
  %v10049 = vadd.f32 0.0, %v10048
  %v10050 = vpop.f32.mrf.mxu0
  %v10051 = vadd.f32 0.0, %v10050
  %v10052 = vpop.f32.mrf.mxu0
  %v10053 = vadd.f32 0.0, %v10052
  %v10054 = vpop.f32.mrf.mxu0
  %v10055 = vadd.f32 0.0, %v10054
  %10056 = vdwg.mxu0
  %10057 = vmatprep.subr.bf16.mxu0 %v9981
  %10058 = vmatpush1.bf16.msra.mxu0 %v9980
  %10059 = vmatprep.subr.bf16.mxu0 %v9977
  %10060 = vmatpush1.bf16.msra.mxu0 %v9976
  %10061 = vmatprep.subr.bf16.mxu0 %v9973
  %10062 = vmatpush1.bf16.msra.mxu0 %v9972
  %10063 = vmatprep.subr.bf16.mxu0 %v9969
  %10064 = vmatpush1.bf16.msra.mxu0 %v9968
  %10065 = vmatprep.subr.bf16.mxu0 %v9965
  %10066 = vmatpush1.bf16.msra.mxu0 %v9964
  %10067 = vmatprep.subr.bf16.mxu0 %v9961
  %10068 = vmatpush1.bf16.msra.mxu0 %v9960
  %10069 = vmatprep.subr.bf16.mxu0 %v9957
  %10070 = vmatpush1.bf16.msra.mxu0 %v9956
  %10071 = vmatprep.subr.bf16.mxu0 %v9953
  %10072 = vmatpush1.bf16.msra.mxu0 %v9952
  %10073 = vmatprep.subr.bf16.mxu0 0
  %10074 = vmatpush2.bf16.msra.mxu0 0
  %10075 = vmatprep.subr.bf16.mxu0 0
  %10076 = vmatpush2.bf16.msra.mxu0 0
  %10077 = vmatprep.subr.bf16.mxu0 0
  %10078 = vmatpush2.bf16.msra.mxu0 0
  %10079 = vmatprep.subr.bf16.mxu0 0
  %10080 = vmatpush2.bf16.msra.mxu0 0
  %10081 = vmatprep.subr.bf16.mxu0 0
  %10082 = vmatpush2.bf16.msra.mxu0 0
  %10083 = vmatprep.subr.bf16.mxu0 0
  %10084 = vmatpush2.bf16.msra.mxu0 0
  %10085 = vmatprep.subr.bf16.mxu0 0
  %10086 = vmatpush2.bf16.msra.mxu0 0
  %10087 = vmatprep.subr.bf16.mxu0 0
  %10088 = vmatpush2.bf16.msra.mxu0 0
  %10089 = vmatprep.mubr.bf16.mxu0 0
  %10090 = vmatmul.mubr.bf16.gmra.mxu0 %v9821
  %v10091 = vpop.f32.mrf.mxu0
  %v10092 = vadd.f32 0.0, %v10091
  %v10093 = vpop.f32.mrf.mxu0
  %v10094 = vadd.f32 0.0, %v10093
  %v10095 = vpop.f32.mrf.mxu0
  %v10096 = vadd.f32 0.0, %v10095
  %v10097 = vpop.f32.mrf.mxu0
  %v10098 = vadd.f32 0.0, %v10097
  %10099 = vdwg.mxu0
  %v10100 = vadd.f32 %v9706, %v10049
  %v10101 = vadd.f32 %v9707, %v10051
  %v10102 = vadd.f32 %v9708, %v10092
  %v10103 = vadd.f32 %v9709, %v10094
  %v10104 = vadd.f32 %v9706, %v10053
  %v10105 = vadd.f32 %v9707, %v10055
  %v10106 = vadd.f32 %v9708, %v10096
  %v10107 = vadd.f32 %v9709, %v10098
  %v10108 = vpack.c.bf16 %v9250, %v9246
  %v10109 = vpack.c.bf16 %v9422, %v9418
  %v10110 = vpack.c.bf16 %v9594, %v9590
  %10111 = vmatprep.subr.bf16.mxu0 0
  %10112 = vmatpush1.bf16.xpose.msra.mxu0 0
  %10113 = vmatprep.subr.bf16.mxu0 0
  %10114 = vmatpush1.bf16.xpose.msra.mxu0 0
  %10115 = vmatprep.subr.bf16.mxu0 0
  %10116 = vmatpush1.bf16.xpose.msra.mxu0 0
  %10117 = vmatprep.subr.bf16.mxu0 0
  %10118 = vmatpush1.bf16.xpose.msra.mxu0 0
  %10119 = vmatprep.subr.bf16.mxu0 0
  %10120 = vmatpush1.bf16.xpose.msra.mxu0 0
  %10121 = vmatprep.subr.bf16.mxu0 0
  %10122 = vmatpush1.bf16.xpose.msra.mxu0 0
  %10123 = vmatprep.subr.bf16.mxu0 0
  %10124 = vmatpush1.bf16.xpose.msra.mxu0 0
  %10125 = vmatprep.subr.bf16.mxu0 0
  %10126 = vmatpush1.bf16.xpose.msra.mxu0 %v10109
  %10127 = vmatprep.subr.bf16.mxu0 0
  %10128 = vmatpush2.bf16.xpose.msra.mxu0 0
  %10129 = vmatprep.subr.bf16.mxu0 0
  %10130 = vmatpush2.bf16.xpose.msra.mxu0 0
  %10131 = vmatprep.subr.bf16.mxu0 0
  %10132 = vmatpush2.bf16.xpose.msra.mxu0 0
  %10133 = vmatprep.subr.bf16.mxu0 0
  %10134 = vmatpush2.bf16.xpose.msra.mxu0 0
  %10135 = vmatprep.subr.bf16.mxu0 0
  %10136 = vmatpush2.bf16.xpose.msra.mxu0 0
  %10137 = vmatprep.subr.bf16.mxu0 0
  %10138 = vmatpush2.bf16.xpose.msra.mxu0 0
  %10139 = vmatprep.subr.bf16.mxu0 0
  %10140 = vmatpush2.bf16.xpose.msra.mxu0 0
  %10141 = vmatprep.subr.bf16.mxu0 0
  %10142 = vmatpush2.bf16.xpose.msra.mxu0 0
  %10143 = vmatprep.mubr.bf16.mxu0 0
  %10144 = vmatmul.mubr.bf16.gmra.mxu0 %v10108
  %v10145 = vpop.f32.mrf.mxu0
  %v10146 = vadd.f32 %v9682, %v10145
  %v10147 = vpop.f32.mrf.mxu0
  %v10148 = vpop.f32.mrf.mxu0
  %v10149 = vadd.f32 %v9683, %v10148
  %v10150 = vpop.f32.mrf.mxu0
  %10151 = vdwg.mxu0
  %v10152 = vsel %vm2438, %v10146, -inf
  %10153 = vmax.xlane.f32.xlu0 %v10152
  %v10154 = vpop.xlane.xlu0 %10153
  %v10155 = vsel %vm2438, %v10149, -inf
  %10156 = vmax.xlane.f32.xlu0 %v10155
  %v10157 = vpop.xlane.xlu0 %10156
  %v10158 = vsub.f32 %v10146, %v10154
  %v10159 = vsub.f32 %v10149, %v10157
  %v10160 = vmul.f32 %v10158, 1.442695
  %v10161 = vpow.pop %v10160
  %v10162 = vmul.f32 %v10159, 1.442695
  %v10163 = vpow.pop %v10162
  %v10164 = vsel %vm2438, %v10161, 0.0
  %10165 = vadd.xlane.f32.xlu0 %v10164
  %v10166 = vpop.xlane.xlu0 %10165
  %v10167 = vsel %vm2438, %v10163, 0.0
  %10168 = vadd.xlane.f32.xlu0 %v10167
  %v10169 = vpop.xlane.xlu0 %10168
  %v10170 = vrcp.pop %v10166
  %v10171 = vrcp.pop %v10169
  %v10172 = vmul.f32 %v10161, %v10170
  %v10173 = vmul.f32 %v10163, %v10171
  %v10174 = vpack.c.bf16 %v10173, %v10172
  %v10176 = vsel %vm2438, %v10174, 0
  %10178 = vmatprep.subr.bf16.mxu0 0
  %10179 = vmatpush1.bf16.msra.mxu0 0
  %10180 = vmatprep.subr.bf16.mxu0 0
  %10181 = vmatpush1.bf16.msra.mxu0 0
  %10182 = vmatprep.subr.bf16.mxu0 0
  %10183 = vmatpush1.bf16.msra.mxu0 0
  %10184 = vmatprep.subr.bf16.mxu0 0
  %10185 = vmatpush1.bf16.msra.mxu0 0
  %10186 = vmatprep.subr.bf16.mxu0 0
  %10187 = vmatpush1.bf16.msra.mxu0 0
  %10188 = vmatprep.subr.bf16.mxu0 0
  %10189 = vmatpush1.bf16.msra.mxu0 0
  %10190 = vmatprep.subr.bf16.mxu0 0
  %10191 = vmatpush1.bf16.msra.mxu0 0
  %10192 = vmatprep.subr.bf16.mxu0 0
  %10193 = vmatpush1.bf16.msra.mxu0 %v10110
  %10194 = vmatprep.subr.bf16.mxu0 0
  %10195 = vmatpush2.bf16.msra.mxu0 0
  %10196 = vmatprep.subr.bf16.mxu0 0
  %10197 = vmatpush2.bf16.msra.mxu0 0
  %10198 = vmatprep.subr.bf16.mxu0 0
  %10199 = vmatpush2.bf16.msra.mxu0 0
  %10200 = vmatprep.subr.bf16.mxu0 0
  %10201 = vmatpush2.bf16.msra.mxu0 0
  %10202 = vmatprep.subr.bf16.mxu0 0
  %10203 = vmatpush2.bf16.msra.mxu0 0
  %10204 = vmatprep.subr.bf16.mxu0 0
  %10205 = vmatpush2.bf16.msra.mxu0 0
  %10206 = vmatprep.subr.bf16.mxu0 0
  %10207 = vmatpush2.bf16.msra.mxu0 0
  %10208 = vmatprep.subr.bf16.mxu0 0
  %10209 = vmatpush2.bf16.msra.mxu0 0
  %10210 = vmatprep.mubr.bf16.mxu0 0
  %10211 = vmatmul.mubr.bf16.gmra.mxu0 %v10176
  %v10212 = vpop.f32.mrf.mxu0
  %v10213 = vadd.f32 0.0, %v10212
  %v10214 = vpop.f32.mrf.mxu0
  %v10215 = vpop.f32.mrf.mxu0
  %v10216 = vadd.f32 0.0, %v10215
  %v10217 = vpop.f32.mrf.mxu0
  %10218 = vdwg.mxu0
  %v10219 = vpack.c.bf16 %v10216, %v10213
  %v10220 = vld [vmem:[%s39 + $0x100] sm:$0xff]
  %v10221 = vld [vmem:[%s39 + $0x108] sm:$0xff]
  %v10222 = vld [vmem:[%s39 + $0x110] sm:$0xff]
  %v10223 = vld [vmem:[%s39 + $0x118] sm:$0xff]
  %v10224 = vld [vmem:[%s39 + $0x120] sm:$0xff]
  %v10225 = vld [vmem:[%s39 + $0x128] sm:$0xff]
  %v10226 = vld [vmem:[%s39 + $0x130] sm:$0xff]
  %v10227 = vld [vmem:[%s39 + $0x138] sm:$0xff]
  %v10228 = vld [vmem:[%s39 + $0x140] sm:$0xff]
  %v10229 = vld [vmem:[%s39 + $0x148] sm:$0xff]
  %v10230 = vld [vmem:[%s39 + $0x150] sm:$0xff]
  %v10231 = vld [vmem:[%s39 + $0x158] sm:$0xff]
  %v10232 = vld [vmem:[%s39 + $0x160] sm:$0xff]
  %v10233 = vld [vmem:[%s39 + $0x168] sm:$0xff]
  %v10234 = vld [vmem:[%s39 + $0x170] sm:$0xff]
  %v10235 = vld [vmem:[%s39 + $0x178] sm:$0xff]
  %v10236 = vld [vmem:[%s39 + $0x180] sm:$0xff]
  %v10237 = vld [vmem:[%s39 + $0x188] sm:$0xff]
  %v10238 = vld [vmem:[%s39 + $0x190] sm:$0xff]
  %v10239 = vld [vmem:[%s39 + $0x198] sm:$0xff]
  %v10240 = vld [vmem:[%s39 + $0x1a0] sm:$0xff]
  %v10241 = vld [vmem:[%s39 + $0x1a8] sm:$0xff]
  %v10242 = vld [vmem:[%s39 + $0x1b0] sm:$0xff]
  %v10243 = vld [vmem:[%s39 + $0x1b8] sm:$0xff]
  %v10244 = vld [vmem:[%s39 + $0x1c0] sm:$0xff]
  %v10245 = vld [vmem:[%s39 + $0x1c8] sm:$0xff]
  %v10246 = vld [vmem:[%s39 + $0x1d0] sm:$0xff]
  %v10247 = vld [vmem:[%s39 + $0x1d8] sm:$0xff]
  %v10248 = vld [vmem:[%s39 + $0x1e0] sm:$0xff]
  %v10249 = vld [vmem:[%s39 + $0x1e8] sm:$0xff]
  %v10250 = vld [vmem:[%s39 + $0x1f0] sm:$0xff]
  %v10251 = vld [vmem:[%s39 + $0x1f8] sm:$0xff]
  %v10284 = vunpack.c.l.b16 %v10220
  %v10285 = vunpack.c.h.b16 %v10220
  %v10286 = vunpack.c.l.b16 %v10221
  %v10287 = vunpack.c.h.b16 %v10221
  %v10288 = vunpack.c.l.b16 %v10222
  %v10289 = vunpack.c.h.b16 %v10222
  %v10290 = vunpack.c.l.b16 %v10223
  %v10291 = vunpack.c.h.b16 %v10223
  %v10292 = vunpack.c.l.b16 %v10224
  %v10293 = vunpack.c.h.b16 %v10224
  %v10294 = vunpack.c.l.b16 %v10225
  %v10295 = vunpack.c.h.b16 %v10225
  %v10296 = vunpack.c.l.b16 %v10226
  %v10297 = vunpack.c.h.b16 %v10226
  %v10298 = vunpack.c.l.b16 %v10227
  %v10299 = vunpack.c.h.b16 %v10227
  %v10300 = vunpack.c.l.b16 %v10228
  %v10301 = vunpack.c.h.b16 %v10228
  %v10302 = vunpack.c.l.b16 %v10229
  %v10303 = vunpack.c.h.b16 %v10229
  %v10304 = vunpack.c.l.b16 %v10230
  %v10305 = vunpack.c.h.b16 %v10230
  %v10306 = vunpack.c.l.b16 %v10231
  %v10307 = vunpack.c.h.b16 %v10231
  %v10308 = vunpack.c.l.b16 %v10232
  %v10309 = vunpack.c.h.b16 %v10232
  %v10310 = vunpack.c.l.b16 %v10233
  %v10311 = vunpack.c.h.b16 %v10233
  %v10312 = vunpack.c.l.b16 %v10234
  %v10313 = vunpack.c.h.b16 %v10234
  %v10314 = vunpack.c.l.b16 %v10235
  %v10315 = vunpack.c.h.b16 %v10235
  %v10316 = vunpack.c.l.b16 %v10236
  %v10317 = vunpack.c.h.b16 %v10236
  %v10318 = vunpack.c.l.b16 %v10237
  %v10319 = vunpack.c.h.b16 %v10237
  %v10320 = vunpack.c.l.b16 %v10238
  %v10321 = vunpack.c.h.b16 %v10238
  %v10322 = vunpack.c.l.b16 %v10239
  %v10323 = vunpack.c.h.b16 %v10239
  %v10324 = vunpack.c.l.b16 %v10240
  %v10325 = vunpack.c.h.b16 %v10240
  %v10326 = vunpack.c.l.b16 %v10241
  %v10327 = vunpack.c.h.b16 %v10241
  %v10328 = vunpack.c.l.b16 %v10242
  %v10329 = vunpack.c.h.b16 %v10242
  %v10330 = vunpack.c.l.b16 %v10243
  %v10331 = vunpack.c.h.b16 %v10243
  %v10332 = vunpack.c.l.b16 %v10244
  %v10333 = vunpack.c.h.b16 %v10244
  %v10334 = vunpack.c.l.b16 %v10245
  %v10335 = vunpack.c.h.b16 %v10245
  %v10336 = vunpack.c.l.b16 %v10246
  %v10337 = vunpack.c.h.b16 %v10246
  %v10338 = vunpack.c.l.b16 %v10247
  %v10339 = vunpack.c.h.b16 %v10247
  %v10340 = vunpack.c.l.b16 %v10248
  %v10341 = vunpack.c.h.b16 %v10248
  %v10342 = vunpack.c.l.b16 %v10249
  %v10343 = vunpack.c.h.b16 %v10249
  %v10344 = vunpack.c.l.b16 %v10250
  %v10345 = vunpack.c.h.b16 %v10250
  %v10346 = vunpack.c.l.b16 %v10251
  %v10347 = vunpack.c.h.b16 %v10251
  %v10348 = vpack.c.b16 %v10288, %v10284
  %v10349 = vpack.c.b16 %v10289, %v10285
  %v10350 = vpack.c.b16 %v10290, %v10286
  %v10351 = vpack.c.b16 %v10291, %v10287
  %v10352 = vpack.c.b16 %v10296, %v10292
  %v10353 = vpack.c.b16 %v10297, %v10293
  %v10354 = vpack.c.b16 %v10298, %v10294
  %v10355 = vpack.c.b16 %v10299, %v10295
  %v10356 = vpack.c.b16 %v10304, %v10300
  %v10357 = vpack.c.b16 %v10305, %v10301
  %v10358 = vpack.c.b16 %v10306, %v10302
  %v10359 = vpack.c.b16 %v10307, %v10303
  %v10360 = vpack.c.b16 %v10312, %v10308
  %v10361 = vpack.c.b16 %v10313, %v10309
  %v10362 = vpack.c.b16 %v10314, %v10310
  %v10363 = vpack.c.b16 %v10315, %v10311
  %v10364 = vpack.c.b16 %v10320, %v10316
  %v10365 = vpack.c.b16 %v10321, %v10317
  %v10366 = vpack.c.b16 %v10322, %v10318
  %v10367 = vpack.c.b16 %v10323, %v10319
  %v10368 = vpack.c.b16 %v10328, %v10324
  %v10369 = vpack.c.b16 %v10329, %v10325
  %v10370 = vpack.c.b16 %v10330, %v10326
  %v10371 = vpack.c.b16 %v10331, %v10327
  %v10372 = vpack.c.b16 %v10336, %v10332
  %v10373 = vpack.c.b16 %v10337, %v10333
  %v10374 = vpack.c.b16 %v10338, %v10334
  %v10375 = vpack.c.b16 %v10339, %v10335
  %v10376 = vpack.c.b16 %v10344, %v10340
  %v10377 = vpack.c.b16 %v10345, %v10341
  %v10378 = vpack.c.b16 %v10346, %v10342
  %v10379 = vpack.c.b16 %v10347, %v10343
  %10412 = vmatprep.subr.bf16.mxu0 %v10377
  %10413 = vmatpush1.bf16.msra.mxu0 %v10376
  %10414 = vmatprep.subr.bf16.mxu0 %v10373
  %10415 = vmatpush1.bf16.msra.mxu0 %v10372
  %10416 = vmatprep.subr.bf16.mxu0 %v10369
  %10417 = vmatpush1.bf16.msra.mxu0 %v10368
  %10418 = vmatprep.subr.bf16.mxu0 %v10365
  %10419 = vmatpush1.bf16.msra.mxu0 %v10364
  %10420 = vmatprep.subr.bf16.mxu0 %v10361
  %10421 = vmatpush1.bf16.msra.mxu0 %v10360
  %10422 = vmatprep.subr.bf16.mxu0 %v10357
  %10423 = vmatpush1.bf16.msra.mxu0 %v10356
  %10424 = vmatprep.subr.bf16.mxu0 %v10353
  %10425 = vmatpush1.bf16.msra.mxu0 %v10352
  %10426 = vmatprep.subr.bf16.mxu0 %v10349
  %10427 = vmatpush1.bf16.msra.mxu0 %v10348
  %10428 = vmatprep.subr.bf16.mxu0 0
  %10429 = vmatpush2.bf16.msra.mxu0 0
  %10430 = vmatprep.subr.bf16.mxu0 0
  %10431 = vmatpush2.bf16.msra.mxu0 0
  %10432 = vmatprep.subr.bf16.mxu0 0
  %10433 = vmatpush2.bf16.msra.mxu0 0
  %10434 = vmatprep.subr.bf16.mxu0 0
  %10435 = vmatpush2.bf16.msra.mxu0 0
  %10436 = vmatprep.subr.bf16.mxu0 0
  %10437 = vmatpush2.bf16.msra.mxu0 0
  %10438 = vmatprep.subr.bf16.mxu0 0
  %10439 = vmatpush2.bf16.msra.mxu0 0
  %10440 = vmatprep.subr.bf16.mxu0 0
  %10441 = vmatpush2.bf16.msra.mxu0 0
  %10442 = vmatprep.subr.bf16.mxu0 0
  %10443 = vmatpush2.bf16.msra.mxu0 0
  %10444 = vmatprep.mubr.bf16.mxu0 0
  %10445 = vmatmul.mubr.bf16.gmra.mxu0 %v10219
  %v10446 = vpop.f32.mrf.mxu0
  %v10447 = vadd.f32 0.0, %v10446
  %v10448 = vpop.f32.mrf.mxu0
  %v10449 = vadd.f32 0.0, %v10448
  %v10450 = vpop.f32.mrf.mxu0
  %v10451 = vadd.f32 0.0, %v10450
  %v10452 = vpop.f32.mrf.mxu0
  %v10453 = vadd.f32 0.0, %v10452
  %10454 = vdwg.mxu0
  %10455 = vmatprep.subr.bf16.mxu0 %v10379
  %10456 = vmatpush1.bf16.msra.mxu0 %v10378
  %10457 = vmatprep.subr.bf16.mxu0 %v10375
  %10458 = vmatpush1.bf16.msra.mxu0 %v10374
  %10459 = vmatprep.subr.bf16.mxu0 %v10371
  %10460 = vmatpush1.bf16.msra.mxu0 %v10370
  %10461 = vmatprep.subr.bf16.mxu0 %v10367
  %10462 = vmatpush1.bf16.msra.mxu0 %v10366
  %10463 = vmatprep.subr.bf16.mxu0 %v10363
  %10464 = vmatpush1.bf16.msra.mxu0 %v10362
  %10465 = vmatprep.subr.bf16.mxu0 %v10359
  %10466 = vmatpush1.bf16.msra.mxu0 %v10358
  %10467 = vmatprep.subr.bf16.mxu0 %v10355
  %10468 = vmatpush1.bf16.msra.mxu0 %v10354
  %10469 = vmatprep.subr.bf16.mxu0 %v10351
  %10470 = vmatpush1.bf16.msra.mxu0 %v10350
  %10471 = vmatprep.subr.bf16.mxu0 0
  %10472 = vmatpush2.bf16.msra.mxu0 0
  %10473 = vmatprep.subr.bf16.mxu0 0
  %10474 = vmatpush2.bf16.msra.mxu0 0
  %10475 = vmatprep.subr.bf16.mxu0 0
  %10476 = vmatpush2.bf16.msra.mxu0 0
  %10477 = vmatprep.subr.bf16.mxu0 0
  %10478 = vmatpush2.bf16.msra.mxu0 0
  %10479 = vmatprep.subr.bf16.mxu0 0
  %10480 = vmatpush2.bf16.msra.mxu0 0
  %10481 = vmatprep.subr.bf16.mxu0 0
  %10482 = vmatpush2.bf16.msra.mxu0 0
  %10483 = vmatprep.subr.bf16.mxu0 0
  %10484 = vmatpush2.bf16.msra.mxu0 0
  %10485 = vmatprep.subr.bf16.mxu0 0
  %10486 = vmatpush2.bf16.msra.mxu0 0
  %10487 = vmatprep.mubr.bf16.mxu0 0
  %10488 = vmatmul.mubr.bf16.gmra.mxu0 %v10219
  %v10489 = vpop.f32.mrf.mxu0
  %v10490 = vadd.f32 0.0, %v10489
  %v10491 = vpop.f32.mrf.mxu0
  %v10492 = vadd.f32 0.0, %v10491
  %v10493 = vpop.f32.mrf.mxu0
  %v10494 = vadd.f32 0.0, %v10493
  %v10495 = vpop.f32.mrf.mxu0
  %v10496 = vadd.f32 0.0, %v10495
  %10497 = vdwg.mxu0
  %v10498 = vadd.f32 %v10100, %v10447
  %v10499 = vadd.f32 %v10101, %v10449
  %v10500 = vadd.f32 %v10102, %v10490
  %v10501 = vadd.f32 %v10103, %v10492
  %v10502 = vadd.f32 %v10104, %v10451
  %v10503 = vadd.f32 %v10105, %v10453
  %v10504 = vadd.f32 %v10106, %v10494
  %v10505 = vadd.f32 %v10107, %v10496
  %v10506 = vpack.c.bf16 %v9334, %v9330
  %v10507 = vpack.c.bf16 %v9506, %v9502
  %v10508 = vpack.c.bf16 %v9678, %v9674
  %10509 = vmatprep.subr.bf16.mxu0 0
  %10510 = vmatpush1.bf16.xpose.msra.mxu0 0
  %10511 = vmatprep.subr.bf16.mxu0 0
  %10512 = vmatpush1.bf16.xpose.msra.mxu0 0
  %10513 = vmatprep.subr.bf16.mxu0 0
  %10514 = vmatpush1.bf16.xpose.msra.mxu0 0
  %10515 = vmatprep.subr.bf16.mxu0 0
  %10516 = vmatpush1.bf16.xpose.msra.mxu0 0
  %10517 = vmatprep.subr.bf16.mxu0 0
  %10518 = vmatpush1.bf16.xpose.msra.mxu0 0
  %10519 = vmatprep.subr.bf16.mxu0 0
  %10520 = vmatpush1.bf16.xpose.msra.mxu0 0
  %10521 = vmatprep.subr.bf16.mxu0 0
  %10522 = vmatpush1.bf16.xpose.msra.mxu0 0
  %10523 = vmatprep.subr.bf16.mxu0 0
  %10524 = vmatpush1.bf16.xpose.msra.mxu0 %v10507
  %10525 = vmatprep.subr.bf16.mxu0 0
  %10526 = vmatpush2.bf16.xpose.msra.mxu0 0
  %10527 = vmatprep.subr.bf16.mxu0 0
  %10528 = vmatpush2.bf16.xpose.msra.mxu0 0
  %10529 = vmatprep.subr.bf16.mxu0 0
  %10530 = vmatpush2.bf16.xpose.msra.mxu0 0
  %10531 = vmatprep.subr.bf16.mxu0 0
  %10532 = vmatpush2.bf16.xpose.msra.mxu0 0
  %10533 = vmatprep.subr.bf16.mxu0 0
  %10534 = vmatpush2.bf16.xpose.msra.mxu0 0
  %10535 = vmatprep.subr.bf16.mxu0 0
  %10536 = vmatpush2.bf16.xpose.msra.mxu0 0
  %10537 = vmatprep.subr.bf16.mxu0 0
  %10538 = vmatpush2.bf16.xpose.msra.mxu0 0
  %10539 = vmatprep.subr.bf16.mxu0 0
  %10540 = vmatpush2.bf16.xpose.msra.mxu0 0
  %10541 = vmatprep.mubr.bf16.mxu0 0
  %10542 = vmatmul.mubr.bf16.gmra.mxu0 %v10506
  %v10543 = vpop.f32.mrf.mxu0
  %v10544 = vadd.f32 %v9682, %v10543
  %v10545 = vpop.f32.mrf.mxu0
  %v10546 = vpop.f32.mrf.mxu0
  %v10547 = vadd.f32 %v9683, %v10546
  %v10548 = vpop.f32.mrf.mxu0
  %10549 = vdwg.mxu0
  %v10550 = vsel %vm2438, %v10544, -inf
  %10551 = vmax.xlane.f32.xlu0 %v10550
  %v10552 = vpop.xlane.xlu0 %10551
  %v10553 = vsel %vm2438, %v10547, -inf
  %10554 = vmax.xlane.f32.xlu0 %v10553
  %v10555 = vpop.xlane.xlu0 %10554
  %v10556 = vsub.f32 %v10544, %v10552
  %v10557 = vsub.f32 %v10547, %v10555
  %v10558 = vmul.f32 %v10556, 1.442695
  %v10559 = vpow.pop %v10558
  %v10560 = vmul.f32 %v10557, 1.442695
  %v10561 = vpow.pop %v10560
  %v10562 = vsel %vm2438, %v10559, 0.0
  %10563 = vadd.xlane.f32.xlu0 %v10562
  %v10564 = vpop.xlane.xlu0 %10563
  %v10565 = vsel %vm2438, %v10561, 0.0
  %10566 = vadd.xlane.f32.xlu0 %v10565
  %v10567 = vpop.xlane.xlu0 %10566
  %v10568 = vrcp.pop %v10564
  %v10569 = vrcp.pop %v10567
  %v10570 = vmul.f32 %v10559, %v10568
  %v10571 = vmul.f32 %v10561, %v10569
  %v10572 = vpack.c.bf16 %v10571, %v10570
  %v10574 = vsel %vm2438, %v10572, 0
  %10576 = vmatprep.subr.bf16.mxu0 0
  %10577 = vmatpush1.bf16.msra.mxu0 0
  %10578 = vmatprep.subr.bf16.mxu0 0
  %10579 = vmatpush1.bf16.msra.mxu0 0
  %10580 = vmatprep.subr.bf16.mxu0 0
  %10581 = vmatpush1.bf16.msra.mxu0 0
  %10582 = vmatprep.subr.bf16.mxu0 0
  %10583 = vmatpush1.bf16.msra.mxu0 0
  %10584 = vmatprep.subr.bf16.mxu0 0
  %10585 = vmatpush1.bf16.msra.mxu0 0
  %10586 = vmatprep.subr.bf16.mxu0 0
  %10587 = vmatpush1.bf16.msra.mxu0 0
  %10588 = vmatprep.subr.bf16.mxu0 0
  %10589 = vmatpush1.bf16.msra.mxu0 0
  %10590 = vmatprep.subr.bf16.mxu0 0
  %10591 = vmatpush1.bf16.msra.mxu0 %v10508
  %10592 = vmatprep.subr.bf16.mxu0 0
  %10593 = vmatpush2.bf16.msra.mxu0 0
  %10594 = vmatprep.subr.bf16.mxu0 0
  %10595 = vmatpush2.bf16.msra.mxu0 0
  %10596 = vmatprep.subr.bf16.mxu0 0
  %10597 = vmatpush2.bf16.msra.mxu0 0
  %10598 = vmatprep.subr.bf16.mxu0 0
  %10599 = vmatpush2.bf16.msra.mxu0 0
  %10600 = vmatprep.subr.bf16.mxu0 0
  %10601 = vmatpush2.bf16.msra.mxu0 0
  %10602 = vmatprep.subr.bf16.mxu0 0
  %10603 = vmatpush2.bf16.msra.mxu0 0
  %10604 = vmatprep.subr.bf16.mxu0 0
  %10605 = vmatpush2.bf16.msra.mxu0 0
  %10606 = vmatprep.subr.bf16.mxu0 0
  %10607 = vmatpush2.bf16.msra.mxu0 0
  %10608 = vmatprep.mubr.bf16.mxu0 0
  %10609 = vmatmul.mubr.bf16.gmra.mxu0 %v10574
  %v10610 = vpop.f32.mrf.mxu0
  %v10611 = vadd.f32 0.0, %v10610
  %v10612 = vpop.f32.mrf.mxu0
  %v10613 = vpop.f32.mrf.mxu0
  %v10614 = vadd.f32 0.0, %v10613
  %v10615 = vpop.f32.mrf.mxu0
  %10616 = vdwg.mxu0
  %v10617 = vpack.c.bf16 %v10614, %v10611
  %v10618 = vld [vmem:[%s39 + $0x200] sm:$0xff]
  %v10619 = vld [vmem:[%s39 + $0x208] sm:$0xff]
  %v10620 = vld [vmem:[%s39 + $0x210] sm:$0xff]
  %v10621 = vld [vmem:[%s39 + $0x218] sm:$0xff]
  %v10622 = vld [vmem:[%s39 + $0x220] sm:$0xff]
  %v10623 = vld [vmem:[%s39 + $0x228] sm:$0xff]
  %v10624 = vld [vmem:[%s39 + $0x230] sm:$0xff]
  %v10625 = vld [vmem:[%s39 + $0x238] sm:$0xff]
  %v10626 = vld [vmem:[%s39 + $0x240] sm:$0xff]
  %v10627 = vld [vmem:[%s39 + $0x248] sm:$0xff]
  %v10628 = vld [vmem:[%s39 + $0x250] sm:$0xff]
  %v10629 = vld [vmem:[%s39 + $0x258] sm:$0xff]
  %v10630 = vld [vmem:[%s39 + $0x260] sm:$0xff]
  %v10631 = vld [vmem:[%s39 + $0x268] sm:$0xff]
  %v10632 = vld [vmem:[%s39 + $0x270] sm:$0xff]
  %v10633 = vld [vmem:[%s39 + $0x278] sm:$0xff]
  %v10634 = vld [vmem:[%s39 + $0x280] sm:$0xff]
  %v10635 = vld [vmem:[%s39 + $0x288] sm:$0xff]
  %v10636 = vld [vmem:[%s39 + $0x290] sm:$0xff]
  %v10637 = vld [vmem:[%s39 + $0x298] sm:$0xff]
  %v10638 = vld [vmem:[%s39 + $0x2a0] sm:$0xff]
  %v10639 = vld [vmem:[%s39 + $0x2a8] sm:$0xff]
  %v10640 = vld [vmem:[%s39 + $0x2b0] sm:$0xff]
  %v10641 = vld [vmem:[%s39 + $0x2b8] sm:$0xff]
  %v10642 = vld [vmem:[%s39 + $0x2c0] sm:$0xff]
  %v10643 = vld [vmem:[%s39 + $0x2c8] sm:$0xff]
  %v10644 = vld [vmem:[%s39 + $0x2d0] sm:$0xff]
  %v10645 = vld [vmem:[%s39 + $0x2d8] sm:$0xff]
  %v10646 = vld [vmem:[%s39 + $0x2e0] sm:$0xff]
  %v10647 = vld [vmem:[%s39 + $0x2e8] sm:$0xff]
  %v10648 = vld [vmem:[%s39 + $0x2f0] sm:$0xff]
  %v10649 = vld [vmem:[%s39 + $0x2f8] sm:$0xff]
  %v10682 = vunpack.c.l.b16 %v10618
  %v10683 = vunpack.c.h.b16 %v10618
  %v10684 = vunpack.c.l.b16 %v10619
  %v10685 = vunpack.c.h.b16 %v10619
  %v10686 = vunpack.c.l.b16 %v10620
  %v10687 = vunpack.c.h.b16 %v10620
  %v10688 = vunpack.c.l.b16 %v10621
  %v10689 = vunpack.c.h.b16 %v10621
  %v10690 = vunpack.c.l.b16 %v10622
  %v10691 = vunpack.c.h.b16 %v10622
  %v10692 = vunpack.c.l.b16 %v10623
  %v10693 = vunpack.c.h.b16 %v10623
  %v10694 = vunpack.c.l.b16 %v10624
  %v10695 = vunpack.c.h.b16 %v10624
  %v10696 = vunpack.c.l.b16 %v10625
  %v10697 = vunpack.c.h.b16 %v10625
  %v10698 = vunpack.c.l.b16 %v10626
  %v10699 = vunpack.c.h.b16 %v10626
  %v10700 = vunpack.c.l.b16 %v10627
  %v10701 = vunpack.c.h.b16 %v10627
  %v10702 = vunpack.c.l.b16 %v10628
  %v10703 = vunpack.c.h.b16 %v10628
  %v10704 = vunpack.c.l.b16 %v10629
  %v10705 = vunpack.c.h.b16 %v10629
  %v10706 = vunpack.c.l.b16 %v10630
  %v10707 = vunpack.c.h.b16 %v10630
  %v10708 = vunpack.c.l.b16 %v10631
  %v10709 = vunpack.c.h.b16 %v10631
  %v10710 = vunpack.c.l.b16 %v10632
  %v10711 = vunpack.c.h.b16 %v10632
  %v10712 = vunpack.c.l.b16 %v10633
  %v10713 = vunpack.c.h.b16 %v10633
  %v10714 = vunpack.c.l.b16 %v10634
  %v10715 = vunpack.c.h.b16 %v10634
  %v10716 = vunpack.c.l.b16 %v10635
  %v10717 = vunpack.c.h.b16 %v10635
  %v10718 = vunpack.c.l.b16 %v10636
  %v10719 = vunpack.c.h.b16 %v10636
  %v10720 = vunpack.c.l.b16 %v10637
  %v10721 = vunpack.c.h.b16 %v10637
  %v10722 = vunpack.c.l.b16 %v10638
  %v10723 = vunpack.c.h.b16 %v10638
  %v10724 = vunpack.c.l.b16 %v10639
  %v10725 = vunpack.c.h.b16 %v10639
  %v10726 = vunpack.c.l.b16 %v10640
  %v10727 = vunpack.c.h.b16 %v10640
  %v10728 = vunpack.c.l.b16 %v10641
  %v10729 = vunpack.c.h.b16 %v10641
  %v10730 = vunpack.c.l.b16 %v10642
  %v10731 = vunpack.c.h.b16 %v10642
  %v10732 = vunpack.c.l.b16 %v10643
  %v10733 = vunpack.c.h.b16 %v10643
  %v10734 = vunpack.c.l.b16 %v10644
  %v10735 = vunpack.c.h.b16 %v10644
  %v10736 = vunpack.c.l.b16 %v10645
  %v10737 = vunpack.c.h.b16 %v10645
  %v10738 = vunpack.c.l.b16 %v10646
  %v10739 = vunpack.c.h.b16 %v10646
  %v10740 = vunpack.c.l.b16 %v10647
  %v10741 = vunpack.c.h.b16 %v10647
  %v10742 = vunpack.c.l.b16 %v10648
  %v10743 = vunpack.c.h.b16 %v10648
  %v10744 = vunpack.c.l.b16 %v10649
  %v10745 = vunpack.c.h.b16 %v10649
  %v10746 = vpack.c.b16 %v10686, %v10682
  %v10747 = vpack.c.b16 %v10687, %v10683
  %v10748 = vpack.c.b16 %v10688, %v10684
  %v10749 = vpack.c.b16 %v10689, %v10685
  %v10750 = vpack.c.b16 %v10694, %v10690
  %v10751 = vpack.c.b16 %v10695, %v10691
  %v10752 = vpack.c.b16 %v10696, %v10692
  %v10753 = vpack.c.b16 %v10697, %v10693
  %v10754 = vpack.c.b16 %v10702, %v10698
  %v10755 = vpack.c.b16 %v10703, %v10699
  %v10756 = vpack.c.b16 %v10704, %v10700
  %v10757 = vpack.c.b16 %v10705, %v10701
  %v10758 = vpack.c.b16 %v10710, %v10706
  %v10759 = vpack.c.b16 %v10711, %v10707
  %v10760 = vpack.c.b16 %v10712, %v10708
  %v10761 = vpack.c.b16 %v10713, %v10709
  %v10762 = vpack.c.b16 %v10718, %v10714
  %v10763 = vpack.c.b16 %v10719, %v10715
  %v10764 = vpack.c.b16 %v10720, %v10716
  %v10765 = vpack.c.b16 %v10721, %v10717
  %v10766 = vpack.c.b16 %v10726, %v10722
  %v10767 = vpack.c.b16 %v10727, %v10723
  %v10768 = vpack.c.b16 %v10728, %v10724
  %v10769 = vpack.c.b16 %v10729, %v10725
  %v10770 = vpack.c.b16 %v10734, %v10730
  %v10771 = vpack.c.b16 %v10735, %v10731
  %v10772 = vpack.c.b16 %v10736, %v10732
  %v10773 = vpack.c.b16 %v10737, %v10733
  %v10774 = vpack.c.b16 %v10742, %v10738
  %v10775 = vpack.c.b16 %v10743, %v10739
  %v10776 = vpack.c.b16 %v10744, %v10740
  %v10777 = vpack.c.b16 %v10745, %v10741
  %10810 = vmatprep.subr.bf16.mxu0 %v10775
  %10811 = vmatpush1.bf16.msra.mxu0 %v10774
  %10812 = vmatprep.subr.bf16.mxu0 %v10771
  %10813 = vmatpush1.bf16.msra.mxu0 %v10770
  %10814 = vmatprep.subr.bf16.mxu0 %v10767
  %10815 = vmatpush1.bf16.msra.mxu0 %v10766
  %10816 = vmatprep.subr.bf16.mxu0 %v10763
  %10817 = vmatpush1.bf16.msra.mxu0 %v10762
  %10818 = vmatprep.subr.bf16.mxu0 %v10759
  %10819 = vmatpush1.bf16.msra.mxu0 %v10758
  %10820 = vmatprep.subr.bf16.mxu0 %v10755
  %10821 = vmatpush1.bf16.msra.mxu0 %v10754
  %10822 = vmatprep.subr.bf16.mxu0 %v10751
  %10823 = vmatpush1.bf16.msra.mxu0 %v10750
  %10824 = vmatprep.subr.bf16.mxu0 %v10747
  %10825 = vmatpush1.bf16.msra.mxu0 %v10746
  %10826 = vmatprep.subr.bf16.mxu0 0
  %10827 = vmatpush2.bf16.msra.mxu0 0
  %10828 = vmatprep.subr.bf16.mxu0 0
  %10829 = vmatpush2.bf16.msra.mxu0 0
  %10830 = vmatprep.subr.bf16.mxu0 0
  %10831 = vmatpush2.bf16.msra.mxu0 0
  %10832 = vmatprep.subr.bf16.mxu0 0
  %10833 = vmatpush2.bf16.msra.mxu0 0
  %10834 = vmatprep.subr.bf16.mxu0 0
  %10835 = vmatpush2.bf16.msra.mxu0 0
  %10836 = vmatprep.subr.bf16.mxu0 0
  %10837 = vmatpush2.bf16.msra.mxu0 0
  %10838 = vmatprep.subr.bf16.mxu0 0
  %10839 = vmatpush2.bf16.msra.mxu0 0
  %10840 = vmatprep.subr.bf16.mxu0 0
  %10841 = vmatpush2.bf16.msra.mxu0 0
  %10842 = vmatprep.mubr.bf16.mxu0 0
  %10843 = vmatmul.mubr.bf16.gmra.mxu0 %v10617
  %v10844 = vpop.f32.mrf.mxu0
  %v10845 = vadd.f32 0.0, %v10844
  %v10846 = vpop.f32.mrf.mxu0
  %v10847 = vadd.f32 0.0, %v10846
  %v10848 = vpop.f32.mrf.mxu0
  %v10849 = vadd.f32 0.0, %v10848
  %v10850 = vpop.f32.mrf.mxu0
  %v10851 = vadd.f32 0.0, %v10850
  %10852 = vdwg.mxu0
  %10853 = vmatprep.subr.bf16.mxu0 %v10777
  %10854 = vmatpush1.bf16.msra.mxu0 %v10776
  %10855 = vmatprep.subr.bf16.mxu0 %v10773
  %10856 = vmatpush1.bf16.msra.mxu0 %v10772
  %10857 = vmatprep.subr.bf16.mxu0 %v10769
  %10858 = vmatpush1.bf16.msra.mxu0 %v10768
  %10859 = vmatprep.subr.bf16.mxu0 %v10765
  %10860 = vmatpush1.bf16.msra.mxu0 %v10764
  %10861 = vmatprep.subr.bf16.mxu0 %v10761
  %10862 = vmatpush1.bf16.msra.mxu0 %v10760
  %10863 = vmatprep.subr.bf16.mxu0 %v10757
  %10864 = vmatpush1.bf16.msra.mxu0 %v10756
  %10865 = vmatprep.subr.bf16.mxu0 %v10753
  %10866 = vmatpush1.bf16.msra.mxu0 %v10752
  %10867 = vmatprep.subr.bf16.mxu0 %v10749
  %10868 = vmatpush1.bf16.msra.mxu0 %v10748
  %10869 = vmatprep.subr.bf16.mxu0 0
  %10870 = vmatpush2.bf16.msra.mxu0 0
  %10871 = vmatprep.subr.bf16.mxu0 0
  %10872 = vmatpush2.bf16.msra.mxu0 0
  %10873 = vmatprep.subr.bf16.mxu0 0
  %10874 = vmatpush2.bf16.msra.mxu0 0
  %10875 = vmatprep.subr.bf16.mxu0 0
  %10876 = vmatpush2.bf16.msra.mxu0 0
  %10877 = vmatprep.subr.bf16.mxu0 0
  %10878 = vmatpush2.bf16.msra.mxu0 0
  %10879 = vmatprep.subr.bf16.mxu0 0
  %10880 = vmatpush2.bf16.msra.mxu0 0
  %10881 = vmatprep.subr.bf16.mxu0 0
  %10882 = vmatpush2.bf16.msra.mxu0 0
  %10883 = vmatprep.subr.bf16.mxu0 0
  %10884 = vmatpush2.bf16.msra.mxu0 0
  %10885 = vmatprep.mubr.bf16.mxu0 0
  %10886 = vmatmul.mubr.bf16.gmra.mxu0 %v10617
  %v10887 = vpop.f32.mrf.mxu0
  %v10888 = vadd.f32 0.0, %v10887
  %v10889 = vpop.f32.mrf.mxu0
  %v10890 = vadd.f32 0.0, %v10889
  %v10891 = vpop.f32.mrf.mxu0
  %v10892 = vadd.f32 0.0, %v10891
  %v10893 = vpop.f32.mrf.mxu0
  %v10894 = vadd.f32 0.0, %v10893
  %10895 = vdwg.mxu0
  %v10896 = vadd.f32 %v10498, %v10845
  %v10897 = vadd.f32 %v10499, %v10847
  %v10898 = vadd.f32 %v10500, %v10888
  %v10899 = vadd.f32 %v10501, %v10890
  %v10900 = vadd.f32 %v10502, %v10849
  %v10901 = vadd.f32 %v10503, %v10851
  %v10902 = vadd.f32 %v10504, %v10892
  %v10903 = vadd.f32 %v10505, %v10894
  %v10904 = vpack.c.bf16 %v9336, %v9332
  %v10905 = vpack.c.bf16 %v9508, %v9504
  %v10906 = vpack.c.bf16 %v9680, %v9676
  %10907 = vmatprep.subr.bf16.mxu0 0
  %10908 = vmatpush1.bf16.xpose.msra.mxu0 0
  %10909 = vmatprep.subr.bf16.mxu0 0
  %10910 = vmatpush1.bf16.xpose.msra.mxu0 0
  %10911 = vmatprep.subr.bf16.mxu0 0
  %10912 = vmatpush1.bf16.xpose.msra.mxu0 0
  %10913 = vmatprep.subr.bf16.mxu0 0
  %10914 = vmatpush1.bf16.xpose.msra.mxu0 0
  %10915 = vmatprep.subr.bf16.mxu0 0
  %10916 = vmatpush1.bf16.xpose.msra.mxu0 0
  %10917 = vmatprep.subr.bf16.mxu0 0
  %10918 = vmatpush1.bf16.xpose.msra.mxu0 0
  %10919 = vmatprep.subr.bf16.mxu0 0
  %10920 = vmatpush1.bf16.xpose.msra.mxu0 0
  %10921 = vmatprep.subr.bf16.mxu0 0
  %10922 = vmatpush1.bf16.xpose.msra.mxu0 %v10905
  %10923 = vmatprep.subr.bf16.mxu0 0
  %10924 = vmatpush2.bf16.xpose.msra.mxu0 0
  %10925 = vmatprep.subr.bf16.mxu0 0
  %10926 = vmatpush2.bf16.xpose.msra.mxu0 0
  %10927 = vmatprep.subr.bf16.mxu0 0
  %10928 = vmatpush2.bf16.xpose.msra.mxu0 0
  %10929 = vmatprep.subr.bf16.mxu0 0
  %10930 = vmatpush2.bf16.xpose.msra.mxu0 0
  %10931 = vmatprep.subr.bf16.mxu0 0
  %10932 = vmatpush2.bf16.xpose.msra.mxu0 0
  %10933 = vmatprep.subr.bf16.mxu0 0
  %10934 = vmatpush2.bf16.xpose.msra.mxu0 0
  %10935 = vmatprep.subr.bf16.mxu0 0
  %10936 = vmatpush2.bf16.xpose.msra.mxu0 0
  %10937 = vmatprep.subr.bf16.mxu0 0
  %10938 = vmatpush2.bf16.xpose.msra.mxu0 0
  %10939 = vmatprep.mubr.bf16.mxu0 0
  %10940 = vmatmul.mubr.bf16.gmra.mxu0 %v10904
  %v10941 = vpop.f32.mrf.mxu0
  %v10942 = vadd.f32 %v9682, %v10941
  %v10943 = vpop.f32.mrf.mxu0
  %v10944 = vpop.f32.mrf.mxu0
  %v10945 = vadd.f32 %v9683, %v10944
  %v10946 = vpop.f32.mrf.mxu0
  %10947 = vdwg.mxu0
  %v10948 = vsel %vm2438, %v10942, -inf
  %10949 = vmax.xlane.f32.xlu0 %v10948
  %v10950 = vpop.xlane.xlu0 %10949
  %v10951 = vsel %vm2438, %v10945, -inf
  %10952 = vmax.xlane.f32.xlu0 %v10951
  %v10953 = vpop.xlane.xlu0 %10952
  %v10954 = vsub.f32 %v10942, %v10950
  %v10955 = vsub.f32 %v10945, %v10953
  %v10956 = vmul.f32 %v10954, 1.442695
  %v10957 = vpow.pop %v10956
  %v10958 = vmul.f32 %v10955, 1.442695
  %v10959 = vpow.pop %v10958
  %v10960 = vsel %vm2438, %v10957, 0.0
  %10961 = vadd.xlane.f32.xlu0 %v10960
  %v10962 = vpop.xlane.xlu0 %10961
  %v10963 = vsel %vm2438, %v10959, 0.0
  %10964 = vadd.xlane.f32.xlu0 %v10963
  %v10965 = vpop.xlane.xlu0 %10964
  %v10966 = vrcp.pop %v10962
  %v10967 = vrcp.pop %v10965
  %v10968 = vmul.f32 %v10957, %v10966
  %v10969 = vmul.f32 %v10959, %v10967
  %v10970 = vpack.c.bf16 %v10969, %v10968
  %v10972 = vsel %vm2438, %v10970, 0
  %10974 = vmatprep.subr.bf16.mxu0 0
  %10975 = vmatpush1.bf16.msra.mxu0 0
  %10976 = vmatprep.subr.bf16.mxu0 0
  %10977 = vmatpush1.bf16.msra.mxu0 0
  %10978 = vmatprep.subr.bf16.mxu0 0
  %10979 = vmatpush1.bf16.msra.mxu0 0
  %10980 = vmatprep.subr.bf16.mxu0 0
  %10981 = vmatpush1.bf16.msra.mxu0 0
  %10982 = vmatprep.subr.bf16.mxu0 0
  %10983 = vmatpush1.bf16.msra.mxu0 0
  %10984 = vmatprep.subr.bf16.mxu0 0
  %10985 = vmatpush1.bf16.msra.mxu0 0
  %10986 = vmatprep.subr.bf16.mxu0 0
  %10987 = vmatpush1.bf16.msra.mxu0 0
  %10988 = vmatprep.subr.bf16.mxu0 0
  %10989 = vmatpush1.bf16.msra.mxu0 %v10906
  %10990 = vmatprep.subr.bf16.mxu0 0
  %10991 = vmatpush2.bf16.msra.mxu0 0
  %10992 = vmatprep.subr.bf16.mxu0 0
  %10993 = vmatpush2.bf16.msra.mxu0 0
  %10994 = vmatprep.subr.bf16.mxu0 0
  %10995 = vmatpush2.bf16.msra.mxu0 0
  %10996 = vmatprep.subr.bf16.mxu0 0
  %10997 = vmatpush2.bf16.msra.mxu0 0
  %10998 = vmatprep.subr.bf16.mxu0 0
  %10999 = vmatpush2.bf16.msra.mxu0 0
  %11000 = vmatprep.subr.bf16.mxu0 0
  %11001 = vmatpush2.bf16.msra.mxu0 0
  %11002 = vmatprep.subr.bf16.mxu0 0
  %11003 = vmatpush2.bf16.msra.mxu0 0
  %11004 = vmatprep.subr.bf16.mxu0 0
  %11005 = vmatpush2.bf16.msra.mxu0 0
  %11006 = vmatprep.mubr.bf16.mxu0 0
  %11007 = vmatmul.mubr.bf16.gmra.mxu0 %v10972
  %v11008 = vpop.f32.mrf.mxu0
  %v11009 = vadd.f32 0.0, %v11008
  %v11010 = vpop.f32.mrf.mxu0
  %v11011 = vpop.f32.mrf.mxu0
  %v11012 = vadd.f32 0.0, %v11011
  %v11013 = vpop.f32.mrf.mxu0
  %11014 = vdwg.mxu0
  %v11015 = vpack.c.bf16 %v11012, %v11009
  %v11016 = vld [vmem:[%s39 + $0x300] sm:$0xff]
  %v11017 = vld [vmem:[%s39 + $0x308] sm:$0xff]
  %v11018 = vld [vmem:[%s39 + $0x310] sm:$0xff]
  %v11019 = vld [vmem:[%s39 + $0x318] sm:$0xff]
  %v11020 = vld [vmem:[%s39 + $0x320] sm:$0xff]
  %v11021 = vld [vmem:[%s39 + $0x328] sm:$0xff]
  %v11022 = vld [vmem:[%s39 + $0x330] sm:$0xff]
  %v11023 = vld [vmem:[%s39 + $0x338] sm:$0xff]
  %v11024 = vld [vmem:[%s39 + $0x340] sm:$0xff]
  %v11025 = vld [vmem:[%s39 + $0x348] sm:$0xff]
  %v11026 = vld [vmem:[%s39 + $0x350] sm:$0xff]
  %v11027 = vld [vmem:[%s39 + $0x358] sm:$0xff]
  %v11028 = vld [vmem:[%s39 + $0x360] sm:$0xff]
  %v11029 = vld [vmem:[%s39 + $0x368] sm:$0xff]
  %v11030 = vld [vmem:[%s39 + $0x370] sm:$0xff]
  %v11031 = vld [vmem:[%s39 + $0x378] sm:$0xff]
  %v11032 = vld [vmem:[%s39 + $0x380] sm:$0xff]
  %v11033 = vld [vmem:[%s39 + $0x388] sm:$0xff]
  %v11034 = vld [vmem:[%s39 + $0x390] sm:$0xff]
  %v11035 = vld [vmem:[%s39 + $0x398] sm:$0xff]
  %v11036 = vld [vmem:[%s39 + $0x3a0] sm:$0xff]
  %v11037 = vld [vmem:[%s39 + $0x3a8] sm:$0xff]
  %v11038 = vld [vmem:[%s39 + $0x3b0] sm:$0xff]
  %v11039 = vld [vmem:[%s39 + $0x3b8] sm:$0xff]
  %v11040 = vld [vmem:[%s39 + $0x3c0] sm:$0xff]
  %v11041 = vld [vmem:[%s39 + $0x3c8] sm:$0xff]
  %v11042 = vld [vmem:[%s39 + $0x3d0] sm:$0xff]
  %v11043 = vld [vmem:[%s39 + $0x3d8] sm:$0xff]
  %v11044 = vld [vmem:[%s39 + $0x3e0] sm:$0xff]
  %v11045 = vld [vmem:[%s39 + $0x3e8] sm:$0xff]
  %v11046 = vld [vmem:[%s39 + $0x3f0] sm:$0xff]
  %v11047 = vld [vmem:[%s39 + $0x3f8] sm:$0xff]
  %v11080 = vunpack.c.l.b16 %v11016
  %v11081 = vunpack.c.h.b16 %v11016
  %v11082 = vunpack.c.l.b16 %v11017
  %v11083 = vunpack.c.h.b16 %v11017
  %v11084 = vunpack.c.l.b16 %v11018
  %v11085 = vunpack.c.h.b16 %v11018
  %v11086 = vunpack.c.l.b16 %v11019
  %v11087 = vunpack.c.h.b16 %v11019
  %v11088 = vunpack.c.l.b16 %v11020
  %v11089 = vunpack.c.h.b16 %v11020
  %v11090 = vunpack.c.l.b16 %v11021
  %v11091 = vunpack.c.h.b16 %v11021
  %v11092 = vunpack.c.l.b16 %v11022
  %v11093 = vunpack.c.h.b16 %v11022
  %v11094 = vunpack.c.l.b16 %v11023
  %v11095 = vunpack.c.h.b16 %v11023
  %v11096 = vunpack.c.l.b16 %v11024
  %v11097 = vunpack.c.h.b16 %v11024
  %v11098 = vunpack.c.l.b16 %v11025
  %v11099 = vunpack.c.h.b16 %v11025
  %v11100 = vunpack.c.l.b16 %v11026
  %v11101 = vunpack.c.h.b16 %v11026
  %v11102 = vunpack.c.l.b16 %v11027
  %v11103 = vunpack.c.h.b16 %v11027
  %v11104 = vunpack.c.l.b16 %v11028
  %v11105 = vunpack.c.h.b16 %v11028
  %v11106 = vunpack.c.l.b16 %v11029
  %v11107 = vunpack.c.h.b16 %v11029
  %v11108 = vunpack.c.l.b16 %v11030
  %v11109 = vunpack.c.h.b16 %v11030
  %v11110 = vunpack.c.l.b16 %v11031
  %v11111 = vunpack.c.h.b16 %v11031
  %v11112 = vunpack.c.l.b16 %v11032
  %v11113 = vunpack.c.h.b16 %v11032
  %v11114 = vunpack.c.l.b16 %v11033
  %v11115 = vunpack.c.h.b16 %v11033
  %v11116 = vunpack.c.l.b16 %v11034
  %v11117 = vunpack.c.h.b16 %v11034
  %v11118 = vunpack.c.l.b16 %v11035
  %v11119 = vunpack.c.h.b16 %v11035
  %v11120 = vunpack.c.l.b16 %v11036
  %v11121 = vunpack.c.h.b16 %v11036
  %v11122 = vunpack.c.l.b16 %v11037
  %v11123 = vunpack.c.h.b16 %v11037
  %v11124 = vunpack.c.l.b16 %v11038
  %v11125 = vunpack.c.h.b16 %v11038
  %v11126 = vunpack.c.l.b16 %v11039
  %v11127 = vunpack.c.h.b16 %v11039
  %v11128 = vunpack.c.l.b16 %v11040
  %v11129 = vunpack.c.h.b16 %v11040
  %v11130 = vunpack.c.l.b16 %v11041
  %v11131 = vunpack.c.h.b16 %v11041
  %v11132 = vunpack.c.l.b16 %v11042
  %v11133 = vunpack.c.h.b16 %v11042
  %v11134 = vunpack.c.l.b16 %v11043
  %v11135 = vunpack.c.h.b16 %v11043
  %v11136 = vunpack.c.l.b16 %v11044
  %v11137 = vunpack.c.h.b16 %v11044
  %v11138 = vunpack.c.l.b16 %v11045
  %v11139 = vunpack.c.h.b16 %v11045
  %v11140 = vunpack.c.l.b16 %v11046
  %v11141 = vunpack.c.h.b16 %v11046
  %v11142 = vunpack.c.l.b16 %v11047
  %v11143 = vunpack.c.h.b16 %v11047
  %v11144 = vpack.c.b16 %v11084, %v11080
  %v11145 = vpack.c.b16 %v11085, %v11081
  %v11146 = vpack.c.b16 %v11086, %v11082
  %v11147 = vpack.c.b16 %v11087, %v11083
  %v11148 = vpack.c.b16 %v11092, %v11088
  %v11149 = vpack.c.b16 %v11093, %v11089
  %v11150 = vpack.c.b16 %v11094, %v11090
  %v11151 = vpack.c.b16 %v11095, %v11091
  %v11152 = vpack.c.b16 %v11100, %v11096
  %v11153 = vpack.c.b16 %v11101, %v11097
  %v11154 = vpack.c.b16 %v11102, %v11098
  %v11155 = vpack.c.b16 %v11103, %v11099
  %v11156 = vpack.c.b16 %v11108, %v11104
  %v11157 = vpack.c.b16 %v11109, %v11105
  %v11158 = vpack.c.b16 %v11110, %v11106
  %v11159 = vpack.c.b16 %v11111, %v11107
  %v11160 = vpack.c.b16 %v11116, %v11112
  %v11161 = vpack.c.b16 %v11117, %v11113
  %v11162 = vpack.c.b16 %v11118, %v11114
  %v11163 = vpack.c.b16 %v11119, %v11115
  %v11164 = vpack.c.b16 %v11124, %v11120
  %v11165 = vpack.c.b16 %v11125, %v11121
  %v11166 = vpack.c.b16 %v11126, %v11122
  %v11167 = vpack.c.b16 %v11127, %v11123
  %v11168 = vpack.c.b16 %v11132, %v11128
  %v11169 = vpack.c.b16 %v11133, %v11129
  %v11170 = vpack.c.b16 %v11134, %v11130
  %v11171 = vpack.c.b16 %v11135, %v11131
  %v11172 = vpack.c.b16 %v11140, %v11136
  %v11173 = vpack.c.b16 %v11141, %v11137
  %v11174 = vpack.c.b16 %v11142, %v11138
  %v11175 = vpack.c.b16 %v11143, %v11139
  %11208 = vmatprep.subr.bf16.mxu0 %v11173
  %11209 = vmatpush1.bf16.msra.mxu0 %v11172
  %11210 = vmatprep.subr.bf16.mxu0 %v11169
  %11211 = vmatpush1.bf16.msra.mxu0 %v11168
  %11212 = vmatprep.subr.bf16.mxu0 %v11165
  %11213 = vmatpush1.bf16.msra.mxu0 %v11164
  %11214 = vmatprep.subr.bf16.mxu0 %v11161
  %11215 = vmatpush1.bf16.msra.mxu0 %v11160
  %11216 = vmatprep.subr.bf16.mxu0 %v11157
  %11217 = vmatpush1.bf16.msra.mxu0 %v11156
  %11218 = vmatprep.subr.bf16.mxu0 %v11153
  %11219 = vmatpush1.bf16.msra.mxu0 %v11152
  %11220 = vmatprep.subr.bf16.mxu0 %v11149
  %11221 = vmatpush1.bf16.msra.mxu0 %v11148
  %11222 = vmatprep.subr.bf16.mxu0 %v11145
  %11223 = vmatpush1.bf16.msra.mxu0 %v11144
  %11224 = vmatprep.subr.bf16.mxu0 0
  %11225 = vmatpush2.bf16.msra.mxu0 0
  %11226 = vmatprep.subr.bf16.mxu0 0
  %11227 = vmatpush2.bf16.msra.mxu0 0
  %11228 = vmatprep.subr.bf16.mxu0 0
  %11229 = vmatpush2.bf16.msra.mxu0 0
  %11230 = vmatprep.subr.bf16.mxu0 0
  %11231 = vmatpush2.bf16.msra.mxu0 0
  %11232 = vmatprep.subr.bf16.mxu0 0
  %11233 = vmatpush2.bf16.msra.mxu0 0
  %11234 = vmatprep.subr.bf16.mxu0 0
  %11235 = vmatpush2.bf16.msra.mxu0 0
  %11236 = vmatprep.subr.bf16.mxu0 0
  %11237 = vmatpush2.bf16.msra.mxu0 0
  %11238 = vmatprep.subr.bf16.mxu0 0
  %11239 = vmatpush2.bf16.msra.mxu0 0
  %11240 = vmatprep.mubr.bf16.mxu0 0
  %11241 = vmatmul.mubr.bf16.gmra.mxu0 %v11015
  %v11242 = vpop.f32.mrf.mxu0
  %v11243 = vadd.f32 0.0, %v11242
  %v11244 = vpop.f32.mrf.mxu0
  %v11245 = vadd.f32 0.0, %v11244
  %v11246 = vpop.f32.mrf.mxu0
  %v11247 = vadd.f32 0.0, %v11246
  %v11248 = vpop.f32.mrf.mxu0
  %v11249 = vadd.f32 0.0, %v11248
  %11250 = vdwg.mxu0
  %11251 = vmatprep.subr.bf16.mxu0 %v11175
  %11252 = vmatpush1.bf16.msra.mxu0 %v11174
  %11253 = vmatprep.subr.bf16.mxu0 %v11171
  %11254 = vmatpush1.bf16.msra.mxu0 %v11170
  %11255 = vmatprep.subr.bf16.mxu0 %v11167
  %11256 = vmatpush1.bf16.msra.mxu0 %v11166
  %11257 = vmatprep.subr.bf16.mxu0 %v11163
  %11258 = vmatpush1.bf16.msra.mxu0 %v11162
  %11259 = vmatprep.subr.bf16.mxu0 %v11159
  %11260 = vmatpush1.bf16.msra.mxu0 %v11158
  %11261 = vmatprep.subr.bf16.mxu0 %v11155
  %11262 = vmatpush1.bf16.msra.mxu0 %v11154
  %11263 = vmatprep.subr.bf16.mxu0 %v11151
  %11264 = vmatpush1.bf16.msra.mxu0 %v11150
  %11265 = vmatprep.subr.bf16.mxu0 %v11147
  %11266 = vmatpush1.bf16.msra.mxu0 %v11146
  %11267 = vmatprep.subr.bf16.mxu0 0
  %11268 = vmatpush2.bf16.msra.mxu0 0
  %11269 = vmatprep.subr.bf16.mxu0 0
  %11270 = vmatpush2.bf16.msra.mxu0 0
  %11271 = vmatprep.subr.bf16.mxu0 0
  %11272 = vmatpush2.bf16.msra.mxu0 0
  %11273 = vmatprep.subr.bf16.mxu0 0
  %11274 = vmatpush2.bf16.msra.mxu0 0
  %11275 = vmatprep.subr.bf16.mxu0 0
  %11276 = vmatpush2.bf16.msra.mxu0 0
  %11277 = vmatprep.subr.bf16.mxu0 0
  %11278 = vmatpush2.bf16.msra.mxu0 0
  %11279 = vmatprep.subr.bf16.mxu0 0
  %11280 = vmatpush2.bf16.msra.mxu0 0
  %11281 = vmatprep.subr.bf16.mxu0 0
  %11282 = vmatpush2.bf16.msra.mxu0 0
  %11283 = vmatprep.mubr.bf16.mxu0 0
  %11284 = vmatmul.mubr.bf16.gmra.mxu0 %v11015
  %v11285 = vpop.f32.mrf.mxu0
  %v11286 = vadd.f32 0.0, %v11285
  %v11287 = vpop.f32.mrf.mxu0
  %v11288 = vadd.f32 0.0, %v11287
  %v11289 = vpop.f32.mrf.mxu0
  %v11290 = vadd.f32 0.0, %v11289
  %v11291 = vpop.f32.mrf.mxu0
  %v11292 = vadd.f32 0.0, %v11291
  %11293 = vdwg.mxu0
  %v11294 = vadd.f32 %v10896, %v11243
  %v11295 = vadd.f32 %v10897, %v11245
  %v11296 = vadd.f32 %v10898, %v11286
  %v11297 = vadd.f32 %v10899, %v11288
  %v11298 = vadd.f32 %v10900, %v11247
  %v11299 = vadd.f32 %v10901, %v11249
  %v11300 = vadd.f32 %v10902, %v11290
  %v11301 = vadd.f32 %v10903, %v11292
  %v11302 = vadd.f32 %v6786, %v11294
  %v11303 = vadd.f32 %v6787, %v11295
  %v11304 = vadd.f32 %v6788, %v11296
  %v11305 = vadd.f32 %v6789, %v11297
  %v11306 = vadd.f32 %v6790, %v11298
  %v11307 = vadd.f32 %v6791, %v11299
  %v11308 = vadd.f32 %v6792, %v11300
  %v11309 = vadd.f32 %v6793, %v11301
  %v11310 = vld [vmem:[%s43] sm:$0xf]
  %v11311 = vld [vmem:[%s45] sm:$0xf]
  %v11312 = vadd.f32 %v11302, %v11303
  %v11313 = vadd.f32 %v11312, %v11304
  %v11314 = vadd.f32 %v11313, %v11305
  %11315 = vadd.xlane.f32.xlu0 %v11314
  %v11316 = vpop.xlane.xlu0 %11315
  %v11317 = vadd.f32 %v11306, %v11307
  %v11318 = vadd.f32 %v11317, %v11308
  %v11319 = vadd.f32 %v11318, %v11309
  %11320 = vadd.xlane.f32.xlu0 %v11319
  %v11321 = vpop.xlane.xlu0 %11320
  %v11322 = vmul.f32 %v11316, %v6677
  %v11323 = vmul.f32 %v11321, %v6677
  %v11324 = vsub.f32 %v11302, %v11322
  %v11325 = vsub.f32 %v11303, %v11322
  %v11326 = vsub.f32 %v11304, %v11322
  %v11327 = vsub.f32 %v11305, %v11322
  %v11328 = vsub.f32 %v11306, %v11323
  %v11329 = vsub.f32 %v11307, %v11323
  %v11330 = vsub.f32 %v11308, %v11323
  %v11331 = vsub.f32 %v11309, %v11323
  %v11332 = vmul.f32 %v11324, %v11324
  %v11333 = vmul.f32 %v11325, %v11325
  %v11334 = vmul.f32 %v11326, %v11326
  %v11335 = vmul.f32 %v11327, %v11327
  %v11336 = vmul.f32 %v11328, %v11328
  %v11337 = vmul.f32 %v11329, %v11329
  %v11338 = vmul.f32 %v11330, %v11330
  %v11339 = vmul.f32 %v11331, %v11331
  %v11340 = vadd.f32 %v11332, %v11333
  %v11341 = vadd.f32 %v11340, %v11334
  %v11342 = vadd.f32 %v11341, %v11335
  %11343 = vadd.xlane.f32.xlu0 %v11342
  %v11344 = vpop.xlane.xlu0 %11343
  %v11345 = vadd.f32 %v11336, %v11337
  %v11346 = vadd.f32 %v11345, %v11338
  %v11347 = vadd.f32 %v11346, %v11339
  %11348 = vadd.xlane.f32.xlu0 %v11347
  %v11349 = vpop.xlane.xlu0 %11348
  %v11350 = vmul.f32 %v11344, %v6677
  %v11351 = vmul.f32 %v11349, %v6677
  %v11352 = vadd.f32 %v11350, 1e-05
  %v11353 = vadd.f32 %v11351, 1e-05
  %v11354 = vrsqrt.pop %v11352
  %v11355 = vrsqrt.pop %v11353
  %v11356 = vmul.f32 %v11324, %v11354
  %v11357 = vmul.f32 %v11325, %v11354
  %v11358 = vmul.f32 %v11326, %v11354
  %v11359 = vmul.f32 %v11327, %v11354
  %v11360 = vmul.f32 %v11328, %v11355
  %v11361 = vmul.f32 %v11329, %v11355
  %v11362 = vmul.f32 %v11330, %v11355
  %v11363 = vmul.f32 %v11331, %v11355
  %v11365 = vlaneseq
  %v11366 = vshrl.u32 %v11365, 7
  %v11367 = vsub.s32 0, %v11366
  %v11368 = vrot.slane %v11310, %v11367
  %v11369 = vlaneseq
  %v11370 = vshrl.u32 %v11369, 7
  %v11371 = vsub.s32 1, %v11370
  %v11372 = vrot.slane %v11310, %v11371
  %v11373 = vlaneseq
  %v11374 = vshrl.u32 %v11373, 7
  %v11375 = vsub.s32 2, %v11374
  %v11376 = vrot.slane %v11310, %v11375
  %v11377 = vlaneseq
  %v11378 = vshrl.u32 %v11377, 7
  %v11379 = vsub.s32 3, %v11378
  %v11380 = vrot.slane %v11310, %v11379
  %v11385 = vmul.f32 %v11356, %v11368
  %v11386 = vmul.f32 %v11357, %v11372
  %v11387 = vmul.f32 %v11358, %v11376
  %v11388 = vmul.f32 %v11359, %v11380
  %v11389 = vmul.f32 %v11360, %v11368
  %v11390 = vmul.f32 %v11361, %v11372
  %v11391 = vmul.f32 %v11362, %v11376
  %v11392 = vmul.f32 %v11363, %v11380
  %v11394 = vlaneseq
  %v11395 = vshrl.u32 %v11394, 7
  %v11396 = vsub.s32 0, %v11395
  %v11397 = vrot.slane %v11311, %v11396
  %v11398 = vlaneseq
  %v11399 = vshrl.u32 %v11398, 7
  %v11400 = vsub.s32 1, %v11399
  %v11401 = vrot.slane %v11311, %v11400
  %v11402 = vlaneseq
  %v11403 = vshrl.u32 %v11402, 7
  %v11404 = vsub.s32 2, %v11403
  %v11405 = vrot.slane %v11311, %v11404
  %v11406 = vlaneseq
  %v11407 = vshrl.u32 %v11406, 7
  %v11408 = vsub.s32 3, %v11407
  %v11409 = vrot.slane %v11311, %v11408
  %v11414 = vadd.f32 %v11385, %v11397
  %v11415 = vadd.f32 %v11386, %v11401
  %v11416 = vadd.f32 %v11387, %v11405
  %v11417 = vadd.f32 %v11388, %v11409
  %v11418 = vadd.f32 %v11389, %v11397
  %v11419 = vadd.f32 %v11390, %v11401
  %v11420 = vadd.f32 %v11391, %v11405
  %v11421 = vadd.f32 %v11392, %v11409
  %v11422 = vld [vmem:[%s47] sm:$0xf]
  %v11423 = vld [vmem:[%s47 + $0x4] sm:$0xf]
  %v11424 = vld [vmem:[%s47 + $0x8] sm:$0xf]
  %v11425 = vld [vmem:[%s47 + $0xc] sm:$0xf]
  %v11426 = vld [vmem:[%s47 + $0x10] sm:$0xf]
  %v11427 = vld [vmem:[%s47 + $0x14] sm:$0xf]
  %v11428 = vld [vmem:[%s47 + $0x18] sm:$0xf]
  %v11429 = vld [vmem:[%s47 + $0x1c] sm:$0xf]
  %v11430 = vld [vmem:[%s47 + $0x20] sm:$0xf]
  %v11431 = vld [vmem:[%s47 + $0x24] sm:$0xf]
  %v11432 = vld [vmem:[%s47 + $0x28] sm:$0xf]
  %v11433 = vld [vmem:[%s47 + $0x2c] sm:$0xf]
  %v11434 = vld [vmem:[%s47 + $0x30] sm:$0xf]
  %v11435 = vld [vmem:[%s47 + $0x34] sm:$0xf]
  %v11436 = vld [vmem:[%s47 + $0x38] sm:$0xf]
  %v11437 = vld [vmem:[%s47 + $0x3c] sm:$0xf]
  %v11438 = vld [vmem:[%s47 + $0x40] sm:$0xf]
  %v11439 = vld [vmem:[%s47 + $0x44] sm:$0xf]
  %v11440 = vld [vmem:[%s47 + $0x48] sm:$0xf]
  %v11441 = vld [vmem:[%s47 + $0x4c] sm:$0xf]
  %v11442 = vld [vmem:[%s47 + $0x50] sm:$0xf]
  %v11443 = vld [vmem:[%s47 + $0x54] sm:$0xf]
  %v11444 = vld [vmem:[%s47 + $0x58] sm:$0xf]
  %v11445 = vld [vmem:[%s47 + $0x5c] sm:$0xf]
  %v11446 = vld [vmem:[%s47 + $0x60] sm:$0xf]
  %v11447 = vld [vmem:[%s47 + $0x64] sm:$0xf]
  %v11448 = vld [vmem:[%s47 + $0x68] sm:$0xf]
  %v11449 = vld [vmem:[%s47 + $0x6c] sm:$0xf]
  %v11450 = vld [vmem:[%s47 + $0x70] sm:$0xf]
  %v11451 = vld [vmem:[%s47 + $0x74] sm:$0xf]
  %v11452 = vld [vmem:[%s47 + $0x78] sm:$0xf]
  %v11453 = vld [vmem:[%s47 + $0x7c] sm:$0xf]
  %v11454 = vld [vmem:[%s47 + $0x80] sm:$0xf]
  %v11455 = vld [vmem:[%s47 + $0x84] sm:$0xf]
  %v11456 = vld [vmem:[%s47 + $0x88] sm:$0xf]
  %v11457 = vld [vmem:[%s47 + $0x8c] sm:$0xf]
  %v11458 = vld [vmem:[%s47 + $0x90] sm:$0xf]
  %v11459 = vld [vmem:[%s47 + $0x94] sm:$0xf]
  %v11460 = vld [vmem:[%s47 + $0x98] sm:$0xf]
  %v11461 = vld [vmem:[%s47 + $0x9c] sm:$0xf]
  %v11462 = vld [vmem:[%s47 + $0xa0] sm:$0xf]
  %v11463 = vld [vmem:[%s47 + $0xa4] sm:$0xf]
  %v11464 = vld [vmem:[%s47 + $0xa8] sm:$0xf]
  %v11465 = vld [vmem:[%s47 + $0xac] sm:$0xf]
  %v11466 = vld [vmem:[%s47 + $0xb0] sm:$0xf]
  %v11467 = vld [vmem:[%s47 + $0xb4] sm:$0xf]
  %v11468 = vld [vmem:[%s47 + $0xb8] sm:$0xf]
  %v11469 = vld [vmem:[%s47 + $0xbc] sm:$0xf]
  %v11470 = vld [vmem:[%s47 + $0xc0] sm:$0xf]
  %v11471 = vld [vmem:[%s47 + $0xc4] sm:$0xf]
  %v11472 = vld [vmem:[%s47 + $0xc8] sm:$0xf]
  %v11473 = vld [vmem:[%s47 + $0xcc] sm:$0xf]
  %v11474 = vld [vmem:[%s47 + $0xd0] sm:$0xf]
  %v11475 = vld [vmem:[%s47 + $0xd4] sm:$0xf]
  %v11476 = vld [vmem:[%s47 + $0xd8] sm:$0xf]
  %v11477 = vld [vmem:[%s47 + $0xdc] sm:$0xf]
  %v11478 = vld [vmem:[%s47 + $0xe0] sm:$0xf]
  %v11479 = vld [vmem:[%s47 + $0xe4] sm:$0xf]
  %v11480 = vld [vmem:[%s47 + $0xe8] sm:$0xf]
  %v11481 = vld [vmem:[%s47 + $0xec] sm:$0xf]
  %v11482 = vld [vmem:[%s47 + $0xf0] sm:$0xf]
  %v11483 = vld [vmem:[%s47 + $0xf4] sm:$0xf]
  %v11484 = vld [vmem:[%s47 + $0xf8] sm:$0xf]
  %v11485 = vld [vmem:[%s47 + $0xfc] sm:$0xf]
  %v11486 = vpack.c.bf16 %v11418, %v11414
  %v11487 = vpack.c.bf16 %v11419, %v11415
  %v11488 = vpack.c.bf16 %v11420, %v11416
  %v11489 = vpack.c.bf16 %v11421, %v11417
  %v11490 = vld [vmem:[%s49] sm:$0x1]
  %v11492 = vlaneseq
  %v11493 = vshrl.u32 %v11492, 7
  %v11494 = vsub.s32 0, %v11493
  %v11495 = vrot.slane %v11490, %v11494
  %v11561 = vunpack.c.l.b16 %v11422
  %v11562 = vunpack.c.l.b16 %v11423
  %v11563 = vunpack.c.l.b16 %v11424
  %v11564 = vunpack.c.l.b16 %v11425
  %v11565 = vunpack.c.l.b16 %v11426
  %v11566 = vunpack.c.l.b16 %v11427
  %v11567 = vunpack.c.l.b16 %v11428
  %v11568 = vunpack.c.l.b16 %v11429
  %v11569 = vunpack.c.l.b16 %v11430
  %v11570 = vunpack.c.l.b16 %v11431
  %v11571 = vunpack.c.l.b16 %v11432
  %v11572 = vunpack.c.l.b16 %v11433
  %v11573 = vunpack.c.l.b16 %v11434
  %v11574 = vunpack.c.l.b16 %v11435
  %v11575 = vunpack.c.l.b16 %v11436
  %v11576 = vunpack.c.l.b16 %v11437
  %v11577 = vunpack.c.l.b16 %v11438
  %v11578 = vunpack.c.l.b16 %v11439
  %v11579 = vunpack.c.l.b16 %v11440
  %v11580 = vunpack.c.l.b16 %v11441
  %v11581 = vunpack.c.l.b16 %v11442
  %v11582 = vunpack.c.l.b16 %v11443
  %v11583 = vunpack.c.l.b16 %v11444
  %v11584 = vunpack.c.l.b16 %v11445
  %v11585 = vunpack.c.l.b16 %v11446
  %v11586 = vunpack.c.l.b16 %v11447
  %v11587 = vunpack.c.l.b16 %v11448
  %v11588 = vunpack.c.l.b16 %v11449
  %v11589 = vunpack.c.l.b16 %v11450
  %v11590 = vunpack.c.l.b16 %v11451
  %v11591 = vunpack.c.l.b16 %v11452
  %v11592 = vunpack.c.l.b16 %v11453
  %v11593 = vunpack.c.l.b16 %v11454
  %v11594 = vunpack.c.l.b16 %v11455
  %v11595 = vunpack.c.l.b16 %v11456
  %v11596 = vunpack.c.l.b16 %v11457
  %v11597 = vunpack.c.l.b16 %v11458
  %v11598 = vunpack.c.l.b16 %v11459
  %v11599 = vunpack.c.l.b16 %v11460
  %v11600 = vunpack.c.l.b16 %v11461
  %v11601 = vunpack.c.l.b16 %v11462
  %v11602 = vunpack.c.l.b16 %v11463
  %v11603 = vunpack.c.l.b16 %v11464
  %v11604 = vunpack.c.l.b16 %v11465
  %v11605 = vunpack.c.l.b16 %v11466
  %v11606 = vunpack.c.l.b16 %v11467
  %v11607 = vunpack.c.l.b16 %v11468
  %v11608 = vunpack.c.l.b16 %v11469
  %v11609 = vunpack.c.l.b16 %v11470
  %v11610 = vunpack.c.l.b16 %v11471
  %v11611 = vunpack.c.l.b16 %v11472
  %v11612 = vunpack.c.l.b16 %v11473
  %v11613 = vunpack.c.l.b16 %v11474
  %v11614 = vunpack.c.l.b16 %v11475
  %v11615 = vunpack.c.l.b16 %v11476
  %v11616 = vunpack.c.l.b16 %v11477
  %v11617 = vunpack.c.l.b16 %v11478
  %v11618 = vunpack.c.l.b16 %v11479
  %v11619 = vunpack.c.l.b16 %v11480
  %v11620 = vunpack.c.l.b16 %v11481
  %v11621 = vunpack.c.l.b16 %v11482
  %v11622 = vunpack.c.l.b16 %v11483
  %v11623 = vunpack.c.l.b16 %v11484
  %v11624 = vunpack.c.l.b16 %v11485
  %v11625 = vpack.c.b16 %v11562, %v11561
  %v11626 = vpack.c.b16 %v11564, %v11563
  %v11627 = vpack.c.b16 %v11566, %v11565
  %v11628 = vpack.c.b16 %v11568, %v11567
  %v11629 = vpack.c.b16 %v11570, %v11569
  %v11630 = vpack.c.b16 %v11572, %v11571
  %v11631 = vpack.c.b16 %v11574, %v11573
  %v11632 = vpack.c.b16 %v11576, %v11575
  %v11633 = vpack.c.b16 %v11578, %v11577
  %v11634 = vpack.c.b16 %v11580, %v11579
  %v11635 = vpack.c.b16 %v11582, %v11581
  %v11636 = vpack.c.b16 %v11584, %v11583
  %v11637 = vpack.c.b16 %v11586, %v11585
  %v11638 = vpack.c.b16 %v11588, %v11587
  %v11639 = vpack.c.b16 %v11590, %v11589
  %v11640 = vpack.c.b16 %v11592, %v11591
  %v11641 = vpack.c.b16 %v11594, %v11593
  %v11642 = vpack.c.b16 %v11596, %v11595
  %v11643 = vpack.c.b16 %v11598, %v11597
  %v11644 = vpack.c.b16 %v11600, %v11599
  %v11645 = vpack.c.b16 %v11602, %v11601
  %v11646 = vpack.c.b16 %v11604, %v11603
  %v11647 = vpack.c.b16 %v11606, %v11605
  %v11648 = vpack.c.b16 %v11608, %v11607
  %v11649 = vpack.c.b16 %v11610, %v11609
  %v11650 = vpack.c.b16 %v11612, %v11611
  %v11651 = vpack.c.b16 %v11614, %v11613
  %v11652 = vpack.c.b16 %v11616, %v11615
  %v11653 = vpack.c.b16 %v11618, %v11617
  %v11654 = vpack.c.b16 %v11620, %v11619
  %v11655 = vpack.c.b16 %v11622, %v11621
  %v11656 = vpack.c.b16 %v11624, %v11623
  %11689 = vmatprep.subr.bf16.mxu0 0
  %11690 = vmatpush1.bf16.msra.mxu0 %v11632
  %11691 = vmatprep.subr.bf16.mxu0 0
  %11692 = vmatpush1.bf16.msra.mxu0 %v11631
  %11693 = vmatprep.subr.bf16.mxu0 0
  %11694 = vmatpush1.bf16.msra.mxu0 %v11630
  %11695 = vmatprep.subr.bf16.mxu0 0
  %11696 = vmatpush1.bf16.msra.mxu0 %v11629
  %11697 = vmatprep.subr.bf16.mxu0 0
  %11698 = vmatpush1.bf16.msra.mxu0 %v11628
  %11699 = vmatprep.subr.bf16.mxu0 0
  %11700 = vmatpush1.bf16.msra.mxu0 %v11627
  %11701 = vmatprep.subr.bf16.mxu0 0
  %11702 = vmatpush1.bf16.msra.mxu0 %v11626
  %11703 = vmatprep.subr.bf16.mxu0 0
  %11704 = vmatpush1.bf16.msra.mxu0 %v11625
  %11705 = vmatprep.subr.bf16.mxu0 0
  %11706 = vmatpush2.bf16.msra.mxu0 %v11640
  %11707 = vmatprep.subr.bf16.mxu0 0
  %11708 = vmatpush2.bf16.msra.mxu0 %v11639
  %11709 = vmatprep.subr.bf16.mxu0 0
  %11710 = vmatpush2.bf16.msra.mxu0 %v11638
  %11711 = vmatprep.subr.bf16.mxu0 0
  %11712 = vmatpush2.bf16.msra.mxu0 %v11637
  %11713 = vmatprep.subr.bf16.mxu0 0
  %11714 = vmatpush2.bf16.msra.mxu0 %v11636
  %11715 = vmatprep.subr.bf16.mxu0 0
  %11716 = vmatpush2.bf16.msra.mxu0 %v11635
  %11717 = vmatprep.subr.bf16.mxu0 0
  %11718 = vmatpush2.bf16.msra.mxu0 %v11634
  %11719 = vmatprep.subr.bf16.mxu0 0
  %11720 = vmatpush2.bf16.msra.mxu0 %v11633
  %11721 = vmatprep.mubr.bf16.mxu0 %v11487
  %11722 = vmatmul.mubr.bf16.gmra.mxu0 %v11486
  %v11723 = vpop.f32.mrf.mxu0
  %v11724 = vadd.f32 %v11495, %v11723
  %v11725 = vpop.f32.mrf.mxu0
  %v11726 = vpop.f32.mrf.mxu0
  %v11727 = vadd.f32 %v11495, %v11726
  %v11728 = vpop.f32.mrf.mxu0
  %11729 = vdwg.mxu0
  %11730 = vmatprep.subr.bf16.mxu0 0
  %11731 = vmatpush1.bf16.msra.mxu0 %v11648
  %11732 = vmatprep.subr.bf16.mxu0 0
  %11733 = vmatpush1.bf16.msra.mxu0 %v11647
  %11734 = vmatprep.subr.bf16.mxu0 0
  %11735 = vmatpush1.bf16.msra.mxu0 %v11646
  %11736 = vmatprep.subr.bf16.mxu0 0
  %11737 = vmatpush1.bf16.msra.mxu0 %v11645
  %11738 = vmatprep.subr.bf16.mxu0 0
  %11739 = vmatpush1.bf16.msra.mxu0 %v11644
  %11740 = vmatprep.subr.bf16.mxu0 0
  %11741 = vmatpush1.bf16.msra.mxu0 %v11643
  %11742 = vmatprep.subr.bf16.mxu0 0
  %11743 = vmatpush1.bf16.msra.mxu0 %v11642
  %11744 = vmatprep.subr.bf16.mxu0 0
  %11745 = vmatpush1.bf16.msra.mxu0 %v11641
  %11746 = vmatprep.subr.bf16.mxu0 0
  %11747 = vmatpush2.bf16.msra.mxu0 %v11656
  %11748 = vmatprep.subr.bf16.mxu0 0
  %11749 = vmatpush2.bf16.msra.mxu0 %v11655
  %11750 = vmatprep.subr.bf16.mxu0 0
  %11751 = vmatpush2.bf16.msra.mxu0 %v11654
  %11752 = vmatprep.subr.bf16.mxu0 0
  %11753 = vmatpush2.bf16.msra.mxu0 %v11653
  %11754 = vmatprep.subr.bf16.mxu0 0
  %11755 = vmatpush2.bf16.msra.mxu0 %v11652
  %11756 = vmatprep.subr.bf16.mxu0 0
  %11757 = vmatpush2.bf16.msra.mxu0 %v11651
  %11758 = vmatprep.subr.bf16.mxu0 0
  %11759 = vmatpush2.bf16.msra.mxu0 %v11650
  %11760 = vmatprep.subr.bf16.mxu0 0
  %11761 = vmatpush2.bf16.msra.mxu0 %v11649
  %11762 = vmatprep.mubr.bf16.mxu0 %v11489
  %11763 = vmatmul.mubr.bf16.gmra.mxu0 %v11488
  %v11764 = vpop.f32.mrf.mxu0
  %v11765 = vadd.f32 %v11724, %v11764
  %v11766 = vpop.f32.mrf.mxu0
  %v11767 = vpop.f32.mrf.mxu0
  %v11768 = vadd.f32 %v11727, %v11767
  %v11769 = vpop.f32.mrf.mxu0
  %11770 = vdwg.mxu0
  %v11771 = vmax.f32 %v11765, 0.0
  %v11772 = vmax.f32 %v11768, 0.0
  %v11773 = vld [vmem:[%s51] sm:$0xff]
  %v11774 = vld [vmem:[%s51 + $0x8] sm:$0xff]
  %v11775 = vld [vmem:[%s51 + $0x10] sm:$0xff]
  %v11776 = vld [vmem:[%s51 + $0x18] sm:$0xff]
  %v11777 = vld [vmem:[%s51 + $0x20] sm:$0xff]
  %v11778 = vld [vmem:[%s51 + $0x28] sm:$0xff]
  %v11779 = vld [vmem:[%s51 + $0x30] sm:$0xff]
  %v11780 = vld [vmem:[%s51 + $0x38] sm:$0xff]
  %v11781 = vld [vmem:[%s51 + $0x40] sm:$0xff]
  %v11782 = vld [vmem:[%s51 + $0x48] sm:$0xff]
  %v11783 = vld [vmem:[%s51 + $0x50] sm:$0xff]
  %v11784 = vld [vmem:[%s51 + $0x58] sm:$0xff]
  %v11785 = vld [vmem:[%s51 + $0x60] sm:$0xff]
  %v11786 = vld [vmem:[%s51 + $0x68] sm:$0xff]
  %v11787 = vld [vmem:[%s51 + $0x70] sm:$0xff]
  %v11788 = vld [vmem:[%s51 + $0x78] sm:$0xff]
  %v11789 = vld [vmem:[%s51 + $0x80] sm:$0xff]
  %v11790 = vld [vmem:[%s51 + $0x88] sm:$0xff]
  %v11791 = vld [vmem:[%s51 + $0x90] sm:$0xff]
  %v11792 = vld [vmem:[%s51 + $0x98] sm:$0xff]
  %v11793 = vld [vmem:[%s51 + $0xa0] sm:$0xff]
  %v11794 = vld [vmem:[%s51 + $0xa8] sm:$0xff]
  %v11795 = vld [vmem:[%s51 + $0xb0] sm:$0xff]
  %v11796 = vld [vmem:[%s51 + $0xb8] sm:$0xff]
  %v11797 = vld [vmem:[%s51 + $0xc0] sm:$0xff]
  %v11798 = vld [vmem:[%s51 + $0xc8] sm:$0xff]
  %v11799 = vld [vmem:[%s51 + $0xd0] sm:$0xff]
  %v11800 = vld [vmem:[%s51 + $0xd8] sm:$0xff]
  %v11801 = vld [vmem:[%s51 + $0xe0] sm:$0xff]
  %v11802 = vld [vmem:[%s51 + $0xe8] sm:$0xff]
  %v11803 = vld [vmem:[%s51 + $0xf0] sm:$0xff]
  %v11804 = vld [vmem:[%s51 + $0xf8] sm:$0xff]
  %v11805 = vpack.c.bf16 %v11772, %v11771
  %v11806 = vld [vmem:[%s53] sm:$0xf]
  %v11808 = vlaneseq
  %v11809 = vshrl.u32 %v11808, 7
  %v11810 = vsub.s32 0, %v11809
  %v11811 = vrot.slane %v11806, %v11810
  %v11812 = vlaneseq
  %v11813 = vshrl.u32 %v11812, 7
  %v11814 = vsub.s32 1, %v11813
  %v11815 = vrot.slane %v11806, %v11814
  %v11816 = vlaneseq
  %v11817 = vshrl.u32 %v11816, 7
  %v11818 = vsub.s32 2, %v11817
  %v11819 = vrot.slane %v11806, %v11818
  %v11820 = vlaneseq
  %v11821 = vshrl.u32 %v11820, 7
  %v11822 = vsub.s32 3, %v11821
  %v11823 = vrot.slane %v11806, %v11822
  %v11860 = vunpack.c.l.b16 %v11773
  %v11861 = vunpack.c.h.b16 %v11773
  %v11862 = vunpack.c.l.b16 %v11774
  %v11863 = vunpack.c.h.b16 %v11774
  %v11864 = vunpack.c.l.b16 %v11775
  %v11865 = vunpack.c.h.b16 %v11775
  %v11866 = vunpack.c.l.b16 %v11776
  %v11867 = vunpack.c.h.b16 %v11776
  %v11868 = vunpack.c.l.b16 %v11777
  %v11869 = vunpack.c.h.b16 %v11777
  %v11870 = vunpack.c.l.b16 %v11778
  %v11871 = vunpack.c.h.b16 %v11778
  %v11872 = vunpack.c.l.b16 %v11779
  %v11873 = vunpack.c.h.b16 %v11779
  %v11874 = vunpack.c.l.b16 %v11780
  %v11875 = vunpack.c.h.b16 %v11780
  %v11876 = vunpack.c.l.b16 %v11781
  %v11877 = vunpack.c.h.b16 %v11781
  %v11878 = vunpack.c.l.b16 %v11782
  %v11879 = vunpack.c.h.b16 %v11782
  %v11880 = vunpack.c.l.b16 %v11783
  %v11881 = vunpack.c.h.b16 %v11783
  %v11882 = vunpack.c.l.b16 %v11784
  %v11883 = vunpack.c.h.b16 %v11784
  %v11884 = vunpack.c.l.b16 %v11785
  %v11885 = vunpack.c.h.b16 %v11785
  %v11886 = vunpack.c.l.b16 %v11786
  %v11887 = vunpack.c.h.b16 %v11786
  %v11888 = vunpack.c.l.b16 %v11787
  %v11889 = vunpack.c.h.b16 %v11787
  %v11890 = vunpack.c.l.b16 %v11788
  %v11891 = vunpack.c.h.b16 %v11788
  %v11892 = vunpack.c.l.b16 %v11789
  %v11893 = vunpack.c.h.b16 %v11789
  %v11894 = vunpack.c.l.b16 %v11790
  %v11895 = vunpack.c.h.b16 %v11790
  %v11896 = vunpack.c.l.b16 %v11791
  %v11897 = vunpack.c.h.b16 %v11791
  %v11898 = vunpack.c.l.b16 %v11792
  %v11899 = vunpack.c.h.b16 %v11792
  %v11900 = vunpack.c.l.b16 %v11793
  %v11901 = vunpack.c.h.b16 %v11793
  %v11902 = vunpack.c.l.b16 %v11794
  %v11903 = vunpack.c.h.b16 %v11794
  %v11904 = vunpack.c.l.b16 %v11795
  %v11905 = vunpack.c.h.b16 %v11795
  %v11906 = vunpack.c.l.b16 %v11796
  %v11907 = vunpack.c.h.b16 %v11796
  %v11908 = vunpack.c.l.b16 %v11797
  %v11909 = vunpack.c.h.b16 %v11797
  %v11910 = vunpack.c.l.b16 %v11798
  %v11911 = vunpack.c.h.b16 %v11798
  %v11912 = vunpack.c.l.b16 %v11799
  %v11913 = vunpack.c.h.b16 %v11799
  %v11914 = vunpack.c.l.b16 %v11800
  %v11915 = vunpack.c.h.b16 %v11800
  %v11916 = vunpack.c.l.b16 %v11801
  %v11917 = vunpack.c.h.b16 %v11801
  %v11918 = vunpack.c.l.b16 %v11802
  %v11919 = vunpack.c.h.b16 %v11802
  %v11920 = vunpack.c.l.b16 %v11803
  %v11921 = vunpack.c.h.b16 %v11803
  %v11922 = vunpack.c.l.b16 %v11804
  %v11923 = vunpack.c.h.b16 %v11804
  %v11924 = vpack.c.b16 %v11864, %v11860
  %v11925 = vpack.c.b16 %v11865, %v11861
  %v11926 = vpack.c.b16 %v11866, %v11862
  %v11927 = vpack.c.b16 %v11867, %v11863
  %v11928 = vpack.c.b16 %v11872, %v11868
  %v11929 = vpack.c.b16 %v11873, %v11869
  %v11930 = vpack.c.b16 %v11874, %v11870
  %v11931 = vpack.c.b16 %v11875, %v11871
  %v11932 = vpack.c.b16 %v11880, %v11876
  %v11933 = vpack.c.b16 %v11881, %v11877
  %v11934 = vpack.c.b16 %v11882, %v11878
  %v11935 = vpack.c.b16 %v11883, %v11879
  %v11936 = vpack.c.b16 %v11888, %v11884
  %v11937 = vpack.c.b16 %v11889, %v11885
  %v11938 = vpack.c.b16 %v11890, %v11886
  %v11939 = vpack.c.b16 %v11891, %v11887
  %v11940 = vpack.c.b16 %v11896, %v11892
  %v11941 = vpack.c.b16 %v11897, %v11893
  %v11942 = vpack.c.b16 %v11898, %v11894
  %v11943 = vpack.c.b16 %v11899, %v11895
  %v11944 = vpack.c.b16 %v11904, %v11900
  %v11945 = vpack.c.b16 %v11905, %v11901
  %v11946 = vpack.c.b16 %v11906, %v11902
  %v11947 = vpack.c.b16 %v11907, %v11903
  %v11948 = vpack.c.b16 %v11912, %v11908
  %v11949 = vpack.c.b16 %v11913, %v11909
  %v11950 = vpack.c.b16 %v11914, %v11910
  %v11951 = vpack.c.b16 %v11915, %v11911
  %v11952 = vpack.c.b16 %v11920, %v11916
  %v11953 = vpack.c.b16 %v11921, %v11917
  %v11954 = vpack.c.b16 %v11922, %v11918
  %v11955 = vpack.c.b16 %v11923, %v11919
  %11988 = vmatprep.subr.bf16.mxu0 %v11953
  %11989 = vmatpush1.bf16.msra.mxu0 %v11952
  %11990 = vmatprep.subr.bf16.mxu0 %v11949
  %11991 = vmatpush1.bf16.msra.mxu0 %v11948
  %11992 = vmatprep.subr.bf16.mxu0 %v11945
  %11993 = vmatpush1.bf16.msra.mxu0 %v11944
  %11994 = vmatprep.subr.bf16.mxu0 %v11941
  %11995 = vmatpush1.bf16.msra.mxu0 %v11940
  %11996 = vmatprep.subr.bf16.mxu0 %v11937
  %11997 = vmatpush1.bf16.msra.mxu0 %v11936
  %11998 = vmatprep.subr.bf16.mxu0 %v11933
  %11999 = vmatpush1.bf16.msra.mxu0 %v11932
  %12000 = vmatprep.subr.bf16.mxu0 %v11929
  %12001 = vmatpush1.bf16.msra.mxu0 %v11928
  %12002 = vmatprep.subr.bf16.mxu0 %v11925
  %12003 = vmatpush1.bf16.msra.mxu0 %v11924
  %12004 = vmatprep.subr.bf16.mxu0 0
  %12005 = vmatpush2.bf16.msra.mxu0 0
  %12006 = vmatprep.subr.bf16.mxu0 0
  %12007 = vmatpush2.bf16.msra.mxu0 0
  %12008 = vmatprep.subr.bf16.mxu0 0
  %12009 = vmatpush2.bf16.msra.mxu0 0
  %12010 = vmatprep.subr.bf16.mxu0 0
  %12011 = vmatpush2.bf16.msra.mxu0 0
  %12012 = vmatprep.subr.bf16.mxu0 0
  %12013 = vmatpush2.bf16.msra.mxu0 0
  %12014 = vmatprep.subr.bf16.mxu0 0
  %12015 = vmatpush2.bf16.msra.mxu0 0
  %12016 = vmatprep.subr.bf16.mxu0 0
  %12017 = vmatpush2.bf16.msra.mxu0 0
  %12018 = vmatprep.subr.bf16.mxu0 0
  %12019 = vmatpush2.bf16.msra.mxu0 0
  %12020 = vmatprep.mubr.bf16.mxu0 0
  %12021 = vmatmul.mubr.bf16.gmra.mxu0 %v11805
  %v12022 = vpop.f32.mrf.mxu0
  %v12023 = vadd.f32 %v11811, %v12022
  %v12024 = vpop.f32.mrf.mxu0
  %v12025 = vadd.f32 %v11815, %v12024
  %v12026 = vpop.f32.mrf.mxu0
  %v12027 = vadd.f32 %v11811, %v12026
  %v12028 = vpop.f32.mrf.mxu0
  %v12029 = vadd.f32 %v11815, %v12028
  %12030 = vdwg.mxu0
  %12031 = vmatprep.subr.bf16.mxu0 %v11955
  %12032 = vmatpush1.bf16.msra.mxu0 %v11954
  %12033 = vmatprep.subr.bf16.mxu0 %v11951
  %12034 = vmatpush1.bf16.msra.mxu0 %v11950
  %12035 = vmatprep.subr.bf16.mxu0 %v11947
  %12036 = vmatpush1.bf16.msra.mxu0 %v11946
  %12037 = vmatprep.subr.bf16.mxu0 %v11943
  %12038 = vmatpush1.bf16.msra.mxu0 %v11942
  %12039 = vmatprep.subr.bf16.mxu0 %v11939
  %12040 = vmatpush1.bf16.msra.mxu0 %v11938
  %12041 = vmatprep.subr.bf16.mxu0 %v11935
  %12042 = vmatpush1.bf16.msra.mxu0 %v11934
  %12043 = vmatprep.subr.bf16.mxu0 %v11931
  %12044 = vmatpush1.bf16.msra.mxu0 %v11930
  %12045 = vmatprep.subr.bf16.mxu0 %v11927
  %12046 = vmatpush1.bf16.msra.mxu0 %v11926
  %12047 = vmatprep.subr.bf16.mxu0 0
  %12048 = vmatpush2.bf16.msra.mxu0 0
  %12049 = vmatprep.subr.bf16.mxu0 0
  %12050 = vmatpush2.bf16.msra.mxu0 0
  %12051 = vmatprep.subr.bf16.mxu0 0
  %12052 = vmatpush2.bf16.msra.mxu0 0
  %12053 = vmatprep.subr.bf16.mxu0 0
  %12054 = vmatpush2.bf16.msra.mxu0 0
  %12055 = vmatprep.subr.bf16.mxu0 0
  %12056 = vmatpush2.bf16.msra.mxu0 0
  %12057 = vmatprep.subr.bf16.mxu0 0
  %12058 = vmatpush2.bf16.msra.mxu0 0
  %12059 = vmatprep.subr.bf16.mxu0 0
  %12060 = vmatpush2.bf16.msra.mxu0 0
  %12061 = vmatprep.subr.bf16.mxu0 0
  %12062 = vmatpush2.bf16.msra.mxu0 0
  %12063 = vmatprep.mubr.bf16.mxu0 0
  %12064 = vmatmul.mubr.bf16.gmra.mxu0 %v11805
  %v12065 = vpop.f32.mrf.mxu0
  %v12066 = vadd.f32 %v11819, %v12065
  %v12067 = vpop.f32.mrf.mxu0
  %v12068 = vadd.f32 %v11823, %v12067
  %v12069 = vpop.f32.mrf.mxu0
  %v12070 = vadd.f32 %v11819, %v12069
  %v12071 = vpop.f32.mrf.mxu0
  %v12072 = vadd.f32 %v11823, %v12071
  %12073 = vdwg.mxu0
  %v12074 = vadd.f32 %v11414, %v12023
  %v12075 = vadd.f32 %v11415, %v12025
  %v12076 = vadd.f32 %v11416, %v12066
  %v12077 = vadd.f32 %v11417, %v12068
  %v12078 = vadd.f32 %v11418, %v12027
  %v12079 = vadd.f32 %v11419, %v12029
  %v12080 = vadd.f32 %v11420, %v12070
  %v12081 = vadd.f32 %v11421, %v12072
  %v12082 = vld [vmem:[%s55] sm:$0xf]
  %v12083 = vld [vmem:[%s57] sm:$0xf]
  %v12084 = vadd.f32 %v12074, %v12075
  %v12085 = vadd.f32 %v12084, %v12076
  %v12086 = vadd.f32 %v12085, %v12077
  %12087 = vadd.xlane.f32.xlu0 %v12086
  %v12088 = vpop.xlane.xlu0 %12087
  %v12089 = vadd.f32 %v12078, %v12079
  %v12090 = vadd.f32 %v12089, %v12080
  %v12091 = vadd.f32 %v12090, %v12081
  %12092 = vadd.xlane.f32.xlu0 %v12091
  %v12093 = vpop.xlane.xlu0 %12092
  %v12094 = vmul.f32 %v12088, %v6677
  %v12095 = vmul.f32 %v12093, %v6677
  %v12096 = vsub.f32 %v12074, %v12094
  %v12097 = vsub.f32 %v12075, %v12094
  %v12098 = vsub.f32 %v12076, %v12094
  %v12099 = vsub.f32 %v12077, %v12094
  %v12100 = vsub.f32 %v12078, %v12095
  %v12101 = vsub.f32 %v12079, %v12095
  %v12102 = vsub.f32 %v12080, %v12095
  %v12103 = vsub.f32 %v12081, %v12095
  %v12104 = vmul.f32 %v12096, %v12096
  %v12105 = vmul.f32 %v12097, %v12097
  %v12106 = vmul.f32 %v12098, %v12098
  %v12107 = vmul.f32 %v12099, %v12099
  %v12108 = vmul.f32 %v12100, %v12100
  %v12109 = vmul.f32 %v12101, %v12101
  %v12110 = vmul.f32 %v12102, %v12102
  %v12111 = vmul.f32 %v12103, %v12103
  %v12112 = vadd.f32 %v12104, %v12105
  %v12113 = vadd.f32 %v12112, %v12106
  %v12114 = vadd.f32 %v12113, %v12107
  %12115 = vadd.xlane.f32.xlu0 %v12114
  %v12116 = vpop.xlane.xlu0 %12115
  %v12117 = vadd.f32 %v12108, %v12109
  %v12118 = vadd.f32 %v12117, %v12110
  %v12119 = vadd.f32 %v12118, %v12111
  %12120 = vadd.xlane.f32.xlu0 %v12119
  %v12121 = vpop.xlane.xlu0 %12120
  %v12122 = vmul.f32 %v12116, %v6677
  %v12123 = vmul.f32 %v12121, %v6677
  %v12124 = vadd.f32 %v12122, 1e-05
  %v12125 = vadd.f32 %v12123, 1e-05
  %v12126 = vrsqrt.pop %v12124
  %v12127 = vrsqrt.pop %v12125
  %v12128 = vmul.f32 %v12096, %v12126
  %v12129 = vmul.f32 %v12097, %v12126
  %v12130 = vmul.f32 %v12098, %v12126
  %v12131 = vmul.f32 %v12099, %v12126
  %v12132 = vmul.f32 %v12100, %v12127
  %v12133 = vmul.f32 %v12101, %v12127
  %v12134 = vmul.f32 %v12102, %v12127
  %v12135 = vmul.f32 %v12103, %v12127
  %v12137 = vlaneseq
  %v12138 = vshrl.u32 %v12137, 7
  %v12139 = vsub.s32 0, %v12138
  %v12140 = vrot.slane %v12082, %v12139
  %v12141 = vlaneseq
  %v12142 = vshrl.u32 %v12141, 7
  %v12143 = vsub.s32 1, %v12142
  %v12144 = vrot.slane %v12082, %v12143
  %v12145 = vlaneseq
  %v12146 = vshrl.u32 %v12145, 7
  %v12147 = vsub.s32 2, %v12146
  %v12148 = vrot.slane %v12082, %v12147
  %v12149 = vlaneseq
  %v12150 = vshrl.u32 %v12149, 7
  %v12151 = vsub.s32 3, %v12150
  %v12152 = vrot.slane %v12082, %v12151
  %v12157 = vmul.f32 %v12128, %v12140
  %v12158 = vmul.f32 %v12129, %v12144
  %v12159 = vmul.f32 %v12130, %v12148
  %v12160 = vmul.f32 %v12131, %v12152
  %v12161 = vmul.f32 %v12132, %v12140
  %v12162 = vmul.f32 %v12133, %v12144
  %v12163 = vmul.f32 %v12134, %v12148
  %v12164 = vmul.f32 %v12135, %v12152
  %v12166 = vlaneseq
  %v12167 = vshrl.u32 %v12166, 7
  %v12168 = vsub.s32 0, %v12167
  %v12169 = vrot.slane %v12083, %v12168
  %v12170 = vlaneseq
  %v12171 = vshrl.u32 %v12170, 7
  %v12172 = vsub.s32 1, %v12171
  %v12173 = vrot.slane %v12083, %v12172
  %v12174 = vlaneseq
  %v12175 = vshrl.u32 %v12174, 7
  %v12176 = vsub.s32 2, %v12175
  %v12177 = vrot.slane %v12083, %v12176
  %v12178 = vlaneseq
  %v12179 = vshrl.u32 %v12178, 7
  %v12180 = vsub.s32 3, %v12179
  %v12181 = vrot.slane %v12083, %v12180
  %v12186 = vadd.f32 %v12157, %v12169
  %v12187 = vadd.f32 %v12158, %v12173
  %v12188 = vadd.f32 %v12159, %v12177
  %v12189 = vadd.f32 %v12160, %v12181
  %v12190 = vadd.f32 %v12161, %v12169
  %v12191 = vadd.f32 %v12162, %v12173
  %v12192 = vadd.f32 %v12163, %v12177
  %v12193 = vadd.f32 %v12164, %v12181
  %v12194 = vpack.c.bf16 %v12190, %v12186
  %v12195 = vpack.c.bf16 %v12191, %v12187
  %v12196 = vpack.c.bf16 %v12192, %v12188
  %v12197 = vpack.c.bf16 %v12193, %v12189
  %v12198 = vld [vmem:[%s59] sm:$0xff]
  %v12199 = vld [vmem:[%s59 + $0x8] sm:$0xf]
  %v12200 = vld [vmem:[%s59 + $0xc] sm:$0xff]
  %v12201 = vld [vmem:[%s59 + $0x14] sm:$0xf]
  %v12202 = vld [vmem:[%s59 + $0x18] sm:$0xff]
  %v12203 = vld [vmem:[%s59 + $0x20] sm:$0xf]
  %v12204 = vld [vmem:[%s59 + $0x24] sm:$0xff]
  %v12205 = vld [vmem:[%s59 + $0x2c] sm:$0xf]
  %v12206 = vld [vmem:[%s59 + $0x30] sm:$0xff]
  %v12207 = vld [vmem:[%s59 + $0x38] sm:$0xf]
  %v12208 = vld [vmem:[%s59 + $0x3c] sm:$0xff]
  %v12209 = vld [vmem:[%s59 + $0x44] sm:$0xf]
  %v12210 = vld [vmem:[%s59 + $0x48] sm:$0xff]
  %v12211 = vld [vmem:[%s59 + $0x50] sm:$0xf]
  %v12212 = vld [vmem:[%s59 + $0x54] sm:$0xff]
  %v12213 = vld [vmem:[%s59 + $0x5c] sm:$0xf]
  %v12214 = vld [vmem:[%s59 + $0x60] sm:$0xff]
  %v12215 = vld [vmem:[%s59 + $0x68] sm:$0xf]
  %v12216 = vld [vmem:[%s59 + $0x6c] sm:$0xff]
  %v12217 = vld [vmem:[%s59 + $0x74] sm:$0xf]
  %v12218 = vld [vmem:[%s59 + $0x78] sm:$0xff]
  %v12219 = vld [vmem:[%s59 + $0x80] sm:$0xf]
  %v12220 = vld [vmem:[%s59 + $0x84] sm:$0xff]
  %v12221 = vld [vmem:[%s59 + $0x8c] sm:$0xf]
  %v12222 = vld [vmem:[%s59 + $0x90] sm:$0xff]
  %v12223 = vld [vmem:[%s59 + $0x98] sm:$0xf]
  %v12224 = vld [vmem:[%s59 + $0x9c] sm:$0xff]
  %v12225 = vld [vmem:[%s59 + $0xa4] sm:$0xf]
  %v12226 = vld [vmem:[%s59 + $0xa8] sm:$0xff]
  %v12227 = vld [vmem:[%s59 + $0xb0] sm:$0xf]
  %v12228 = vld [vmem:[%s59 + $0xb4] sm:$0xff]
  %v12229 = vld [vmem:[%s59 + $0xbc] sm:$0xf]
  %v12230 = vld [vmem:[%s59 + $0xc0] sm:$0xff]
  %v12231 = vld [vmem:[%s59 + $0xc8] sm:$0xf]
  %v12232 = vld [vmem:[%s59 + $0xcc] sm:$0xff]
  %v12233 = vld [vmem:[%s59 + $0xd4] sm:$0xf]
  %v12234 = vld [vmem:[%s59 + $0xd8] sm:$0xff]
  %v12235 = vld [vmem:[%s59 + $0xe0] sm:$0xf]
  %v12236 = vld [vmem:[%s59 + $0xe4] sm:$0xff]
  %v12237 = vld [vmem:[%s59 + $0xec] sm:$0xf]
  %v12238 = vld [vmem:[%s59 + $0xf0] sm:$0xff]
  %v12239 = vld [vmem:[%s59 + $0xf8] sm:$0xf]
  %v12240 = vld [vmem:[%s59 + $0xfc] sm:$0xff]
  %v12241 = vld [vmem:[%s59 + $0x104] sm:$0xf]
  %v12242 = vld [vmem:[%s59 + $0x108] sm:$0xff]
  %v12243 = vld [vmem:[%s59 + $0x110] sm:$0xf]
  %v12244 = vld [vmem:[%s59 + $0x114] sm:$0xff]
  %v12245 = vld [vmem:[%s59 + $0x11c] sm:$0xf]
  %v12246 = vld [vmem:[%s59 + $0x120] sm:$0xff]
  %v12247 = vld [vmem:[%s59 + $0x128] sm:$0xf]
  %v12248 = vld [vmem:[%s59 + $0x12c] sm:$0xff]
  %v12249 = vld [vmem:[%s59 + $0x134] sm:$0xf]
  %v12250 = vld [vmem:[%s59 + $0x138] sm:$0xff]
  %v12251 = vld [vmem:[%s59 + $0x140] sm:$0xf]
  %v12252 = vld [vmem:[%s59 + $0x144] sm:$0xff]
  %v12253 = vld [vmem:[%s59 + $0x14c] sm:$0xf]
  %v12254 = vld [vmem:[%s59 + $0x150] sm:$0xff]
  %v12255 = vld [vmem:[%s59 + $0x158] sm:$0xf]
  %v12256 = vld [vmem:[%s59 + $0x15c] sm:$0xff]
  %v12257 = vld [vmem:[%s59 + $0x164] sm:$0xf]
  %v12258 = vld [vmem:[%s59 + $0x168] sm:$0xff]
  %v12259 = vld [vmem:[%s59 + $0x170] sm:$0xf]
  %v12260 = vld [vmem:[%s59 + $0x174] sm:$0xff]
  %v12261 = vld [vmem:[%s59 + $0x17c] sm:$0xf]
  %v12262 = vld [vmem:[%s59 + $0x180] sm:$0xff]
  %v12263 = vld [vmem:[%s59 + $0x188] sm:$0xf]
  %v12264 = vld [vmem:[%s59 + $0x18c] sm:$0xff]
  %v12265 = vld [vmem:[%s59 + $0x194] sm:$0xf]
  %v12266 = vld [vmem:[%s59 + $0x198] sm:$0xff]
  %v12267 = vld [vmem:[%s59 + $0x1a0] sm:$0xf]
  %v12268 = vld [vmem:[%s59 + $0x1a4] sm:$0xff]
  %v12269 = vld [vmem:[%s59 + $0x1ac] sm:$0xf]
  %v12270 = vld [vmem:[%s59 + $0x1b0] sm:$0xff]
  %v12271 = vld [vmem:[%s59 + $0x1b8] sm:$0xf]
  %v12272 = vld [vmem:[%s59 + $0x1bc] sm:$0xff]
  %v12273 = vld [vmem:[%s59 + $0x1c4] sm:$0xf]
  %v12274 = vld [vmem:[%s59 + $0x1c8] sm:$0xff]
  %v12275 = vld [vmem:[%s59 + $0x1d0] sm:$0xf]
  %v12276 = vld [vmem:[%s59 + $0x1d4] sm:$0xff]
  %v12277 = vld [vmem:[%s59 + $0x1dc] sm:$0xf]
  %v12278 = vld [vmem:[%s59 + $0x1e0] sm:$0xff]
  %v12279 = vld [vmem:[%s59 + $0x1e8] sm:$0xf]
  %v12280 = vld [vmem:[%s59 + $0x1ec] sm:$0xff]
  %v12281 = vld [vmem:[%s59 + $0x1f4] sm:$0xf]
  %v12282 = vld [vmem:[%s59 + $0x1f8] sm:$0xff]
  %v12283 = vld [vmem:[%s59 + $0x200] sm:$0xf]
  %v12284 = vld [vmem:[%s59 + $0x204] sm:$0xff]
  %v12285 = vld [vmem:[%s59 + $0x20c] sm:$0xf]
  %v12286 = vld [vmem:[%s59 + $0x210] sm:$0xff]
  %v12287 = vld [vmem:[%s59 + $0x218] sm:$0xf]
  %v12288 = vld [vmem:[%s59 + $0x21c] sm:$0xff]
  %v12289 = vld [vmem:[%s59 + $0x224] sm:$0xf]
  %v12290 = vld [vmem:[%s59 + $0x228] sm:$0xff]
  %v12291 = vld [vmem:[%s59 + $0x230] sm:$0xf]
  %v12292 = vld [vmem:[%s59 + $0x234] sm:$0xff]
  %v12293 = vld [vmem:[%s59 + $0x23c] sm:$0xf]
  %v12294 = vld [vmem:[%s59 + $0x240] sm:$0xff]
  %v12295 = vld [vmem:[%s59 + $0x248] sm:$0xf]
  %v12296 = vld [vmem:[%s59 + $0x24c] sm:$0xff]
  %v12297 = vld [vmem:[%s59 + $0x254] sm:$0xf]
  %v12298 = vld [vmem:[%s59 + $0x258] sm:$0xff]
  %v12299 = vld [vmem:[%s59 + $0x260] sm:$0xf]
  %v12300 = vld [vmem:[%s59 + $0x264] sm:$0xff]
  %v12301 = vld [vmem:[%s59 + $0x26c] sm:$0xf]
  %v12302 = vld [vmem:[%s59 + $0x270] sm:$0xff]
  %v12303 = vld [vmem:[%s59 + $0x278] sm:$0xf]
  %v12304 = vld [vmem:[%s59 + $0x27c] sm:$0xff]
  %v12305 = vld [vmem:[%s59 + $0x284] sm:$0xf]
  %v12306 = vld [vmem:[%s59 + $0x288] sm:$0xff]
  %v12307 = vld [vmem:[%s59 + $0x290] sm:$0xf]
  %v12308 = vld [vmem:[%s59 + $0x294] sm:$0xff]
  %v12309 = vld [vmem:[%s59 + $0x29c] sm:$0xf]
  %v12310 = vld [vmem:[%s59 + $0x2a0] sm:$0xff]
  %v12311 = vld [vmem:[%s59 + $0x2a8] sm:$0xf]
  %v12312 = vld [vmem:[%s59 + $0x2ac] sm:$0xff]
  %v12313 = vld [vmem:[%s59 + $0x2b4] sm:$0xf]
  %v12314 = vld [vmem:[%s59 + $0x2b8] sm:$0xff]
  %v12315 = vld [vmem:[%s59 + $0x2c0] sm:$0xf]
  %v12316 = vld [vmem:[%s59 + $0x2c4] sm:$0xff]
  %v12317 = vld [vmem:[%s59 + $0x2cc] sm:$0xf]
  %v12318 = vld [vmem:[%s59 + $0x2d0] sm:$0xff]
  %v12319 = vld [vmem:[%s59 + $0x2d8] sm:$0xf]
  %v12320 = vld [vmem:[%s59 + $0x2dc] sm:$0xff]
  %v12321 = vld [vmem:[%s59 + $0x2e4] sm:$0xf]
  %v12322 = vld [vmem:[%s59 + $0x2e8] sm:$0xff]
  %v12323 = vld [vmem:[%s59 + $0x2f0] sm:$0xf]
  %v12324 = vld [vmem:[%s59 + $0x2f4] sm:$0xff]
  %v12325 = vld [vmem:[%s59 + $0x2fc] sm:$0xf]
  %v12454 = vunpack.c.l.b16 %v12198
  %v12455 = vunpack.c.h.b16 %v12198
  %v12456 = vunpack.c.l.b16 %v12199
  %v12457 = vunpack.c.l.b16 %v12200
  %v12458 = vunpack.c.h.b16 %v12200
  %v12459 = vunpack.c.l.b16 %v12201
  %v12460 = vunpack.c.l.b16 %v12202
  %v12461 = vunpack.c.h.b16 %v12202
  %v12462 = vunpack.c.l.b16 %v12203
  %v12463 = vunpack.c.l.b16 %v12204
  %v12464 = vunpack.c.h.b16 %v12204
  %v12465 = vunpack.c.l.b16 %v12205
  %v12466 = vunpack.c.l.b16 %v12206
  %v12467 = vunpack.c.h.b16 %v12206
  %v12468 = vunpack.c.l.b16 %v12207
  %v12469 = vunpack.c.l.b16 %v12208
  %v12470 = vunpack.c.h.b16 %v12208
  %v12471 = vunpack.c.l.b16 %v12209
  %v12472 = vunpack.c.l.b16 %v12210
  %v12473 = vunpack.c.h.b16 %v12210
  %v12474 = vunpack.c.l.b16 %v12211
  %v12475 = vunpack.c.l.b16 %v12212
  %v12476 = vunpack.c.h.b16 %v12212
  %v12477 = vunpack.c.l.b16 %v12213
  %v12478 = vunpack.c.l.b16 %v12214
  %v12479 = vunpack.c.h.b16 %v12214
  %v12480 = vunpack.c.l.b16 %v12215
  %v12481 = vunpack.c.l.b16 %v12216
  %v12482 = vunpack.c.h.b16 %v12216
  %v12483 = vunpack.c.l.b16 %v12217
  %v12484 = vunpack.c.l.b16 %v12218
  %v12485 = vunpack.c.h.b16 %v12218
  %v12486 = vunpack.c.l.b16 %v12219
  %v12487 = vunpack.c.l.b16 %v12220
  %v12488 = vunpack.c.h.b16 %v12220
  %v12489 = vunpack.c.l.b16 %v12221
  %v12490 = vunpack.c.l.b16 %v12222
  %v12491 = vunpack.c.h.b16 %v12222
  %v12492 = vunpack.c.l.b16 %v12223
  %v12493 = vunpack.c.l.b16 %v12224
  %v12494 = vunpack.c.h.b16 %v12224
  %v12495 = vunpack.c.l.b16 %v12225
  %v12496 = vunpack.c.l.b16 %v12226
  %v12497 = vunpack.c.h.b16 %v12226
  %v12498 = vunpack.c.l.b16 %v12227
  %v12499 = vunpack.c.l.b16 %v12228
  %v12500 = vunpack.c.h.b16 %v12228
  %v12501 = vunpack.c.l.b16 %v12229
  %v12502 = vunpack.c.l.b16 %v12230
  %v12503 = vunpack.c.h.b16 %v12230
  %v12504 = vunpack.c.l.b16 %v12231
  %v12505 = vunpack.c.l.b16 %v12232
  %v12506 = vunpack.c.h.b16 %v12232
  %v12507 = vunpack.c.l.b16 %v12233
  %v12508 = vunpack.c.l.b16 %v12234
  %v12509 = vunpack.c.h.b16 %v12234
  %v12510 = vunpack.c.l.b16 %v12235
  %v12511 = vunpack.c.l.b16 %v12236
  %v12512 = vunpack.c.h.b16 %v12236
  %v12513 = vunpack.c.l.b16 %v12237
  %v12514 = vunpack.c.l.b16 %v12238
  %v12515 = vunpack.c.h.b16 %v12238
  %v12516 = vunpack.c.l.b16 %v12239
  %v12517 = vunpack.c.l.b16 %v12240
  %v12518 = vunpack.c.h.b16 %v12240
  %v12519 = vunpack.c.l.b16 %v12241
  %v12520 = vunpack.c.l.b16 %v12242
  %v12521 = vunpack.c.h.b16 %v12242
  %v12522 = vunpack.c.l.b16 %v12243
  %v12523 = vunpack.c.l.b16 %v12244
  %v12524 = vunpack.c.h.b16 %v12244
  %v12525 = vunpack.c.l.b16 %v12245
  %v12526 = vunpack.c.l.b16 %v12246
  %v12527 = vunpack.c.h.b16 %v12246
  %v12528 = vunpack.c.l.b16 %v12247
  %v12529 = vunpack.c.l.b16 %v12248
  %v12530 = vunpack.c.h.b16 %v12248
  %v12531 = vunpack.c.l.b16 %v12249
  %v12532 = vunpack.c.l.b16 %v12250
  %v12533 = vunpack.c.h.b16 %v12250
  %v12534 = vunpack.c.l.b16 %v12251
  %v12535 = vunpack.c.l.b16 %v12252
  %v12536 = vunpack.c.h.b16 %v12252
  %v12537 = vunpack.c.l.b16 %v12253
  %v12538 = vunpack.c.l.b16 %v12254
  %v12539 = vunpack.c.h.b16 %v12254
  %v12540 = vunpack.c.l.b16 %v12255
  %v12541 = vunpack.c.l.b16 %v12256
  %v12542 = vunpack.c.h.b16 %v12256
  %v12543 = vunpack.c.l.b16 %v12257
  %v12544 = vunpack.c.l.b16 %v12258
  %v12545 = vunpack.c.h.b16 %v12258
  %v12546 = vunpack.c.l.b16 %v12259
  %v12547 = vunpack.c.l.b16 %v12260
  %v12548 = vunpack.c.h.b16 %v12260
  %v12549 = vunpack.c.l.b16 %v12261
  %v12550 = vunpack.c.l.b16 %v12262
  %v12551 = vunpack.c.h.b16 %v12262
  %v12552 = vunpack.c.l.b16 %v12263
  %v12553 = vunpack.c.l.b16 %v12264
  %v12554 = vunpack.c.h.b16 %v12264
  %v12555 = vunpack.c.l.b16 %v12265
  %v12556 = vunpack.c.l.b16 %v12266
  %v12557 = vunpack.c.h.b16 %v12266
  %v12558 = vunpack.c.l.b16 %v12267
  %v12559 = vunpack.c.l.b16 %v12268
  %v12560 = vunpack.c.h.b16 %v12268
  %v12561 = vunpack.c.l.b16 %v12269
  %v12562 = vunpack.c.l.b16 %v12270
  %v12563 = vunpack.c.h.b16 %v12270
  %v12564 = vunpack.c.l.b16 %v12271
  %v12565 = vunpack.c.l.b16 %v12272
  %v12566 = vunpack.c.h.b16 %v12272
  %v12567 = vunpack.c.l.b16 %v12273
  %v12568 = vunpack.c.l.b16 %v12274
  %v12569 = vunpack.c.h.b16 %v12274
  %v12570 = vunpack.c.l.b16 %v12275
  %v12571 = vunpack.c.l.b16 %v12276
  %v12572 = vunpack.c.h.b16 %v12276
  %v12573 = vunpack.c.l.b16 %v12277
  %v12574 = vunpack.c.l.b16 %v12278
  %v12575 = vunpack.c.h.b16 %v12278
  %v12576 = vunpack.c.l.b16 %v12279
  %v12577 = vunpack.c.l.b16 %v12280
  %v12578 = vunpack.c.h.b16 %v12280
  %v12579 = vunpack.c.l.b16 %v12281
  %v12580 = vunpack.c.l.b16 %v12282
  %v12581 = vunpack.c.h.b16 %v12282
  %v12582 = vunpack.c.l.b16 %v12283
  %v12583 = vunpack.c.l.b16 %v12284
  %v12584 = vunpack.c.h.b16 %v12284
  %v12585 = vunpack.c.l.b16 %v12285
  %v12586 = vunpack.c.l.b16 %v12286
  %v12587 = vunpack.c.h.b16 %v12286
  %v12588 = vunpack.c.l.b16 %v12287
  %v12589 = vunpack.c.l.b16 %v12288
  %v12590 = vunpack.c.h.b16 %v12288
  %v12591 = vunpack.c.l.b16 %v12289
  %v12592 = vunpack.c.l.b16 %v12290
  %v12593 = vunpack.c.h.b16 %v12290
  %v12594 = vunpack.c.l.b16 %v12291
  %v12595 = vunpack.c.l.b16 %v12292
  %v12596 = vunpack.c.h.b16 %v12292
  %v12597 = vunpack.c.l.b16 %v12293
  %v12598 = vunpack.c.l.b16 %v12294
  %v12599 = vunpack.c.h.b16 %v12294
  %v12600 = vunpack.c.l.b16 %v12295
  %v12601 = vunpack.c.l.b16 %v12296
  %v12602 = vunpack.c.h.b16 %v12296
  %v12603 = vunpack.c.l.b16 %v12297
  %v12604 = vunpack.c.l.b16 %v12298
  %v12605 = vunpack.c.h.b16 %v12298
  %v12606 = vunpack.c.l.b16 %v12299
  %v12607 = vunpack.c.l.b16 %v12300
  %v12608 = vunpack.c.h.b16 %v12300
  %v12609 = vunpack.c.l.b16 %v12301
  %v12610 = vunpack.c.l.b16 %v12302
  %v12611 = vunpack.c.h.b16 %v12302
  %v12612 = vunpack.c.l.b16 %v12303
  %v12613 = vunpack.c.l.b16 %v12304
  %v12614 = vunpack.c.h.b16 %v12304
  %v12615 = vunpack.c.l.b16 %v12305
  %v12616 = vunpack.c.l.b16 %v12306
  %v12617 = vunpack.c.h.b16 %v12306
  %v12618 = vunpack.c.l.b16 %v12307
  %v12619 = vunpack.c.l.b16 %v12308
  %v12620 = vunpack.c.h.b16 %v12308
  %v12621 = vunpack.c.l.b16 %v12309
  %v12622 = vunpack.c.l.b16 %v12310
  %v12623 = vunpack.c.h.b16 %v12310
  %v12624 = vunpack.c.l.b16 %v12311
  %v12625 = vunpack.c.l.b16 %v12312
  %v12626 = vunpack.c.h.b16 %v12312
  %v12627 = vunpack.c.l.b16 %v12313
  %v12628 = vunpack.c.l.b16 %v12314
  %v12629 = vunpack.c.h.b16 %v12314
  %v12630 = vunpack.c.l.b16 %v12315
  %v12631 = vunpack.c.l.b16 %v12316
  %v12632 = vunpack.c.h.b16 %v12316
  %v12633 = vunpack.c.l.b16 %v12317
  %v12634 = vunpack.c.l.b16 %v12318
  %v12635 = vunpack.c.h.b16 %v12318
  %v12636 = vunpack.c.l.b16 %v12319
  %v12637 = vunpack.c.l.b16 %v12320
  %v12638 = vunpack.c.h.b16 %v12320
  %v12639 = vunpack.c.l.b16 %v12321
  %v12640 = vunpack.c.l.b16 %v12322
  %v12641 = vunpack.c.h.b16 %v12322
  %v12642 = vunpack.c.l.b16 %v12323
  %v12643 = vunpack.c.l.b16 %v12324
  %v12644 = vunpack.c.h.b16 %v12324
  %v12645 = vunpack.c.l.b16 %v12325
  %v12646 = vpack.c.b16 %v12457, %v12454
  %v12647 = vpack.c.b16 %v12458, %v12455
  %v12648 = vpack.c.b16 %v12459, %v12456
  %v12649 = vpack.c.b16 %v12463, %v12460
  %v12650 = vpack.c.b16 %v12464, %v12461
  %v12651 = vpack.c.b16 %v12465, %v12462
  %v12652 = vpack.c.b16 %v12469, %v12466
  %v12653 = vpack.c.b16 %v12470, %v12467
  %v12654 = vpack.c.b16 %v12471, %v12468
  %v12655 = vpack.c.b16 %v12475, %v12472
  %v12656 = vpack.c.b16 %v12476, %v12473
  %v12657 = vpack.c.b16 %v12477, %v12474
  %v12658 = vpack.c.b16 %v12481, %v12478
  %v12659 = vpack.c.b16 %v12482, %v12479
  %v12660 = vpack.c.b16 %v12483, %v12480
  %v12661 = vpack.c.b16 %v12487, %v12484
  %v12662 = vpack.c.b16 %v12488, %v12485
  %v12663 = vpack.c.b16 %v12489, %v12486
  %v12664 = vpack.c.b16 %v12493, %v12490
  %v12665 = vpack.c.b16 %v12494, %v12491
  %v12666 = vpack.c.b16 %v12495, %v12492
  %v12667 = vpack.c.b16 %v12499, %v12496
  %v12668 = vpack.c.b16 %v12500, %v12497
  %v12669 = vpack.c.b16 %v12501, %v12498
  %v12670 = vpack.c.b16 %v12505, %v12502
  %v12671 = vpack.c.b16 %v12506, %v12503
  %v12672 = vpack.c.b16 %v12507, %v12504
  %v12673 = vpack.c.b16 %v12511, %v12508
  %v12674 = vpack.c.b16 %v12512, %v12509
  %v12675 = vpack.c.b16 %v12513, %v12510
  %v12676 = vpack.c.b16 %v12517, %v12514
  %v12677 = vpack.c.b16 %v12518, %v12515
  %v12678 = vpack.c.b16 %v12519, %v12516
  %v12679 = vpack.c.b16 %v12523, %v12520
  %v12680 = vpack.c.b16 %v12524, %v12521
  %v12681 = vpack.c.b16 %v12525, %v12522
  %v12682 = vpack.c.b16 %v12529, %v12526
  %v12683 = vpack.c.b16 %v12530, %v12527
  %v12684 = vpack.c.b16 %v12531, %v12528
  %v12685 = vpack.c.b16 %v12535, %v12532
  %v12686 = vpack.c.b16 %v12536, %v12533
  %v12687 = vpack.c.b16 %v12537, %v12534
  %v12688 = vpack.c.b16 %v12541, %v12538
  %v12689 = vpack.c.b16 %v12542, %v12539
  %v12690 = vpack.c.b16 %v12543, %v12540
  %v12691 = vpack.c.b16 %v12547, %v12544
  %v12692 = vpack.c.b16 %v12548, %v12545
  %v12693 = vpack.c.b16 %v12549, %v12546
  %v12694 = vpack.c.b16 %v12553, %v12550
  %v12695 = vpack.c.b16 %v12554, %v12551
  %v12696 = vpack.c.b16 %v12555, %v12552
  %v12697 = vpack.c.b16 %v12559, %v12556
  %v12698 = vpack.c.b16 %v12560, %v12557
  %v12699 = vpack.c.b16 %v12561, %v12558
  %v12700 = vpack.c.b16 %v12565, %v12562
  %v12701 = vpack.c.b16 %v12566, %v12563
  %v12702 = vpack.c.b16 %v12567, %v12564
  %v12703 = vpack.c.b16 %v12571, %v12568
  %v12704 = vpack.c.b16 %v12572, %v12569
  %v12705 = vpack.c.b16 %v12573, %v12570
  %v12706 = vpack.c.b16 %v12577, %v12574
  %v12707 = vpack.c.b16 %v12578, %v12575
  %v12708 = vpack.c.b16 %v12579, %v12576
  %v12709 = vpack.c.b16 %v12583, %v12580
  %v12710 = vpack.c.b16 %v12584, %v12581
  %v12711 = vpack.c.b16 %v12585, %v12582
  %v12712 = vpack.c.b16 %v12589, %v12586
  %v12713 = vpack.c.b16 %v12590, %v12587
  %v12714 = vpack.c.b16 %v12591, %v12588
  %v12715 = vpack.c.b16 %v12595, %v12592
  %v12716 = vpack.c.b16 %v12596, %v12593
  %v12717 = vpack.c.b16 %v12597, %v12594
  %v12718 = vpack.c.b16 %v12601, %v12598
  %v12719 = vpack.c.b16 %v12602, %v12599
  %v12720 = vpack.c.b16 %v12603, %v12600
  %v12721 = vpack.c.b16 %v12607, %v12604
  %v12722 = vpack.c.b16 %v12608, %v12605
  %v12723 = vpack.c.b16 %v12609, %v12606
  %v12724 = vpack.c.b16 %v12613, %v12610
  %v12725 = vpack.c.b16 %v12614, %v12611
  %v12726 = vpack.c.b16 %v12615, %v12612
  %v12727 = vpack.c.b16 %v12619, %v12616
  %v12728 = vpack.c.b16 %v12620, %v12617
  %v12729 = vpack.c.b16 %v12621, %v12618
  %v12730 = vpack.c.b16 %v12625, %v12622
  %v12731 = vpack.c.b16 %v12626, %v12623
  %v12732 = vpack.c.b16 %v12627, %v12624
  %v12733 = vpack.c.b16 %v12631, %v12628
  %v12734 = vpack.c.b16 %v12632, %v12629
  %v12735 = vpack.c.b16 %v12633, %v12630
  %v12736 = vpack.c.b16 %v12637, %v12634
  %v12737 = vpack.c.b16 %v12638, %v12635
  %v12738 = vpack.c.b16 %v12639, %v12636
  %v12739 = vpack.c.b16 %v12643, %v12640
  %v12740 = vpack.c.b16 %v12644, %v12641
  %v12741 = vpack.c.b16 %v12645, %v12642
  %12838 = vmatprep.subr.bf16.mxu0 %v12668
  %12839 = vmatpush1.bf16.msra.mxu0 %v12667
  %12840 = vmatprep.subr.bf16.mxu0 %v12665
  %12841 = vmatpush1.bf16.msra.mxu0 %v12664
  %12842 = vmatprep.subr.bf16.mxu0 %v12662
  %12843 = vmatpush1.bf16.msra.mxu0 %v12661
  %12844 = vmatprep.subr.bf16.mxu0 %v12659
  %12845 = vmatpush1.bf16.msra.mxu0 %v12658
  %12846 = vmatprep.subr.bf16.mxu0 %v12656
  %12847 = vmatpush1.bf16.msra.mxu0 %v12655
  %12848 = vmatprep.subr.bf16.mxu0 %v12653
  %12849 = vmatpush1.bf16.msra.mxu0 %v12652
  %12850 = vmatprep.subr.bf16.mxu0 %v12650
  %12851 = vmatpush1.bf16.msra.mxu0 %v12649
  %12852 = vmatprep.subr.bf16.mxu0 %v12647
  %12853 = vmatpush1.bf16.msra.mxu0 %v12646
  %12854 = vmatprep.subr.bf16.mxu0 %v12692
  %12855 = vmatpush2.bf16.msra.mxu0 %v12691
  %12856 = vmatprep.subr.bf16.mxu0 %v12689
  %12857 = vmatpush2.bf16.msra.mxu0 %v12688
  %12858 = vmatprep.subr.bf16.mxu0 %v12686
  %12859 = vmatpush2.bf16.msra.mxu0 %v12685
  %12860 = vmatprep.subr.bf16.mxu0 %v12683
  %12861 = vmatpush2.bf16.msra.mxu0 %v12682
  %12862 = vmatprep.subr.bf16.mxu0 %v12680
  %12863 = vmatpush2.bf16.msra.mxu0 %v12679
  %12864 = vmatprep.subr.bf16.mxu0 %v12677
  %12865 = vmatpush2.bf16.msra.mxu0 %v12676
  %12866 = vmatprep.subr.bf16.mxu0 %v12674
  %12867 = vmatpush2.bf16.msra.mxu0 %v12673
  %12868 = vmatprep.subr.bf16.mxu0 %v12671
  %12869 = vmatpush2.bf16.msra.mxu0 %v12670
  %12870 = vmatprep.mubr.bf16.mxu0 %v12195
  %12871 = vmatmul.mubr.bf16.gmra.mxu0 %v12194
  %v12872 = vpop.f32.mrf.mxu0
  %v12873 = vadd.f32 0.0, %v12872
  %v12874 = vpop.f32.mrf.mxu0
  %v12875 = vadd.f32 0.0, %v12874
  %v12876 = vpop.f32.mrf.mxu0
  %v12877 = vadd.f32 0.0, %v12876
  %v12878 = vpop.f32.mrf.mxu0
  %v12879 = vadd.f32 0.0, %v12878
  %12880 = vdwg.mxu0
  %12881 = vmatprep.subr.bf16.mxu0 %v12716
  %12882 = vmatpush1.bf16.msra.mxu0 %v12715
  %12883 = vmatprep.subr.bf16.mxu0 %v12713
  %12884 = vmatpush1.bf16.msra.mxu0 %v12712
  %12885 = vmatprep.subr.bf16.mxu0 %v12710
  %12886 = vmatpush1.bf16.msra.mxu0 %v12709
  %12887 = vmatprep.subr.bf16.mxu0 %v12707
  %12888 = vmatpush1.bf16.msra.mxu0 %v12706
  %12889 = vmatprep.subr.bf16.mxu0 %v12704
  %12890 = vmatpush1.bf16.msra.mxu0 %v12703
  %12891 = vmatprep.subr.bf16.mxu0 %v12701
  %12892 = vmatpush1.bf16.msra.mxu0 %v12700
  %12893 = vmatprep.subr.bf16.mxu0 %v12698
  %12894 = vmatpush1.bf16.msra.mxu0 %v12697
  %12895 = vmatprep.subr.bf16.mxu0 %v12695
  %12896 = vmatpush1.bf16.msra.mxu0 %v12694
  %12897 = vmatprep.subr.bf16.mxu0 %v12740
  %12898 = vmatpush2.bf16.msra.mxu0 %v12739
  %12899 = vmatprep.subr.bf16.mxu0 %v12737
  %12900 = vmatpush2.bf16.msra.mxu0 %v12736
  %12901 = vmatprep.subr.bf16.mxu0 %v12734
  %12902 = vmatpush2.bf16.msra.mxu0 %v12733
  %12903 = vmatprep.subr.bf16.mxu0 %v12731
  %12904 = vmatpush2.bf16.msra.mxu0 %v12730
  %12905 = vmatprep.subr.bf16.mxu0 %v12728
  %12906 = vmatpush2.bf16.msra.mxu0 %v12727
  %12907 = vmatprep.subr.bf16.mxu0 %v12725
  %12908 = vmatpush2.bf16.msra.mxu0 %v12724
  %12909 = vmatprep.subr.bf16.mxu0 %v12722
  %12910 = vmatpush2.bf16.msra.mxu0 %v12721
  %12911 = vmatprep.subr.bf16.mxu0 %v12719
  %12912 = vmatpush2.bf16.msra.mxu0 %v12718
  %12913 = vmatprep.mubr.bf16.mxu0 %v12197
  %12914 = vmatmul.mubr.bf16.gmra.mxu0 %v12196
  %v12915 = vpop.f32.mrf.mxu0
  %v12916 = vadd.f32 %v12873, %v12915
  %v12917 = vpop.f32.mrf.mxu0
  %v12918 = vadd.f32 %v12875, %v12917
  %v12919 = vpop.f32.mrf.mxu0
  %v12920 = vadd.f32 %v12877, %v12919
  %v12921 = vpop.f32.mrf.mxu0
  %v12922 = vadd.f32 %v12879, %v12921
  %12923 = vdwg.mxu0
  %12924 = vmatprep.subr.bf16.mxu0 0
  %12925 = vmatpush1.bf16.msra.mxu0 %v12669
  %12926 = vmatprep.subr.bf16.mxu0 0
  %12927 = vmatpush1.bf16.msra.mxu0 %v12666
  %12928 = vmatprep.subr.bf16.mxu0 0
  %12929 = vmatpush1.bf16.msra.mxu0 %v12663
  %12930 = vmatprep.subr.bf16.mxu0 0
  %12931 = vmatpush1.bf16.msra.mxu0 %v12660
  %12932 = vmatprep.subr.bf16.mxu0 0
  %12933 = vmatpush1.bf16.msra.mxu0 %v12657
  %12934 = vmatprep.subr.bf16.mxu0 0
  %12935 = vmatpush1.bf16.msra.mxu0 %v12654
  %12936 = vmatprep.subr.bf16.mxu0 0
  %12937 = vmatpush1.bf16.msra.mxu0 %v12651
  %12938 = vmatprep.subr.bf16.mxu0 0
  %12939 = vmatpush1.bf16.msra.mxu0 %v12648
  %12940 = vmatprep.subr.bf16.mxu0 0
  %12941 = vmatpush2.bf16.msra.mxu0 %v12693
  %12942 = vmatprep.subr.bf16.mxu0 0
  %12943 = vmatpush2.bf16.msra.mxu0 %v12690
  %12944 = vmatprep.subr.bf16.mxu0 0
  %12945 = vmatpush2.bf16.msra.mxu0 %v12687
  %12946 = vmatprep.subr.bf16.mxu0 0
  %12947 = vmatpush2.bf16.msra.mxu0 %v12684
  %12948 = vmatprep.subr.bf16.mxu0 0
  %12949 = vmatpush2.bf16.msra.mxu0 %v12681
  %12950 = vmatprep.subr.bf16.mxu0 0
  %12951 = vmatpush2.bf16.msra.mxu0 %v12678
  %12952 = vmatprep.subr.bf16.mxu0 0
  %12953 = vmatpush2.bf16.msra.mxu0 %v12675
  %12954 = vmatprep.subr.bf16.mxu0 0
  %12955 = vmatpush2.bf16.msra.mxu0 %v12672
  %12956 = vmatprep.mubr.bf16.mxu0 %v12195
  %12957 = vmatmul.mubr.bf16.gmra.mxu0 %v12194
  %v12958 = vpop.f32.mrf.mxu0
  %v12959 = vadd.f32 0.0, %v12958
  %v12960 = vpop.f32.mrf.mxu0
  %v12961 = vpop.f32.mrf.mxu0
  %v12962 = vadd.f32 0.0, %v12961
  %v12963 = vpop.f32.mrf.mxu0
  %12964 = vdwg.mxu0
  %12965 = vmatprep.subr.bf16.mxu0 0
  %12966 = vmatpush1.bf16.msra.mxu0 %v12717
  %12967 = vmatprep.subr.bf16.mxu0 0
  %12968 = vmatpush1.bf16.msra.mxu0 %v12714
  %12969 = vmatprep.subr.bf16.mxu0 0
  %12970 = vmatpush1.bf16.msra.mxu0 %v12711
  %12971 = vmatprep.subr.bf16.mxu0 0
  %12972 = vmatpush1.bf16.msra.mxu0 %v12708
  %12973 = vmatprep.subr.bf16.mxu0 0
  %12974 = vmatpush1.bf16.msra.mxu0 %v12705
  %12975 = vmatprep.subr.bf16.mxu0 0
  %12976 = vmatpush1.bf16.msra.mxu0 %v12702
  %12977 = vmatprep.subr.bf16.mxu0 0
  %12978 = vmatpush1.bf16.msra.mxu0 %v12699
  %12979 = vmatprep.subr.bf16.mxu0 0
  %12980 = vmatpush1.bf16.msra.mxu0 %v12696
  %12981 = vmatprep.subr.bf16.mxu0 0
  %12982 = vmatpush2.bf16.msra.mxu0 %v12741
  %12983 = vmatprep.subr.bf16.mxu0 0
  %12984 = vmatpush2.bf16.msra.mxu0 %v12738
  %12985 = vmatprep.subr.bf16.mxu0 0
  %12986 = vmatpush2.bf16.msra.mxu0 %v12735
  %12987 = vmatprep.subr.bf16.mxu0 0
  %12988 = vmatpush2.bf16.msra.mxu0 %v12732
  %12989 = vmatprep.subr.bf16.mxu0 0
  %12990 = vmatpush2.bf16.msra.mxu0 %v12729
  %12991 = vmatprep.subr.bf16.mxu0 0
  %12992 = vmatpush2.bf16.msra.mxu0 %v12726
  %12993 = vmatprep.subr.bf16.mxu0 0
  %12994 = vmatpush2.bf16.msra.mxu0 %v12723
  %12995 = vmatprep.subr.bf16.mxu0 0
  %12996 = vmatpush2.bf16.msra.mxu0 %v12720
  %12997 = vmatprep.mubr.bf16.mxu0 %v12197
  %12998 = vmatmul.mubr.bf16.gmra.mxu0 %v12196
  %v12999 = vpop.f32.mrf.mxu0
  %v13000 = vadd.f32 %v12959, %v12999
  %v13001 = vpop.f32.mrf.mxu0
  %v13002 = vpop.f32.mrf.mxu0
  %v13003 = vadd.f32 %v12962, %v13002
  %v13004 = vpop.f32.mrf.mxu0
  %13005 = vdwg.mxu0
  %v13006 = vld [vmem:[%s11] sm:$0xff]
  %v13007 = vld [vmem:[%s11 + $0x8] sm:$0xff]
  %13009 = vset.pattern.permute.xlu0 0
  %13010 = vperm.xlu0 %13009, %v13006
  %v13011 = vpop.permute.xlu0 %13010
  %13014 = vset.pattern.permute.xlu0 0
  %13015 = vperm.xlu0 %13014, %v13007
  %v13016 = vpop.permute.xlu0 %13015
  %v13018 = vmul.f32 %v12916, %v13011
  %v13019 = vmul.f32 %v12920, %v13016
  %v13020 = vadd.f32 %v13018, 0.0
  %v13021 = vadd.f32 %v13019, 0.0
  %13022 = vset.pattern.permute.xlu0 1
  %13023 = vperm.xlu0 %13022, %v13006
  %v13024 = vpop.permute.xlu0 %13023
  %13026 = vset.pattern.permute.xlu0 1
  %13027 = vperm.xlu0 %13026, %v13007
  %v13028 = vpop.permute.xlu0 %13027
  %v13030 = vmul.f32 %v12916, %v13024
  %v13031 = vmul.f32 %v12920, %v13028
  %13034 = vrot.lane.b32.xlu0 %v13030, 64
  %v13035 = vpop.permute.xlu0 %13034
  %13036 = vrot.lane.b32.xlu0 %v13031, 64
  %v13037 = vpop.permute.xlu0 %13036
  %v13040 = vadd.f32 %v13020, %v13035
  %v13041 = vadd.f32 %v13021, %v13037
  %13042 = vset.pattern.permute.xlu0 2
  %13043 = vperm.xlu0 %13042, %v13006
  %v13044 = vpop.permute.xlu0 %13043
  %13046 = vset.pattern.permute.xlu0 2
  %13047 = vperm.xlu0 %13046, %v13007
  %v13048 = vpop.permute.xlu0 %13047
  %v13050 = vmul.f32 %v12918, %v13044
  %v13051 = vmul.f32 %v12922, %v13048
  %v13052 = vadd.f32 %v13040, %v13050
  %v13053 = vadd.f32 %v13041, %v13051
  %13054 = vset.pattern.permute.xlu0 3
  %13055 = vperm.xlu0 %13054, %v13006
  %v13056 = vpop.permute.xlu0 %13055
  %13058 = vset.pattern.permute.xlu0 3
  %13059 = vperm.xlu0 %13058, %v13007
  %v13060 = vpop.permute.xlu0 %13059
  %v13062 = vmul.f32 %v12918, %v13056
  %v13063 = vmul.f32 %v12922, %v13060
  %13066 = vrot.lane.b32.xlu0 %v13062, 64
  %v13067 = vpop.permute.xlu0 %13066
  %13068 = vrot.lane.b32.xlu0 %v13063, 64
  %v13069 = vpop.permute.xlu0 %13068
  %v13072 = vadd.f32 %v13052, %v13067
  %v13073 = vadd.f32 %v13053, %v13069
  %13074 = vset.pattern.permute.xlu0 4
  %13075 = vperm.xlu0 %13074, %v13006
  %v13076 = vpop.permute.xlu0 %13075
  %13078 = vset.pattern.permute.xlu0 4
  %13079 = vperm.xlu0 %13078, %v13007
  %v13080 = vpop.permute.xlu0 %13079
  %v13082 = vmul.f32 %v13000, %v13076
  %v13083 = vmul.f32 %v13003, %v13080
  %v13084 = vadd.f32 %v13072, %v13082
  %v13085 = vadd.f32 %v13073, %v13083
  %v13086 = vld [vmem:[%s13] sm:$0x3]
  %v13087 = vld [vmem:[%s61] sm:$0x1]
  %v13089 = vlaneseq
  %v13090 = vshrl.u32 %v13089, 7
  %v13091 = vsub.s32 0, %v13090
  %v13092 = vrot.slane %v13087, %v13091
  %v13095 = vsel %vm2438, %v13086, 0
  %13097 = vmatprep.subr.mxu0 0.0
  %13098 = vmatpush1.msra.mxu0 0.0
  %13099 = vmatprep.subr.mxu0 0.0
  %13100 = vmatpush1.msra.mxu0 0.0
  %13101 = vmatprep.subr.mxu0 0.0
  %13102 = vmatpush1.msra.mxu0 0.0
  %13103 = vmatprep.subr.mxu0 0.0
  %13104 = vmatpush1.msra.mxu0 0.0
  %13105 = vmatprep.subr.mxu0 0.0
  %13106 = vmatpush1.msra.mxu0 0.0
  %13107 = vmatprep.subr.mxu0 0.0
  %13108 = vmatpush1.msra.mxu0 0.0
  %13109 = vmatprep.subr.mxu0 0.0
  %13110 = vmatpush1.msra.mxu0 0.0
  %13111 = vmatprep.subr.mxu0 0.0
  %13112 = vmatpush1.msra.mxu0 0.0
  %13113 = vmatprep.subr.mxu0 0.0
  %13114 = vmatpush1.msra.mxu0 0.0
  %13115 = vmatprep.subr.mxu0 0.0
  %13116 = vmatpush1.msra.mxu0 0.0
  %13117 = vmatprep.subr.mxu0 0.0
  %13118 = vmatpush1.msra.mxu0 0.0
  %13119 = vmatprep.subr.mxu0 0.0
  %13120 = vmatpush1.msra.mxu0 0.0
  %13121 = vmatprep.subr.mxu0 0.0
  %13122 = vmatpush1.msra.mxu0 0.0
  %13123 = vmatprep.subr.mxu0 0.0
  %13124 = vmatpush1.msra.mxu0 0.0
  %13125 = vmatprep.subr.mxu0 0.0
  %13126 = vmatpush1.msra.mxu0 %v13085
  %13127 = vmatprep.subr.mxu0 0.0
  %13128 = vmatpush1.msra.mxu0 %v13084
  %13129 = vmatprep.subr.mxu0 0.0
  %13130 = vmatpush2.msra.mxu0 0.0
  %13131 = vmatprep.subr.mxu0 0.0
  %13132 = vmatpush2.msra.mxu0 0.0
  %13133 = vmatprep.subr.mxu0 0.0
  %13134 = vmatpush2.msra.mxu0 0.0
  %13135 = vmatprep.subr.mxu0 0.0
  %13136 = vmatpush2.msra.mxu0 0.0
  %13137 = vmatprep.subr.mxu0 0.0
  %13138 = vmatpush2.msra.mxu0 0.0
  %13139 = vmatprep.subr.mxu0 0.0
  %13140 = vmatpush2.msra.mxu0 0.0
  %13141 = vmatprep.subr.mxu0 0.0
  %13142 = vmatpush2.msra.mxu0 0.0
  %13143 = vmatprep.subr.mxu0 0.0
  %13144 = vmatpush2.msra.mxu0 0.0
  %13145 = vmatprep.subr.mxu0 0.0
  %13146 = vmatpush2.msra.mxu0 0.0
  %13147 = vmatprep.subr.mxu0 0.0
  %13148 = vmatpush2.msra.mxu0 0.0
  %13149 = vmatprep.subr.mxu0 0.0
  %13150 = vmatpush2.msra.mxu0 0.0
  %13151 = vmatprep.subr.mxu0 0.0
  %13152 = vmatpush2.msra.mxu0 0.0
  %13153 = vmatprep.subr.mxu0 0.0
  %13154 = vmatpush2.msra.mxu0 0.0
  %13155 = vmatprep.subr.mxu0 0.0
  %13156 = vmatpush2.msra.mxu0 0.0
  %13157 = vmatprep.subr.mxu0 0.0
  %13158 = vmatpush2.msra.mxu0 0.0
  %13159 = vmatprep.subr.mxu0 0.0
  %13160 = vmatpush2.msra.mxu0 0.0
  %13161 = vmatprep.mubr.f32.mxu0 0.0
  %13162 = vmatmul.mubr.f32.gmra.mxu0 %v13095
  %v13163 = vpop.f32.mrf.mxu0
  %v13164 = vadd.f32 %v13092, %v13163
  %v13165 = vpop.f32.mrf.mxu0
  %13166 = vdwg.mxu0
  %v13167 = vmax.f32 %v13164, 0.0
  %v13168 = vld [vmem:[%s63] sm:$0x1]
  %v13170 = vlaneseq
  %v13171 = vshrl.u32 %v13170, 7
  %v13172 = vsub.s32 0, %v13171
  %v13173 = vrot.slane %v13168, %v13172
  %v13175 = vmul.f32 %v13167, %v13173
  %vm13176 = vcmask 517120
  %v13177 = vsel %vm13176, %v13175, 0.0
  %13178 = vadd.xlane.f32.xlu0 %v13177
  %v13179 = vpop.xlane.xlu0 %13178
  %v13180 = vld [vmem:[#allocation2] sm:$0x1]
  %v13182 = vlaneseq
  %v13183 = vshrl.u32 %v13182, 7
  %v13184 = vsub.s32 0, %v13183
  %v13185 = vrot.slane %v13180, %v13184
  %v13187 = vadd.f32 %v13179, %v13185
  %vm13188 = vcmask 1024
  %13189 = vst.msk [vmem:[%s67] sm:$0x3] %vm13188, %v13187
  // Predicated region
  $region134: #{simple_tft_forward.1} parent=0 // pred_check
    _
  $region135: #{simple_tft_forward.1} parent=0 // pred_check_branch
    %13191 = sbr.rel (0) target = $region137
  $region136: #{simple_tft_forward.1} parent=0 // pred_region
    _
  $region137: #{simple_tft_forward.1} parent=0 // pred_fallthru
    _
  // Predicated region
  $region138: #{simple_tft_forward.1} parent=0 // pred_check
    _
  $region139: #{simple_tft_forward.1} parent=0 // pred_check_branch
    %13193 = sbr.rel (0) target = $region141
  $region140: #{simple_tft_forward.1} parent=0 // pred_region
    _
  $region141: #{simple_tft_forward.1} parent=0 // pred_fallthru
    _

</llo_original>
